<compile_context>
chip_gen: v6e
topology: v6e:2x2x1
jax: 0.10.0
libtpu: 0.0.40
codegen_flags: <defaults>
</compile_context>

<pallas_src>
import functools

import jax
import jax.numpy as jnp
from jax import lax
from jax.experimental import pallas as pl
from jax.experimental.pallas import tpu as pltpu

BN_EPS = 0.8
LEAKY_SLOPE = 0.2
HIDDEN = (128, 256, 512, 1024)


def _round_up(n, m):
    return ((n + m - 1) // m) * m


def _make_kernel(offs, widths, batch):
    """Build the fused forward kernel.

    offs/widths: static slice positions into the packed (1, total) vector
    laid out as [b1 | g2 be2 | g3 be3 | g4 be4 | b5_padded].
    """
    inv_b = 1.0 / float(batch)

    def kernel(z_ref, w1_ref, w2_ref, vec_ref, w3_hbm, w4_hbm, w5_hbm,
               out_ref, w3_buf, w4_buf, w5_buf, sem):
        def vslice(i):
            o, n = offs[i], widths[i]
            return vec_ref[:, o:o + n]          # (1, n) f32, static 128-aligned

        def leaky_bf16(x):
            # LeakyReLU in f32, result emitted directly in bf16 for the next
            # matmul (no separate cast pass over the activation).
            return jnp.where(x > 0, x, LEAKY_SLOPE * x).astype(jnp.bfloat16)

        def mm(h, w_ref):
            # bf16 x bf16 MXU matmul, f32 accumulation.
            return jnp.dot(h.astype(jnp.bfloat16), w_ref[...],
                           preferred_element_type=jnp.float32)

        def bn_leaky(x, g, be):
            # Training-mode BN folded into a per-feature affine.
            # One-pass moments: var = E[x^2] - mean^2 (f32 accum, eps=0.8 ->
            # the reduced numerical stability is irrelevant here).
            mean = jnp.sum(x, axis=0, keepdims=True) * inv_b
            ex2 = jnp.sum(x * x, axis=0, keepdims=True) * inv_b
            var = ex2 - mean * mean
            scale = g * lax.rsqrt(var + BN_EPS)   # rsqrt -> EUP slot
            shift = be - mean * scale
            return leaky_bf16(x * scale + shift)

        # Manual weight prefetch (overlaps HBM DMA with earlier layers).
        cp3 = pltpu.make_async_copy(w3_hbm, w3_buf, sem.at[0])
        cp4 = pltpu.make_async_copy(w4_hbm, w4_buf, sem.at[1])
        cp5 = pltpu.make_async_copy(w5_hbm, w5_buf, sem.at[2])
        cp3.start()

        # Block 1: Linear -> LeakyReLU (no BN).
        h = leaky_bf16(mm(z_ref[...], w1_ref) + vslice(0))
        cp4.start()

        # Block 2: Linear -> BN(train) -> LeakyReLU.
        # (Linear bias is exactly cancelled by the BN mean subtraction, so it
        #  is dropped from the kernel.)
        h = bn_leaky(mm(h, w2_ref), vslice(1), vslice(2))
        cp5.start()

        # Block 3.
        cp3.wait()
        h = bn_leaky(mm(h, w3_buf), vslice(3), vslice(4))

        # Block 4.
        cp4.wait()
        h = bn_leaky(mm(h, w4_buf), vslice(5), vslice(6))

        # Output layer: Linear -> Tanh (lane-dense padded store).
        cp5.wait()
        out_ref[...] = jnp.tanh(mm(h, w5_buf) + vslice(7))

    return kernel


def pack_generator_params(params):
    """PyTorch-layout f32 params -> (bf16 weights tuple, packed f32 vector).

    * w1 rows (latent dim) zero-padded to a multiple of 128 (aligned K).
    * w5/b5 columns zero-padded to a multiple of 128 (lane-dense output).
    * b2/b3/b4 are dropped: they are exactly cancelled by training-mode BN.
    Packed vector layout (all offsets multiples of 128):
      [b1 | g2 be2 | g3 be3 | g4 be4 | b5_padded]
    """
    (w1, b1,
     w2, _b2, g2, be2,
     w3, _b3, g3, be3,
     w4, _b4, g4, be4,
     w5, b5) = params

    latent = w1.shape[0]
    latent_pad = _round_up(latent, 128)
    if latent_pad != latent:
        w1 = jnp.pad(w1, ((0, latent_pad - latent), (0, 0)))

    out_dim = w5.shape[1]
    out_pad = _round_up(out_dim, 128)
    if out_pad != out_dim:
        w5 = jnp.pad(w5, ((0, 0), (0, out_pad - out_dim)))
        b5 = jnp.pad(b5, ((0, 0), (0, out_pad - out_dim)))

    weights = tuple(w.astype(jnp.bfloat16) for w in (w1, w2, w3, w4, w5))
    vec = jnp.concatenate(
        [b1, g2, be2, g3, be3, g4, be4, b5], axis=1).astype(jnp.float32)
    return weights, vec


def _vmem_limit_bytes(batch, latent_pad, hdims, out_pad):
    f32, bf16 = 4, 2
    h1, h2, h3, h4 = hdims
    # Auto-DMA'd inputs / output (x2 for possible double buffering).
    io = batch * latent_pad * f32                       # z
    io += latent_pad * h1 * bf16                        # w1
    io += h1 * h2 * bf16                                # w2
    io += (h1 + 2 * h2 + 2 * h3 + 2 * h4 + out_pad) * f32  # packed vec
    io += batch * out_pad * f32                         # output
    io *= 2
    # Manually managed weight buffers (single-buffered scratch).
    scratch = (h2 * h3 + h3 * h4 + h4 * out_pad) * bf16
    # f32 intermediates + bf16 activation copies (generous live-range factor).
    act = 2 * batch * (h1 + h2 + h3 + h4 + out_pad) * (f32 + bf16)
    need = io + scratch + act + (4 << 20)               # + 4 MiB headroom
    return int(min(max(need, 12 << 20), 32 << 20))


def generator_forward(z, weights, vec, out_dim):
    """z: (B, latent) f32. weights: 5 bf16 (in,out) matrices (w1 row-padded,
    w5 column-padded). vec: packed (1, total) f32 biases/BN params.
    Returns (B, out_dim) f32."""
    w1, w2, w3, w4, w5 = weights
    B = z.shape[0]
    latent_pad = w1.shape[0]
    out_pad = w5.shape[1]
    h1, h2, h3, h4 = w1.shape[1], w2.shape[1], w3.shape[1], w4.shape[1]

    # Lane-dense, MXU-aligned K for the first matmul.
    if z.shape[1] != latent_pad:
        z = jnp.pad(z, ((0, 0), (0, latent_pad - z.shape[1])))

    widths = (h1, h2, h2, h3, h3, h4, h4, out_pad)
    offs, acc = [], 0
    for wd in widths:
        offs.append(acc)
        acc += wd
    assert acc == vec.shape[1], "packed parameter vector has wrong width"

    vmem_spec = pl.BlockSpec(memory_space=pltpu.MemorySpace.VMEM)
    any_spec = pl.BlockSpec(memory_space=pl.ANY)

    flops = 2 * B * (latent_pad * h1 + h1 * h2 + h2 * h3 + h3 * h4
                     + h4 * out_pad)
    transcendentals = B * out_pad + (h2 + h3 + h4)       # tanh + rsqrt
    bytes_accessed = (z.size * 4 + vec.size * 4 + B * out_pad * 4
                      + sum(w.size * 2 for w in weights))

    out_padded = pl.pallas_call(
        _make_kernel(tuple(offs), widths, B),
        out_shape=jax.ShapeDtypeStruct((B, out_pad), jnp.float32),
        in_specs=[vmem_spec, vmem_spec, vmem_spec, vmem_spec,
                  any_spec, any_spec, any_spec],
        out_specs=vmem_spec,
        scratch_shapes=[
            pltpu.VMEM(w3.shape, jnp.bfloat16),
            pltpu.VMEM(w4.shape, jnp.bfloat16),
            pltpu.VMEM(w5.shape, jnp.bfloat16),
            pltpu.SemaphoreType.DMA((3,)),
        ],
        compiler_params=pltpu.CompilerParams(
            vmem_limit_bytes=_vmem_limit_bytes(
                B, latent_pad, (h1, h2, h3, h4), out_pad)),
        cost_estimate=pl.CostEstimate(flops=flops,
                                      transcendentals=transcendentals,
                                      bytes_accessed=bytes_accessed),
    )(z, w1, w2, vec, w3, w4, w5)
    return out_padded[:, :out_dim]


def init_generator_params(key, latent_dim, output_shape):
    """Deterministic synthetic parameters (shapes match the PyTorch module)."""
    dims = [latent_dim, *HIDDEN, output_shape]
    keys = jax.random.split(key, 2 * (len(dims) - 1))
    params = []
    for i in range(len(dims) - 1):
        fan_in, fan_out = dims[i], dims[i + 1]
        w = jax.random.normal(keys[2 * i], (fan_in, fan_out), jnp.float32) * (
            1.0 / jnp.sqrt(fan_in))
        b = jax.random.normal(keys[2 * i + 1], (1, fan_out), jnp.float32) * 0.01
        params.append(w)
        params.append(b)
        if 1 <= i <= 3:  # BN gamma/beta for the normalize=True blocks
            params.append(jnp.ones((1, fan_out), jnp.float32))   # gamma
            params.append(jnp.zeros((1, fan_out), jnp.float32))  # beta
    return tuple(params)


def _leaky(x):
    return jnp.where(x > 0, x, LEAKY_SLOPE * x)


def _bn_train(x, g, be):
    m = x.mean(0, keepdims=True)
    v = jnp.mean((x - m) ** 2, axis=0, keepdims=True)
    return (x - m) * lax.rsqrt(v + BN_EPS) * g + be


def _reference_forward_bf16(z, params):
    """Pure-JAX reference mirroring the kernel numerics (bf16 matmul inputs,
    f32 accumulation, f32 training-mode BN, biases kept explicitly)."""
    (w1, b1, w2, b2, g2, be2, w3, b3, g3, be3, w4, b4, g4, be4, w5, b5) = params

    def mm(h, w):
        return jnp.dot(h.astype(jnp.bfloat16), w.astype(jnp.bfloat16),
                       preferred_element_type=jnp.float32)

    h = _leaky(mm(z, w1) + b1)
    h = _leaky(_bn_train(mm(h, w2) + b2, g2, be2))
    h = _leaky(_bn_train(mm(h, w3) + b3, g3, be3))
    h = _leaky(_bn_train(mm(h, w4) + b4, g4, be4))
    return jnp.tanh(mm(h, w5) + b5)


def _reference_forward_f32(z, params):
    """PyTorch-faithful pure-f32 forward (HIGHEST matmul precision) to bound
    the bf16 weight/activation quantization error of the kernel."""
    (w1, b1, w2, b2, g2, be2, w3, b3, g3, be3, w4, b4, g4, be4, w5, b5) = params

    def mm(h, w):
        return jnp.dot(h, w, precision=lax.Precision.HIGHEST)

    h = _leaky(mm(z, w1) + b1)
    h = _leaky(_bn_train(mm(h, w2) + b2, g2, be2))
    h = _leaky(_bn_train(mm(h, w3) + b3, g3, be3))
    h = _leaky(_bn_train(mm(h, w4) + b4, g4, be4))
    return jnp.tanh(mm(h, w5) + b5)


if __name__ == "__main__":
    B = 128            # whole batch in one tile; training-mode BN needs it anyway
    LATENT_DIM = 32
    OUTPUT_SHAPE = 256  # e.g. flattened 16x16 image (multiple of 128 -> lane-dense)

    key = jax.random.PRNGKey(0)
    kz, kp = jax.random.split(key)
    z = jax.random.normal(kz, (B, LATENT_DIM), jnp.float32)
    params = init_generator_params(kp, LATENT_DIM, OUTPUT_SHAPE)
    weights, vec = pack_generator_params(params)

    fwd = jax.jit(functools.partial(generator_forward, out_dim=OUTPUT_SHAPE))
    img = jax.block_until_ready(fwd(z, weights, vec))

    assert img.shape == (B, OUTPUT_SHAPE)
    # Tight check vs. a reference mirroring the kernel's bf16/f32 numerics.
    ref_bf16 = _reference_forward_bf16(z, params)
    assert jnp.allclose(img, ref_bf16, rtol=1e-2, atol=1e-2), \
        "mismatch vs bf16-mirroring reference"
    # Loose check vs. the pure-f32 PyTorch-faithful forward, bounding the
    # bf16 quantization deviation on the tanh output.
    ref_f32 = _reference_forward_f32(z, params)
    assert jnp.allclose(img, ref_f32, rtol=0.0, atol=1e-1), \
        "bf16 quantization deviation exceeds bound vs f32 reference"

    print("KERNEL_OK")
</pallas_src>

<mosaic_0001>
module attributes {stable_mosaic.version = 11 : i64} {
  func.func @kernel(%arg0: memref<128x128xf32, #tpu.memory_space<vmem>>, %arg1: memref<128x128xbf16, #tpu.memory_space<vmem>>, %arg2: memref<128x256xbf16, #tpu.memory_space<vmem>>, %arg3: memref<1x3968xf32, #tpu.memory_space<vmem>>, %arg4: memref<256x512xbf16, #tpu.memory_space<any>>, %arg5: memref<512x1024xbf16, #tpu.memory_space<any>>, %arg6: memref<1024x256xbf16, #tpu.memory_space<any>>, %arg7: memref<128x256xf32, #tpu.memory_space<vmem>>, %arg8: memref<256x512xbf16, #tpu.memory_space<vmem>>, %arg9: memref<512x1024xbf16, #tpu.memory_space<vmem>>, %arg10: memref<1024x256xbf16, #tpu.memory_space<vmem>>, %arg11: memref<3x!tpu.dma_semaphore, #tpu.memory_space<semaphore_mem>>) attributes {dimension_semantics = [], scalar_prefetch = 0 : i64, scratch_operands = 4 : i64, tpu.core_type = #tpu.core_type<tc>} {
    %c0_i32 = arith.constant 0 : i32
    %0 = tpu.memref_slice %arg11[%c0_i32] : memref<3x!tpu.dma_semaphore, #tpu.memory_space<semaphore_mem>> -> memref<1x!tpu.dma_semaphore, #tpu.memory_space<semaphore_mem>>
    %1 = tpu.memref_squeeze %0 : memref<1x!tpu.dma_semaphore, #tpu.memory_space<semaphore_mem>> -> memref<!tpu.dma_semaphore, #tpu.memory_space<semaphore_mem>>
    tpu.enqueue_dma source(%arg4 : memref<256x512xbf16, #tpu.memory_space<any>>) target(%arg8 : memref<256x512xbf16, #tpu.memory_space<vmem>>) target_semaphore(%1 : memref<!tpu.dma_semaphore, #tpu.memory_space<semaphore_mem>>)
    %c0 = arith.constant 0 : index
    %c0_0 = arith.constant 0 : index
    %2 = vector.load %arg0[%c0, %c0_0] : memref<128x128xf32, #tpu.memory_space<vmem>>, vector<128x128xf32>
    %3 = arith.truncf %2 : vector<128x128xf32> to vector<128x128xbf16>
    %c0_1 = arith.constant 0 : index
    %c0_2 = arith.constant 0 : index
    %4 = vector.load %arg1[%c0_1, %c0_2] : memref<128x128xbf16, #tpu.memory_space<vmem>>, vector<128x128xbf16>
    %cst = arith.constant dense<0.000000e+00> : vector<128x128xf32>
    %5 = tpu.matmul %3, %4, %cst {dimension_numbers = #tpu.dot_dimension_numbers<[1], [0], [0], [1], [0, 0, 1, 1], [], []>} : vector<128x128xbf16>, vector<128x128xbf16>, vector<128x128xf32> -> vector<128x128xf32>
    %c0_3 = arith.constant 0 : index
    %c0_4 = arith.constant 0 : index
    %6 = vector.load %arg3[%c0_3, %c0_4] : memref<1x3968xf32, #tpu.memory_space<vmem>>, vector<1x128xf32>
    %7 = vector.broadcast %6 : vector<1x128xf32> to vector<128x128xf32>
    %8 = arith.addf %5, %7 : vector<128x128xf32>
    %cst_5 = arith.constant 0.000000e+00 : f32
    %9 = vector.broadcast %cst_5 : f32 to vector<128x128xf32>
    %10 = arith.cmpf ogt, %8, %9 : vector<128x128xf32>
    %cst_6 = arith.constant 2.000000e-01 : f32
    %11 = vector.broadcast %cst_6 : f32 to vector<128x128xf32>
    %12 = arith.mulf %11, %8 : vector<128x128xf32>
    %13 = arith.select %10, %8, %12 : vector<128x128xi1>, vector<128x128xf32>
    %14 = arith.truncf %13 : vector<128x128xf32> to vector<128x128xbf16>
    %c1_i32 = arith.constant 1 : i32
    %15 = tpu.memref_slice %arg11[%c1_i32] : memref<3x!tpu.dma_semaphore, #tpu.memory_space<semaphore_mem>> -> memref<1x!tpu.dma_semaphore, #tpu.memory_space<semaphore_mem>>
    %16 = tpu.memref_squeeze %15 : memref<1x!tpu.dma_semaphore, #tpu.memory_space<semaphore_mem>> -> memref<!tpu.dma_semaphore, #tpu.memory_space<semaphore_mem>>
    tpu.enqueue_dma source(%arg5 : memref<512x1024xbf16, #tpu.memory_space<any>>) target(%arg9 : memref<512x1024xbf16, #tpu.memory_space<vmem>>) target_semaphore(%16 : memref<!tpu.dma_semaphore, #tpu.memory_space<semaphore_mem>>)
    %c0_7 = arith.constant 0 : index
    %c0_8 = arith.constant 0 : index
    %17 = vector.load %arg2[%c0_7, %c0_8] : memref<128x256xbf16, #tpu.memory_space<vmem>>, vector<128x256xbf16>
    %cst_9 = arith.constant dense<0.000000e+00> : vector<128x256xf32>
    %18 = tpu.matmul %14, %17, %cst_9 {dimension_numbers = #tpu.dot_dimension_numbers<[1], [0], [0], [1], [0, 0, 1, 1], [], []>} : vector<128x128xbf16>, vector<128x256xbf16>, vector<128x256xf32> -> vector<128x256xf32>
    %c0_10 = arith.constant 0 : index
    %c128 = arith.constant 128 : index
    %19 = vector.load %arg3[%c0_10, %c128] : memref<1x3968xf32, #tpu.memory_space<vmem>>, vector<1x256xf32>
    %c0_11 = arith.constant 0 : index
    %c384 = arith.constant 384 : index
    %20 = vector.load %arg3[%c0_11, %c384] : memref<1x3968xf32, #tpu.memory_space<vmem>>, vector<1x256xf32>
    %cst_12 = arith.constant dense<0.000000e+00> : vector<256xf32>
    %21 = vector.multi_reduction <add>, %18, %cst_12 [0] : vector<128x256xf32> to vector<256xf32>
    %22 = vector.shape_cast %21 : vector<256xf32> to vector<1x256xf32>
    %cst_13 = arith.constant 7.812500e-03 : f32
    %23 = vector.broadcast %cst_13 : f32 to vector<1x256xf32>
    %24 = arith.mulf %22, %23 : vector<1x256xf32>
    %25 = arith.mulf %18, %18 : vector<128x256xf32>
    %cst_14 = arith.constant dense<0.000000e+00> : vector<256xf32>
    %26 = vector.multi_reduction <add>, %25, %cst_14 [0] : vector<128x256xf32> to vector<256xf32>
    %27 = vector.shape_cast %26 : vector<256xf32> to vector<1x256xf32>
    %cst_15 = arith.constant 7.812500e-03 : f32
    %28 = vector.broadcast %cst_15 : f32 to vector<1x256xf32>
    %29 = arith.mulf %27, %28 : vector<1x256xf32>
    %30 = arith.mulf %24, %24 : vector<1x256xf32>
    %31 = arith.subf %29, %30 : vector<1x256xf32>
    %cst_16 = arith.constant 8.000000e-01 : f32
    %32 = vector.broadcast %cst_16 : f32 to vector<1x256xf32>
    %33 = arith.addf %31, %32 : vector<1x256xf32>
    %34 = math.rsqrt %33 : vector<1x256xf32>
    %35 = arith.mulf %19, %34 : vector<1x256xf32>
    %36 = arith.mulf %24, %35 : vector<1x256xf32>
    %37 = arith.subf %20, %36 : vector<1x256xf32>
    %38 = vector.broadcast %35 : vector<1x256xf32> to vector<128x256xf32>
    %39 = arith.mulf %18, %38 : vector<128x256xf32>
    %40 = vector.broadcast %37 : vector<1x256xf32> to vector<128x256xf32>
    %41 = arith.addf %39, %40 : vector<128x256xf32>
    %cst_17 = arith.constant 0.000000e+00 : f32
    %42 = vector.broadcast %cst_17 : f32 to vector<128x256xf32>
    %43 = arith.cmpf ogt, %41, %42 : vector<128x256xf32>
    %cst_18 = arith.constant 2.000000e-01 : f32
    %44 = vector.broadcast %cst_18 : f32 to vector<128x256xf32>
    %45 = arith.mulf %44, %41 : vector<128x256xf32>
    %46 = arith.select %43, %41, %45 : vector<128x256xi1>, vector<128x256xf32>
    %47 = arith.truncf %46 : vector<128x256xf32> to vector<128x256xbf16>
    %c2_i32 = arith.constant 2 : i32
    %48 = tpu.memref_slice %arg11[%c2_i32] : memref<3x!tpu.dma_semaphore, #tpu.memory_space<semaphore_mem>> -> memref<1x!tpu.dma_semaphore, #tpu.memory_space<semaphore_mem>>
    %49 = tpu.memref_squeeze %48 : memref<1x!tpu.dma_semaphore, #tpu.memory_space<semaphore_mem>> -> memref<!tpu.dma_semaphore, #tpu.memory_space<semaphore_mem>>
    tpu.enqueue_dma source(%arg6 : memref<1024x256xbf16, #tpu.memory_space<any>>) target(%arg10 : memref<1024x256xbf16, #tpu.memory_space<vmem>>) target_semaphore(%49 : memref<!tpu.dma_semaphore, #tpu.memory_space<semaphore_mem>>)
    %c0_i32_19 = arith.constant 0 : i32
    %50 = tpu.memref_slice %arg11[%c0_i32_19] : memref<3x!tpu.dma_semaphore, #tpu.memory_space<semaphore_mem>> -> memref<1x!tpu.dma_semaphore, #tpu.memory_space<semaphore_mem>>
    %51 = tpu.memref_squeeze %50 : memref<1x!tpu.dma_semaphore, #tpu.memory_space<semaphore_mem>> -> memref<!tpu.dma_semaphore, #tpu.memory_space<semaphore_mem>>
    tpu.wait_dma2 semaphore(%51 : memref<!tpu.dma_semaphore, #tpu.memory_space<semaphore_mem>>) src(%arg4 : memref<256x512xbf16, #tpu.memory_space<any>>) dst(%arg8 : memref<256x512xbf16, #tpu.memory_space<vmem>>)
    %c0_20 = arith.constant 0 : index
    %c0_21 = arith.constant 0 : index
    %52 = vector.load %arg8[%c0_20, %c0_21] : memref<256x512xbf16, #tpu.memory_space<vmem>>, vector<256x512xbf16>
    %cst_22 = arith.constant dense<0.000000e+00> : vector<128x512xf32>
    %53 = tpu.matmul %47, %52, %cst_22 {dimension_numbers = #tpu.dot_dimension_numbers<[1], [0], [0], [1], [0, 0, 1, 1], [], []>} : vector<128x256xbf16>, vector<256x512xbf16>, vector<128x512xf32> -> vector<128x512xf32>
    %c0_23 = arith.constant 0 : index
    %c640 = arith.constant 640 : index
    %54 = vector.load %arg3[%c0_23, %c640] : memref<1x3968xf32, #tpu.memory_space<vmem>>, vector<1x512xf32>
    %c0_24 = arith.constant 0 : index
    %c1152 = arith.constant 1152 : index
    %55 = vector.load %arg3[%c0_24, %c1152] : memref<1x3968xf32, #tpu.memory_space<vmem>>, vector<1x512xf32>
    %cst_25 = arith.constant dense<0.000000e+00> : vector<512xf32>
    %56 = vector.multi_reduction <add>, %53, %cst_25 [0] : vector<128x512xf32> to vector<512xf32>
    %57 = vector.shape_cast %56 : vector<512xf32> to vector<1x512xf32>
    %cst_26 = arith.constant 7.812500e-03 : f32
    %58 = vector.broadcast %cst_26 : f32 to vector<1x512xf32>
    %59 = arith.mulf %57, %58 : vector<1x512xf32>
    %60 = arith.mulf %53, %53 : vector<128x512xf32>
    %cst_27 = arith.constant dense<0.000000e+00> : vector<512xf32>
    %61 = vector.multi_reduction <add>, %60, %cst_27 [0] : vector<128x512xf32> to vector<512xf32>
    %62 = vector.shape_cast %61 : vector<512xf32> to vector<1x512xf32>
    %cst_28 = arith.constant 7.812500e-03 : f32
    %63 = vector.broadcast %cst_28 : f32 to vector<1x512xf32>
    %64 = arith.mulf %62, %63 : vector<1x512xf32>
    %65 = arith.mulf %59, %59 : vector<1x512xf32>
    %66 = arith.subf %64, %65 : vector<1x512xf32>
    %cst_29 = arith.constant 8.000000e-01 : f32
    %67 = vector.broadcast %cst_29 : f32 to vector<1x512xf32>
    %68 = arith.addf %66, %67 : vector<1x512xf32>
    %69 = math.rsqrt %68 : vector<1x512xf32>
    %70 = arith.mulf %54, %69 : vector<1x512xf32>
    %71 = arith.mulf %59, %70 : vector<1x512xf32>
    %72 = arith.subf %55, %71 : vector<1x512xf32>
    %73 = vector.broadcast %70 : vector<1x512xf32> to vector<128x512xf32>
    %74 = arith.mulf %53, %73 : vector<128x512xf32>
    %75 = vector.broadcast %72 : vector<1x512xf32> to vector<128x512xf32>
    %76 = arith.addf %74, %75 : vector<128x512xf32>
    %cst_30 = arith.constant 0.000000e+00 : f32
    %77 = vector.broadcast %cst_30 : f32 to vector<128x512xf32>
    %78 = arith.cmpf ogt, %76, %77 : vector<128x512xf32>
    %cst_31 = arith.constant 2.000000e-01 : f32
    %79 = vector.broadcast %cst_31 : f32 to vector<128x512xf32>
    %80 = arith.mulf %79, %76 : vector<128x512xf32>
    %81 = arith.select %78, %76, %80 : vector<128x512xi1>, vector<128x512xf32>
    %82 = arith.truncf %81 : vector<128x512xf32> to vector<128x512xbf16>
    %c1_i32_32 = arith.constant 1 : i32
    %83 = tpu.memref_slice %arg11[%c1_i32_32] : memref<3x!tpu.dma_semaphore, #tpu.memory_space<semaphore_mem>> -> memref<1x!tpu.dma_semaphore, #tpu.memory_space<semaphore_mem>>
    %84 = tpu.memref_squeeze %83 : memref<1x!tpu.dma_semaphore, #tpu.memory_space<semaphore_mem>> -> memref<!tpu.dma_semaphore, #tpu.memory_space<semaphore_mem>>
    tpu.wait_dma2 semaphore(%84 : memref<!tpu.dma_semaphore, #tpu.memory_space<semaphore_mem>>) src(%arg5 : memref<512x1024xbf16, #tpu.memory_space<any>>) dst(%arg9 : memref<512x1024xbf16, #tpu.memory_space<vmem>>)
    %c0_33 = arith.constant 0 : index
    %c0_34 = arith.constant 0 : index
    %85 = vector.load %arg9[%c0_33, %c0_34] : memref<512x1024xbf16, #tpu.memory_space<vmem>>, vector<512x1024xbf16>
    %cst_35 = arith.constant dense<0.000000e+00> : vector<128x1024xf32>
    %86 = tpu.matmul %82, %85, %cst_35 {dimension_numbers = #tpu.dot_dimension_numbers<[1], [0], [0], [1], [0, 0, 1, 1], [], []>} : vector<128x512xbf16>, vector<512x1024xbf16>, vector<128x1024xf32> -> vector<128x1024xf32>
    %c0_36 = arith.constant 0 : index
    %c1664 = arith.constant 1664 : index
    %87 = vector.load %arg3[%c0_36, %c1664] : memref<1x3968xf32, #tpu.memory_space<vmem>>, vector<1x1024xf32>
    %c0_37 = arith.constant 0 : index
    %c2688 = arith.constant 2688 : index
    %88 = vector.load %arg3[%c0_37, %c2688] : memref<1x3968xf32, #tpu.memory_space<vmem>>, vector<1x1024xf32>
    %cst_38 = arith.constant dense<0.000000e+00> : vector<1024xf32>
    %89 = vector.multi_reduction <add>, %86, %cst_38 [0] : vector<128x1024xf32> to vector<1024xf32>
    %90 = vector.shape_cast %89 : vector<1024xf32> to vector<1x1024xf32>
    %cst_39 = arith.constant 7.812500e-03 : f32
    %91 = vector.broadcast %cst_39 : f32 to vector<1x1024xf32>
    %92 = arith.mulf %90, %91 : vector<1x1024xf32>
    %93 = arith.mulf %86, %86 : vector<128x1024xf32>
    %cst_40 = arith.constant dense<0.000000e+00> : vector<1024xf32>
    %94 = vector.multi_reduction <add>, %93, %cst_40 [0] : vector<128x1024xf32> to vector<1024xf32>
    %95 = vector.shape_cast %94 : vector<1024xf32> to vector<1x1024xf32>
    %cst_41 = arith.constant 7.812500e-03 : f32
    %96 = vector.broadcast %cst_41 : f32 to vector<1x1024xf32>
    %97 = arith.mulf %95, %96 : vector<1x1024xf32>
    %98 = arith.mulf %92, %92 : vector<1x1024xf32>
    %99 = arith.subf %97, %98 : vector<1x1024xf32>
    %cst_42 = arith.constant 8.000000e-01 : f32
    %100 = vector.broadcast %cst_42 : f32 to vector<1x1024xf32>
    %101 = arith.addf %99, %100 : vector<1x1024xf32>
    %102 = math.rsqrt %101 : vector<1x1024xf32>
    %103 = arith.mulf %87, %102 : vector<1x1024xf32>
    %104 = arith.mulf %92, %103 : vector<1x1024xf32>
    %105 = arith.subf %88, %104 : vector<1x1024xf32>
    %106 = vector.broadcast %103 : vector<1x1024xf32> to vector<128x1024xf32>
    %107 = arith.mulf %86, %106 : vector<128x1024xf32>
    %108 = vector.broadcast %105 : vector<1x1024xf32> to vector<128x1024xf32>
    %109 = arith.addf %107, %108 : vector<128x1024xf32>
    %cst_43 = arith.constant 0.000000e+00 : f32
    %110 = vector.broadcast %cst_43 : f32 to vector<128x1024xf32>
    %111 = arith.cmpf ogt, %109, %110 : vector<128x1024xf32>
    %cst_44 = arith.constant 2.000000e-01 : f32
    %112 = vector.broadcast %cst_44 : f32 to vector<128x1024xf32>
    %113 = arith.mulf %112, %109 : vector<128x1024xf32>
    %114 = arith.select %111, %109, %113 : vector<128x1024xi1>, vector<128x1024xf32>
    %115 = arith.truncf %114 : vector<128x1024xf32> to vector<128x1024xbf16>
    %c2_i32_45 = arith.constant 2 : i32
    %116 = tpu.memref_slice %arg11[%c2_i32_45] : memref<3x!tpu.dma_semaphore, #tpu.memory_space<semaphore_mem>> -> memref<1x!tpu.dma_semaphore, #tpu.memory_space<semaphore_mem>>
    %117 = tpu.memref_squeeze %116 : memref<1x!tpu.dma_semaphore, #tpu.memory_space<semaphore_mem>> -> memref<!tpu.dma_semaphore, #tpu.memory_space<semaphore_mem>>
    tpu.wait_dma2 semaphore(%117 : memref<!tpu.dma_semaphore, #tpu.memory_space<semaphore_mem>>) src(%arg6 : memref<1024x256xbf16, #tpu.memory_space<any>>) dst(%arg10 : memref<1024x256xbf16, #tpu.memory_space<vmem>>)
    %c0_46 = arith.constant 0 : index
    %c0_47 = arith.constant 0 : index
    %118 = vector.load %arg10[%c0_46, %c0_47] : memref<1024x256xbf16, #tpu.memory_space<vmem>>, vector<1024x256xbf16>
    %cst_48 = arith.constant dense<0.000000e+00> : vector<128x256xf32>
    %119 = tpu.matmul %115, %118, %cst_48 {dimension_numbers = #tpu.dot_dimension_numbers<[1], [0], [0], [1], [0, 0, 1, 1], [], []>} : vector<128x1024xbf16>, vector<1024x256xbf16>, vector<128x256xf32> -> vector<128x256xf32>
    %c0_49 = arith.constant 0 : index
    %c3712 = arith.constant 3712 : index
    %120 = vector.load %arg3[%c0_49, %c3712] : memref<1x3968xf32, #tpu.memory_space<vmem>>, vector<1x256xf32>
    %121 = vector.broadcast %120 : vector<1x256xf32> to vector<128x256xf32>
    %122 = arith.addf %119, %121 : vector<128x256xf32>
    %123 = math.tanh %122 : vector<128x256xf32>
    %c0_50 = arith.constant 0 : index
    %c0_51 = arith.constant 0 : index
    %124 = vector.load %arg7[%c0_50, %c0_51] : memref<128x256xf32, #tpu.memory_space<vmem>>, vector<128x256xf32>
    tpu.vector_store %arg7[%c0_50, %c0_51], %123 {strides = array<i32>} : memref<128x256xf32, #tpu.memory_space<vmem>>, vector<128x256xf32>,
    return
  }
}

</mosaic_0001>

<llo_original>
// kernel: generator_forward.1
$region0: #{generator_forward.1}
  #allocation0 [shape = 'u32[]', space=smem, size = 0x4, offset = 0x4, fixed_abs, tag = 'smem constant byte address 0x4 - core index']
  #allocation1 [shape = 'u32[144,128]{1,0:T(1,128)}', space=vmem, size = 0x12000, scoped, tag = 'internal scratch']
  #allocation2 [shape = 'bf16[256,512]{1,0:T(8,128)(2,1)}', space=vmem, size = 0x40000, scoped, tag = 'scratch operand']
  #allocation3 [shape = 'bf16[512,1024]{1,0:T(8,128)(2,1)}', space=vmem, size = 0x100000, scoped, tag = 'scratch operand']
  #allocation4 [shape = 'bf16[1024,256]{1,0:T(8,128)(2,1)}', space=vmem, size = 0x80000, scoped, tag = 'scratch operand']
  #allocation5 [shape = 's32[3]{0}', space=sflag, size = 0xc, scoped, tag = 'scratch operand']
  #allocation8 [shape = 's32[]', space=sflag, size = 0x4, offset = 0, fixed_abs, tag = 'sflag constant byte address 0x0 - dummy sync flag']
  #allocation9 [shape = 's32[]', space=sflag, size = 0x4, offset = 0, fixed_abs, tag = 'sflag constant byte address 0x0 - dummy sync flag']
  #allocation10 [shape = 'u32[]', space=smem, size = 0x4, offset = 0x44, fixed_abs, tag = 'smem constant byte address 0x44 - assertion arg 0']
  #allocation11 [shape = 'u32[]', space=smem, size = 0x4, offset = 0x48, fixed_abs, tag = 'smem constant byte address 0x48 - assertion arg 1']
  #allocation12 [shape = 's32[]', space=sflag, size = 0x4, offset = 0, fixed_abs, tag = 'sflag constant byte address 0x0 - dummy sync flag']
  #allocation13 [shape = 's32[]', space=sflag, size = 0x4, offset = 0, fixed_abs, tag = 'sflag constant byte address 0x0 - dummy sync flag']
  #allocation14 [shape = 's32[]', space=sflag, size = 0x4, offset = 0, fixed_abs, tag = 'sflag constant byte address 0x0 - dummy sync flag']
  #allocation15 [shape = 's32[]', space=sflag, size = 0x4, offset = 0, fixed_abs, tag = 'sflag constant byte address 0x0 - dummy sync flag']
  %s0 = inlined_call_operand.vmem [shape: f32[128,128], index: 0, kind: input, shape index: {}]
  %s1 = inlined_call_operand.vmem [shape: bf16[128,128], index: 1, kind: input, shape index: {}]
  %s2 = inlined_call_operand.vmem [shape: bf16[128,256], index: 2, kind: input, shape index: {}]
  %s3 = inlined_call_operand.vmem [shape: f32[1,3968], index: 3, kind: input, shape index: {}]
  %s4 = inlined_call_operand.hbm [shape: bf16[256,512], index: 4, kind: input, shape index: {}]
  %s5 = inlined_call_operand.hbm [shape: bf16[512,1024], index: 5, kind: input, shape index: {}]
  %s6 = inlined_call_operand.hbm [shape: bf16[1024,256], index: 6, kind: input, shape index: {}]
  %s7 = inlined_call_operand.hbm [shape: f32[128,256], index: 7, kind: output, shape index: {}]
  %s8 = sld [smem:[#allocation0]]
  $region38: #{generator_forward.1} parent=0
    _
  %s10 = ssub.s32 1, %s8
  %s11 = scalar_select 0, %s10, %s8
  $region1: #{generator_forward.1} parent=0
    #allocation6 [shape = 'u8[131072]{0}', space=vmem, size = 0x20000, scoped, tag = 'output window, operand 0, single buffered']
    #allocation7 [shape = 's32[1]{0}', space=sflag, size = 0x4, scoped, tag = 'scoped memory for generator_forward.1']
    %12 = vsyncpa [#allocation7], 0
    // Predicated region
    $region2: #{generator_forward.1} parent=1 // pred_check
      _
    $region3: #{generator_forward.1} parent=1 // pred_check_branch
      %14 = sbr.rel (0) target = $region5
    $region4: #{generator_forward.1} parent=1 // pred_region
      _
    $region5: #{generator_forward.1} parent=1 // pred_fallthru
      _
    // Predicated region
    $region6: #{generator_forward.1} parent=1 // pred_check
      _
    $region7: #{generator_forward.1} parent=1 // pred_check_branch
      %16 = sbr.rel (0) target = $region9
    $region8: #{generator_forward.1} parent=1 // pred_region
      _
    $region9: #{generator_forward.1} parent=1 // pred_fallthru
      _
    // Predicated region
    $region10: #{generator_forward.1} parent=1 // pred_check
      _
    $region11: #{generator_forward.1} parent=1 // pred_check_branch
      %18 = sbr.rel (0) target = $region13
    $region12: #{generator_forward.1} parent=1 // pred_region
      _
    $region13: #{generator_forward.1} parent=1 // pred_fallthru
      _
    // Predicated region
    $region14: #{generator_forward.1} parent=1 // pred_check
      _
    $region15: #{generator_forward.1} parent=1 // pred_check_branch
      %20 = sbr.rel (0) target = $region17
    $region16: #{generator_forward.1} parent=1 // pred_region
      _
    $region17: #{generator_forward.1} parent=1 // pred_fallthru
      _
    // Predicated region
    $region18: #{generator_forward.1} parent=1 // pred_check
      _
    $region19: #{generator_forward.1} parent=1 // pred_check_branch
      %23 = sbr.rel target = $region21
    $region20: #{generator_forward.1} parent=1 // pred_region
      %24 = sst [smem:[#allocation10]] [#allocation9]
      %25 = sst [smem:[#allocation11]] [#allocation8]
    $region21: #{generator_forward.1} parent=1 // pred_fallthru
      _
    %27 = shalt.err (0)
    %s29 = sshll.u32 [#allocation2], 4
    %s30 = int_to_ptr.vmem [resolvable:$true] %s29
    %32 = dma.hbm_to_vmem [thread:$0]  %s4, 8192, %s30, [#allocation5]
    %v33 = vld [vmem:[%s0] sm:$0xff]
    %v34 = vld [vmem:[%s0 + $0x8] sm:$0xff]
    %v35 = vld [vmem:[%s0 + $0x10] sm:$0xff]
    %v36 = vld [vmem:[%s0 + $0x18] sm:$0xff]
    %v37 = vld [vmem:[%s0 + $0x20] sm:$0xff]
    %v38 = vld [vmem:[%s0 + $0x28] sm:$0xff]
    %v39 = vld [vmem:[%s0 + $0x30] sm:$0xff]
    %v40 = vld [vmem:[%s0 + $0x38] sm:$0xff]
    %v41 = vld [vmem:[%s0 + $0x40] sm:$0xff]
    %v42 = vld [vmem:[%s0 + $0x48] sm:$0xff]
    %v43 = vld [vmem:[%s0 + $0x50] sm:$0xff]
    %v44 = vld [vmem:[%s0 + $0x58] sm:$0xff]
    %v45 = vld [vmem:[%s0 + $0x60] sm:$0xff]
    %v46 = vld [vmem:[%s0 + $0x68] sm:$0xff]
    %v47 = vld [vmem:[%s0 + $0x70] sm:$0xff]
    %v48 = vld [vmem:[%s0 + $0x78] sm:$0xff]
    %v49 = vpack.c.bf16 %v34, %v33
    %v50 = vpack.c.bf16 %v36, %v35
    %v51 = vpack.c.bf16 %v38, %v37
    %v52 = vpack.c.bf16 %v40, %v39
    %v53 = vpack.c.bf16 %v42, %v41
    %v54 = vpack.c.bf16 %v44, %v43
    %v55 = vpack.c.bf16 %v46, %v45
    %v56 = vpack.c.bf16 %v48, %v47
    %v57 = vld [vmem:[%s1] sm:$0xf]
    %v58 = vld [vmem:[%s1 + $0x4] sm:$0xf]
    %v59 = vld [vmem:[%s1 + $0x8] sm:$0xf]
    %v60 = vld [vmem:[%s1 + $0xc] sm:$0xf]
    %v61 = vld [vmem:[%s1 + $0x10] sm:$0xf]
    %v62 = vld [vmem:[%s1 + $0x14] sm:$0xf]
    %v63 = vld [vmem:[%s1 + $0x18] sm:$0xf]
    %v64 = vld [vmem:[%s1 + $0x1c] sm:$0xf]
    %v65 = vld [vmem:[%s1 + $0x20] sm:$0xf]
    %v66 = vld [vmem:[%s1 + $0x24] sm:$0xf]
    %v67 = vld [vmem:[%s1 + $0x28] sm:$0xf]
    %v68 = vld [vmem:[%s1 + $0x2c] sm:$0xf]
    %v69 = vld [vmem:[%s1 + $0x30] sm:$0xf]
    %v70 = vld [vmem:[%s1 + $0x34] sm:$0xf]
    %v71 = vld [vmem:[%s1 + $0x38] sm:$0xf]
    %v72 = vld [vmem:[%s1 + $0x3c] sm:$0xf]
    %v73 = vld [vmem:[%s3] sm:$0x1]
    %v75 = vlaneseq
    %v76 = vshrl.u32 %v75, 7
    %v77 = vsub.s32 0, %v76
    %v78 = vrot.slane %v73, %v77
    %v96 = vunpack.c.l.b16 %v57
    %v97 = vunpack.c.l.b16 %v58
    %v98 = vunpack.c.l.b16 %v59
    %v99 = vunpack.c.l.b16 %v60
    %v100 = vunpack.c.l.b16 %v61
    %v101 = vunpack.c.l.b16 %v62
    %v102 = vunpack.c.l.b16 %v63
    %v103 = vunpack.c.l.b16 %v64
    %v104 = vunpack.c.l.b16 %v65
    %v105 = vunpack.c.l.b16 %v66
    %v106 = vunpack.c.l.b16 %v67
    %v107 = vunpack.c.l.b16 %v68
    %v108 = vunpack.c.l.b16 %v69
    %v109 = vunpack.c.l.b16 %v70
    %v110 = vunpack.c.l.b16 %v71
    %v111 = vunpack.c.l.b16 %v72
    %v112 = vpack.c.b16 %v97, %v96
    %v113 = vpack.c.b16 %v99, %v98
    %v114 = vpack.c.b16 %v101, %v100
    %v115 = vpack.c.b16 %v103, %v102
    %v116 = vpack.c.b16 %v105, %v104
    %v117 = vpack.c.b16 %v107, %v106
    %v118 = vpack.c.b16 %v109, %v108
    %v119 = vpack.c.b16 %v111, %v110
    %128 = vmatprep.subr.bf16.mxu0 0
    %129 = vmatpush1.bf16.msra.mxu0 %v119
    %130 = vmatprep.subr.bf16.mxu0 0
    %131 = vmatpush1.bf16.msra.mxu0 %v118
    %132 = vmatprep.subr.bf16.mxu0 0
    %133 = vmatpush1.bf16.msra.mxu0 %v117
    %134 = vmatprep.subr.bf16.mxu0 0
    %135 = vmatpush1.bf16.msra.mxu0 %v116
    %136 = vmatprep.subr.bf16.mxu0 0
    %137 = vmatpush1.bf16.msra.mxu0 %v115
    %138 = vmatprep.subr.bf16.mxu0 0
    %139 = vmatpush1.bf16.msra.mxu0 %v114
    %140 = vmatprep.subr.bf16.mxu0 0
    %141 = vmatpush1.bf16.msra.mxu0 %v113
    %142 = vmatprep.subr.bf16.mxu0 0
    %143 = vmatpush1.bf16.msra.mxu0 %v112
    %144 = vmatprep.subr.bf16.mxu0 0
    %145 = vmatpush2.bf16.msra.mxu0 0
    %146 = vmatprep.subr.bf16.mxu0 0
    %147 = vmatpush2.bf16.msra.mxu0 0
    %148 = vmatprep.subr.bf16.mxu0 0
    %149 = vmatpush2.bf16.msra.mxu0 0
    %150 = vmatprep.subr.bf16.mxu0 0
    %151 = vmatpush2.bf16.msra.mxu0 0
    %152 = vmatprep.subr.bf16.mxu0 0
    %153 = vmatpush2.bf16.msra.mxu0 0
    %154 = vmatprep.subr.bf16.mxu0 0
    %155 = vmatpush2.bf16.msra.mxu0 0
    %156 = vmatprep.subr.bf16.mxu0 0
    %157 = vmatpush2.bf16.msra.mxu0 0
    %158 = vmatprep.subr.bf16.mxu0 0
    %159 = vmatpush2.bf16.msra.mxu0 0
    %160 = vmatprep.mubr.bf16.mxu0 0
    %161 = vmatmul.mubr.bf16.gmra.mxu0 %v49
    %v162 = vpop.f32.mrf.mxu0
    %v163 = vadd.f32 %v78, %v162
    %v164 = vpop.f32.mrf.mxu0
    %v165 = vpop.f32.mrf.mxu0
    %v166 = vadd.f32 %v78, %v165
    %v167 = vpop.f32.mrf.mxu0
    %168 = vmatprep.mubr.bf16.mxu0 0
    %169 = vmatmul.mubr.bf16.gmra.mxu0 %v50
    %v170 = vpop.f32.mrf.mxu0
    %v171 = vadd.f32 %v78, %v170
    %v172 = vpop.f32.mrf.mxu0
    %v173 = vpop.f32.mrf.mxu0
    %v174 = vadd.f32 %v78, %v173
    %v175 = vpop.f32.mrf.mxu0
    %176 = vmatprep.mubr.bf16.mxu0 0
    %177 = vmatmul.mubr.bf16.gmra.mxu0 %v51
    %v178 = vpop.f32.mrf.mxu0
    %v179 = vadd.f32 %v78, %v178
    %v180 = vpop.f32.mrf.mxu0
    %v181 = vpop.f32.mrf.mxu0
    %v182 = vadd.f32 %v78, %v181
    %v183 = vpop.f32.mrf.mxu0
    %184 = vmatprep.mubr.bf16.mxu0 0
    %185 = vmatmul.mubr.bf16.gmra.mxu0 %v52
    %v186 = vpop.f32.mrf.mxu0
    %v187 = vadd.f32 %v78, %v186
    %v188 = vpop.f32.mrf.mxu0
    %v189 = vpop.f32.mrf.mxu0
    %v190 = vadd.f32 %v78, %v189
    %v191 = vpop.f32.mrf.mxu0
    %192 = vmatprep.mubr.bf16.mxu0 0
    %193 = vmatmul.mubr.bf16.gmra.mxu0 %v53
    %v194 = vpop.f32.mrf.mxu0
    %v195 = vadd.f32 %v78, %v194
    %v196 = vpop.f32.mrf.mxu0
    %v197 = vpop.f32.mrf.mxu0
    %v198 = vadd.f32 %v78, %v197
    %v199 = vpop.f32.mrf.mxu0
    %200 = vmatprep.mubr.bf16.mxu0 0
    %201 = vmatmul.mubr.bf16.gmra.mxu0 %v54
    %v202 = vpop.f32.mrf.mxu0
    %v203 = vadd.f32 %v78, %v202
    %v204 = vpop.f32.mrf.mxu0
    %v205 = vpop.f32.mrf.mxu0
    %v206 = vadd.f32 %v78, %v205
    %v207 = vpop.f32.mrf.mxu0
    %208 = vmatprep.mubr.bf16.mxu0 0
    %209 = vmatmul.mubr.bf16.gmra.mxu0 %v55
    %v210 = vpop.f32.mrf.mxu0
    %v211 = vadd.f32 %v78, %v210
    %v212 = vpop.f32.mrf.mxu0
    %v213 = vpop.f32.mrf.mxu0
    %v214 = vadd.f32 %v78, %v213
    %v215 = vpop.f32.mrf.mxu0
    %216 = vmatprep.mubr.bf16.mxu0 0
    %217 = vmatmul.mubr.bf16.gmra.mxu0 %v56
    %v218 = vpop.f32.mrf.mxu0
    %v219 = vadd.f32 %v78, %v218
    %v220 = vpop.f32.mrf.mxu0
    %v221 = vpop.f32.mrf.mxu0
    %v222 = vadd.f32 %v78, %v221
    %v223 = vpop.f32.mrf.mxu0
    %224 = vdwg.mxu0
    %vm225 = vcmp.gt.f32.partialorder %v163, 0.0
    %vm226 = vcmp.gt.f32.partialorder %v166, 0.0
    %vm227 = vcmp.gt.f32.partialorder %v171, 0.0
    %vm228 = vcmp.gt.f32.partialorder %v174, 0.0
    %vm229 = vcmp.gt.f32.partialorder %v179, 0.0
    %vm230 = vcmp.gt.f32.partialorder %v182, 0.0
    %vm231 = vcmp.gt.f32.partialorder %v187, 0.0
    %vm232 = vcmp.gt.f32.partialorder %v190, 0.0
    %vm233 = vcmp.gt.f32.partialorder %v195, 0.0
    %vm234 = vcmp.gt.f32.partialorder %v198, 0.0
    %vm235 = vcmp.gt.f32.partialorder %v203, 0.0
    %vm236 = vcmp.gt.f32.partialorder %v206, 0.0
    %vm237 = vcmp.gt.f32.partialorder %v211, 0.0
    %vm238 = vcmp.gt.f32.partialorder %v214, 0.0
    %vm239 = vcmp.gt.f32.partialorder %v219, 0.0
    %vm240 = vcmp.gt.f32.partialorder %v222, 0.0
    %v241 = vmul.f32 %v163, 0.2
    %v242 = vmul.f32 %v166, 0.2
    %v243 = vmul.f32 %v171, 0.2
    %v244 = vmul.f32 %v174, 0.2
    %v245 = vmul.f32 %v179, 0.2
    %v246 = vmul.f32 %v182, 0.2
    %v247 = vmul.f32 %v187, 0.2
    %v248 = vmul.f32 %v190, 0.2
    %v249 = vmul.f32 %v195, 0.2
    %v250 = vmul.f32 %v198, 0.2
    %v251 = vmul.f32 %v203, 0.2
    %v252 = vmul.f32 %v206, 0.2
    %v253 = vmul.f32 %v211, 0.2
    %v254 = vmul.f32 %v214, 0.2
    %v255 = vmul.f32 %v219, 0.2
    %v256 = vmul.f32 %v222, 0.2
    %v257 = vsel %vm225, %v163, %v241
    %v258 = vsel %vm226, %v166, %v242
    %v259 = vsel %vm227, %v171, %v243
    %v260 = vsel %vm228, %v174, %v244
    %v261 = vsel %vm229, %v179, %v245
    %v262 = vsel %vm230, %v182, %v246
    %v263 = vsel %vm231, %v187, %v247
    %v264 = vsel %vm232, %v190, %v248
    %v265 = vsel %vm233, %v195, %v249
    %v266 = vsel %vm234, %v198, %v250
    %v267 = vsel %vm235, %v203, %v251
    %v268 = vsel %vm236, %v206, %v252
    %v269 = vsel %vm237, %v211, %v253
    %v270 = vsel %vm238, %v214, %v254
    %v271 = vsel %vm239, %v219, %v255
    %v272 = vsel %vm240, %v222, %v256
    %v273 = vpack.c.bf16 %v258, %v257
    %v274 = vpack.c.bf16 %v260, %v259
    %v275 = vpack.c.bf16 %v262, %v261
    %v276 = vpack.c.bf16 %v264, %v263
    %v277 = vpack.c.bf16 %v266, %v265
    %v278 = vpack.c.bf16 %v268, %v267
    %v279 = vpack.c.bf16 %v270, %v269
    %v280 = vpack.c.bf16 %v272, %v271
    %s281 = scalar_lea.sflag [#allocation5], 1
    // Predicated region
    $region22: #{generator_forward.1} parent=1 // pred_check
      _
    $region23: #{generator_forward.1} parent=1 // pred_check_branch
      %283 = sbr.rel target = $region25
    $region24: #{generator_forward.1} parent=1 // pred_region
      %284 = sst [smem:[#allocation10]] [#allocation13]
      %285 = sst [smem:[#allocation11]] [#allocation12]
    $region25: #{generator_forward.1} parent=1 // pred_fallthru
      _
    %287 = shalt.err (0)
    %s289 = sshll.u32 [#allocation3], 4
    %s290 = int_to_ptr.vmem [resolvable:$true] %s289
    %292 = dma.hbm_to_vmem [thread:$0]  %s5, 32768, %s290, %s281
    %v293 = vld [vmem:[%s2] sm:$0xff]
    %v294 = vld [vmem:[%s2 + $0x8] sm:$0xff]
    %v295 = vld [vmem:[%s2 + $0x10] sm:$0xff]
    %v296 = vld [vmem:[%s2 + $0x18] sm:$0xff]
    %v297 = vld [vmem:[%s2 + $0x20] sm:$0xff]
    %v298 = vld [vmem:[%s2 + $0x28] sm:$0xff]
    %v299 = vld [vmem:[%s2 + $0x30] sm:$0xff]
    %v300 = vld [vmem:[%s2 + $0x38] sm:$0xff]
    %v301 = vld [vmem:[%s2 + $0x40] sm:$0xff]
    %v302 = vld [vmem:[%s2 + $0x48] sm:$0xff]
    %v303 = vld [vmem:[%s2 + $0x50] sm:$0xff]
    %v304 = vld [vmem:[%s2 + $0x58] sm:$0xff]
    %v305 = vld [vmem:[%s2 + $0x60] sm:$0xff]
    %v306 = vld [vmem:[%s2 + $0x68] sm:$0xff]
    %v307 = vld [vmem:[%s2 + $0x70] sm:$0xff]
    %v308 = vld [vmem:[%s2 + $0x78] sm:$0xff]
    %v325 = vunpack.c.l.b16 %v293
    %v326 = vunpack.c.h.b16 %v293
    %v327 = vunpack.c.l.b16 %v294
    %v328 = vunpack.c.h.b16 %v294
    %v329 = vunpack.c.l.b16 %v295
    %v330 = vunpack.c.h.b16 %v295
    %v331 = vunpack.c.l.b16 %v296
    %v332 = vunpack.c.h.b16 %v296
    %v333 = vunpack.c.l.b16 %v297
    %v334 = vunpack.c.h.b16 %v297
    %v335 = vunpack.c.l.b16 %v298
    %v336 = vunpack.c.h.b16 %v298
    %v337 = vunpack.c.l.b16 %v299
    %v338 = vunpack.c.h.b16 %v299
    %v339 = vunpack.c.l.b16 %v300
    %v340 = vunpack.c.h.b16 %v300
    %v341 = vunpack.c.l.b16 %v301
    %v342 = vunpack.c.h.b16 %v301
    %v343 = vunpack.c.l.b16 %v302
    %v344 = vunpack.c.h.b16 %v302
    %v345 = vunpack.c.l.b16 %v303
    %v346 = vunpack.c.h.b16 %v303
    %v347 = vunpack.c.l.b16 %v304
    %v348 = vunpack.c.h.b16 %v304
    %v349 = vunpack.c.l.b16 %v305
    %v350 = vunpack.c.h.b16 %v305
    %v351 = vunpack.c.l.b16 %v306
    %v352 = vunpack.c.h.b16 %v306
    %v353 = vunpack.c.l.b16 %v307
    %v354 = vunpack.c.h.b16 %v307
    %v355 = vunpack.c.l.b16 %v308
    %v356 = vunpack.c.h.b16 %v308
    %v357 = vpack.c.b16 %v327, %v325
    %v358 = vpack.c.b16 %v328, %v326
    %v359 = vpack.c.b16 %v331, %v329
    %v360 = vpack.c.b16 %v332, %v330
    %v361 = vpack.c.b16 %v335, %v333
    %v362 = vpack.c.b16 %v336, %v334
    %v363 = vpack.c.b16 %v339, %v337
    %v364 = vpack.c.b16 %v340, %v338
    %v365 = vpack.c.b16 %v343, %v341
    %v366 = vpack.c.b16 %v344, %v342
    %v367 = vpack.c.b16 %v347, %v345
    %v368 = vpack.c.b16 %v348, %v346
    %v369 = vpack.c.b16 %v351, %v349
    %v370 = vpack.c.b16 %v352, %v350
    %v371 = vpack.c.b16 %v355, %v353
    %v372 = vpack.c.b16 %v356, %v354
    %389 = vmatprep.subr.bf16.mxu0 %v372
    %390 = vmatpush1.bf16.msra.mxu0 %v371
    %391 = vmatprep.subr.bf16.mxu0 %v370
    %392 = vmatpush1.bf16.msra.mxu0 %v369
    %393 = vmatprep.subr.bf16.mxu0 %v368
    %394 = vmatpush1.bf16.msra.mxu0 %v367
    %395 = vmatprep.subr.bf16.mxu0 %v366
    %396 = vmatpush1.bf16.msra.mxu0 %v365
    %397 = vmatprep.subr.bf16.mxu0 %v364
    %398 = vmatpush1.bf16.msra.mxu0 %v363
    %399 = vmatprep.subr.bf16.mxu0 %v362
    %400 = vmatpush1.bf16.msra.mxu0 %v361
    %401 = vmatprep.subr.bf16.mxu0 %v360
    %402 = vmatpush1.bf16.msra.mxu0 %v359
    %403 = vmatprep.subr.bf16.mxu0 %v358
    %404 = vmatpush1.bf16.msra.mxu0 %v357
    %405 = vmatprep.subr.bf16.mxu0 0
    %406 = vmatpush2.bf16.msra.mxu0 0
    %407 = vmatprep.subr.bf16.mxu0 0
    %408 = vmatpush2.bf16.msra.mxu0 0
    %409 = vmatprep.subr.bf16.mxu0 0
    %410 = vmatpush2.bf16.msra.mxu0 0
    %411 = vmatprep.subr.bf16.mxu0 0
    %412 = vmatpush2.bf16.msra.mxu0 0
    %413 = vmatprep.subr.bf16.mxu0 0
    %414 = vmatpush2.bf16.msra.mxu0 0
    %415 = vmatprep.subr.bf16.mxu0 0
    %416 = vmatpush2.bf16.msra.mxu0 0
    %417 = vmatprep.subr.bf16.mxu0 0
    %418 = vmatpush2.bf16.msra.mxu0 0
    %419 = vmatprep.subr.bf16.mxu0 0
    %420 = vmatpush2.bf16.msra.mxu0 0
    %421 = vmatprep.mubr.bf16.mxu0 0
    %422 = vmatmul.mubr.bf16.gmra.mxu0 %v273
    %v423 = vpop.f32.mrf.mxu0
    %v424 = vadd.f32 0.0, %v423
    %v425 = vpop.f32.mrf.mxu0
    %v426 = vadd.f32 0.0, %v425
    %v427 = vpop.f32.mrf.mxu0
    %v428 = vadd.f32 0.0, %v427
    %v429 = vpop.f32.mrf.mxu0
    %v430 = vadd.f32 0.0, %v429
    %431 = vmatprep.mubr.bf16.mxu0 0
    %432 = vmatmul.mubr.bf16.gmra.mxu0 %v274
    %v433 = vpop.f32.mrf.mxu0
    %v434 = vadd.f32 0.0, %v433
    %v435 = vpop.f32.mrf.mxu0
    %v436 = vadd.f32 0.0, %v435
    %v437 = vpop.f32.mrf.mxu0
    %v438 = vadd.f32 0.0, %v437
    %v439 = vpop.f32.mrf.mxu0
    %v440 = vadd.f32 0.0, %v439
    %441 = vmatprep.mubr.bf16.mxu0 0
    %442 = vmatmul.mubr.bf16.gmra.mxu0 %v275
    %v443 = vpop.f32.mrf.mxu0
    %v444 = vadd.f32 0.0, %v443
    %v445 = vpop.f32.mrf.mxu0
    %v446 = vadd.f32 0.0, %v445
    %v447 = vpop.f32.mrf.mxu0
    %v448 = vadd.f32 0.0, %v447
    %v449 = vpop.f32.mrf.mxu0
    %v450 = vadd.f32 0.0, %v449
    %451 = vmatprep.mubr.bf16.mxu0 0
    %452 = vmatmul.mubr.bf16.gmra.mxu0 %v276
    %v453 = vpop.f32.mrf.mxu0
    %v454 = vadd.f32 0.0, %v453
    %v455 = vpop.f32.mrf.mxu0
    %v456 = vadd.f32 0.0, %v455
    %v457 = vpop.f32.mrf.mxu0
    %v458 = vadd.f32 0.0, %v457
    %v459 = vpop.f32.mrf.mxu0
    %v460 = vadd.f32 0.0, %v459
    %461 = vmatprep.mubr.bf16.mxu0 0
    %462 = vmatmul.mubr.bf16.gmra.mxu0 %v277
    %v463 = vpop.f32.mrf.mxu0
    %v464 = vadd.f32 0.0, %v463
    %v465 = vpop.f32.mrf.mxu0
    %v466 = vadd.f32 0.0, %v465
    %v467 = vpop.f32.mrf.mxu0
    %v468 = vadd.f32 0.0, %v467
    %v469 = vpop.f32.mrf.mxu0
    %v470 = vadd.f32 0.0, %v469
    %471 = vmatprep.mubr.bf16.mxu0 0
    %472 = vmatmul.mubr.bf16.gmra.mxu0 %v278
    %v473 = vpop.f32.mrf.mxu0
    %v474 = vadd.f32 0.0, %v473
    %v475 = vpop.f32.mrf.mxu0
    %v476 = vadd.f32 0.0, %v475
    %v477 = vpop.f32.mrf.mxu0
    %v478 = vadd.f32 0.0, %v477
    %v479 = vpop.f32.mrf.mxu0
    %v480 = vadd.f32 0.0, %v479
    %481 = vmatprep.mubr.bf16.mxu0 0
    %482 = vmatmul.mubr.bf16.gmra.mxu0 %v279
    %v483 = vpop.f32.mrf.mxu0
    %v484 = vadd.f32 0.0, %v483
    %v485 = vpop.f32.mrf.mxu0
    %v486 = vadd.f32 0.0, %v485
    %v487 = vpop.f32.mrf.mxu0
    %v488 = vadd.f32 0.0, %v487
    %v489 = vpop.f32.mrf.mxu0
    %v490 = vadd.f32 0.0, %v489
    %491 = vmatprep.mubr.bf16.mxu0 0
    %492 = vmatmul.mubr.bf16.gmra.mxu0 %v280
    %v493 = vpop.f32.mrf.mxu0
    %v494 = vadd.f32 0.0, %v493
    %v495 = vpop.f32.mrf.mxu0
    %v496 = vadd.f32 0.0, %v495
    %v497 = vpop.f32.mrf.mxu0
    %v498 = vadd.f32 0.0, %v497
    %v499 = vpop.f32.mrf.mxu0
    %v500 = vadd.f32 0.0, %v499
    %501 = vdwg.mxu0
    %v502 = vld [vmem:[%s3 + $0x1] sm:$0x3]
    %v503 = vld [vmem:[%s3 + $0x3] sm:$0x3]
    %v504 = vadd.f32 %v424, %v428
    %v505 = vadd.f32 %v504, %v434
    %v506 = vadd.f32 %v505, %v438
    %v507 = vadd.f32 %v506, %v444
    %v508 = vadd.f32 %v507, %v448
    %v509 = vadd.f32 %v508, %v454
    %v510 = vadd.f32 %v509, %v458
    %v511 = vadd.f32 %v510, %v464
    %v512 = vadd.f32 %v511, %v468
    %v513 = vadd.f32 %v512, %v474
    %v514 = vadd.f32 %v513, %v478
    %v515 = vadd.f32 %v514, %v484
    %v516 = vadd.f32 %v515, %v488
    %v517 = vadd.f32 %v516, %v494
    %v518 = vadd.f32 %v517, %v498
    %v519 = vrot.slane %v518, 4
    %v520 = vadd.f32 %v518, %v519
    %v521 = vrot.slane %v520, 2
    %v522 = vadd.f32 %v520, %v521
    %v523 = vrot.slane %v522, 1
    %v524 = vadd.f32 %v522, %v523
    %v525 = vadd.f32 %v426, %v430
    %v526 = vadd.f32 %v525, %v436
    %v527 = vadd.f32 %v526, %v440
    %v528 = vadd.f32 %v527, %v446
    %v529 = vadd.f32 %v528, %v450
    %v530 = vadd.f32 %v529, %v456
    %v531 = vadd.f32 %v530, %v460
    %v532 = vadd.f32 %v531, %v466
    %v533 = vadd.f32 %v532, %v470
    %v534 = vadd.f32 %v533, %v476
    %v535 = vadd.f32 %v534, %v480
    %v536 = vadd.f32 %v535, %v486
    %v537 = vadd.f32 %v536, %v490
    %v538 = vadd.f32 %v537, %v496
    %v539 = vadd.f32 %v538, %v500
    %v540 = vrot.slane %v539, 4
    %v541 = vadd.f32 %v539, %v540
    %v542 = vrot.slane %v541, 2
    %v543 = vadd.f32 %v541, %v542
    %v544 = vrot.slane %v543, 1
    %v545 = vadd.f32 %v543, %v544
    %v546 = vmul.f32 %v524, 0.0078125
    %v547 = vmul.f32 %v545, 0.0078125
    %v548 = vmul.f32 %v424, %v424
    %v549 = vmul.f32 %v426, %v426
    %v550 = vmul.f32 %v428, %v428
    %v551 = vmul.f32 %v430, %v430
    %v552 = vmul.f32 %v434, %v434
    %v553 = vmul.f32 %v436, %v436
    %v554 = vmul.f32 %v438, %v438
    %v555 = vmul.f32 %v440, %v440
    %v556 = vmul.f32 %v444, %v444
    %v557 = vmul.f32 %v446, %v446
    %v558 = vmul.f32 %v448, %v448
    %v559 = vmul.f32 %v450, %v450
    %v560 = vmul.f32 %v454, %v454
    %v561 = vmul.f32 %v456, %v456
    %v562 = vmul.f32 %v458, %v458
    %v563 = vmul.f32 %v460, %v460
    %v564 = vmul.f32 %v464, %v464
    %v565 = vmul.f32 %v466, %v466
    %v566 = vmul.f32 %v468, %v468
    %v567 = vmul.f32 %v470, %v470
    %v568 = vmul.f32 %v474, %v474
    %v569 = vmul.f32 %v476, %v476
    %v570 = vmul.f32 %v478, %v478
    %v571 = vmul.f32 %v480, %v480
    %v572 = vmul.f32 %v484, %v484
    %v573 = vmul.f32 %v486, %v486
    %v574 = vmul.f32 %v488, %v488
    %v575 = vmul.f32 %v490, %v490
    %v576 = vmul.f32 %v494, %v494
    %v577 = vmul.f32 %v496, %v496
    %v578 = vmul.f32 %v498, %v498
    %v579 = vmul.f32 %v500, %v500
    %v580 = vadd.f32 %v548, %v550
    %v581 = vadd.f32 %v580, %v552
    %v582 = vadd.f32 %v581, %v554
    %v583 = vadd.f32 %v582, %v556
    %v584 = vadd.f32 %v583, %v558
    %v585 = vadd.f32 %v584, %v560
    %v586 = vadd.f32 %v585, %v562
    %v587 = vadd.f32 %v586, %v564
    %v588 = vadd.f32 %v587, %v566
    %v589 = vadd.f32 %v588, %v568
    %v590 = vadd.f32 %v589, %v570
    %v591 = vadd.f32 %v590, %v572
    %v592 = vadd.f32 %v591, %v574
    %v593 = vadd.f32 %v592, %v576
    %v594 = vadd.f32 %v593, %v578
    %v595 = vrot.slane %v594, 4
    %v596 = vadd.f32 %v594, %v595
    %v597 = vrot.slane %v596, 2
    %v598 = vadd.f32 %v596, %v597
    %v599 = vrot.slane %v598, 1
    %v600 = vadd.f32 %v598, %v599
    %v601 = vadd.f32 %v549, %v551
    %v602 = vadd.f32 %v601, %v553
    %v603 = vadd.f32 %v602, %v555
    %v604 = vadd.f32 %v603, %v557
    %v605 = vadd.f32 %v604, %v559
    %v606 = vadd.f32 %v605, %v561
    %v607 = vadd.f32 %v606, %v563
    %v608 = vadd.f32 %v607, %v565
    %v609 = vadd.f32 %v608, %v567
    %v610 = vadd.f32 %v609, %v569
    %v611 = vadd.f32 %v610, %v571
    %v612 = vadd.f32 %v611, %v573
    %v613 = vadd.f32 %v612, %v575
    %v614 = vadd.f32 %v613, %v577
    %v615 = vadd.f32 %v614, %v579
    %v616 = vrot.slane %v615, 4
    %v617 = vadd.f32 %v615, %v616
    %v618 = vrot.slane %v617, 2
    %v619 = vadd.f32 %v617, %v618
    %v620 = vrot.slane %v619, 1
    %v621 = vadd.f32 %v619, %v620
    %v622 = vmul.f32 %v600, 0.0078125
    %v623 = vmul.f32 %v621, 0.0078125
    %v624 = vmul.f32 %v546, %v546
    %v625 = vmul.f32 %v547, %v547
    %v626 = vsub.f32 %v622, %v624
    %v627 = vsub.f32 %v623, %v625
    %v628 = vadd.f32 %v626, 0.8
    %v629 = vadd.f32 %v627, 0.8
    %v630 = vrsqrt.pop %v628
    %v631 = vrsqrt.pop %v629
    %v634 = vcombine.low %v630, %v631
    %v636 = vunpack.c.l.s4 1966171168
    %v637 = vunpack.c.0.s8 %v636
    %v638 = vlaneseq
    %v639 = vshrl.u32 %v638, 7
    %v640 = vsub.s32 %v637, %v639
    %v641 = vrot.slane %v634, %v640
    %v643 = vunpack.c.l.s4 1966171168
    %v644 = vunpack.c.0.s8 %v643
    %v645 = vlaneseq
    %v646 = vshrl.u32 %v645, 7
    %v647 = vsub.s32 %v644, %v646
    %v648 = vrot.slane %v641, %v647
    %v650 = vmul.f32 %v502, %v648
    %v652 = vlaneseq
    %v653 = vshrl.u32 %v652, 7
    %v654 = vsub.s32 0, %v653
    %v655 = vrot.slane %v650, %v654
    %v656 = vlaneseq
    %v657 = vshrl.u32 %v656, 7
    %v658 = vsub.s32 1, %v657
    %v659 = vrot.slane %v650, %v658
    %v662 = vmul.f32 %v546, %v655
    %v663 = vmul.f32 %v547, %v659
    %v666 = vcombine.low %v662, %v663
    %v668 = vunpack.c.l.s4 1966171168
    %v669 = vunpack.c.0.s8 %v668
    %v670 = vlaneseq
    %v671 = vshrl.u32 %v670, 7
    %v672 = vsub.s32 %v669, %v671
    %v673 = vrot.slane %v666, %v672
    %v675 = vunpack.c.l.s4 1966171168
    %v676 = vunpack.c.0.s8 %v675
    %v677 = vlaneseq
    %v678 = vshrl.u32 %v677, 7
    %v679 = vsub.s32 %v676, %v678
    %v680 = vrot.slane %v673, %v679
    %v682 = vsub.f32 %v503, %v680
    %v683 = vmul.f32 %v424, %v655
    %v684 = vmul.f32 %v426, %v659
    %v685 = vmul.f32 %v428, %v655
    %v686 = vmul.f32 %v430, %v659
    %v687 = vmul.f32 %v434, %v655
    %v688 = vmul.f32 %v436, %v659
    %v689 = vmul.f32 %v438, %v655
    %v690 = vmul.f32 %v440, %v659
    %v691 = vmul.f32 %v444, %v655
    %v692 = vmul.f32 %v446, %v659
    %v693 = vmul.f32 %v448, %v655
    %v694 = vmul.f32 %v450, %v659
    %v695 = vmul.f32 %v454, %v655
    %v696 = vmul.f32 %v456, %v659
    %v697 = vmul.f32 %v458, %v655
    %v698 = vmul.f32 %v460, %v659
    %v699 = vmul.f32 %v464, %v655
    %v700 = vmul.f32 %v466, %v659
    %v701 = vmul.f32 %v468, %v655
    %v702 = vmul.f32 %v470, %v659
    %v703 = vmul.f32 %v474, %v655
    %v704 = vmul.f32 %v476, %v659
    %v705 = vmul.f32 %v478, %v655
    %v706 = vmul.f32 %v480, %v659
    %v707 = vmul.f32 %v484, %v655
    %v708 = vmul.f32 %v486, %v659
    %v709 = vmul.f32 %v488, %v655
    %v710 = vmul.f32 %v490, %v659
    %v711 = vmul.f32 %v494, %v655
    %v712 = vmul.f32 %v496, %v659
    %v713 = vmul.f32 %v498, %v655
    %v714 = vmul.f32 %v500, %v659
    %v716 = vlaneseq
    %v717 = vshrl.u32 %v716, 7
    %v718 = vsub.s32 0, %v717
    %v719 = vrot.slane %v682, %v718
    %v720 = vlaneseq
    %v721 = vshrl.u32 %v720, 7
    %v722 = vsub.s32 1, %v721
    %v723 = vrot.slane %v682, %v722
    %v726 = vadd.f32 %v683, %v719
    %v727 = vadd.f32 %v684, %v723
    %v728 = vadd.f32 %v685, %v719
    %v729 = vadd.f32 %v686, %v723
    %v730 = vadd.f32 %v687, %v719
    %v731 = vadd.f32 %v688, %v723
    %v732 = vadd.f32 %v689, %v719
    %v733 = vadd.f32 %v690, %v723
    %v734 = vadd.f32 %v691, %v719
    %v735 = vadd.f32 %v692, %v723
    %v736 = vadd.f32 %v693, %v719
    %v737 = vadd.f32 %v694, %v723
    %v738 = vadd.f32 %v695, %v719
    %v739 = vadd.f32 %v696, %v723
    %v740 = vadd.f32 %v697, %v719
    %v741 = vadd.f32 %v698, %v723
    %v742 = vadd.f32 %v699, %v719
    %v743 = vadd.f32 %v700, %v723
    %v744 = vadd.f32 %v701, %v719
    %v745 = vadd.f32 %v702, %v723
    %v746 = vadd.f32 %v703, %v719
    %v747 = vadd.f32 %v704, %v723
    %v748 = vadd.f32 %v705, %v719
    %v749 = vadd.f32 %v706, %v723
    %v750 = vadd.f32 %v707, %v719
    %v751 = vadd.f32 %v708, %v723
    %v752 = vadd.f32 %v709, %v719
    %v753 = vadd.f32 %v710, %v723
    %v754 = vadd.f32 %v711, %v719
    %v755 = vadd.f32 %v712, %v723
    %v756 = vadd.f32 %v713, %v719
    %v757 = vadd.f32 %v714, %v723
    %vm758 = vcmp.gt.f32.partialorder %v726, 0.0
    %vm759 = vcmp.gt.f32.partialorder %v727, 0.0
    %vm760 = vcmp.gt.f32.partialorder %v728, 0.0
    %vm761 = vcmp.gt.f32.partialorder %v729, 0.0
    %vm762 = vcmp.gt.f32.partialorder %v730, 0.0
    %vm763 = vcmp.gt.f32.partialorder %v731, 0.0
    %vm764 = vcmp.gt.f32.partialorder %v732, 0.0
    %vm765 = vcmp.gt.f32.partialorder %v733, 0.0
    %vm766 = vcmp.gt.f32.partialorder %v734, 0.0
    %vm767 = vcmp.gt.f32.partialorder %v735, 0.0
    %vm768 = vcmp.gt.f32.partialorder %v736, 0.0
    %vm769 = vcmp.gt.f32.partialorder %v737, 0.0
    %vm770 = vcmp.gt.f32.partialorder %v738, 0.0
    %vm771 = vcmp.gt.f32.partialorder %v739, 0.0
    %vm772 = vcmp.gt.f32.partialorder %v740, 0.0
    %vm773 = vcmp.gt.f32.partialorder %v741, 0.0
    %vm774 = vcmp.gt.f32.partialorder %v742, 0.0
    %vm775 = vcmp.gt.f32.partialorder %v743, 0.0
    %vm776 = vcmp.gt.f32.partialorder %v744, 0.0
    %vm777 = vcmp.gt.f32.partialorder %v745, 0.0
    %vm778 = vcmp.gt.f32.partialorder %v746, 0.0
    %vm779 = vcmp.gt.f32.partialorder %v747, 0.0
    %vm780 = vcmp.gt.f32.partialorder %v748, 0.0
    %vm781 = vcmp.gt.f32.partialorder %v749, 0.0
    %vm782 = vcmp.gt.f32.partialorder %v750, 0.0
    %vm783 = vcmp.gt.f32.partialorder %v751, 0.0
    %vm784 = vcmp.gt.f32.partialorder %v752, 0.0
    %vm785 = vcmp.gt.f32.partialorder %v753, 0.0
    %vm786 = vcmp.gt.f32.partialorder %v754, 0.0
    %vm787 = vcmp.gt.f32.partialorder %v755, 0.0
    %vm788 = vcmp.gt.f32.partialorder %v756, 0.0
    %vm789 = vcmp.gt.f32.partialorder %v757, 0.0
    %v790 = vmul.f32 %v726, 0.2
    %v791 = vmul.f32 %v727, 0.2
    %v792 = vmul.f32 %v728, 0.2
    %v793 = vmul.f32 %v729, 0.2
    %v794 = vmul.f32 %v730, 0.2
    %v795 = vmul.f32 %v731, 0.2
    %v796 = vmul.f32 %v732, 0.2
    %v797 = vmul.f32 %v733, 0.2
    %v798 = vmul.f32 %v734, 0.2
    %v799 = vmul.f32 %v735, 0.2
    %v800 = vmul.f32 %v736, 0.2
    %v801 = vmul.f32 %v737, 0.2
    %v802 = vmul.f32 %v738, 0.2
    %v803 = vmul.f32 %v739, 0.2
    %v804 = vmul.f32 %v740, 0.2
    %v805 = vmul.f32 %v741, 0.2
    %v806 = vmul.f32 %v742, 0.2
    %v807 = vmul.f32 %v743, 0.2
    %v808 = vmul.f32 %v744, 0.2
    %v809 = vmul.f32 %v745, 0.2
    %v810 = vmul.f32 %v746, 0.2
    %v811 = vmul.f32 %v747, 0.2
    %v812 = vmul.f32 %v748, 0.2
    %v813 = vmul.f32 %v749, 0.2
    %v814 = vmul.f32 %v750, 0.2
    %v815 = vmul.f32 %v751, 0.2
    %v816 = vmul.f32 %v752, 0.2
    %v817 = vmul.f32 %v753, 0.2
    %v818 = vmul.f32 %v754, 0.2
    %v819 = vmul.f32 %v755, 0.2
    %v820 = vmul.f32 %v756, 0.2
    %v821 = vmul.f32 %v757, 0.2
    %v822 = vsel %vm758, %v726, %v790
    %v823 = vsel %vm759, %v727, %v791
    %v824 = vsel %vm760, %v728, %v792
    %v825 = vsel %vm761, %v729, %v793
    %v826 = vsel %vm762, %v730, %v794
    %v827 = vsel %vm763, %v731, %v795
    %v828 = vsel %vm764, %v732, %v796
    %v829 = vsel %vm765, %v733, %v797
    %v830 = vsel %vm766, %v734, %v798
    %v831 = vsel %vm767, %v735, %v799
    %v832 = vsel %vm768, %v736, %v800
    %v833 = vsel %vm769, %v737, %v801
    %v834 = vsel %vm770, %v738, %v802
    %v835 = vsel %vm771, %v739, %v803
    %v836 = vsel %vm772, %v740, %v804
    %v837 = vsel %vm773, %v741, %v805
    %v838 = vsel %vm774, %v742, %v806
    %v839 = vsel %vm775, %v743, %v807
    %v840 = vsel %vm776, %v744, %v808
    %v841 = vsel %vm777, %v745, %v809
    %v842 = vsel %vm778, %v746, %v810
    %v843 = vsel %vm779, %v747, %v811
    %v844 = vsel %vm780, %v748, %v812
    %v845 = vsel %vm781, %v749, %v813
    %v846 = vsel %vm782, %v750, %v814
    %v847 = vsel %vm783, %v751, %v815
    %v848 = vsel %vm784, %v752, %v816
    %v849 = vsel %vm785, %v753, %v817
    %v850 = vsel %vm786, %v754, %v818
    %v851 = vsel %vm787, %v755, %v819
    %v852 = vsel %vm788, %v756, %v820
    %v853 = vsel %vm789, %v757, %v821
    %v854 = vpack.c.bf16 %v824, %v822
    %v855 = vpack.c.bf16 %v825, %v823
    %v856 = vpack.c.bf16 %v828, %v826
    %v857 = vpack.c.bf16 %v829, %v827
    %v858 = vpack.c.bf16 %v832, %v830
    %v859 = vpack.c.bf16 %v833, %v831
    %v860 = vpack.c.bf16 %v836, %v834
    %v861 = vpack.c.bf16 %v837, %v835
    %v862 = vpack.c.bf16 %v840, %v838
    %v863 = vpack.c.bf16 %v841, %v839
    %v864 = vpack.c.bf16 %v844, %v842
    %v865 = vpack.c.bf16 %v845, %v843
    %v866 = vpack.c.bf16 %v848, %v846
    %v867 = vpack.c.bf16 %v849, %v847
    %v868 = vpack.c.bf16 %v852, %v850
    %v869 = vpack.c.bf16 %v853, %v851
    %s870 = scalar_lea.sflag [#allocation5], 2
    // Predicated region
    $region26: #{generator_forward.1} parent=1 // pred_check
      _
    $region27: #{generator_forward.1} parent=1 // pred_check_branch
      %872 = sbr.rel target = $region29
    $region28: #{generator_forward.1} parent=1 // pred_region
      %873 = sst [smem:[#allocation10]] [#allocation15]
      %874 = sst [smem:[#allocation11]] [#allocation14]
    $region29: #{generator_forward.1} parent=1 // pred_fallthru
      _
    %876 = shalt.err (0)
    %s878 = sshll.u32 [#allocation4], 4
    %s879 = int_to_ptr.vmem [resolvable:$true] %s878
    %881 = dma.hbm_to_vmem [thread:$0]  %s6, 16384, %s879, %s870
    %s882 = smul.u32 4, 32
    %s883 = smul.u32 %s882, 4
    %s884 = sshll.u32 %s883, 4
    %885 = dma.done [#allocation5], %s884
    %v886 = vld [vmem:[#allocation2] sm:$0xff]
    %v887 = vld [vmem:[#allocation2 + $0x8] sm:$0xff]
    %v888 = vld [vmem:[#allocation2 + $0x10] sm:$0xff]
    %v889 = vld [vmem:[#allocation2 + $0x18] sm:$0xff]
    %v890 = vld [vmem:[#allocation2 + $0x20] sm:$0xff]
    %v891 = vld [vmem:[#allocation2 + $0x28] sm:$0xff]
    %v892 = vld [vmem:[#allocation2 + $0x30] sm:$0xff]
    %v893 = vld [vmem:[#allocation2 + $0x38] sm:$0xff]
    %v894 = vld [vmem:[#allocation2 + $0x40] sm:$0xff]
    %v895 = vld [vmem:[#allocation2 + $0x48] sm:$0xff]
    %v896 = vld [vmem:[#allocation2 + $0x50] sm:$0xff]
    %v897 = vld [vmem:[#allocation2 + $0x58] sm:$0xff]
    %v898 = vld [vmem:[#allocation2 + $0x60] sm:$0xff]
    %v899 = vld [vmem:[#allocation2 + $0x68] sm:$0xff]
    %v900 = vld [vmem:[#allocation2 + $0x70] sm:$0xff]
    %v901 = vld [vmem:[#allocation2 + $0x78] sm:$0xff]
    %v902 = vld [vmem:[#allocation2 + $0x80] sm:$0xff]
    %v903 = vld [vmem:[#allocation2 + $0x88] sm:$0xff]
    %v904 = vld [vmem:[#allocation2 + $0x90] sm:$0xff]
    %v905 = vld [vmem:[#allocation2 + $0x98] sm:$0xff]
    %v906 = vld [vmem:[#allocation2 + $0xa0] sm:$0xff]
    %v907 = vld [vmem:[#allocation2 + $0xa8] sm:$0xff]
    %v908 = vld [vmem:[#allocation2 + $0xb0] sm:$0xff]
    %v909 = vld [vmem:[#allocation2 + $0xb8] sm:$0xff]
    %v910 = vld [vmem:[#allocation2 + $0xc0] sm:$0xff]
    %v911 = vld [vmem:[#allocation2 + $0xc8] sm:$0xff]
    %v912 = vld [vmem:[#allocation2 + $0xd0] sm:$0xff]
    %v913 = vld [vmem:[#allocation2 + $0xd8] sm:$0xff]
    %v914 = vld [vmem:[#allocation2 + $0xe0] sm:$0xff]
    %v915 = vld [vmem:[#allocation2 + $0xe8] sm:$0xff]
    %v916 = vld [vmem:[#allocation2 + $0xf0] sm:$0xff]
    %v917 = vld [vmem:[#allocation2 + $0xf8] sm:$0xff]
    %v918 = vld [vmem:[#allocation2 + $0x100] sm:$0xff]
    %v919 = vld [vmem:[#allocation2 + $0x108] sm:$0xff]
    %v920 = vld [vmem:[#allocation2 + $0x110] sm:$0xff]
    %v921 = vld [vmem:[#allocation2 + $0x118] sm:$0xff]
    %v922 = vld [vmem:[#allocation2 + $0x120] sm:$0xff]
    %v923 = vld [vmem:[#allocation2 + $0x128] sm:$0xff]
    %v924 = vld [vmem:[#allocation2 + $0x130] sm:$0xff]
    %v925 = vld [vmem:[#allocation2 + $0x138] sm:$0xff]
    %v926 = vld [vmem:[#allocation2 + $0x140] sm:$0xff]
    %v927 = vld [vmem:[#allocation2 + $0x148] sm:$0xff]
    %v928 = vld [vmem:[#allocation2 + $0x150] sm:$0xff]
    %v929 = vld [vmem:[#allocation2 + $0x158] sm:$0xff]
    %v930 = vld [vmem:[#allocation2 + $0x160] sm:$0xff]
    %v931 = vld [vmem:[#allocation2 + $0x168] sm:$0xff]
    %v932 = vld [vmem:[#allocation2 + $0x170] sm:$0xff]
    %v933 = vld [vmem:[#allocation2 + $0x178] sm:$0xff]
    %v934 = vld [vmem:[#allocation2 + $0x180] sm:$0xff]
    %v935 = vld [vmem:[#allocation2 + $0x188] sm:$0xff]
    %v936 = vld [vmem:[#allocation2 + $0x190] sm:$0xff]
    %v937 = vld [vmem:[#allocation2 + $0x198] sm:$0xff]
    %v938 = vld [vmem:[#allocation2 + $0x1a0] sm:$0xff]
    %v939 = vld [vmem:[#allocation2 + $0x1a8] sm:$0xff]
    %v940 = vld [vmem:[#allocation2 + $0x1b0] sm:$0xff]
    %v941 = vld [vmem:[#allocation2 + $0x1b8] sm:$0xff]
    %v942 = vld [vmem:[#allocation2 + $0x1c0] sm:$0xff]
    %v943 = vld [vmem:[#allocation2 + $0x1c8] sm:$0xff]
    %v944 = vld [vmem:[#allocation2 + $0x1d0] sm:$0xff]
    %v945 = vld [vmem:[#allocation2 + $0x1d8] sm:$0xff]
    %v946 = vld [vmem:[#allocation2 + $0x1e0] sm:$0xff]
    %v947 = vld [vmem:[#allocation2 + $0x1e8] sm:$0xff]
    %v948 = vld [vmem:[#allocation2 + $0x1f0] sm:$0xff]
    %v949 = vld [vmem:[#allocation2 + $0x1f8] sm:$0xff]
    %v1014 = vunpack.c.l.b16 %v886
    %v1015 = vunpack.c.h.b16 %v886
    %v1016 = vunpack.c.l.b16 %v887
    %v1017 = vunpack.c.h.b16 %v887
    %v1018 = vunpack.c.l.b16 %v888
    %v1019 = vunpack.c.h.b16 %v888
    %v1020 = vunpack.c.l.b16 %v889
    %v1021 = vunpack.c.h.b16 %v889
    %v1022 = vunpack.c.l.b16 %v890
    %v1023 = vunpack.c.h.b16 %v890
    %v1024 = vunpack.c.l.b16 %v891
    %v1025 = vunpack.c.h.b16 %v891
    %v1026 = vunpack.c.l.b16 %v892
    %v1027 = vunpack.c.h.b16 %v892
    %v1028 = vunpack.c.l.b16 %v893
    %v1029 = vunpack.c.h.b16 %v893
    %v1030 = vunpack.c.l.b16 %v894
    %v1031 = vunpack.c.h.b16 %v894
    %v1032 = vunpack.c.l.b16 %v895
    %v1033 = vunpack.c.h.b16 %v895
    %v1034 = vunpack.c.l.b16 %v896
    %v1035 = vunpack.c.h.b16 %v896
    %v1036 = vunpack.c.l.b16 %v897
    %v1037 = vunpack.c.h.b16 %v897
    %v1038 = vunpack.c.l.b16 %v898
    %v1039 = vunpack.c.h.b16 %v898
    %v1040 = vunpack.c.l.b16 %v899
    %v1041 = vunpack.c.h.b16 %v899
    %v1042 = vunpack.c.l.b16 %v900
    %v1043 = vunpack.c.h.b16 %v900
    %v1044 = vunpack.c.l.b16 %v901
    %v1045 = vunpack.c.h.b16 %v901
    %v1046 = vunpack.c.l.b16 %v902
    %v1047 = vunpack.c.h.b16 %v902
    %v1048 = vunpack.c.l.b16 %v903
    %v1049 = vunpack.c.h.b16 %v903
    %v1050 = vunpack.c.l.b16 %v904
    %v1051 = vunpack.c.h.b16 %v904
    %v1052 = vunpack.c.l.b16 %v905
    %v1053 = vunpack.c.h.b16 %v905
    %v1054 = vunpack.c.l.b16 %v906
    %v1055 = vunpack.c.h.b16 %v906
    %v1056 = vunpack.c.l.b16 %v907
    %v1057 = vunpack.c.h.b16 %v907
    %v1058 = vunpack.c.l.b16 %v908
    %v1059 = vunpack.c.h.b16 %v908
    %v1060 = vunpack.c.l.b16 %v909
    %v1061 = vunpack.c.h.b16 %v909
    %v1062 = vunpack.c.l.b16 %v910
    %v1063 = vunpack.c.h.b16 %v910
    %v1064 = vunpack.c.l.b16 %v911
    %v1065 = vunpack.c.h.b16 %v911
    %v1066 = vunpack.c.l.b16 %v912
    %v1067 = vunpack.c.h.b16 %v912
    %v1068 = vunpack.c.l.b16 %v913
    %v1069 = vunpack.c.h.b16 %v913
    %v1070 = vunpack.c.l.b16 %v914
    %v1071 = vunpack.c.h.b16 %v914
    %v1072 = vunpack.c.l.b16 %v915
    %v1073 = vunpack.c.h.b16 %v915
    %v1074 = vunpack.c.l.b16 %v916
    %v1075 = vunpack.c.h.b16 %v916
    %v1076 = vunpack.c.l.b16 %v917
    %v1077 = vunpack.c.h.b16 %v917
    %v1078 = vunpack.c.l.b16 %v918
    %v1079 = vunpack.c.h.b16 %v918
    %v1080 = vunpack.c.l.b16 %v919
    %v1081 = vunpack.c.h.b16 %v919
    %v1082 = vunpack.c.l.b16 %v920
    %v1083 = vunpack.c.h.b16 %v920
    %v1084 = vunpack.c.l.b16 %v921
    %v1085 = vunpack.c.h.b16 %v921
    %v1086 = vunpack.c.l.b16 %v922
    %v1087 = vunpack.c.h.b16 %v922
    %v1088 = vunpack.c.l.b16 %v923
    %v1089 = vunpack.c.h.b16 %v923
    %v1090 = vunpack.c.l.b16 %v924
    %v1091 = vunpack.c.h.b16 %v924
    %v1092 = vunpack.c.l.b16 %v925
    %v1093 = vunpack.c.h.b16 %v925
    %v1094 = vunpack.c.l.b16 %v926
    %v1095 = vunpack.c.h.b16 %v926
    %v1096 = vunpack.c.l.b16 %v927
    %v1097 = vunpack.c.h.b16 %v927
    %v1098 = vunpack.c.l.b16 %v928
    %v1099 = vunpack.c.h.b16 %v928
    %v1100 = vunpack.c.l.b16 %v929
    %v1101 = vunpack.c.h.b16 %v929
    %v1102 = vunpack.c.l.b16 %v930
    %v1103 = vunpack.c.h.b16 %v930
    %v1104 = vunpack.c.l.b16 %v931
    %v1105 = vunpack.c.h.b16 %v931
    %v1106 = vunpack.c.l.b16 %v932
    %v1107 = vunpack.c.h.b16 %v932
    %v1108 = vunpack.c.l.b16 %v933
    %v1109 = vunpack.c.h.b16 %v933
    %v1110 = vunpack.c.l.b16 %v934
    %v1111 = vunpack.c.h.b16 %v934
    %v1112 = vunpack.c.l.b16 %v935
    %v1113 = vunpack.c.h.b16 %v935
    %v1114 = vunpack.c.l.b16 %v936
    %v1115 = vunpack.c.h.b16 %v936
    %v1116 = vunpack.c.l.b16 %v937
    %v1117 = vunpack.c.h.b16 %v937
    %v1118 = vunpack.c.l.b16 %v938
    %v1119 = vunpack.c.h.b16 %v938
    %v1120 = vunpack.c.l.b16 %v939
    %v1121 = vunpack.c.h.b16 %v939
    %v1122 = vunpack.c.l.b16 %v940
    %v1123 = vunpack.c.h.b16 %v940
    %v1124 = vunpack.c.l.b16 %v941
    %v1125 = vunpack.c.h.b16 %v941
    %v1126 = vunpack.c.l.b16 %v942
    %v1127 = vunpack.c.h.b16 %v942
    %v1128 = vunpack.c.l.b16 %v943
    %v1129 = vunpack.c.h.b16 %v943
    %v1130 = vunpack.c.l.b16 %v944
    %v1131 = vunpack.c.h.b16 %v944
    %v1132 = vunpack.c.l.b16 %v945
    %v1133 = vunpack.c.h.b16 %v945
    %v1134 = vunpack.c.l.b16 %v946
    %v1135 = vunpack.c.h.b16 %v946
    %v1136 = vunpack.c.l.b16 %v947
    %v1137 = vunpack.c.h.b16 %v947
    %v1138 = vunpack.c.l.b16 %v948
    %v1139 = vunpack.c.h.b16 %v948
    %v1140 = vunpack.c.l.b16 %v949
    %v1141 = vunpack.c.h.b16 %v949
    %v1142 = vpack.c.b16 %v1018, %v1014
    %v1143 = vpack.c.b16 %v1019, %v1015
    %v1144 = vpack.c.b16 %v1020, %v1016
    %v1145 = vpack.c.b16 %v1021, %v1017
    %v1146 = vpack.c.b16 %v1026, %v1022
    %v1147 = vpack.c.b16 %v1027, %v1023
    %v1148 = vpack.c.b16 %v1028, %v1024
    %v1149 = vpack.c.b16 %v1029, %v1025
    %v1150 = vpack.c.b16 %v1034, %v1030
    %v1151 = vpack.c.b16 %v1035, %v1031
    %v1152 = vpack.c.b16 %v1036, %v1032
    %v1153 = vpack.c.b16 %v1037, %v1033
    %v1154 = vpack.c.b16 %v1042, %v1038
    %v1155 = vpack.c.b16 %v1043, %v1039
    %v1156 = vpack.c.b16 %v1044, %v1040
    %v1157 = vpack.c.b16 %v1045, %v1041
    %v1158 = vpack.c.b16 %v1050, %v1046
    %v1159 = vpack.c.b16 %v1051, %v1047
    %v1160 = vpack.c.b16 %v1052, %v1048
    %v1161 = vpack.c.b16 %v1053, %v1049
    %v1162 = vpack.c.b16 %v1058, %v1054
    %v1163 = vpack.c.b16 %v1059, %v1055
    %v1164 = vpack.c.b16 %v1060, %v1056
    %v1165 = vpack.c.b16 %v1061, %v1057
    %v1166 = vpack.c.b16 %v1066, %v1062
    %v1167 = vpack.c.b16 %v1067, %v1063
    %v1168 = vpack.c.b16 %v1068, %v1064
    %v1169 = vpack.c.b16 %v1069, %v1065
    %v1170 = vpack.c.b16 %v1074, %v1070
    %v1171 = vpack.c.b16 %v1075, %v1071
    %v1172 = vpack.c.b16 %v1076, %v1072
    %v1173 = vpack.c.b16 %v1077, %v1073
    %v1174 = vpack.c.b16 %v1082, %v1078
    %v1175 = vpack.c.b16 %v1083, %v1079
    %v1176 = vpack.c.b16 %v1084, %v1080
    %v1177 = vpack.c.b16 %v1085, %v1081
    %v1178 = vpack.c.b16 %v1090, %v1086
    %v1179 = vpack.c.b16 %v1091, %v1087
    %v1180 = vpack.c.b16 %v1092, %v1088
    %v1181 = vpack.c.b16 %v1093, %v1089
    %v1182 = vpack.c.b16 %v1098, %v1094
    %v1183 = vpack.c.b16 %v1099, %v1095
    %v1184 = vpack.c.b16 %v1100, %v1096
    %v1185 = vpack.c.b16 %v1101, %v1097
    %v1186 = vpack.c.b16 %v1106, %v1102
    %v1187 = vpack.c.b16 %v1107, %v1103
    %v1188 = vpack.c.b16 %v1108, %v1104
    %v1189 = vpack.c.b16 %v1109, %v1105
    %v1190 = vpack.c.b16 %v1114, %v1110
    %v1191 = vpack.c.b16 %v1115, %v1111
    %v1192 = vpack.c.b16 %v1116, %v1112
    %v1193 = vpack.c.b16 %v1117, %v1113
    %v1194 = vpack.c.b16 %v1122, %v1118
    %v1195 = vpack.c.b16 %v1123, %v1119
    %v1196 = vpack.c.b16 %v1124, %v1120
    %v1197 = vpack.c.b16 %v1125, %v1121
    %v1198 = vpack.c.b16 %v1130, %v1126
    %v1199 = vpack.c.b16 %v1131, %v1127
    %v1200 = vpack.c.b16 %v1132, %v1128
    %v1201 = vpack.c.b16 %v1133, %v1129
    %v1202 = vpack.c.b16 %v1138, %v1134
    %v1203 = vpack.c.b16 %v1139, %v1135
    %v1204 = vpack.c.b16 %v1140, %v1136
    %v1205 = vpack.c.b16 %v1141, %v1137
    %1270 = vmatprep.subr.bf16.mxu0 %v1171
    %1271 = vmatpush1.bf16.msra.mxu0 %v1170
    %1272 = vmatprep.subr.bf16.mxu0 %v1167
    %1273 = vmatpush1.bf16.msra.mxu0 %v1166
    %1274 = vmatprep.subr.bf16.mxu0 %v1163
    %1275 = vmatpush1.bf16.msra.mxu0 %v1162
    %1276 = vmatprep.subr.bf16.mxu0 %v1159
    %1277 = vmatpush1.bf16.msra.mxu0 %v1158
    %1278 = vmatprep.subr.bf16.mxu0 %v1155
    %1279 = vmatpush1.bf16.msra.mxu0 %v1154
    %1280 = vmatprep.subr.bf16.mxu0 %v1151
    %1281 = vmatpush1.bf16.msra.mxu0 %v1150
    %1282 = vmatprep.subr.bf16.mxu0 %v1147
    %1283 = vmatpush1.bf16.msra.mxu0 %v1146
    %1284 = vmatprep.subr.bf16.mxu0 %v1143
    %1285 = vmatpush1.bf16.msra.mxu0 %v1142
    %1286 = vmatprep.subr.bf16.mxu0 %v1203
    %1287 = vmatpush2.bf16.msra.mxu0 %v1202
    %1288 = vmatprep.subr.bf16.mxu0 %v1199
    %1289 = vmatpush2.bf16.msra.mxu0 %v1198
    %1290 = vmatprep.subr.bf16.mxu0 %v1195
    %1291 = vmatpush2.bf16.msra.mxu0 %v1194
    %1292 = vmatprep.subr.bf16.mxu0 %v1191
    %1293 = vmatpush2.bf16.msra.mxu0 %v1190
    %1294 = vmatprep.subr.bf16.mxu0 %v1187
    %1295 = vmatpush2.bf16.msra.mxu0 %v1186
    %1296 = vmatprep.subr.bf16.mxu0 %v1183
    %1297 = vmatpush2.bf16.msra.mxu0 %v1182
    %1298 = vmatprep.subr.bf16.mxu0 %v1179
    %1299 = vmatpush2.bf16.msra.mxu0 %v1178
    %1300 = vmatprep.subr.bf16.mxu0 %v1175
    %1301 = vmatpush2.bf16.msra.mxu0 %v1174
    %1302 = vmatprep.mubr.bf16.mxu0 %v855
    %1303 = vmatmul.mubr.bf16.gmra.mxu0 %v854
    %v1304 = vpop.f32.mrf.mxu0
    %v1305 = vadd.f32 0.0, %v1304
    %v1306 = vpop.f32.mrf.mxu0
    %v1307 = vadd.f32 0.0, %v1306
    %v1308 = vpop.f32.mrf.mxu0
    %v1309 = vadd.f32 0.0, %v1308
    %v1310 = vpop.f32.mrf.mxu0
    %v1311 = vadd.f32 0.0, %v1310
    %1312 = vmatprep.mubr.bf16.mxu0 %v857
    %1313 = vmatmul.mubr.bf16.gmra.mxu0 %v856
    %v1314 = vpop.f32.mrf.mxu0
    %v1315 = vadd.f32 0.0, %v1314
    %v1316 = vpop.f32.mrf.mxu0
    %v1317 = vadd.f32 0.0, %v1316
    %v1318 = vpop.f32.mrf.mxu0
    %v1319 = vadd.f32 0.0, %v1318
    %v1320 = vpop.f32.mrf.mxu0
    %v1321 = vadd.f32 0.0, %v1320
    %1322 = vmatprep.mubr.bf16.mxu0 %v859
    %1323 = vmatmul.mubr.bf16.gmra.mxu0 %v858
    %v1324 = vpop.f32.mrf.mxu0
    %v1325 = vadd.f32 0.0, %v1324
    %v1326 = vpop.f32.mrf.mxu0
    %v1327 = vadd.f32 0.0, %v1326
    %v1328 = vpop.f32.mrf.mxu0
    %v1329 = vadd.f32 0.0, %v1328
    %v1330 = vpop.f32.mrf.mxu0
    %v1331 = vadd.f32 0.0, %v1330
    %1332 = vmatprep.mubr.bf16.mxu0 %v861
    %1333 = vmatmul.mubr.bf16.gmra.mxu0 %v860
    %v1334 = vpop.f32.mrf.mxu0
    %v1335 = vadd.f32 0.0, %v1334
    %v1336 = vpop.f32.mrf.mxu0
    %v1337 = vadd.f32 0.0, %v1336
    %v1338 = vpop.f32.mrf.mxu0
    %v1339 = vadd.f32 0.0, %v1338
    %v1340 = vpop.f32.mrf.mxu0
    %v1341 = vadd.f32 0.0, %v1340
    %1342 = vmatprep.mubr.bf16.mxu0 %v863
    %1343 = vmatmul.mubr.bf16.gmra.mxu0 %v862
    %v1344 = vpop.f32.mrf.mxu0
    %v1345 = vadd.f32 0.0, %v1344
    %v1346 = vpop.f32.mrf.mxu0
    %v1347 = vadd.f32 0.0, %v1346
    %v1348 = vpop.f32.mrf.mxu0
    %v1349 = vadd.f32 0.0, %v1348
    %v1350 = vpop.f32.mrf.mxu0
    %v1351 = vadd.f32 0.0, %v1350
    %1352 = vmatprep.mubr.bf16.mxu0 %v865
    %1353 = vmatmul.mubr.bf16.gmra.mxu0 %v864
    %v1354 = vpop.f32.mrf.mxu0
    %v1355 = vadd.f32 0.0, %v1354
    %v1356 = vpop.f32.mrf.mxu0
    %v1357 = vadd.f32 0.0, %v1356
    %v1358 = vpop.f32.mrf.mxu0
    %v1359 = vadd.f32 0.0, %v1358
    %v1360 = vpop.f32.mrf.mxu0
    %v1361 = vadd.f32 0.0, %v1360
    %1362 = vmatprep.mubr.bf16.mxu0 %v867
    %1363 = vmatmul.mubr.bf16.gmra.mxu0 %v866
    %v1364 = vpop.f32.mrf.mxu0
    %v1365 = vadd.f32 0.0, %v1364
    %v1366 = vpop.f32.mrf.mxu0
    %v1367 = vadd.f32 0.0, %v1366
    %v1368 = vpop.f32.mrf.mxu0
    %v1369 = vadd.f32 0.0, %v1368
    %v1370 = vpop.f32.mrf.mxu0
    %v1371 = vadd.f32 0.0, %v1370
    %1372 = vmatprep.mubr.bf16.mxu0 %v869
    %1373 = vmatmul.mubr.bf16.gmra.mxu0 %v868
    %v1374 = vpop.f32.mrf.mxu0
    %v1375 = vadd.f32 0.0, %v1374
    %v1376 = vpop.f32.mrf.mxu0
    %v1377 = vadd.f32 0.0, %v1376
    %v1378 = vpop.f32.mrf.mxu0
    %v1379 = vadd.f32 0.0, %v1378
    %v1380 = vpop.f32.mrf.mxu0
    %v1381 = vadd.f32 0.0, %v1380
    %1382 = vdwg.mxu0
    %1383 = vmatprep.subr.bf16.mxu0 %v1173
    %1384 = vmatpush1.bf16.msra.mxu0 %v1172
    %1385 = vmatprep.subr.bf16.mxu0 %v1169
    %1386 = vmatpush1.bf16.msra.mxu0 %v1168
    %1387 = vmatprep.subr.bf16.mxu0 %v1165
    %1388 = vmatpush1.bf16.msra.mxu0 %v1164
    %1389 = vmatprep.subr.bf16.mxu0 %v1161
    %1390 = vmatpush1.bf16.msra.mxu0 %v1160
    %1391 = vmatprep.subr.bf16.mxu0 %v1157
    %1392 = vmatpush1.bf16.msra.mxu0 %v1156
    %1393 = vmatprep.subr.bf16.mxu0 %v1153
    %1394 = vmatpush1.bf16.msra.mxu0 %v1152
    %1395 = vmatprep.subr.bf16.mxu0 %v1149
    %1396 = vmatpush1.bf16.msra.mxu0 %v1148
    %1397 = vmatprep.subr.bf16.mxu0 %v1145
    %1398 = vmatpush1.bf16.msra.mxu0 %v1144
    %1399 = vmatprep.subr.bf16.mxu0 %v1205
    %1400 = vmatpush2.bf16.msra.mxu0 %v1204
    %1401 = vmatprep.subr.bf16.mxu0 %v1201
    %1402 = vmatpush2.bf16.msra.mxu0 %v1200
    %1403 = vmatprep.subr.bf16.mxu0 %v1197
    %1404 = vmatpush2.bf16.msra.mxu0 %v1196
    %1405 = vmatprep.subr.bf16.mxu0 %v1193
    %1406 = vmatpush2.bf16.msra.mxu0 %v1192
    %1407 = vmatprep.subr.bf16.mxu0 %v1189
    %1408 = vmatpush2.bf16.msra.mxu0 %v1188
    %1409 = vmatprep.subr.bf16.mxu0 %v1185
    %1410 = vmatpush2.bf16.msra.mxu0 %v1184
    %1411 = vmatprep.subr.bf16.mxu0 %v1181
    %1412 = vmatpush2.bf16.msra.mxu0 %v1180
    %1413 = vmatprep.subr.bf16.mxu0 %v1177
    %1414 = vmatpush2.bf16.msra.mxu0 %v1176
    %1415 = vmatprep.mubr.bf16.mxu0 %v855
    %1416 = vmatmul.mubr.bf16.gmra.mxu0 %v854
    %v1417 = vpop.f32.mrf.mxu0
    %v1418 = vadd.f32 0.0, %v1417
    %v1419 = vpop.f32.mrf.mxu0
    %v1420 = vadd.f32 0.0, %v1419
    %v1421 = vpop.f32.mrf.mxu0
    %v1422 = vadd.f32 0.0, %v1421
    %v1423 = vpop.f32.mrf.mxu0
    %v1424 = vadd.f32 0.0, %v1423
    %1425 = vmatprep.mubr.bf16.mxu0 %v857
    %1426 = vmatmul.mubr.bf16.gmra.mxu0 %v856
    %v1427 = vpop.f32.mrf.mxu0
    %v1428 = vadd.f32 0.0, %v1427
    %v1429 = vpop.f32.mrf.mxu0
    %v1430 = vadd.f32 0.0, %v1429
    %v1431 = vpop.f32.mrf.mxu0
    %v1432 = vadd.f32 0.0, %v1431
    %v1433 = vpop.f32.mrf.mxu0
    %v1434 = vadd.f32 0.0, %v1433
    %1435 = vmatprep.mubr.bf16.mxu0 %v859
    %1436 = vmatmul.mubr.bf16.gmra.mxu0 %v858
    %v1437 = vpop.f32.mrf.mxu0
    %v1438 = vadd.f32 0.0, %v1437
    %v1439 = vpop.f32.mrf.mxu0
    %v1440 = vadd.f32 0.0, %v1439
    %v1441 = vpop.f32.mrf.mxu0
    %v1442 = vadd.f32 0.0, %v1441
    %v1443 = vpop.f32.mrf.mxu0
    %v1444 = vadd.f32 0.0, %v1443
    %1445 = vmatprep.mubr.bf16.mxu0 %v861
    %1446 = vmatmul.mubr.bf16.gmra.mxu0 %v860
    %v1447 = vpop.f32.mrf.mxu0
    %v1448 = vadd.f32 0.0, %v1447
    %v1449 = vpop.f32.mrf.mxu0
    %v1450 = vadd.f32 0.0, %v1449
    %v1451 = vpop.f32.mrf.mxu0
    %v1452 = vadd.f32 0.0, %v1451
    %v1453 = vpop.f32.mrf.mxu0
    %v1454 = vadd.f32 0.0, %v1453
    %1455 = vmatprep.mubr.bf16.mxu0 %v863
    %1456 = vmatmul.mubr.bf16.gmra.mxu0 %v862
    %v1457 = vpop.f32.mrf.mxu0
    %v1458 = vadd.f32 0.0, %v1457
    %v1459 = vpop.f32.mrf.mxu0
    %v1460 = vadd.f32 0.0, %v1459
    %v1461 = vpop.f32.mrf.mxu0
    %v1462 = vadd.f32 0.0, %v1461
    %v1463 = vpop.f32.mrf.mxu0
    %v1464 = vadd.f32 0.0, %v1463
    %1465 = vmatprep.mubr.bf16.mxu0 %v865
    %1466 = vmatmul.mubr.bf16.gmra.mxu0 %v864
    %v1467 = vpop.f32.mrf.mxu0
    %v1468 = vadd.f32 0.0, %v1467
    %v1469 = vpop.f32.mrf.mxu0
    %v1470 = vadd.f32 0.0, %v1469
    %v1471 = vpop.f32.mrf.mxu0
    %v1472 = vadd.f32 0.0, %v1471
    %v1473 = vpop.f32.mrf.mxu0
    %v1474 = vadd.f32 0.0, %v1473
    %1475 = vmatprep.mubr.bf16.mxu0 %v867
    %1476 = vmatmul.mubr.bf16.gmra.mxu0 %v866
    %v1477 = vpop.f32.mrf.mxu0
    %v1478 = vadd.f32 0.0, %v1477
    %v1479 = vpop.f32.mrf.mxu0
    %v1480 = vadd.f32 0.0, %v1479
    %v1481 = vpop.f32.mrf.mxu0
    %v1482 = vadd.f32 0.0, %v1481
    %v1483 = vpop.f32.mrf.mxu0
    %v1484 = vadd.f32 0.0, %v1483
    %1485 = vmatprep.mubr.bf16.mxu0 %v869
    %1486 = vmatmul.mubr.bf16.gmra.mxu0 %v868
    %v1487 = vpop.f32.mrf.mxu0
    %v1488 = vadd.f32 0.0, %v1487
    %v1489 = vpop.f32.mrf.mxu0
    %v1490 = vadd.f32 0.0, %v1489
    %v1491 = vpop.f32.mrf.mxu0
    %v1492 = vadd.f32 0.0, %v1491
    %v1493 = vpop.f32.mrf.mxu0
    %v1494 = vadd.f32 0.0, %v1493
    %1495 = vdwg.mxu0
    %v1496 = vld [vmem:[%s3 + $0x5] sm:$0xf]
    %v1497 = vld [vmem:[%s3 + $0x9] sm:$0xf]
    %v1498 = vadd.f32 %v1305, %v1309
    %v1499 = vadd.f32 %v1498, %v1315
    %v1500 = vadd.f32 %v1499, %v1319
    %v1501 = vadd.f32 %v1500, %v1325
    %v1502 = vadd.f32 %v1501, %v1329
    %v1503 = vadd.f32 %v1502, %v1335
    %v1504 = vadd.f32 %v1503, %v1339
    %v1505 = vadd.f32 %v1504, %v1345
    %v1506 = vadd.f32 %v1505, %v1349
    %v1507 = vadd.f32 %v1506, %v1355
    %v1508 = vadd.f32 %v1507, %v1359
    %v1509 = vadd.f32 %v1508, %v1365
    %v1510 = vadd.f32 %v1509, %v1369
    %v1511 = vadd.f32 %v1510, %v1375
    %v1512 = vadd.f32 %v1511, %v1379
    %v1513 = vrot.slane %v1512, 4
    %v1514 = vadd.f32 %v1512, %v1513
    %v1515 = vrot.slane %v1514, 2
    %v1516 = vadd.f32 %v1514, %v1515
    %v1517 = vrot.slane %v1516, 1
    %v1518 = vadd.f32 %v1516, %v1517
    %v1519 = vadd.f32 %v1307, %v1311
    %v1520 = vadd.f32 %v1519, %v1317
    %v1521 = vadd.f32 %v1520, %v1321
    %v1522 = vadd.f32 %v1521, %v1327
    %v1523 = vadd.f32 %v1522, %v1331
    %v1524 = vadd.f32 %v1523, %v1337
    %v1525 = vadd.f32 %v1524, %v1341
    %v1526 = vadd.f32 %v1525, %v1347
    %v1527 = vadd.f32 %v1526, %v1351
    %v1528 = vadd.f32 %v1527, %v1357
    %v1529 = vadd.f32 %v1528, %v1361
    %v1530 = vadd.f32 %v1529, %v1367
    %v1531 = vadd.f32 %v1530, %v1371
    %v1532 = vadd.f32 %v1531, %v1377
    %v1533 = vadd.f32 %v1532, %v1381
    %v1534 = vrot.slane %v1533, 4
    %v1535 = vadd.f32 %v1533, %v1534
    %v1536 = vrot.slane %v1535, 2
    %v1537 = vadd.f32 %v1535, %v1536
    %v1538 = vrot.slane %v1537, 1
    %v1539 = vadd.f32 %v1537, %v1538
    %v1540 = vadd.f32 %v1418, %v1422
    %v1541 = vadd.f32 %v1540, %v1428
    %v1542 = vadd.f32 %v1541, %v1432
    %v1543 = vadd.f32 %v1542, %v1438
    %v1544 = vadd.f32 %v1543, %v1442
    %v1545 = vadd.f32 %v1544, %v1448
    %v1546 = vadd.f32 %v1545, %v1452
    %v1547 = vadd.f32 %v1546, %v1458
    %v1548 = vadd.f32 %v1547, %v1462
    %v1549 = vadd.f32 %v1548, %v1468
    %v1550 = vadd.f32 %v1549, %v1472
    %v1551 = vadd.f32 %v1550, %v1478
    %v1552 = vadd.f32 %v1551, %v1482
    %v1553 = vadd.f32 %v1552, %v1488
    %v1554 = vadd.f32 %v1553, %v1492
    %v1555 = vrot.slane %v1554, 4
    %v1556 = vadd.f32 %v1554, %v1555
    %v1557 = vrot.slane %v1556, 2
    %v1558 = vadd.f32 %v1556, %v1557
    %v1559 = vrot.slane %v1558, 1
    %v1560 = vadd.f32 %v1558, %v1559
    %v1561 = vadd.f32 %v1420, %v1424
    %v1562 = vadd.f32 %v1561, %v1430
    %v1563 = vadd.f32 %v1562, %v1434
    %v1564 = vadd.f32 %v1563, %v1440
    %v1565 = vadd.f32 %v1564, %v1444
    %v1566 = vadd.f32 %v1565, %v1450
    %v1567 = vadd.f32 %v1566, %v1454
    %v1568 = vadd.f32 %v1567, %v1460
    %v1569 = vadd.f32 %v1568, %v1464
    %v1570 = vadd.f32 %v1569, %v1470
    %v1571 = vadd.f32 %v1570, %v1474
    %v1572 = vadd.f32 %v1571, %v1480
    %v1573 = vadd.f32 %v1572, %v1484
    %v1574 = vadd.f32 %v1573, %v1490
    %v1575 = vadd.f32 %v1574, %v1494
    %v1576 = vrot.slane %v1575, 4
    %v1577 = vadd.f32 %v1575, %v1576
    %v1578 = vrot.slane %v1577, 2
    %v1579 = vadd.f32 %v1577, %v1578
    %v1580 = vrot.slane %v1579, 1
    %v1581 = vadd.f32 %v1579, %v1580
    %v1582 = vmul.f32 %v1518, 0.0078125
    %v1583 = vmul.f32 %v1539, 0.0078125
    %v1584 = vmul.f32 %v1560, 0.0078125
    %v1585 = vmul.f32 %v1581, 0.0078125
    %v1586 = vmul.f32 %v1305, %v1305
    %v1587 = vmul.f32 %v1307, %v1307
    %v1588 = vmul.f32 %v1418, %v1418
    %v1589 = vmul.f32 %v1420, %v1420
    %v1590 = vmul.f32 %v1309, %v1309
    %v1591 = vmul.f32 %v1311, %v1311
    %v1592 = vmul.f32 %v1422, %v1422
    %v1593 = vmul.f32 %v1424, %v1424
    %v1594 = vmul.f32 %v1315, %v1315
    %v1595 = vmul.f32 %v1317, %v1317
    %v1596 = vmul.f32 %v1428, %v1428
    %v1597 = vmul.f32 %v1430, %v1430
    %v1598 = vmul.f32 %v1319, %v1319
    %v1599 = vmul.f32 %v1321, %v1321
    %v1600 = vmul.f32 %v1432, %v1432
    %v1601 = vmul.f32 %v1434, %v1434
    %v1602 = vmul.f32 %v1325, %v1325
    %v1603 = vmul.f32 %v1327, %v1327
    %v1604 = vmul.f32 %v1438, %v1438
    %v1605 = vmul.f32 %v1440, %v1440
    %v1606 = vmul.f32 %v1329, %v1329
    %v1607 = vmul.f32 %v1331, %v1331
    %v1608 = vmul.f32 %v1442, %v1442
    %v1609 = vmul.f32 %v1444, %v1444
    %v1610 = vmul.f32 %v1335, %v1335
    %v1611 = vmul.f32 %v1337, %v1337
    %v1612 = vmul.f32 %v1448, %v1448
    %v1613 = vmul.f32 %v1450, %v1450
    %v1614 = vmul.f32 %v1339, %v1339
    %v1615 = vmul.f32 %v1341, %v1341
    %v1616 = vmul.f32 %v1452, %v1452
    %v1617 = vmul.f32 %v1454, %v1454
    %v1618 = vmul.f32 %v1345, %v1345
    %v1619 = vmul.f32 %v1347, %v1347
    %v1620 = vmul.f32 %v1458, %v1458
    %v1621 = vmul.f32 %v1460, %v1460
    %v1622 = vmul.f32 %v1349, %v1349
    %v1623 = vmul.f32 %v1351, %v1351
    %v1624 = vmul.f32 %v1462, %v1462
    %v1625 = vmul.f32 %v1464, %v1464
    %v1626 = vmul.f32 %v1355, %v1355
    %v1627 = vmul.f32 %v1357, %v1357
    %v1628 = vmul.f32 %v1468, %v1468
    %v1629 = vmul.f32 %v1470, %v1470
    %v1630 = vmul.f32 %v1359, %v1359
    %v1631 = vmul.f32 %v1361, %v1361
    %v1632 = vmul.f32 %v1472, %v1472
    %v1633 = vmul.f32 %v1474, %v1474
    %v1634 = vmul.f32 %v1365, %v1365
    %v1635 = vmul.f32 %v1367, %v1367
    %v1636 = vmul.f32 %v1478, %v1478
    %v1637 = vmul.f32 %v1480, %v1480
    %v1638 = vmul.f32 %v1369, %v1369
    %v1639 = vmul.f32 %v1371, %v1371
    %v1640 = vmul.f32 %v1482, %v1482
    %v1641 = vmul.f32 %v1484, %v1484
    %v1642 = vmul.f32 %v1375, %v1375
    %v1643 = vmul.f32 %v1377, %v1377
    %v1644 = vmul.f32 %v1488, %v1488
    %v1645 = vmul.f32 %v1490, %v1490
    %v1646 = vmul.f32 %v1379, %v1379
    %v1647 = vmul.f32 %v1381, %v1381
    %v1648 = vmul.f32 %v1492, %v1492
    %v1649 = vmul.f32 %v1494, %v1494
    %v1650 = vadd.f32 %v1586, %v1590
    %v1651 = vadd.f32 %v1650, %v1594
    %v1652 = vadd.f32 %v1651, %v1598
    %v1653 = vadd.f32 %v1652, %v1602
    %v1654 = vadd.f32 %v1653, %v1606
    %v1655 = vadd.f32 %v1654, %v1610
    %v1656 = vadd.f32 %v1655, %v1614
    %v1657 = vadd.f32 %v1656, %v1618
    %v1658 = vadd.f32 %v1657, %v1622
    %v1659 = vadd.f32 %v1658, %v1626
    %v1660 = vadd.f32 %v1659, %v1630
    %v1661 = vadd.f32 %v1660, %v1634
    %v1662 = vadd.f32 %v1661, %v1638
    %v1663 = vadd.f32 %v1662, %v1642
    %v1664 = vadd.f32 %v1663, %v1646
    %v1665 = vrot.slane %v1664, 4
    %v1666 = vadd.f32 %v1664, %v1665
    %v1667 = vrot.slane %v1666, 2
    %v1668 = vadd.f32 %v1666, %v1667
    %v1669 = vrot.slane %v1668, 1
    %v1670 = vadd.f32 %v1668, %v1669
    %v1671 = vadd.f32 %v1587, %v1591
    %v1672 = vadd.f32 %v1671, %v1595
    %v1673 = vadd.f32 %v1672, %v1599
    %v1674 = vadd.f32 %v1673, %v1603
    %v1675 = vadd.f32 %v1674, %v1607
    %v1676 = vadd.f32 %v1675, %v1611
    %v1677 = vadd.f32 %v1676, %v1615
    %v1678 = vadd.f32 %v1677, %v1619
    %v1679 = vadd.f32 %v1678, %v1623
    %v1680 = vadd.f32 %v1679, %v1627
    %v1681 = vadd.f32 %v1680, %v1631
    %v1682 = vadd.f32 %v1681, %v1635
    %v1683 = vadd.f32 %v1682, %v1639
    %v1684 = vadd.f32 %v1683, %v1643
    %v1685 = vadd.f32 %v1684, %v1647
    %v1686 = vrot.slane %v1685, 4
    %v1687 = vadd.f32 %v1685, %v1686
    %v1688 = vrot.slane %v1687, 2
    %v1689 = vadd.f32 %v1687, %v1688
    %v1690 = vrot.slane %v1689, 1
    %v1691 = vadd.f32 %v1689, %v1690
    %v1692 = vadd.f32 %v1588, %v1592
    %v1693 = vadd.f32 %v1692, %v1596
    %v1694 = vadd.f32 %v1693, %v1600
    %v1695 = vadd.f32 %v1694, %v1604
    %v1696 = vadd.f32 %v1695, %v1608
    %v1697 = vadd.f32 %v1696, %v1612
    %v1698 = vadd.f32 %v1697, %v1616
    %v1699 = vadd.f32 %v1698, %v1620
    %v1700 = vadd.f32 %v1699, %v1624
    %v1701 = vadd.f32 %v1700, %v1628
    %v1702 = vadd.f32 %v1701, %v1632
    %v1703 = vadd.f32 %v1702, %v1636
    %v1704 = vadd.f32 %v1703, %v1640
    %v1705 = vadd.f32 %v1704, %v1644
    %v1706 = vadd.f32 %v1705, %v1648
    %v1707 = vrot.slane %v1706, 4
    %v1708 = vadd.f32 %v1706, %v1707
    %v1709 = vrot.slane %v1708, 2
    %v1710 = vadd.f32 %v1708, %v1709
    %v1711 = vrot.slane %v1710, 1
    %v1712 = vadd.f32 %v1710, %v1711
    %v1713 = vadd.f32 %v1589, %v1593
    %v1714 = vadd.f32 %v1713, %v1597
    %v1715 = vadd.f32 %v1714, %v1601
    %v1716 = vadd.f32 %v1715, %v1605
    %v1717 = vadd.f32 %v1716, %v1609
    %v1718 = vadd.f32 %v1717, %v1613
    %v1719 = vadd.f32 %v1718, %v1617
    %v1720 = vadd.f32 %v1719, %v1621
    %v1721 = vadd.f32 %v1720, %v1625
    %v1722 = vadd.f32 %v1721, %v1629
    %v1723 = vadd.f32 %v1722, %v1633
    %v1724 = vadd.f32 %v1723, %v1637
    %v1725 = vadd.f32 %v1724, %v1641
    %v1726 = vadd.f32 %v1725, %v1645
    %v1727 = vadd.f32 %v1726, %v1649
    %v1728 = vrot.slane %v1727, 4
    %v1729 = vadd.f32 %v1727, %v1728
    %v1730 = vrot.slane %v1729, 2
    %v1731 = vadd.f32 %v1729, %v1730
    %v1732 = vrot.slane %v1731, 1
    %v1733 = vadd.f32 %v1731, %v1732
    %v1734 = vmul.f32 %v1670, 0.0078125
    %v1735 = vmul.f32 %v1691, 0.0078125
    %v1736 = vmul.f32 %v1712, 0.0078125
    %v1737 = vmul.f32 %v1733, 0.0078125
    %v1738 = vmul.f32 %v1582, %v1582
    %v1739 = vmul.f32 %v1583, %v1583
    %v1740 = vmul.f32 %v1584, %v1584
    %v1741 = vmul.f32 %v1585, %v1585
    %v1742 = vsub.f32 %v1734, %v1738
    %v1743 = vsub.f32 %v1735, %v1739
    %v1744 = vsub.f32 %v1736, %v1740
    %v1745 = vsub.f32 %v1737, %v1741
    %v1746 = vadd.f32 %v1742, 0.8
    %v1747 = vadd.f32 %v1743, 0.8
    %v1748 = vadd.f32 %v1744, 0.8
    %v1749 = vadd.f32 %v1745, 0.8
    %v1750 = vrsqrt.pop %v1746
    %v1751 = vrsqrt.pop %v1747
    %v1752 = vrsqrt.pop %v1748
    %v1753 = vrsqrt.pop %v1749
    %v1758 = vcombine.low %v1750, %v1751
    %v1759 = vcombine.low %v1752, %v1753
    %v1761 = vunpack.c.l.s4 1966171168
    %v1762 = vunpack.c.0.s8 %v1761
    %v1763 = vlaneseq
    %v1764 = vshrl.u32 %v1763, 7
    %v1765 = vsub.s32 %v1762, %v1764
    %v1766 = vrot.slane %v1758, %v1765
    %v1768 = vunpack.c.l.s4 1966171168
    %v1769 = vunpack.c.0.s8 %v1768
    %v1770 = vlaneseq
    %v1771 = vshrl.u32 %v1770, 7
    %v1772 = vsub.s32 %v1769, %v1771
    %v1773 = vrot.slane %v1759, %v1772
    %v1774 = vcombine.low %v1766, %v1773
    %v1776 = vunpack.c.l.s4 1966171168
    %v1777 = vunpack.c.0.s8 %v1776
    %v1778 = vlaneseq
    %v1779 = vshrl.u32 %v1778, 7
    %v1780 = vsub.s32 %v1777, %v1779
    %v1781 = vrot.slane %v1774, %v1780
    %v1783 = vmul.f32 %v1496, %v1781
    %v1785 = vlaneseq
    %v1786 = vshrl.u32 %v1785, 7
    %v1787 = vsub.s32 0, %v1786
    %v1788 = vrot.slane %v1783, %v1787
    %v1789 = vlaneseq
    %v1790 = vshrl.u32 %v1789, 7
    %v1791 = vsub.s32 1, %v1790
    %v1792 = vrot.slane %v1783, %v1791
    %v1793 = vlaneseq
    %v1794 = vshrl.u32 %v1793, 7
    %v1795 = vsub.s32 2, %v1794
    %v1796 = vrot.slane %v1783, %v1795
    %v1797 = vlaneseq
    %v1798 = vshrl.u32 %v1797, 7
    %v1799 = vsub.s32 3, %v1798
    %v1800 = vrot.slane %v1783, %v1799
    %v1805 = vmul.f32 %v1582, %v1788
    %v1806 = vmul.f32 %v1583, %v1792
    %v1807 = vmul.f32 %v1584, %v1796
    %v1808 = vmul.f32 %v1585, %v1800
    %v1813 = vcombine.low %v1805, %v1806
    %v1814 = vcombine.low %v1807, %v1808
    %v1816 = vunpack.c.l.s4 1966171168
    %v1817 = vunpack.c.0.s8 %v1816
    %v1818 = vlaneseq
    %v1819 = vshrl.u32 %v1818, 7
    %v1820 = vsub.s32 %v1817, %v1819
    %v1821 = vrot.slane %v1813, %v1820
    %v1823 = vunpack.c.l.s4 1966171168
    %v1824 = vunpack.c.0.s8 %v1823
    %v1825 = vlaneseq
    %v1826 = vshrl.u32 %v1825, 7
    %v1827 = vsub.s32 %v1824, %v1826
    %v1828 = vrot.slane %v1814, %v1827
    %v1829 = vcombine.low %v1821, %v1828
    %v1831 = vunpack.c.l.s4 1966171168
    %v1832 = vunpack.c.0.s8 %v1831
    %v1833 = vlaneseq
    %v1834 = vshrl.u32 %v1833, 7
    %v1835 = vsub.s32 %v1832, %v1834
    %v1836 = vrot.slane %v1829, %v1835
    %v1838 = vsub.f32 %v1497, %v1836
    %v1839 = vmul.f32 %v1305, %v1788
    %v1840 = vmul.f32 %v1307, %v1792
    %v1841 = vmul.f32 %v1418, %v1796
    %v1842 = vmul.f32 %v1420, %v1800
    %v1843 = vmul.f32 %v1309, %v1788
    %v1844 = vmul.f32 %v1311, %v1792
    %v1845 = vmul.f32 %v1422, %v1796
    %v1846 = vmul.f32 %v1424, %v1800
    %v1847 = vmul.f32 %v1315, %v1788
    %v1848 = vmul.f32 %v1317, %v1792
    %v1849 = vmul.f32 %v1428, %v1796
    %v1850 = vmul.f32 %v1430, %v1800
    %v1851 = vmul.f32 %v1319, %v1788
    %v1852 = vmul.f32 %v1321, %v1792
    %v1853 = vmul.f32 %v1432, %v1796
    %v1854 = vmul.f32 %v1434, %v1800
    %v1855 = vmul.f32 %v1325, %v1788
    %v1856 = vmul.f32 %v1327, %v1792
    %v1857 = vmul.f32 %v1438, %v1796
    %v1858 = vmul.f32 %v1440, %v1800
    %v1859 = vmul.f32 %v1329, %v1788
    %v1860 = vmul.f32 %v1331, %v1792
    %v1861 = vmul.f32 %v1442, %v1796
    %v1862 = vmul.f32 %v1444, %v1800
    %v1863 = vmul.f32 %v1335, %v1788
    %v1864 = vmul.f32 %v1337, %v1792
    %v1865 = vmul.f32 %v1448, %v1796
    %v1866 = vmul.f32 %v1450, %v1800
    %v1867 = vmul.f32 %v1339, %v1788
    %v1868 = vmul.f32 %v1341, %v1792
    %v1869 = vmul.f32 %v1452, %v1796
    %v1870 = vmul.f32 %v1454, %v1800
    %v1871 = vmul.f32 %v1345, %v1788
    %v1872 = vmul.f32 %v1347, %v1792
    %v1873 = vmul.f32 %v1458, %v1796
    %v1874 = vmul.f32 %v1460, %v1800
    %v1875 = vmul.f32 %v1349, %v1788
    %v1876 = vmul.f32 %v1351, %v1792
    %v1877 = vmul.f32 %v1462, %v1796
    %v1878 = vmul.f32 %v1464, %v1800
    %v1879 = vmul.f32 %v1355, %v1788
    %v1880 = vmul.f32 %v1357, %v1792
    %v1881 = vmul.f32 %v1468, %v1796
    %v1882 = vmul.f32 %v1470, %v1800
    %v1883 = vmul.f32 %v1359, %v1788
    %v1884 = vmul.f32 %v1361, %v1792
    %v1885 = vmul.f32 %v1472, %v1796
    %v1886 = vmul.f32 %v1474, %v1800
    %v1887 = vmul.f32 %v1365, %v1788
    %v1888 = vmul.f32 %v1367, %v1792
    %v1889 = vmul.f32 %v1478, %v1796
    %v1890 = vmul.f32 %v1480, %v1800
    %v1891 = vmul.f32 %v1369, %v1788
    %v1892 = vmul.f32 %v1371, %v1792
    %v1893 = vmul.f32 %v1482, %v1796
    %v1894 = vmul.f32 %v1484, %v1800
    %v1895 = vmul.f32 %v1375, %v1788
    %v1896 = vmul.f32 %v1377, %v1792
    %v1897 = vmul.f32 %v1488, %v1796
    %v1898 = vmul.f32 %v1490, %v1800
    %v1899 = vmul.f32 %v1379, %v1788
    %v1900 = vmul.f32 %v1381, %v1792
    %v1901 = vmul.f32 %v1492, %v1796
    %v1902 = vmul.f32 %v1494, %v1800
    %v1904 = vlaneseq
    %v1905 = vshrl.u32 %v1904, 7
    %v1906 = vsub.s32 0, %v1905
    %v1907 = vrot.slane %v1838, %v1906
    %v1908 = vlaneseq
    %v1909 = vshrl.u32 %v1908, 7
    %v1910 = vsub.s32 1, %v1909
    %v1911 = vrot.slane %v1838, %v1910
    %v1912 = vlaneseq
    %v1913 = vshrl.u32 %v1912, 7
    %v1914 = vsub.s32 2, %v1913
    %v1915 = vrot.slane %v1838, %v1914
    %v1916 = vlaneseq
    %v1917 = vshrl.u32 %v1916, 7
    %v1918 = vsub.s32 3, %v1917
    %v1919 = vrot.slane %v1838, %v1918
    %v1924 = vadd.f32 %v1839, %v1907
    %v1925 = vadd.f32 %v1840, %v1911
    %v1926 = vadd.f32 %v1841, %v1915
    %v1927 = vadd.f32 %v1842, %v1919
    %v1928 = vadd.f32 %v1843, %v1907
    %v1929 = vadd.f32 %v1844, %v1911
    %v1930 = vadd.f32 %v1845, %v1915
    %v1931 = vadd.f32 %v1846, %v1919
    %v1932 = vadd.f32 %v1847, %v1907
    %v1933 = vadd.f32 %v1848, %v1911
    %v1934 = vadd.f32 %v1849, %v1915
    %v1935 = vadd.f32 %v1850, %v1919
    %v1936 = vadd.f32 %v1851, %v1907
    %v1937 = vadd.f32 %v1852, %v1911
    %v1938 = vadd.f32 %v1853, %v1915
    %v1939 = vadd.f32 %v1854, %v1919
    %v1940 = vadd.f32 %v1855, %v1907
    %v1941 = vadd.f32 %v1856, %v1911
    %v1942 = vadd.f32 %v1857, %v1915
    %v1943 = vadd.f32 %v1858, %v1919
    %v1944 = vadd.f32 %v1859, %v1907
    %v1945 = vadd.f32 %v1860, %v1911
    %v1946 = vadd.f32 %v1861, %v1915
    %v1947 = vadd.f32 %v1862, %v1919
    %v1948 = vadd.f32 %v1863, %v1907
    %v1949 = vadd.f32 %v1864, %v1911
    %v1950 = vadd.f32 %v1865, %v1915
    %v1951 = vadd.f32 %v1866, %v1919
    %v1952 = vadd.f32 %v1867, %v1907
    %v1953 = vadd.f32 %v1868, %v1911
    %v1954 = vadd.f32 %v1869, %v1915
    %v1955 = vadd.f32 %v1870, %v1919
    %v1956 = vadd.f32 %v1871, %v1907
    %v1957 = vadd.f32 %v1872, %v1911
    %v1958 = vadd.f32 %v1873, %v1915
    %v1959 = vadd.f32 %v1874, %v1919
    %v1960 = vadd.f32 %v1875, %v1907
    %v1961 = vadd.f32 %v1876, %v1911
    %v1962 = vadd.f32 %v1877, %v1915
    %v1963 = vadd.f32 %v1878, %v1919
    %v1964 = vadd.f32 %v1879, %v1907
    %v1965 = vadd.f32 %v1880, %v1911
    %v1966 = vadd.f32 %v1881, %v1915
    %v1967 = vadd.f32 %v1882, %v1919
    %v1968 = vadd.f32 %v1883, %v1907
    %v1969 = vadd.f32 %v1884, %v1911
    %v1970 = vadd.f32 %v1885, %v1915
    %v1971 = vadd.f32 %v1886, %v1919
    %v1972 = vadd.f32 %v1887, %v1907
    %v1973 = vadd.f32 %v1888, %v1911
    %v1974 = vadd.f32 %v1889, %v1915
    %v1975 = vadd.f32 %v1890, %v1919
    %v1976 = vadd.f32 %v1891, %v1907
    %v1977 = vadd.f32 %v1892, %v1911
    %v1978 = vadd.f32 %v1893, %v1915
    %v1979 = vadd.f32 %v1894, %v1919
    %v1980 = vadd.f32 %v1895, %v1907
    %v1981 = vadd.f32 %v1896, %v1911
    %v1982 = vadd.f32 %v1897, %v1915
    %v1983 = vadd.f32 %v1898, %v1919
    %v1984 = vadd.f32 %v1899, %v1907
    %v1985 = vadd.f32 %v1900, %v1911
    %v1986 = vadd.f32 %v1901, %v1915
    %v1987 = vadd.f32 %v1902, %v1919
    %vm1988 = vcmp.gt.f32.partialorder %v1924, 0.0
    %vm1989 = vcmp.gt.f32.partialorder %v1925, 0.0
    %vm1990 = vcmp.gt.f32.partialorder %v1926, 0.0
    %vm1991 = vcmp.gt.f32.partialorder %v1927, 0.0
    %vm1992 = vcmp.gt.f32.partialorder %v1928, 0.0
    %vm1993 = vcmp.gt.f32.partialorder %v1929, 0.0
    %vm1994 = vcmp.gt.f32.partialorder %v1930, 0.0
    %vm1995 = vcmp.gt.f32.partialorder %v1931, 0.0
    %vm1996 = vcmp.gt.f32.partialorder %v1932, 0.0
    %vm1997 = vcmp.gt.f32.partialorder %v1933, 0.0
    %vm1998 = vcmp.gt.f32.partialorder %v1934, 0.0
    %vm1999 = vcmp.gt.f32.partialorder %v1935, 0.0
    %vm2000 = vcmp.gt.f32.partialorder %v1936, 0.0
    %vm2001 = vcmp.gt.f32.partialorder %v1937, 0.0
    %vm2002 = vcmp.gt.f32.partialorder %v1938, 0.0
    %vm2003 = vcmp.gt.f32.partialorder %v1939, 0.0
    %vm2004 = vcmp.gt.f32.partialorder %v1940, 0.0
    %vm2005 = vcmp.gt.f32.partialorder %v1941, 0.0
    %vm2006 = vcmp.gt.f32.partialorder %v1942, 0.0
    %vm2007 = vcmp.gt.f32.partialorder %v1943, 0.0
    %vm2008 = vcmp.gt.f32.partialorder %v1944, 0.0
    %vm2009 = vcmp.gt.f32.partialorder %v1945, 0.0
    %vm2010 = vcmp.gt.f32.partialorder %v1946, 0.0
    %vm2011 = vcmp.gt.f32.partialorder %v1947, 0.0
    %vm2012 = vcmp.gt.f32.partialorder %v1948, 0.0
    %vm2013 = vcmp.gt.f32.partialorder %v1949, 0.0
    %vm2014 = vcmp.gt.f32.partialorder %v1950, 0.0
    %vm2015 = vcmp.gt.f32.partialorder %v1951, 0.0
    %vm2016 = vcmp.gt.f32.partialorder %v1952, 0.0
    %vm2017 = vcmp.gt.f32.partialorder %v1953, 0.0
    %vm2018 = vcmp.gt.f32.partialorder %v1954, 0.0
    %vm2019 = vcmp.gt.f32.partialorder %v1955, 0.0
    %vm2020 = vcmp.gt.f32.partialorder %v1956, 0.0
    %vm2021 = vcmp.gt.f32.partialorder %v1957, 0.0
    %vm2022 = vcmp.gt.f32.partialorder %v1958, 0.0
    %vm2023 = vcmp.gt.f32.partialorder %v1959, 0.0
    %vm2024 = vcmp.gt.f32.partialorder %v1960, 0.0
    %vm2025 = vcmp.gt.f32.partialorder %v1961, 0.0
    %vm2026 = vcmp.gt.f32.partialorder %v1962, 0.0
    %vm2027 = vcmp.gt.f32.partialorder %v1963, 0.0
    %vm2028 = vcmp.gt.f32.partialorder %v1964, 0.0
    %vm2029 = vcmp.gt.f32.partialorder %v1965, 0.0
    %vm2030 = vcmp.gt.f32.partialorder %v1966, 0.0
    %vm2031 = vcmp.gt.f32.partialorder %v1967, 0.0
    %vm2032 = vcmp.gt.f32.partialorder %v1968, 0.0
    %vm2033 = vcmp.gt.f32.partialorder %v1969, 0.0
    %vm2034 = vcmp.gt.f32.partialorder %v1970, 0.0
    %vm2035 = vcmp.gt.f32.partialorder %v1971, 0.0
    %vm2036 = vcmp.gt.f32.partialorder %v1972, 0.0
    %vm2037 = vcmp.gt.f32.partialorder %v1973, 0.0
    %vm2038 = vcmp.gt.f32.partialorder %v1974, 0.0
    %vm2039 = vcmp.gt.f32.partialorder %v1975, 0.0
    %vm2040 = vcmp.gt.f32.partialorder %v1976, 0.0
    %vm2041 = vcmp.gt.f32.partialorder %v1977, 0.0
    %vm2042 = vcmp.gt.f32.partialorder %v1978, 0.0
    %vm2043 = vcmp.gt.f32.partialorder %v1979, 0.0
    %vm2044 = vcmp.gt.f32.partialorder %v1980, 0.0
    %vm2045 = vcmp.gt.f32.partialorder %v1981, 0.0
    %vm2046 = vcmp.gt.f32.partialorder %v1982, 0.0
    %vm2047 = vcmp.gt.f32.partialorder %v1983, 0.0
    %vm2048 = vcmp.gt.f32.partialorder %v1984, 0.0
    %vm2049 = vcmp.gt.f32.partialorder %v1985, 0.0
    %vm2050 = vcmp.gt.f32.partialorder %v1986, 0.0
    %vm2051 = vcmp.gt.f32.partialorder %v1987, 0.0
    %v2052 = vmul.f32 %v1924, 0.2
    %v2053 = vmul.f32 %v1925, 0.2
    %v2054 = vmul.f32 %v1926, 0.2
    %v2055 = vmul.f32 %v1927, 0.2
    %v2056 = vmul.f32 %v1928, 0.2
    %v2057 = vmul.f32 %v1929, 0.2
    %v2058 = vmul.f32 %v1930, 0.2
    %v2059 = vmul.f32 %v1931, 0.2
    %v2060 = vmul.f32 %v1932, 0.2
    %v2061 = vmul.f32 %v1933, 0.2
    %v2062 = vmul.f32 %v1934, 0.2
    %v2063 = vmul.f32 %v1935, 0.2
    %v2064 = vmul.f32 %v1936, 0.2
    %v2065 = vmul.f32 %v1937, 0.2
    %v2066 = vmul.f32 %v1938, 0.2
    %v2067 = vmul.f32 %v1939, 0.2
    %v2068 = vmul.f32 %v1940, 0.2
    %v2069 = vmul.f32 %v1941, 0.2
    %v2070 = vmul.f32 %v1942, 0.2
    %v2071 = vmul.f32 %v1943, 0.2
    %v2072 = vmul.f32 %v1944, 0.2
    %v2073 = vmul.f32 %v1945, 0.2
    %v2074 = vmul.f32 %v1946, 0.2
    %v2075 = vmul.f32 %v1947, 0.2
    %v2076 = vmul.f32 %v1948, 0.2
    %v2077 = vmul.f32 %v1949, 0.2
    %v2078 = vmul.f32 %v1950, 0.2
    %v2079 = vmul.f32 %v1951, 0.2
    %v2080 = vmul.f32 %v1952, 0.2
    %v2081 = vmul.f32 %v1953, 0.2
    %v2082 = vmul.f32 %v1954, 0.2
    %v2083 = vmul.f32 %v1955, 0.2
    %v2084 = vmul.f32 %v1956, 0.2
    %v2085 = vmul.f32 %v1957, 0.2
    %v2086 = vmul.f32 %v1958, 0.2
    %v2087 = vmul.f32 %v1959, 0.2
    %v2088 = vmul.f32 %v1960, 0.2
    %v2089 = vmul.f32 %v1961, 0.2
    %v2090 = vmul.f32 %v1962, 0.2
    %v2091 = vmul.f32 %v1963, 0.2
    %v2092 = vmul.f32 %v1964, 0.2
    %v2093 = vmul.f32 %v1965, 0.2
    %v2094 = vmul.f32 %v1966, 0.2
    %v2095 = vmul.f32 %v1967, 0.2
    %v2096 = vmul.f32 %v1968, 0.2
    %v2097 = vmul.f32 %v1969, 0.2
    %v2098 = vmul.f32 %v1970, 0.2
    %v2099 = vmul.f32 %v1971, 0.2
    %v2100 = vmul.f32 %v1972, 0.2
    %v2101 = vmul.f32 %v1973, 0.2
    %v2102 = vmul.f32 %v1974, 0.2
    %v2103 = vmul.f32 %v1975, 0.2
    %v2104 = vmul.f32 %v1976, 0.2
    %v2105 = vmul.f32 %v1977, 0.2
    %v2106 = vmul.f32 %v1978, 0.2
    %v2107 = vmul.f32 %v1979, 0.2
    %v2108 = vmul.f32 %v1980, 0.2
    %v2109 = vmul.f32 %v1981, 0.2
    %v2110 = vmul.f32 %v1982, 0.2
    %v2111 = vmul.f32 %v1983, 0.2
    %v2112 = vmul.f32 %v1984, 0.2
    %v2113 = vmul.f32 %v1985, 0.2
    %v2114 = vmul.f32 %v1986, 0.2
    %v2115 = vmul.f32 %v1987, 0.2
    %v2116 = vsel %vm1988, %v1924, %v2052
    %v2117 = vsel %vm1989, %v1925, %v2053
    %v2118 = vsel %vm1990, %v1926, %v2054
    %v2119 = vsel %vm1991, %v1927, %v2055
    %v2120 = vsel %vm1992, %v1928, %v2056
    %v2121 = vsel %vm1993, %v1929, %v2057
    %v2122 = vsel %vm1994, %v1930, %v2058
    %v2123 = vsel %vm1995, %v1931, %v2059
    %v2124 = vsel %vm1996, %v1932, %v2060
    %v2125 = vsel %vm1997, %v1933, %v2061
    %v2126 = vsel %vm1998, %v1934, %v2062
    %v2127 = vsel %vm1999, %v1935, %v2063
    %v2128 = vsel %vm2000, %v1936, %v2064
    %v2129 = vsel %vm2001, %v1937, %v2065
    %v2130 = vsel %vm2002, %v1938, %v2066
    %v2131 = vsel %vm2003, %v1939, %v2067
    %v2132 = vsel %vm2004, %v1940, %v2068
    %v2133 = vsel %vm2005, %v1941, %v2069
    %v2134 = vsel %vm2006, %v1942, %v2070
    %v2135 = vsel %vm2007, %v1943, %v2071
    %v2136 = vsel %vm2008, %v1944, %v2072
    %v2137 = vsel %vm2009, %v1945, %v2073
    %v2138 = vsel %vm2010, %v1946, %v2074
    %v2139 = vsel %vm2011, %v1947, %v2075
    %v2140 = vsel %vm2012, %v1948, %v2076
    %v2141 = vsel %vm2013, %v1949, %v2077
    %v2142 = vsel %vm2014, %v1950, %v2078
    %v2143 = vsel %vm2015, %v1951, %v2079
    %v2144 = vsel %vm2016, %v1952, %v2080
    %v2145 = vsel %vm2017, %v1953, %v2081
    %v2146 = vsel %vm2018, %v1954, %v2082
    %v2147 = vsel %vm2019, %v1955, %v2083
    %v2148 = vsel %vm2020, %v1956, %v2084
    %v2149 = vsel %vm2021, %v1957, %v2085
    %v2150 = vsel %vm2022, %v1958, %v2086
    %v2151 = vsel %vm2023, %v1959, %v2087
    %v2152 = vsel %vm2024, %v1960, %v2088
    %v2153 = vsel %vm2025, %v1961, %v2089
    %v2154 = vsel %vm2026, %v1962, %v2090
    %v2155 = vsel %vm2027, %v1963, %v2091
    %v2156 = vsel %vm2028, %v1964, %v2092
    %v2157 = vsel %vm2029, %v1965, %v2093
    %v2158 = vsel %vm2030, %v1966, %v2094
    %v2159 = vsel %vm2031, %v1967, %v2095
    %v2160 = vsel %vm2032, %v1968, %v2096
    %v2161 = vsel %vm2033, %v1969, %v2097
    %v2162 = vsel %vm2034, %v1970, %v2098
    %v2163 = vsel %vm2035, %v1971, %v2099
    %v2164 = vsel %vm2036, %v1972, %v2100
    %v2165 = vsel %vm2037, %v1973, %v2101
    %v2166 = vsel %vm2038, %v1974, %v2102
    %v2167 = vsel %vm2039, %v1975, %v2103
    %v2168 = vsel %vm2040, %v1976, %v2104
    %v2169 = vsel %vm2041, %v1977, %v2105
    %v2170 = vsel %vm2042, %v1978, %v2106
    %v2171 = vsel %vm2043, %v1979, %v2107
    %v2172 = vsel %vm2044, %v1980, %v2108
    %v2173 = vsel %vm2045, %v1981, %v2109
    %v2174 = vsel %vm2046, %v1982, %v2110
    %v2175 = vsel %vm2047, %v1983, %v2111
    %v2176 = vsel %vm2048, %v1984, %v2112
    %v2177 = vsel %vm2049, %v1985, %v2113
    %v2178 = vsel %vm2050, %v1986, %v2114
    %v2179 = vsel %vm2051, %v1987, %v2115
    %v2180 = vpack.c.bf16 %v2120, %v2116
    %v2181 = vpack.c.bf16 %v2121, %v2117
    %v2182 = vpack.c.bf16 %v2122, %v2118
    %v2183 = vpack.c.bf16 %v2123, %v2119
    %v2184 = vpack.c.bf16 %v2128, %v2124
    %v2185 = vpack.c.bf16 %v2129, %v2125
    %v2186 = vpack.c.bf16 %v2130, %v2126
    %v2187 = vpack.c.bf16 %v2131, %v2127
    %v2188 = vpack.c.bf16 %v2136, %v2132
    %v2189 = vpack.c.bf16 %v2137, %v2133
    %v2190 = vpack.c.bf16 %v2138, %v2134
    %v2191 = vpack.c.bf16 %v2139, %v2135
    %v2192 = vpack.c.bf16 %v2144, %v2140
    %v2193 = vpack.c.bf16 %v2145, %v2141
    %v2194 = vpack.c.bf16 %v2146, %v2142
    %v2195 = vpack.c.bf16 %v2147, %v2143
    %v2196 = vpack.c.bf16 %v2152, %v2148
    %v2197 = vpack.c.bf16 %v2153, %v2149
    %v2198 = vpack.c.bf16 %v2154, %v2150
    %v2199 = vpack.c.bf16 %v2155, %v2151
    %v2200 = vpack.c.bf16 %v2160, %v2156
    %v2201 = vpack.c.bf16 %v2161, %v2157
    %v2202 = vpack.c.bf16 %v2162, %v2158
    %v2203 = vpack.c.bf16 %v2163, %v2159
    %v2204 = vpack.c.bf16 %v2168, %v2164
    %v2205 = vpack.c.bf16 %v2169, %v2165
    %v2206 = vpack.c.bf16 %v2170, %v2166
    %v2207 = vpack.c.bf16 %v2171, %v2167
    %v2208 = vpack.c.bf16 %v2176, %v2172
    %v2209 = vpack.c.bf16 %v2177, %v2173
    %v2210 = vpack.c.bf16 %v2178, %v2174
    %v2211 = vpack.c.bf16 %v2179, %v2175
    %s2212 = smul.u32 4, 64
    %s2213 = smul.u32 %s2212, 8
    %s2214 = sshll.u32 %s2213, 4
    %2215 = dma.done %s281, %s2214
    %v2216 = vld [vmem:[#allocation3] sm:$0xff]
    %v2217 = vld [vmem:[#allocation3 + $0x8] sm:$0xff]
    %v2218 = vld [vmem:[#allocation3 + $0x10] sm:$0xff]
    %v2219 = vld [vmem:[#allocation3 + $0x18] sm:$0xff]
    %v2220 = vld [vmem:[#allocation3 + $0x20] sm:$0xff]
    %v2221 = vld [vmem:[#allocation3 + $0x28] sm:$0xff]
    %v2222 = vld [vmem:[#allocation3 + $0x30] sm:$0xff]
    %v2223 = vld [vmem:[#allocation3 + $0x38] sm:$0xff]
    %v2224 = vld [vmem:[#allocation3 + $0x40] sm:$0xff]
    %v2225 = vld [vmem:[#allocation3 + $0x48] sm:$0xff]
    %v2226 = vld [vmem:[#allocation3 + $0x50] sm:$0xff]
    %v2227 = vld [vmem:[#allocation3 + $0x58] sm:$0xff]
    %v2228 = vld [vmem:[#allocation3 + $0x60] sm:$0xff]
    %v2229 = vld [vmem:[#allocation3 + $0x68] sm:$0xff]
    %v2230 = vld [vmem:[#allocation3 + $0x70] sm:$0xff]
    %v2231 = vld [vmem:[#allocation3 + $0x78] sm:$0xff]
    %v2232 = vld [vmem:[#allocation3 + $0x80] sm:$0xff]
    %v2233 = vld [vmem:[#allocation3 + $0x88] sm:$0xff]
    %v2234 = vld [vmem:[#allocation3 + $0x90] sm:$0xff]
    %v2235 = vld [vmem:[#allocation3 + $0x98] sm:$0xff]
    %v2236 = vld [vmem:[#allocation3 + $0xa0] sm:$0xff]
    %v2237 = vld [vmem:[#allocation3 + $0xa8] sm:$0xff]
    %v2238 = vld [vmem:[#allocation3 + $0xb0] sm:$0xff]
    %v2239 = vld [vmem:[#allocation3 + $0xb8] sm:$0xff]
    %v2240 = vld [vmem:[#allocation3 + $0xc0] sm:$0xff]
    %v2241 = vld [vmem:[#allocation3 + $0xc8] sm:$0xff]
    %v2242 = vld [vmem:[#allocation3 + $0xd0] sm:$0xff]
    %v2243 = vld [vmem:[#allocation3 + $0xd8] sm:$0xff]
    %v2244 = vld [vmem:[#allocation3 + $0xe0] sm:$0xff]
    %v2245 = vld [vmem:[#allocation3 + $0xe8] sm:$0xff]
    %v2246 = vld [vmem:[#allocation3 + $0xf0] sm:$0xff]
    %v2247 = vld [vmem:[#allocation3 + $0xf8] sm:$0xff]
    %v2248 = vld [vmem:[#allocation3 + $0x100] sm:$0xff]
    %v2249 = vld [vmem:[#allocation3 + $0x108] sm:$0xff]
    %v2250 = vld [vmem:[#allocation3 + $0x110] sm:$0xff]
    %v2251 = vld [vmem:[#allocation3 + $0x118] sm:$0xff]
    %v2252 = vld [vmem:[#allocation3 + $0x120] sm:$0xff]
    %v2253 = vld [vmem:[#allocation3 + $0x128] sm:$0xff]
    %v2254 = vld [vmem:[#allocation3 + $0x130] sm:$0xff]
    %v2255 = vld [vmem:[#allocation3 + $0x138] sm:$0xff]
    %v2256 = vld [vmem:[#allocation3 + $0x140] sm:$0xff]
    %v2257 = vld [vmem:[#allocation3 + $0x148] sm:$0xff]
    %v2258 = vld [vmem:[#allocation3 + $0x150] sm:$0xff]
    %v2259 = vld [vmem:[#allocation3 + $0x158] sm:$0xff]
    %v2260 = vld [vmem:[#allocation3 + $0x160] sm:$0xff]
    %v2261 = vld [vmem:[#allocation3 + $0x168] sm:$0xff]
    %v2262 = vld [vmem:[#allocation3 + $0x170] sm:$0xff]
    %v2263 = vld [vmem:[#allocation3 + $0x178] sm:$0xff]
    %v2264 = vld [vmem:[#allocation3 + $0x180] sm:$0xff]
    %v2265 = vld [vmem:[#allocation3 + $0x188] sm:$0xff]
    %v2266 = vld [vmem:[#allocation3 + $0x190] sm:$0xff]
    %v2267 = vld [vmem:[#allocation3 + $0x198] sm:$0xff]
    %v2268 = vld [vmem:[#allocation3 + $0x1a0] sm:$0xff]
    %v2269 = vld [vmem:[#allocation3 + $0x1a8] sm:$0xff]
    %v2270 = vld [vmem:[#allocation3 + $0x1b0] sm:$0xff]
    %v2271 = vld [vmem:[#allocation3 + $0x1b8] sm:$0xff]
    %v2272 = vld [vmem:[#allocation3 + $0x1c0] sm:$0xff]
    %v2273 = vld [vmem:[#allocation3 + $0x1c8] sm:$0xff]
    %v2274 = vld [vmem:[#allocation3 + $0x1d0] sm:$0xff]
    %v2275 = vld [vmem:[#allocation3 + $0x1d8] sm:$0xff]
    %v2276 = vld [vmem:[#allocation3 + $0x1e0] sm:$0xff]
    %v2277 = vld [vmem:[#allocation3 + $0x1e8] sm:$0xff]
    %v2278 = vld [vmem:[#allocation3 + $0x1f0] sm:$0xff]
    %v2279 = vld [vmem:[#allocation3 + $0x1f8] sm:$0xff]
    %v2280 = vld [vmem:[#allocation3 + $0x200] sm:$0xff]
    %v2281 = vld [vmem:[#allocation3 + $0x208] sm:$0xff]
    %v2282 = vld [vmem:[#allocation3 + $0x210] sm:$0xff]
    %v2283 = vld [vmem:[#allocation3 + $0x218] sm:$0xff]
    %v2284 = vld [vmem:[#allocation3 + $0x220] sm:$0xff]
    %v2285 = vld [vmem:[#allocation3 + $0x228] sm:$0xff]
    %v2286 = vld [vmem:[#allocation3 + $0x230] sm:$0xff]
    %v2287 = vld [vmem:[#allocation3 + $0x238] sm:$0xff]
    %v2288 = vld [vmem:[#allocation3 + $0x240] sm:$0xff]
    %v2289 = vld [vmem:[#allocation3 + $0x248] sm:$0xff]
    %v2290 = vld [vmem:[#allocation3 + $0x250] sm:$0xff]
    %v2291 = vld [vmem:[#allocation3 + $0x258] sm:$0xff]
    %v2292 = vld [vmem:[#allocation3 + $0x260] sm:$0xff]
    %v2293 = vld [vmem:[#allocation3 + $0x268] sm:$0xff]
    %v2294 = vld [vmem:[#allocation3 + $0x270] sm:$0xff]
    %v2295 = vld [vmem:[#allocation3 + $0x278] sm:$0xff]
    %v2296 = vld [vmem:[#allocation3 + $0x280] sm:$0xff]
    %v2297 = vld [vmem:[#allocation3 + $0x288] sm:$0xff]
    %v2298 = vld [vmem:[#allocation3 + $0x290] sm:$0xff]
    %v2299 = vld [vmem:[#allocation3 + $0x298] sm:$0xff]
    %v2300 = vld [vmem:[#allocation3 + $0x2a0] sm:$0xff]
    %v2301 = vld [vmem:[#allocation3 + $0x2a8] sm:$0xff]
    %v2302 = vld [vmem:[#allocation3 + $0x2b0] sm:$0xff]
    %v2303 = vld [vmem:[#allocation3 + $0x2b8] sm:$0xff]
    %v2304 = vld [vmem:[#allocation3 + $0x2c0] sm:$0xff]
    %v2305 = vld [vmem:[#allocation3 + $0x2c8] sm:$0xff]
    %v2306 = vld [vmem:[#allocation3 + $0x2d0] sm:$0xff]
    %v2307 = vld [vmem:[#allocation3 + $0x2d8] sm:$0xff]
    %v2308 = vld [vmem:[#allocation3 + $0x2e0] sm:$0xff]
    %v2309 = vld [vmem:[#allocation3 + $0x2e8] sm:$0xff]
    %v2310 = vld [vmem:[#allocation3 + $0x2f0] sm:$0xff]
    %v2311 = vld [vmem:[#allocation3 + $0x2f8] sm:$0xff]
    %v2312 = vld [vmem:[#allocation3 + $0x300] sm:$0xff]
    %v2313 = vld [vmem:[#allocation3 + $0x308] sm:$0xff]
    %v2314 = vld [vmem:[#allocation3 + $0x310] sm:$0xff]
    %v2315 = vld [vmem:[#allocation3 + $0x318] sm:$0xff]
    %v2316 = vld [vmem:[#allocation3 + $0x320] sm:$0xff]
    %v2317 = vld [vmem:[#allocation3 + $0x328] sm:$0xff]
    %v2318 = vld [vmem:[#allocation3 + $0x330] sm:$0xff]
    %v2319 = vld [vmem:[#allocation3 + $0x338] sm:$0xff]
    %v2320 = vld [vmem:[#allocation3 + $0x340] sm:$0xff]
    %v2321 = vld [vmem:[#allocation3 + $0x348] sm:$0xff]
    %v2322 = vld [vmem:[#allocation3 + $0x350] sm:$0xff]
    %v2323 = vld [vmem:[#allocation3 + $0x358] sm:$0xff]
    %v2324 = vld [vmem:[#allocation3 + $0x360] sm:$0xff]
    %v2325 = vld [vmem:[#allocation3 + $0x368] sm:$0xff]
    %v2326 = vld [vmem:[#allocation3 + $0x370] sm:$0xff]
    %v2327 = vld [vmem:[#allocation3 + $0x378] sm:$0xff]
    %v2328 = vld [vmem:[#allocation3 + $0x380] sm:$0xff]
    %v2329 = vld [vmem:[#allocation3 + $0x388] sm:$0xff]
    %v2330 = vld [vmem:[#allocation3 + $0x390] sm:$0xff]
    %v2331 = vld [vmem:[#allocation3 + $0x398] sm:$0xff]
    %v2332 = vld [vmem:[#allocation3 + $0x3a0] sm:$0xff]
    %v2333 = vld [vmem:[#allocation3 + $0x3a8] sm:$0xff]
    %v2334 = vld [vmem:[#allocation3 + $0x3b0] sm:$0xff]
    %v2335 = vld [vmem:[#allocation3 + $0x3b8] sm:$0xff]
    %v2336 = vld [vmem:[#allocation3 + $0x3c0] sm:$0xff]
    %v2337 = vld [vmem:[#allocation3 + $0x3c8] sm:$0xff]
    %v2338 = vld [vmem:[#allocation3 + $0x3d0] sm:$0xff]
    %v2339 = vld [vmem:[#allocation3 + $0x3d8] sm:$0xff]
    %v2340 = vld [vmem:[#allocation3 + $0x3e0] sm:$0xff]
    %v2341 = vld [vmem:[#allocation3 + $0x3e8] sm:$0xff]
    %v2342 = vld [vmem:[#allocation3 + $0x3f0] sm:$0xff]
    %v2343 = vld [vmem:[#allocation3 + $0x3f8] sm:$0xff]
    %v2344 = vld [vmem:[#allocation3 + $0x400] sm:$0xff]
    %v2345 = vld [vmem:[#allocation3 + $0x408] sm:$0xff]
    %v2346 = vld [vmem:[#allocation3 + $0x410] sm:$0xff]
    %v2347 = vld [vmem:[#allocation3 + $0x418] sm:$0xff]
    %v2348 = vld [vmem:[#allocation3 + $0x420] sm:$0xff]
    %v2349 = vld [vmem:[#allocation3 + $0x428] sm:$0xff]
    %v2350 = vld [vmem:[#allocation3 + $0x430] sm:$0xff]
    %v2351 = vld [vmem:[#allocation3 + $0x438] sm:$0xff]
    %v2352 = vld [vmem:[#allocation3 + $0x440] sm:$0xff]
    %v2353 = vld [vmem:[#allocation3 + $0x448] sm:$0xff]
    %v2354 = vld [vmem:[#allocation3 + $0x450] sm:$0xff]
    %v2355 = vld [vmem:[#allocation3 + $0x458] sm:$0xff]
    %v2356 = vld [vmem:[#allocation3 + $0x460] sm:$0xff]
    %v2357 = vld [vmem:[#allocation3 + $0x468] sm:$0xff]
    %v2358 = vld [vmem:[#allocation3 + $0x470] sm:$0xff]
    %v2359 = vld [vmem:[#allocation3 + $0x478] sm:$0xff]
    %v2360 = vld [vmem:[#allocation3 + $0x480] sm:$0xff]
    %v2361 = vld [vmem:[#allocation3 + $0x488] sm:$0xff]
    %v2362 = vld [vmem:[#allocation3 + $0x490] sm:$0xff]
    %v2363 = vld [vmem:[#allocation3 + $0x498] sm:$0xff]
    %v2364 = vld [vmem:[#allocation3 + $0x4a0] sm:$0xff]
    %v2365 = vld [vmem:[#allocation3 + $0x4a8] sm:$0xff]
    %v2366 = vld [vmem:[#allocation3 + $0x4b0] sm:$0xff]
    %v2367 = vld [vmem:[#allocation3 + $0x4b8] sm:$0xff]
    %v2368 = vld [vmem:[#allocation3 + $0x4c0] sm:$0xff]
    %v2369 = vld [vmem:[#allocation3 + $0x4c8] sm:$0xff]
    %v2370 = vld [vmem:[#allocation3 + $0x4d0] sm:$0xff]
    %v2371 = vld [vmem:[#allocation3 + $0x4d8] sm:$0xff]
    %v2372 = vld [vmem:[#allocation3 + $0x4e0] sm:$0xff]
    %v2373 = vld [vmem:[#allocation3 + $0x4e8] sm:$0xff]
    %v2374 = vld [vmem:[#allocation3 + $0x4f0] sm:$0xff]
    %v2375 = vld [vmem:[#allocation3 + $0x4f8] sm:$0xff]
    %v2376 = vld [vmem:[#allocation3 + $0x500] sm:$0xff]
    %v2377 = vld [vmem:[#allocation3 + $0x508] sm:$0xff]
    %v2378 = vld [vmem:[#allocation3 + $0x510] sm:$0xff]
    %v2379 = vld [vmem:[#allocation3 + $0x518] sm:$0xff]
    %v2380 = vld [vmem:[#allocation3 + $0x520] sm:$0xff]
    %v2381 = vld [vmem:[#allocation3 + $0x528] sm:$0xff]
    %v2382 = vld [vmem:[#allocation3 + $0x530] sm:$0xff]
    %v2383 = vld [vmem:[#allocation3 + $0x538] sm:$0xff]
    %v2384 = vld [vmem:[#allocation3 + $0x540] sm:$0xff]
    %v2385 = vld [vmem:[#allocation3 + $0x548] sm:$0xff]
    %v2386 = vld [vmem:[#allocation3 + $0x550] sm:$0xff]
    %v2387 = vld [vmem:[#allocation3 + $0x558] sm:$0xff]
    %v2388 = vld [vmem:[#allocation3 + $0x560] sm:$0xff]
    %v2389 = vld [vmem:[#allocation3 + $0x568] sm:$0xff]
    %v2390 = vld [vmem:[#allocation3 + $0x570] sm:$0xff]
    %v2391 = vld [vmem:[#allocation3 + $0x578] sm:$0xff]
    %v2392 = vld [vmem:[#allocation3 + $0x580] sm:$0xff]
    %v2393 = vld [vmem:[#allocation3 + $0x588] sm:$0xff]
    %v2394 = vld [vmem:[#allocation3 + $0x590] sm:$0xff]
    %v2395 = vld [vmem:[#allocation3 + $0x598] sm:$0xff]
    %v2396 = vld [vmem:[#allocation3 + $0x5a0] sm:$0xff]
    %v2397 = vld [vmem:[#allocation3 + $0x5a8] sm:$0xff]
    %v2398 = vld [vmem:[#allocation3 + $0x5b0] sm:$0xff]
    %v2399 = vld [vmem:[#allocation3 + $0x5b8] sm:$0xff]
    %v2400 = vld [vmem:[#allocation3 + $0x5c0] sm:$0xff]
    %v2401 = vld [vmem:[#allocation3 + $0x5c8] sm:$0xff]
    %v2402 = vld [vmem:[#allocation3 + $0x5d0] sm:$0xff]
    %v2403 = vld [vmem:[#allocation3 + $0x5d8] sm:$0xff]
    %v2404 = vld [vmem:[#allocation3 + $0x5e0] sm:$0xff]
    %v2405 = vld [vmem:[#allocation3 + $0x5e8] sm:$0xff]
    %v2406 = vld [vmem:[#allocation3 + $0x5f0] sm:$0xff]
    %v2407 = vld [vmem:[#allocation3 + $0x5f8] sm:$0xff]
    %v2408 = vld [vmem:[#allocation3 + $0x600] sm:$0xff]
    %v2409 = vld [vmem:[#allocation3 + $0x608] sm:$0xff]
    %v2410 = vld [vmem:[#allocation3 + $0x610] sm:$0xff]
    %v2411 = vld [vmem:[#allocation3 + $0x618] sm:$0xff]
    %v2412 = vld [vmem:[#allocation3 + $0x620] sm:$0xff]
    %v2413 = vld [vmem:[#allocation3 + $0x628] sm:$0xff]
    %v2414 = vld [vmem:[#allocation3 + $0x630] sm:$0xff]
    %v2415 = vld [vmem:[#allocation3 + $0x638] sm:$0xff]
    %v2416 = vld [vmem:[#allocation3 + $0x640] sm:$0xff]
    %v2417 = vld [vmem:[#allocation3 + $0x648] sm:$0xff]
    %v2418 = vld [vmem:[#allocation3 + $0x650] sm:$0xff]
    %v2419 = vld [vmem:[#allocation3 + $0x658] sm:$0xff]
    %v2420 = vld [vmem:[#allocation3 + $0x660] sm:$0xff]
    %v2421 = vld [vmem:[#allocation3 + $0x668] sm:$0xff]
    %v2422 = vld [vmem:[#allocation3 + $0x670] sm:$0xff]
    %v2423 = vld [vmem:[#allocation3 + $0x678] sm:$0xff]
    %v2424 = vld [vmem:[#allocation3 + $0x680] sm:$0xff]
    %v2425 = vld [vmem:[#allocation3 + $0x688] sm:$0xff]
    %v2426 = vld [vmem:[#allocation3 + $0x690] sm:$0xff]
    %v2427 = vld [vmem:[#allocation3 + $0x698] sm:$0xff]
    %v2428 = vld [vmem:[#allocation3 + $0x6a0] sm:$0xff]
    %v2429 = vld [vmem:[#allocation3 + $0x6a8] sm:$0xff]
    %v2430 = vld [vmem:[#allocation3 + $0x6b0] sm:$0xff]
    %v2431 = vld [vmem:[#allocation3 + $0x6b8] sm:$0xff]
    %v2432 = vld [vmem:[#allocation3 + $0x6c0] sm:$0xff]
    %v2433 = vld [vmem:[#allocation3 + $0x6c8] sm:$0xff]
    %v2434 = vld [vmem:[#allocation3 + $0x6d0] sm:$0xff]
    %v2435 = vld [vmem:[#allocation3 + $0x6d8] sm:$0xff]
    %v2436 = vld [vmem:[#allocation3 + $0x6e0] sm:$0xff]
    %v2437 = vld [vmem:[#allocation3 + $0x6e8] sm:$0xff]
    %v2438 = vld [vmem:[#allocation3 + $0x6f0] sm:$0xff]
    %v2439 = vld [vmem:[#allocation3 + $0x6f8] sm:$0xff]
    %v2440 = vld [vmem:[#allocation3 + $0x700] sm:$0xff]
    %v2441 = vld [vmem:[#allocation3 + $0x708] sm:$0xff]
    %v2442 = vld [vmem:[#allocation3 + $0x710] sm:$0xff]
    %v2443 = vld [vmem:[#allocation3 + $0x718] sm:$0xff]
    %v2444 = vld [vmem:[#allocation3 + $0x720] sm:$0xff]
    %v2445 = vld [vmem:[#allocation3 + $0x728] sm:$0xff]
    %v2446 = vld [vmem:[#allocation3 + $0x730] sm:$0xff]
    %v2447 = vld [vmem:[#allocation3 + $0x738] sm:$0xff]
    %v2448 = vld [vmem:[#allocation3 + $0x740] sm:$0xff]
    %v2449 = vld [vmem:[#allocation3 + $0x748] sm:$0xff]
    %v2450 = vld [vmem:[#allocation3 + $0x750] sm:$0xff]
    %v2451 = vld [vmem:[#allocation3 + $0x758] sm:$0xff]
    %v2452 = vld [vmem:[#allocation3 + $0x760] sm:$0xff]
    %v2453 = vld [vmem:[#allocation3 + $0x768] sm:$0xff]
    %v2454 = vld [vmem:[#allocation3 + $0x770] sm:$0xff]
    %v2455 = vld [vmem:[#allocation3 + $0x778] sm:$0xff]
    %v2456 = vld [vmem:[#allocation3 + $0x780] sm:$0xff]
    %v2457 = vld [vmem:[#allocation3 + $0x788] sm:$0xff]
    %v2458 = vld [vmem:[#allocation3 + $0x790] sm:$0xff]
    %v2459 = vld [vmem:[#allocation3 + $0x798] sm:$0xff]
    %v2460 = vld [vmem:[#allocation3 + $0x7a0] sm:$0xff]
    %v2461 = vld [vmem:[#allocation3 + $0x7a8] sm:$0xff]
    %v2462 = vld [vmem:[#allocation3 + $0x7b0] sm:$0xff]
    %v2463 = vld [vmem:[#allocation3 + $0x7b8] sm:$0xff]
    %v2464 = vld [vmem:[#allocation3 + $0x7c0] sm:$0xff]
    %v2465 = vld [vmem:[#allocation3 + $0x7c8] sm:$0xff]
    %v2466 = vld [vmem:[#allocation3 + $0x7d0] sm:$0xff]
    %v2467 = vld [vmem:[#allocation3 + $0x7d8] sm:$0xff]
    %v2468 = vld [vmem:[#allocation3 + $0x7e0] sm:$0xff]
    %v2469 = vld [vmem:[#allocation3 + $0x7e8] sm:$0xff]
    %v2470 = vld [vmem:[#allocation3 + $0x7f0] sm:$0xff]
    %v2471 = vld [vmem:[#allocation3 + $0x7f8] sm:$0xff]
    %v2728 = vunpack.c.l.b16 %v2216
    %v2729 = vunpack.c.h.b16 %v2216
    %v2730 = vunpack.c.l.b16 %v2217
    %v2731 = vunpack.c.h.b16 %v2217
    %v2732 = vunpack.c.l.b16 %v2218
    %v2733 = vunpack.c.h.b16 %v2218
    %v2734 = vunpack.c.l.b16 %v2219
    %v2735 = vunpack.c.h.b16 %v2219
    %v2736 = vunpack.c.l.b16 %v2220
    %v2737 = vunpack.c.h.b16 %v2220
    %v2738 = vunpack.c.l.b16 %v2221
    %v2739 = vunpack.c.h.b16 %v2221
    %v2740 = vunpack.c.l.b16 %v2222
    %v2741 = vunpack.c.h.b16 %v2222
    %v2742 = vunpack.c.l.b16 %v2223
    %v2743 = vunpack.c.h.b16 %v2223
    %v2744 = vunpack.c.l.b16 %v2224
    %v2745 = vunpack.c.h.b16 %v2224
    %v2746 = vunpack.c.l.b16 %v2225
    %v2747 = vunpack.c.h.b16 %v2225
    %v2748 = vunpack.c.l.b16 %v2226
    %v2749 = vunpack.c.h.b16 %v2226
    %v2750 = vunpack.c.l.b16 %v2227
    %v2751 = vunpack.c.h.b16 %v2227
    %v2752 = vunpack.c.l.b16 %v2228
    %v2753 = vunpack.c.h.b16 %v2228
    %v2754 = vunpack.c.l.b16 %v2229
    %v2755 = vunpack.c.h.b16 %v2229
    %v2756 = vunpack.c.l.b16 %v2230
    %v2757 = vunpack.c.h.b16 %v2230
    %v2758 = vunpack.c.l.b16 %v2231
    %v2759 = vunpack.c.h.b16 %v2231
    %v2760 = vunpack.c.l.b16 %v2232
    %v2761 = vunpack.c.h.b16 %v2232
    %v2762 = vunpack.c.l.b16 %v2233
    %v2763 = vunpack.c.h.b16 %v2233
    %v2764 = vunpack.c.l.b16 %v2234
    %v2765 = vunpack.c.h.b16 %v2234
    %v2766 = vunpack.c.l.b16 %v2235
    %v2767 = vunpack.c.h.b16 %v2235
    %v2768 = vunpack.c.l.b16 %v2236
    %v2769 = vunpack.c.h.b16 %v2236
    %v2770 = vunpack.c.l.b16 %v2237
    %v2771 = vunpack.c.h.b16 %v2237
    %v2772 = vunpack.c.l.b16 %v2238
    %v2773 = vunpack.c.h.b16 %v2238
    %v2774 = vunpack.c.l.b16 %v2239
    %v2775 = vunpack.c.h.b16 %v2239
    %v2776 = vunpack.c.l.b16 %v2240
    %v2777 = vunpack.c.h.b16 %v2240
    %v2778 = vunpack.c.l.b16 %v2241
    %v2779 = vunpack.c.h.b16 %v2241
    %v2780 = vunpack.c.l.b16 %v2242
    %v2781 = vunpack.c.h.b16 %v2242
    %v2782 = vunpack.c.l.b16 %v2243
    %v2783 = vunpack.c.h.b16 %v2243
    %v2784 = vunpack.c.l.b16 %v2244
    %v2785 = vunpack.c.h.b16 %v2244
    %v2786 = vunpack.c.l.b16 %v2245
    %v2787 = vunpack.c.h.b16 %v2245
    %v2788 = vunpack.c.l.b16 %v2246
    %v2789 = vunpack.c.h.b16 %v2246
    %v2790 = vunpack.c.l.b16 %v2247
    %v2791 = vunpack.c.h.b16 %v2247
    %v2792 = vunpack.c.l.b16 %v2248
    %v2793 = vunpack.c.h.b16 %v2248
    %v2794 = vunpack.c.l.b16 %v2249
    %v2795 = vunpack.c.h.b16 %v2249
    %v2796 = vunpack.c.l.b16 %v2250
    %v2797 = vunpack.c.h.b16 %v2250
    %v2798 = vunpack.c.l.b16 %v2251
    %v2799 = vunpack.c.h.b16 %v2251
    %v2800 = vunpack.c.l.b16 %v2252
    %v2801 = vunpack.c.h.b16 %v2252
    %v2802 = vunpack.c.l.b16 %v2253
    %v2803 = vunpack.c.h.b16 %v2253
    %v2804 = vunpack.c.l.b16 %v2254
    %v2805 = vunpack.c.h.b16 %v2254
    %v2806 = vunpack.c.l.b16 %v2255
    %v2807 = vunpack.c.h.b16 %v2255
    %v2808 = vunpack.c.l.b16 %v2256
    %v2809 = vunpack.c.h.b16 %v2256
    %v2810 = vunpack.c.l.b16 %v2257
    %v2811 = vunpack.c.h.b16 %v2257
    %v2812 = vunpack.c.l.b16 %v2258
    %v2813 = vunpack.c.h.b16 %v2258
    %v2814 = vunpack.c.l.b16 %v2259
    %v2815 = vunpack.c.h.b16 %v2259
    %v2816 = vunpack.c.l.b16 %v2260
    %v2817 = vunpack.c.h.b16 %v2260
    %v2818 = vunpack.c.l.b16 %v2261
    %v2819 = vunpack.c.h.b16 %v2261
    %v2820 = vunpack.c.l.b16 %v2262
    %v2821 = vunpack.c.h.b16 %v2262
    %v2822 = vunpack.c.l.b16 %v2263
    %v2823 = vunpack.c.h.b16 %v2263
    %v2824 = vunpack.c.l.b16 %v2264
    %v2825 = vunpack.c.h.b16 %v2264
    %v2826 = vunpack.c.l.b16 %v2265
    %v2827 = vunpack.c.h.b16 %v2265
    %v2828 = vunpack.c.l.b16 %v2266
    %v2829 = vunpack.c.h.b16 %v2266
    %v2830 = vunpack.c.l.b16 %v2267
    %v2831 = vunpack.c.h.b16 %v2267
    %v2832 = vunpack.c.l.b16 %v2268
    %v2833 = vunpack.c.h.b16 %v2268
    %v2834 = vunpack.c.l.b16 %v2269
    %v2835 = vunpack.c.h.b16 %v2269
    %v2836 = vunpack.c.l.b16 %v2270
    %v2837 = vunpack.c.h.b16 %v2270
    %v2838 = vunpack.c.l.b16 %v2271
    %v2839 = vunpack.c.h.b16 %v2271
    %v2840 = vunpack.c.l.b16 %v2272
    %v2841 = vunpack.c.h.b16 %v2272
    %v2842 = vunpack.c.l.b16 %v2273
    %v2843 = vunpack.c.h.b16 %v2273
    %v2844 = vunpack.c.l.b16 %v2274
    %v2845 = vunpack.c.h.b16 %v2274
    %v2846 = vunpack.c.l.b16 %v2275
    %v2847 = vunpack.c.h.b16 %v2275
    %v2848 = vunpack.c.l.b16 %v2276
    %v2849 = vunpack.c.h.b16 %v2276
    %v2850 = vunpack.c.l.b16 %v2277
    %v2851 = vunpack.c.h.b16 %v2277
    %v2852 = vunpack.c.l.b16 %v2278
    %v2853 = vunpack.c.h.b16 %v2278
    %v2854 = vunpack.c.l.b16 %v2279
    %v2855 = vunpack.c.h.b16 %v2279
    %v2856 = vunpack.c.l.b16 %v2280
    %v2857 = vunpack.c.h.b16 %v2280
    %v2858 = vunpack.c.l.b16 %v2281
    %v2859 = vunpack.c.h.b16 %v2281
    %v2860 = vunpack.c.l.b16 %v2282
    %v2861 = vunpack.c.h.b16 %v2282
    %v2862 = vunpack.c.l.b16 %v2283
    %v2863 = vunpack.c.h.b16 %v2283
    %v2864 = vunpack.c.l.b16 %v2284
    %v2865 = vunpack.c.h.b16 %v2284
    %v2866 = vunpack.c.l.b16 %v2285
    %v2867 = vunpack.c.h.b16 %v2285
    %v2868 = vunpack.c.l.b16 %v2286
    %v2869 = vunpack.c.h.b16 %v2286
    %v2870 = vunpack.c.l.b16 %v2287
    %v2871 = vunpack.c.h.b16 %v2287
    %v2872 = vunpack.c.l.b16 %v2288
    %v2873 = vunpack.c.h.b16 %v2288
    %v2874 = vunpack.c.l.b16 %v2289
    %v2875 = vunpack.c.h.b16 %v2289
    %v2876 = vunpack.c.l.b16 %v2290
    %v2877 = vunpack.c.h.b16 %v2290
    %v2878 = vunpack.c.l.b16 %v2291
    %v2879 = vunpack.c.h.b16 %v2291
    %v2880 = vunpack.c.l.b16 %v2292
    %v2881 = vunpack.c.h.b16 %v2292
    %v2882 = vunpack.c.l.b16 %v2293
    %v2883 = vunpack.c.h.b16 %v2293
    %v2884 = vunpack.c.l.b16 %v2294
    %v2885 = vunpack.c.h.b16 %v2294
    %v2886 = vunpack.c.l.b16 %v2295
    %v2887 = vunpack.c.h.b16 %v2295
    %v2888 = vunpack.c.l.b16 %v2296
    %v2889 = vunpack.c.h.b16 %v2296
    %v2890 = vunpack.c.l.b16 %v2297
    %v2891 = vunpack.c.h.b16 %v2297
    %v2892 = vunpack.c.l.b16 %v2298
    %v2893 = vunpack.c.h.b16 %v2298
    %v2894 = vunpack.c.l.b16 %v2299
    %v2895 = vunpack.c.h.b16 %v2299
    %v2896 = vunpack.c.l.b16 %v2300
    %v2897 = vunpack.c.h.b16 %v2300
    %v2898 = vunpack.c.l.b16 %v2301
    %v2899 = vunpack.c.h.b16 %v2301
    %v2900 = vunpack.c.l.b16 %v2302
    %v2901 = vunpack.c.h.b16 %v2302
    %v2902 = vunpack.c.l.b16 %v2303
    %v2903 = vunpack.c.h.b16 %v2303
    %v2904 = vunpack.c.l.b16 %v2304
    %v2905 = vunpack.c.h.b16 %v2304
    %v2906 = vunpack.c.l.b16 %v2305
    %v2907 = vunpack.c.h.b16 %v2305
    %v2908 = vunpack.c.l.b16 %v2306
    %v2909 = vunpack.c.h.b16 %v2306
    %v2910 = vunpack.c.l.b16 %v2307
    %v2911 = vunpack.c.h.b16 %v2307
    %v2912 = vunpack.c.l.b16 %v2308
    %v2913 = vunpack.c.h.b16 %v2308
    %v2914 = vunpack.c.l.b16 %v2309
    %v2915 = vunpack.c.h.b16 %v2309
    %v2916 = vunpack.c.l.b16 %v2310
    %v2917 = vunpack.c.h.b16 %v2310
    %v2918 = vunpack.c.l.b16 %v2311
    %v2919 = vunpack.c.h.b16 %v2311
    %v2920 = vunpack.c.l.b16 %v2312
    %v2921 = vunpack.c.h.b16 %v2312
    %v2922 = vunpack.c.l.b16 %v2313
    %v2923 = vunpack.c.h.b16 %v2313
    %v2924 = vunpack.c.l.b16 %v2314
    %v2925 = vunpack.c.h.b16 %v2314
    %v2926 = vunpack.c.l.b16 %v2315
    %v2927 = vunpack.c.h.b16 %v2315
    %v2928 = vunpack.c.l.b16 %v2316
    %v2929 = vunpack.c.h.b16 %v2316
    %v2930 = vunpack.c.l.b16 %v2317
    %v2931 = vunpack.c.h.b16 %v2317
    %v2932 = vunpack.c.l.b16 %v2318
    %v2933 = vunpack.c.h.b16 %v2318
    %v2934 = vunpack.c.l.b16 %v2319
    %v2935 = vunpack.c.h.b16 %v2319
    %v2936 = vunpack.c.l.b16 %v2320
    %v2937 = vunpack.c.h.b16 %v2320
    %v2938 = vunpack.c.l.b16 %v2321
    %v2939 = vunpack.c.h.b16 %v2321
    %v2940 = vunpack.c.l.b16 %v2322
    %v2941 = vunpack.c.h.b16 %v2322
    %v2942 = vunpack.c.l.b16 %v2323
    %v2943 = vunpack.c.h.b16 %v2323
    %v2944 = vunpack.c.l.b16 %v2324
    %v2945 = vunpack.c.h.b16 %v2324
    %v2946 = vunpack.c.l.b16 %v2325
    %v2947 = vunpack.c.h.b16 %v2325
    %v2948 = vunpack.c.l.b16 %v2326
    %v2949 = vunpack.c.h.b16 %v2326
    %v2950 = vunpack.c.l.b16 %v2327
    %v2951 = vunpack.c.h.b16 %v2327
    %v2952 = vunpack.c.l.b16 %v2328
    %v2953 = vunpack.c.h.b16 %v2328
    %v2954 = vunpack.c.l.b16 %v2329
    %v2955 = vunpack.c.h.b16 %v2329
    %v2956 = vunpack.c.l.b16 %v2330
    %v2957 = vunpack.c.h.b16 %v2330
    %v2958 = vunpack.c.l.b16 %v2331
    %v2959 = vunpack.c.h.b16 %v2331
    %v2960 = vunpack.c.l.b16 %v2332
    %v2961 = vunpack.c.h.b16 %v2332
    %v2962 = vunpack.c.l.b16 %v2333
    %v2963 = vunpack.c.h.b16 %v2333
    %v2964 = vunpack.c.l.b16 %v2334
    %v2965 = vunpack.c.h.b16 %v2334
    %v2966 = vunpack.c.l.b16 %v2335
    %v2967 = vunpack.c.h.b16 %v2335
    %v2968 = vunpack.c.l.b16 %v2336
    %v2969 = vunpack.c.h.b16 %v2336
    %v2970 = vunpack.c.l.b16 %v2337
    %v2971 = vunpack.c.h.b16 %v2337
    %v2972 = vunpack.c.l.b16 %v2338
    %v2973 = vunpack.c.h.b16 %v2338
    %v2974 = vunpack.c.l.b16 %v2339
    %v2975 = vunpack.c.h.b16 %v2339
    %v2976 = vunpack.c.l.b16 %v2340
    %v2977 = vunpack.c.h.b16 %v2340
    %v2978 = vunpack.c.l.b16 %v2341
    %v2979 = vunpack.c.h.b16 %v2341
    %v2980 = vunpack.c.l.b16 %v2342
    %v2981 = vunpack.c.h.b16 %v2342
    %v2982 = vunpack.c.l.b16 %v2343
    %v2983 = vunpack.c.h.b16 %v2343
    %v2984 = vunpack.c.l.b16 %v2344
    %v2985 = vunpack.c.h.b16 %v2344
    %v2986 = vunpack.c.l.b16 %v2345
    %v2987 = vunpack.c.h.b16 %v2345
    %v2988 = vunpack.c.l.b16 %v2346
    %v2989 = vunpack.c.h.b16 %v2346
    %v2990 = vunpack.c.l.b16 %v2347
    %v2991 = vunpack.c.h.b16 %v2347
    %v2992 = vunpack.c.l.b16 %v2348
    %v2993 = vunpack.c.h.b16 %v2348
    %v2994 = vunpack.c.l.b16 %v2349
    %v2995 = vunpack.c.h.b16 %v2349
    %v2996 = vunpack.c.l.b16 %v2350
    %v2997 = vunpack.c.h.b16 %v2350
    %v2998 = vunpack.c.l.b16 %v2351
    %v2999 = vunpack.c.h.b16 %v2351
    %v3000 = vunpack.c.l.b16 %v2352
    %v3001 = vunpack.c.h.b16 %v2352
    %v3002 = vunpack.c.l.b16 %v2353
    %v3003 = vunpack.c.h.b16 %v2353
    %v3004 = vunpack.c.l.b16 %v2354
    %v3005 = vunpack.c.h.b16 %v2354
    %v3006 = vunpack.c.l.b16 %v2355
    %v3007 = vunpack.c.h.b16 %v2355
    %v3008 = vunpack.c.l.b16 %v2356
    %v3009 = vunpack.c.h.b16 %v2356
    %v3010 = vunpack.c.l.b16 %v2357
    %v3011 = vunpack.c.h.b16 %v2357
    %v3012 = vunpack.c.l.b16 %v2358
    %v3013 = vunpack.c.h.b16 %v2358
    %v3014 = vunpack.c.l.b16 %v2359
    %v3015 = vunpack.c.h.b16 %v2359
    %v3016 = vunpack.c.l.b16 %v2360
    %v3017 = vunpack.c.h.b16 %v2360
    %v3018 = vunpack.c.l.b16 %v2361
    %v3019 = vunpack.c.h.b16 %v2361
    %v3020 = vunpack.c.l.b16 %v2362
    %v3021 = vunpack.c.h.b16 %v2362
    %v3022 = vunpack.c.l.b16 %v2363
    %v3023 = vunpack.c.h.b16 %v2363
    %v3024 = vunpack.c.l.b16 %v2364
    %v3025 = vunpack.c.h.b16 %v2364
    %v3026 = vunpack.c.l.b16 %v2365
    %v3027 = vunpack.c.h.b16 %v2365
    %v3028 = vunpack.c.l.b16 %v2366
    %v3029 = vunpack.c.h.b16 %v2366
    %v3030 = vunpack.c.l.b16 %v2367
    %v3031 = vunpack.c.h.b16 %v2367
    %v3032 = vunpack.c.l.b16 %v2368
    %v3033 = vunpack.c.h.b16 %v2368
    %v3034 = vunpack.c.l.b16 %v2369
    %v3035 = vunpack.c.h.b16 %v2369
    %v3036 = vunpack.c.l.b16 %v2370
    %v3037 = vunpack.c.h.b16 %v2370
    %v3038 = vunpack.c.l.b16 %v2371
    %v3039 = vunpack.c.h.b16 %v2371
    %v3040 = vunpack.c.l.b16 %v2372
    %v3041 = vunpack.c.h.b16 %v2372
    %v3042 = vunpack.c.l.b16 %v2373
    %v3043 = vunpack.c.h.b16 %v2373
    %v3044 = vunpack.c.l.b16 %v2374
    %v3045 = vunpack.c.h.b16 %v2374
    %v3046 = vunpack.c.l.b16 %v2375
    %v3047 = vunpack.c.h.b16 %v2375
    %v3048 = vunpack.c.l.b16 %v2376
    %v3049 = vunpack.c.h.b16 %v2376
    %v3050 = vunpack.c.l.b16 %v2377
    %v3051 = vunpack.c.h.b16 %v2377
    %v3052 = vunpack.c.l.b16 %v2378
    %v3053 = vunpack.c.h.b16 %v2378
    %v3054 = vunpack.c.l.b16 %v2379
    %v3055 = vunpack.c.h.b16 %v2379
    %v3056 = vunpack.c.l.b16 %v2380
    %v3057 = vunpack.c.h.b16 %v2380
    %v3058 = vunpack.c.l.b16 %v2381
    %v3059 = vunpack.c.h.b16 %v2381
    %v3060 = vunpack.c.l.b16 %v2382
    %v3061 = vunpack.c.h.b16 %v2382
    %v3062 = vunpack.c.l.b16 %v2383
    %v3063 = vunpack.c.h.b16 %v2383
    %v3064 = vunpack.c.l.b16 %v2384
    %v3065 = vunpack.c.h.b16 %v2384
    %v3066 = vunpack.c.l.b16 %v2385
    %v3067 = vunpack.c.h.b16 %v2385
    %v3068 = vunpack.c.l.b16 %v2386
    %v3069 = vunpack.c.h.b16 %v2386
    %v3070 = vunpack.c.l.b16 %v2387
    %v3071 = vunpack.c.h.b16 %v2387
    %v3072 = vunpack.c.l.b16 %v2388
    %v3073 = vunpack.c.h.b16 %v2388
    %v3074 = vunpack.c.l.b16 %v2389
    %v3075 = vunpack.c.h.b16 %v2389
    %v3076 = vunpack.c.l.b16 %v2390
    %v3077 = vunpack.c.h.b16 %v2390
    %v3078 = vunpack.c.l.b16 %v2391
    %v3079 = vunpack.c.h.b16 %v2391
    %v3080 = vunpack.c.l.b16 %v2392
    %v3081 = vunpack.c.h.b16 %v2392
    %v3082 = vunpack.c.l.b16 %v2393
    %v3083 = vunpack.c.h.b16 %v2393
    %v3084 = vunpack.c.l.b16 %v2394
    %v3085 = vunpack.c.h.b16 %v2394
    %v3086 = vunpack.c.l.b16 %v2395
    %v3087 = vunpack.c.h.b16 %v2395
    %v3088 = vunpack.c.l.b16 %v2396
    %v3089 = vunpack.c.h.b16 %v2396
    %v3090 = vunpack.c.l.b16 %v2397
    %v3091 = vunpack.c.h.b16 %v2397
    %v3092 = vunpack.c.l.b16 %v2398
    %v3093 = vunpack.c.h.b16 %v2398
    %v3094 = vunpack.c.l.b16 %v2399
    %v3095 = vunpack.c.h.b16 %v2399
    %v3096 = vunpack.c.l.b16 %v2400
    %v3097 = vunpack.c.h.b16 %v2400
    %v3098 = vunpack.c.l.b16 %v2401
    %v3099 = vunpack.c.h.b16 %v2401
    %v3100 = vunpack.c.l.b16 %v2402
    %v3101 = vunpack.c.h.b16 %v2402
    %v3102 = vunpack.c.l.b16 %v2403
    %v3103 = vunpack.c.h.b16 %v2403
    %v3104 = vunpack.c.l.b16 %v2404
    %v3105 = vunpack.c.h.b16 %v2404
    %v3106 = vunpack.c.l.b16 %v2405
    %v3107 = vunpack.c.h.b16 %v2405
    %v3108 = vunpack.c.l.b16 %v2406
    %v3109 = vunpack.c.h.b16 %v2406
    %v3110 = vunpack.c.l.b16 %v2407
    %v3111 = vunpack.c.h.b16 %v2407
    %v3112 = vunpack.c.l.b16 %v2408
    %v3113 = vunpack.c.h.b16 %v2408
    %v3114 = vunpack.c.l.b16 %v2409
    %v3115 = vunpack.c.h.b16 %v2409
    %v3116 = vunpack.c.l.b16 %v2410
    %v3117 = vunpack.c.h.b16 %v2410
    %v3118 = vunpack.c.l.b16 %v2411
    %v3119 = vunpack.c.h.b16 %v2411
    %v3120 = vunpack.c.l.b16 %v2412
    %v3121 = vunpack.c.h.b16 %v2412
    %v3122 = vunpack.c.l.b16 %v2413
    %v3123 = vunpack.c.h.b16 %v2413
    %v3124 = vunpack.c.l.b16 %v2414
    %v3125 = vunpack.c.h.b16 %v2414
    %v3126 = vunpack.c.l.b16 %v2415
    %v3127 = vunpack.c.h.b16 %v2415
    %v3128 = vunpack.c.l.b16 %v2416
    %v3129 = vunpack.c.h.b16 %v2416
    %v3130 = vunpack.c.l.b16 %v2417
    %v3131 = vunpack.c.h.b16 %v2417
    %v3132 = vunpack.c.l.b16 %v2418
    %v3133 = vunpack.c.h.b16 %v2418
    %v3134 = vunpack.c.l.b16 %v2419
    %v3135 = vunpack.c.h.b16 %v2419
    %v3136 = vunpack.c.l.b16 %v2420
    %v3137 = vunpack.c.h.b16 %v2420
    %v3138 = vunpack.c.l.b16 %v2421
    %v3139 = vunpack.c.h.b16 %v2421
    %v3140 = vunpack.c.l.b16 %v2422
    %v3141 = vunpack.c.h.b16 %v2422
    %v3142 = vunpack.c.l.b16 %v2423
    %v3143 = vunpack.c.h.b16 %v2423
    %v3144 = vunpack.c.l.b16 %v2424
    %v3145 = vunpack.c.h.b16 %v2424
    %v3146 = vunpack.c.l.b16 %v2425
    %v3147 = vunpack.c.h.b16 %v2425
    %v3148 = vunpack.c.l.b16 %v2426
    %v3149 = vunpack.c.h.b16 %v2426
    %v3150 = vunpack.c.l.b16 %v2427
    %v3151 = vunpack.c.h.b16 %v2427
    %v3152 = vunpack.c.l.b16 %v2428
    %v3153 = vunpack.c.h.b16 %v2428
    %v3154 = vunpack.c.l.b16 %v2429
    %v3155 = vunpack.c.h.b16 %v2429
    %v3156 = vunpack.c.l.b16 %v2430
    %v3157 = vunpack.c.h.b16 %v2430
    %v3158 = vunpack.c.l.b16 %v2431
    %v3159 = vunpack.c.h.b16 %v2431
    %v3160 = vunpack.c.l.b16 %v2432
    %v3161 = vunpack.c.h.b16 %v2432
    %v3162 = vunpack.c.l.b16 %v2433
    %v3163 = vunpack.c.h.b16 %v2433
    %v3164 = vunpack.c.l.b16 %v2434
    %v3165 = vunpack.c.h.b16 %v2434
    %v3166 = vunpack.c.l.b16 %v2435
    %v3167 = vunpack.c.h.b16 %v2435
    %v3168 = vunpack.c.l.b16 %v2436
    %v3169 = vunpack.c.h.b16 %v2436
    %v3170 = vunpack.c.l.b16 %v2437
    %v3171 = vunpack.c.h.b16 %v2437
    %v3172 = vunpack.c.l.b16 %v2438
    %v3173 = vunpack.c.h.b16 %v2438
    %v3174 = vunpack.c.l.b16 %v2439
    %v3175 = vunpack.c.h.b16 %v2439
    %v3176 = vunpack.c.l.b16 %v2440
    %v3177 = vunpack.c.h.b16 %v2440
    %v3178 = vunpack.c.l.b16 %v2441
    %v3179 = vunpack.c.h.b16 %v2441
    %v3180 = vunpack.c.l.b16 %v2442
    %v3181 = vunpack.c.h.b16 %v2442
    %v3182 = vunpack.c.l.b16 %v2443
    %v3183 = vunpack.c.h.b16 %v2443
    %v3184 = vunpack.c.l.b16 %v2444
    %v3185 = vunpack.c.h.b16 %v2444
    %v3186 = vunpack.c.l.b16 %v2445
    %v3187 = vunpack.c.h.b16 %v2445
    %v3188 = vunpack.c.l.b16 %v2446
    %v3189 = vunpack.c.h.b16 %v2446
    %v3190 = vunpack.c.l.b16 %v2447
    %v3191 = vunpack.c.h.b16 %v2447
    %v3192 = vunpack.c.l.b16 %v2448
    %v3193 = vunpack.c.h.b16 %v2448
    %v3194 = vunpack.c.l.b16 %v2449
    %v3195 = vunpack.c.h.b16 %v2449
    %v3196 = vunpack.c.l.b16 %v2450
    %v3197 = vunpack.c.h.b16 %v2450
    %v3198 = vunpack.c.l.b16 %v2451
    %v3199 = vunpack.c.h.b16 %v2451
    %v3200 = vunpack.c.l.b16 %v2452
    %v3201 = vunpack.c.h.b16 %v2452
    %v3202 = vunpack.c.l.b16 %v2453
    %v3203 = vunpack.c.h.b16 %v2453
    %v3204 = vunpack.c.l.b16 %v2454
    %v3205 = vunpack.c.h.b16 %v2454
    %v3206 = vunpack.c.l.b16 %v2455
    %v3207 = vunpack.c.h.b16 %v2455
    %v3208 = vunpack.c.l.b16 %v2456
    %v3209 = vunpack.c.h.b16 %v2456
    %v3210 = vunpack.c.l.b16 %v2457
    %v3211 = vunpack.c.h.b16 %v2457
    %v3212 = vunpack.c.l.b16 %v2458
    %v3213 = vunpack.c.h.b16 %v2458
    %v3214 = vunpack.c.l.b16 %v2459
    %v3215 = vunpack.c.h.b16 %v2459
    %v3216 = vunpack.c.l.b16 %v2460
    %v3217 = vunpack.c.h.b16 %v2460
    %v3218 = vunpack.c.l.b16 %v2461
    %v3219 = vunpack.c.h.b16 %v2461
    %v3220 = vunpack.c.l.b16 %v2462
    %v3221 = vunpack.c.h.b16 %v2462
    %v3222 = vunpack.c.l.b16 %v2463
    %v3223 = vunpack.c.h.b16 %v2463
    %v3224 = vunpack.c.l.b16 %v2464
    %v3225 = vunpack.c.h.b16 %v2464
    %v3226 = vunpack.c.l.b16 %v2465
    %v3227 = vunpack.c.h.b16 %v2465
    %v3228 = vunpack.c.l.b16 %v2466
    %v3229 = vunpack.c.h.b16 %v2466
    %v3230 = vunpack.c.l.b16 %v2467
    %v3231 = vunpack.c.h.b16 %v2467
    %v3232 = vunpack.c.l.b16 %v2468
    %v3233 = vunpack.c.h.b16 %v2468
    %v3234 = vunpack.c.l.b16 %v2469
    %v3235 = vunpack.c.h.b16 %v2469
    %v3236 = vunpack.c.l.b16 %v2470
    %v3237 = vunpack.c.h.b16 %v2470
    %v3238 = vunpack.c.l.b16 %v2471
    %v3239 = vunpack.c.h.b16 %v2471
    %v3240 = vpack.c.b16 %v2736, %v2728
    %v3241 = vpack.c.b16 %v2737, %v2729
    %v3242 = vpack.c.b16 %v2738, %v2730
    %v3243 = vpack.c.b16 %v2739, %v2731
    %v3244 = vpack.c.b16 %v2740, %v2732
    %v3245 = vpack.c.b16 %v2741, %v2733
    %v3246 = vpack.c.b16 %v2742, %v2734
    %v3247 = vpack.c.b16 %v2743, %v2735
    %v3248 = vpack.c.b16 %v2752, %v2744
    %v3249 = vpack.c.b16 %v2753, %v2745
    %v3250 = vpack.c.b16 %v2754, %v2746
    %v3251 = vpack.c.b16 %v2755, %v2747
    %v3252 = vpack.c.b16 %v2756, %v2748
    %v3253 = vpack.c.b16 %v2757, %v2749
    %v3254 = vpack.c.b16 %v2758, %v2750
    %v3255 = vpack.c.b16 %v2759, %v2751
    %v3256 = vpack.c.b16 %v2768, %v2760
    %v3257 = vpack.c.b16 %v2769, %v2761
    %v3258 = vpack.c.b16 %v2770, %v2762
    %v3259 = vpack.c.b16 %v2771, %v2763
    %v3260 = vpack.c.b16 %v2772, %v2764
    %v3261 = vpack.c.b16 %v2773, %v2765
    %v3262 = vpack.c.b16 %v2774, %v2766
    %v3263 = vpack.c.b16 %v2775, %v2767
    %v3264 = vpack.c.b16 %v2784, %v2776
    %v3265 = vpack.c.b16 %v2785, %v2777
    %v3266 = vpack.c.b16 %v2786, %v2778
    %v3267 = vpack.c.b16 %v2787, %v2779
    %v3268 = vpack.c.b16 %v2788, %v2780
    %v3269 = vpack.c.b16 %v2789, %v2781
    %v3270 = vpack.c.b16 %v2790, %v2782
    %v3271 = vpack.c.b16 %v2791, %v2783
    %v3272 = vpack.c.b16 %v2800, %v2792
    %v3273 = vpack.c.b16 %v2801, %v2793
    %v3274 = vpack.c.b16 %v2802, %v2794
    %v3275 = vpack.c.b16 %v2803, %v2795
    %v3276 = vpack.c.b16 %v2804, %v2796
    %v3277 = vpack.c.b16 %v2805, %v2797
    %v3278 = vpack.c.b16 %v2806, %v2798
    %v3279 = vpack.c.b16 %v2807, %v2799
    %v3280 = vpack.c.b16 %v2816, %v2808
    %v3281 = vpack.c.b16 %v2817, %v2809
    %v3282 = vpack.c.b16 %v2818, %v2810
    %v3283 = vpack.c.b16 %v2819, %v2811
    %v3284 = vpack.c.b16 %v2820, %v2812
    %v3285 = vpack.c.b16 %v2821, %v2813
    %v3286 = vpack.c.b16 %v2822, %v2814
    %v3287 = vpack.c.b16 %v2823, %v2815
    %v3288 = vpack.c.b16 %v2832, %v2824
    %v3289 = vpack.c.b16 %v2833, %v2825
    %v3290 = vpack.c.b16 %v2834, %v2826
    %v3291 = vpack.c.b16 %v2835, %v2827
    %v3292 = vpack.c.b16 %v2836, %v2828
    %v3293 = vpack.c.b16 %v2837, %v2829
    %v3294 = vpack.c.b16 %v2838, %v2830
    %v3295 = vpack.c.b16 %v2839, %v2831
    %v3296 = vpack.c.b16 %v2848, %v2840
    %v3297 = vpack.c.b16 %v2849, %v2841
    %v3298 = vpack.c.b16 %v2850, %v2842
    %v3299 = vpack.c.b16 %v2851, %v2843
    %v3300 = vpack.c.b16 %v2852, %v2844
    %v3301 = vpack.c.b16 %v2853, %v2845
    %v3302 = vpack.c.b16 %v2854, %v2846
    %v3303 = vpack.c.b16 %v2855, %v2847
    %v3304 = vpack.c.b16 %v2864, %v2856
    %v3305 = vpack.c.b16 %v2865, %v2857
    %v3306 = vpack.c.b16 %v2866, %v2858
    %v3307 = vpack.c.b16 %v2867, %v2859
    %v3308 = vpack.c.b16 %v2868, %v2860
    %v3309 = vpack.c.b16 %v2869, %v2861
    %v3310 = vpack.c.b16 %v2870, %v2862
    %v3311 = vpack.c.b16 %v2871, %v2863
    %v3312 = vpack.c.b16 %v2880, %v2872
    %v3313 = vpack.c.b16 %v2881, %v2873
    %v3314 = vpack.c.b16 %v2882, %v2874
    %v3315 = vpack.c.b16 %v2883, %v2875
    %v3316 = vpack.c.b16 %v2884, %v2876
    %v3317 = vpack.c.b16 %v2885, %v2877
    %v3318 = vpack.c.b16 %v2886, %v2878
    %v3319 = vpack.c.b16 %v2887, %v2879
    %v3320 = vpack.c.b16 %v2896, %v2888
    %v3321 = vpack.c.b16 %v2897, %v2889
    %v3322 = vpack.c.b16 %v2898, %v2890
    %v3323 = vpack.c.b16 %v2899, %v2891
    %v3324 = vpack.c.b16 %v2900, %v2892
    %v3325 = vpack.c.b16 %v2901, %v2893
    %v3326 = vpack.c.b16 %v2902, %v2894
    %v3327 = vpack.c.b16 %v2903, %v2895
    %v3328 = vpack.c.b16 %v2912, %v2904
    %v3329 = vpack.c.b16 %v2913, %v2905
    %v3330 = vpack.c.b16 %v2914, %v2906
    %v3331 = vpack.c.b16 %v2915, %v2907
    %v3332 = vpack.c.b16 %v2916, %v2908
    %v3333 = vpack.c.b16 %v2917, %v2909
    %v3334 = vpack.c.b16 %v2918, %v2910
    %v3335 = vpack.c.b16 %v2919, %v2911
    %v3336 = vpack.c.b16 %v2928, %v2920
    %v3337 = vpack.c.b16 %v2929, %v2921
    %v3338 = vpack.c.b16 %v2930, %v2922
    %v3339 = vpack.c.b16 %v2931, %v2923
    %v3340 = vpack.c.b16 %v2932, %v2924
    %v3341 = vpack.c.b16 %v2933, %v2925
    %v3342 = vpack.c.b16 %v2934, %v2926
    %v3343 = vpack.c.b16 %v2935, %v2927
    %v3344 = vpack.c.b16 %v2944, %v2936
    %v3345 = vpack.c.b16 %v2945, %v2937
    %v3346 = vpack.c.b16 %v2946, %v2938
    %v3347 = vpack.c.b16 %v2947, %v2939
    %v3348 = vpack.c.b16 %v2948, %v2940
    %v3349 = vpack.c.b16 %v2949, %v2941
    %v3350 = vpack.c.b16 %v2950, %v2942
    %v3351 = vpack.c.b16 %v2951, %v2943
    %v3352 = vpack.c.b16 %v2960, %v2952
    %v3353 = vpack.c.b16 %v2961, %v2953
    %v3354 = vpack.c.b16 %v2962, %v2954
    %v3355 = vpack.c.b16 %v2963, %v2955
    %v3356 = vpack.c.b16 %v2964, %v2956
    %v3357 = vpack.c.b16 %v2965, %v2957
    %v3358 = vpack.c.b16 %v2966, %v2958
    %v3359 = vpack.c.b16 %v2967, %v2959
    %v3360 = vpack.c.b16 %v2976, %v2968
    %v3361 = vpack.c.b16 %v2977, %v2969
    %v3362 = vpack.c.b16 %v2978, %v2970
    %v3363 = vpack.c.b16 %v2979, %v2971
    %v3364 = vpack.c.b16 %v2980, %v2972
    %v3365 = vpack.c.b16 %v2981, %v2973
    %v3366 = vpack.c.b16 %v2982, %v2974
    %v3367 = vpack.c.b16 %v2983, %v2975
    %v3368 = vpack.c.b16 %v2992, %v2984
    %v3369 = vpack.c.b16 %v2993, %v2985
    %v3370 = vpack.c.b16 %v2994, %v2986
    %v3371 = vpack.c.b16 %v2995, %v2987
    %v3372 = vpack.c.b16 %v2996, %v2988
    %v3373 = vpack.c.b16 %v2997, %v2989
    %v3374 = vpack.c.b16 %v2998, %v2990
    %v3375 = vpack.c.b16 %v2999, %v2991
    %v3376 = vpack.c.b16 %v3008, %v3000
    %v3377 = vpack.c.b16 %v3009, %v3001
    %v3378 = vpack.c.b16 %v3010, %v3002
    %v3379 = vpack.c.b16 %v3011, %v3003
    %v3380 = vpack.c.b16 %v3012, %v3004
    %v3381 = vpack.c.b16 %v3013, %v3005
    %v3382 = vpack.c.b16 %v3014, %v3006
    %v3383 = vpack.c.b16 %v3015, %v3007
    %v3384 = vpack.c.b16 %v3024, %v3016
    %v3385 = vpack.c.b16 %v3025, %v3017
    %v3386 = vpack.c.b16 %v3026, %v3018
    %v3387 = vpack.c.b16 %v3027, %v3019
    %v3388 = vpack.c.b16 %v3028, %v3020
    %v3389 = vpack.c.b16 %v3029, %v3021
    %v3390 = vpack.c.b16 %v3030, %v3022
    %v3391 = vpack.c.b16 %v3031, %v3023
    %v3392 = vpack.c.b16 %v3040, %v3032
    %v3393 = vpack.c.b16 %v3041, %v3033
    %v3394 = vpack.c.b16 %v3042, %v3034
    %v3395 = vpack.c.b16 %v3043, %v3035
    %v3396 = vpack.c.b16 %v3044, %v3036
    %v3397 = vpack.c.b16 %v3045, %v3037
    %v3398 = vpack.c.b16 %v3046, %v3038
    %v3399 = vpack.c.b16 %v3047, %v3039
    %v3400 = vpack.c.b16 %v3056, %v3048
    %v3401 = vpack.c.b16 %v3057, %v3049
    %v3402 = vpack.c.b16 %v3058, %v3050
    %v3403 = vpack.c.b16 %v3059, %v3051
    %v3404 = vpack.c.b16 %v3060, %v3052
    %v3405 = vpack.c.b16 %v3061, %v3053
    %v3406 = vpack.c.b16 %v3062, %v3054
    %v3407 = vpack.c.b16 %v3063, %v3055
    %v3408 = vpack.c.b16 %v3072, %v3064
    %v3409 = vpack.c.b16 %v3073, %v3065
    %v3410 = vpack.c.b16 %v3074, %v3066
    %v3411 = vpack.c.b16 %v3075, %v3067
    %v3412 = vpack.c.b16 %v3076, %v3068
    %v3413 = vpack.c.b16 %v3077, %v3069
    %v3414 = vpack.c.b16 %v3078, %v3070
    %v3415 = vpack.c.b16 %v3079, %v3071
    %v3416 = vpack.c.b16 %v3088, %v3080
    %v3417 = vpack.c.b16 %v3089, %v3081
    %v3418 = vpack.c.b16 %v3090, %v3082
    %v3419 = vpack.c.b16 %v3091, %v3083
    %v3420 = vpack.c.b16 %v3092, %v3084
    %v3421 = vpack.c.b16 %v3093, %v3085
    %v3422 = vpack.c.b16 %v3094, %v3086
    %v3423 = vpack.c.b16 %v3095, %v3087
    %v3424 = vpack.c.b16 %v3104, %v3096
    %v3425 = vpack.c.b16 %v3105, %v3097
    %v3426 = vpack.c.b16 %v3106, %v3098
    %v3427 = vpack.c.b16 %v3107, %v3099
    %v3428 = vpack.c.b16 %v3108, %v3100
    %v3429 = vpack.c.b16 %v3109, %v3101
    %v3430 = vpack.c.b16 %v3110, %v3102
    %v3431 = vpack.c.b16 %v3111, %v3103
    %v3432 = vpack.c.b16 %v3120, %v3112
    %v3433 = vpack.c.b16 %v3121, %v3113
    %v3434 = vpack.c.b16 %v3122, %v3114
    %v3435 = vpack.c.b16 %v3123, %v3115
    %v3436 = vpack.c.b16 %v3124, %v3116
    %v3437 = vpack.c.b16 %v3125, %v3117
    %v3438 = vpack.c.b16 %v3126, %v3118
    %v3439 = vpack.c.b16 %v3127, %v3119
    %v3440 = vpack.c.b16 %v3136, %v3128
    %v3441 = vpack.c.b16 %v3137, %v3129
    %v3442 = vpack.c.b16 %v3138, %v3130
    %v3443 = vpack.c.b16 %v3139, %v3131
    %v3444 = vpack.c.b16 %v3140, %v3132
    %v3445 = vpack.c.b16 %v3141, %v3133
    %v3446 = vpack.c.b16 %v3142, %v3134
    %v3447 = vpack.c.b16 %v3143, %v3135
    %v3448 = vpack.c.b16 %v3152, %v3144
    %v3449 = vpack.c.b16 %v3153, %v3145
    %v3450 = vpack.c.b16 %v3154, %v3146
    %v3451 = vpack.c.b16 %v3155, %v3147
    %v3452 = vpack.c.b16 %v3156, %v3148
    %v3453 = vpack.c.b16 %v3157, %v3149
    %v3454 = vpack.c.b16 %v3158, %v3150
    %v3455 = vpack.c.b16 %v3159, %v3151
    %v3456 = vpack.c.b16 %v3168, %v3160
    %v3457 = vpack.c.b16 %v3169, %v3161
    %v3458 = vpack.c.b16 %v3170, %v3162
    %v3459 = vpack.c.b16 %v3171, %v3163
    %v3460 = vpack.c.b16 %v3172, %v3164
    %v3461 = vpack.c.b16 %v3173, %v3165
    %v3462 = vpack.c.b16 %v3174, %v3166
    %v3463 = vpack.c.b16 %v3175, %v3167
    %v3464 = vpack.c.b16 %v3184, %v3176
    %v3465 = vpack.c.b16 %v3185, %v3177
    %v3466 = vpack.c.b16 %v3186, %v3178
    %v3467 = vpack.c.b16 %v3187, %v3179
    %v3468 = vpack.c.b16 %v3188, %v3180
    %v3469 = vpack.c.b16 %v3189, %v3181
    %v3470 = vpack.c.b16 %v3190, %v3182
    %v3471 = vpack.c.b16 %v3191, %v3183
    %v3472 = vpack.c.b16 %v3200, %v3192
    %v3473 = vpack.c.b16 %v3201, %v3193
    %v3474 = vpack.c.b16 %v3202, %v3194
    %v3475 = vpack.c.b16 %v3203, %v3195
    %v3476 = vpack.c.b16 %v3204, %v3196
    %v3477 = vpack.c.b16 %v3205, %v3197
    %v3478 = vpack.c.b16 %v3206, %v3198
    %v3479 = vpack.c.b16 %v3207, %v3199
    %v3480 = vpack.c.b16 %v3216, %v3208
    %v3481 = vpack.c.b16 %v3217, %v3209
    %v3482 = vpack.c.b16 %v3218, %v3210
    %v3483 = vpack.c.b16 %v3219, %v3211
    %v3484 = vpack.c.b16 %v3220, %v3212
    %v3485 = vpack.c.b16 %v3221, %v3213
    %v3486 = vpack.c.b16 %v3222, %v3214
    %v3487 = vpack.c.b16 %v3223, %v3215
    %v3488 = vpack.c.b16 %v3232, %v3224
    %v3489 = vpack.c.b16 %v3233, %v3225
    %v3490 = vpack.c.b16 %v3234, %v3226
    %v3491 = vpack.c.b16 %v3235, %v3227
    %v3492 = vpack.c.b16 %v3236, %v3228
    %v3493 = vpack.c.b16 %v3237, %v3229
    %v3494 = vpack.c.b16 %v3238, %v3230
    %v3495 = vpack.c.b16 %v3239, %v3231
    %3752 = vmatprep.subr.bf16.mxu0 %v3297
    %3753 = vmatpush1.bf16.msra.mxu0 %v3296
    %3754 = vmatprep.subr.bf16.mxu0 %v3289
    %3755 = vmatpush1.bf16.msra.mxu0 %v3288
    %3756 = vmatprep.subr.bf16.mxu0 %v3281
    %3757 = vmatpush1.bf16.msra.mxu0 %v3280
    %3758 = vmatprep.subr.bf16.mxu0 %v3273
    %3759 = vmatpush1.bf16.msra.mxu0 %v3272
    %3760 = vmatprep.subr.bf16.mxu0 %v3265
    %3761 = vmatpush1.bf16.msra.mxu0 %v3264
    %3762 = vmatprep.subr.bf16.mxu0 %v3257
    %3763 = vmatpush1.bf16.msra.mxu0 %v3256
    %3764 = vmatprep.subr.bf16.mxu0 %v3249
    %3765 = vmatpush1.bf16.msra.mxu0 %v3248
    %3766 = vmatprep.subr.bf16.mxu0 %v3241
    %3767 = vmatpush1.bf16.msra.mxu0 %v3240
    %3768 = vmatprep.subr.bf16.mxu0 %v3361
    %3769 = vmatpush2.bf16.msra.mxu0 %v3360
    %3770 = vmatprep.subr.bf16.mxu0 %v3353
    %3771 = vmatpush2.bf16.msra.mxu0 %v3352
    %3772 = vmatprep.subr.bf16.mxu0 %v3345
    %3773 = vmatpush2.bf16.msra.mxu0 %v3344
    %3774 = vmatprep.subr.bf16.mxu0 %v3337
    %3775 = vmatpush2.bf16.msra.mxu0 %v3336
    %3776 = vmatprep.subr.bf16.mxu0 %v3329
    %3777 = vmatpush2.bf16.msra.mxu0 %v3328
    %3778 = vmatprep.subr.bf16.mxu0 %v3321
    %3779 = vmatpush2.bf16.msra.mxu0 %v3320
    %3780 = vmatprep.subr.bf16.mxu0 %v3313
    %3781 = vmatpush2.bf16.msra.mxu0 %v3312
    %3782 = vmatprep.subr.bf16.mxu0 %v3305
    %3783 = vmatpush2.bf16.msra.mxu0 %v3304
    %3784 = vmatprep.mubr.bf16.mxu0 %v2181
    %3785 = vmatmul.mubr.bf16.gmra.mxu0 %v2180
    %v3786 = vpop.f32.mrf.mxu0
    %v3787 = vadd.f32 0.0, %v3786
    %v3788 = vpop.f32.mrf.mxu0
    %v3789 = vadd.f32 0.0, %v3788
    %v3790 = vpop.f32.mrf.mxu0
    %v3791 = vadd.f32 0.0, %v3790
    %v3792 = vpop.f32.mrf.mxu0
    %v3793 = vadd.f32 0.0, %v3792
    %3794 = vmatprep.mubr.bf16.mxu0 %v2185
    %3795 = vmatmul.mubr.bf16.gmra.mxu0 %v2184
    %v3796 = vpop.f32.mrf.mxu0
    %v3797 = vadd.f32 0.0, %v3796
    %v3798 = vpop.f32.mrf.mxu0
    %v3799 = vadd.f32 0.0, %v3798
    %v3800 = vpop.f32.mrf.mxu0
    %v3801 = vadd.f32 0.0, %v3800
    %v3802 = vpop.f32.mrf.mxu0
    %v3803 = vadd.f32 0.0, %v3802
    %3804 = vmatprep.mubr.bf16.mxu0 %v2189
    %3805 = vmatmul.mubr.bf16.gmra.mxu0 %v2188
    %v3806 = vpop.f32.mrf.mxu0
    %v3807 = vadd.f32 0.0, %v3806
    %v3808 = vpop.f32.mrf.mxu0
    %v3809 = vadd.f32 0.0, %v3808
    %v3810 = vpop.f32.mrf.mxu0
    %v3811 = vadd.f32 0.0, %v3810
    %v3812 = vpop.f32.mrf.mxu0
    %v3813 = vadd.f32 0.0, %v3812
    %3814 = vmatprep.mubr.bf16.mxu0 %v2193
    %3815 = vmatmul.mubr.bf16.gmra.mxu0 %v2192
    %v3816 = vpop.f32.mrf.mxu0
    %v3817 = vadd.f32 0.0, %v3816
    %v3818 = vpop.f32.mrf.mxu0
    %v3819 = vadd.f32 0.0, %v3818
    %v3820 = vpop.f32.mrf.mxu0
    %v3821 = vadd.f32 0.0, %v3820
    %v3822 = vpop.f32.mrf.mxu0
    %v3823 = vadd.f32 0.0, %v3822
    %3824 = vmatprep.mubr.bf16.mxu0 %v2197
    %3825 = vmatmul.mubr.bf16.gmra.mxu0 %v2196
    %v3826 = vpop.f32.mrf.mxu0
    %v3827 = vadd.f32 0.0, %v3826
    %v3828 = vpop.f32.mrf.mxu0
    %v3829 = vadd.f32 0.0, %v3828
    %v3830 = vpop.f32.mrf.mxu0
    %v3831 = vadd.f32 0.0, %v3830
    %v3832 = vpop.f32.mrf.mxu0
    %v3833 = vadd.f32 0.0, %v3832
    %3834 = vmatprep.mubr.bf16.mxu0 %v2201
    %3835 = vmatmul.mubr.bf16.gmra.mxu0 %v2200
    %v3836 = vpop.f32.mrf.mxu0
    %v3837 = vadd.f32 0.0, %v3836
    %v3838 = vpop.f32.mrf.mxu0
    %v3839 = vadd.f32 0.0, %v3838
    %v3840 = vpop.f32.mrf.mxu0
    %v3841 = vadd.f32 0.0, %v3840
    %v3842 = vpop.f32.mrf.mxu0
    %v3843 = vadd.f32 0.0, %v3842
    %3844 = vmatprep.mubr.bf16.mxu0 %v2205
    %3845 = vmatmul.mubr.bf16.gmra.mxu0 %v2204
    %v3846 = vpop.f32.mrf.mxu0
    %v3847 = vadd.f32 0.0, %v3846
    %v3848 = vpop.f32.mrf.mxu0
    %v3849 = vadd.f32 0.0, %v3848
    %v3850 = vpop.f32.mrf.mxu0
    %v3851 = vadd.f32 0.0, %v3850
    %v3852 = vpop.f32.mrf.mxu0
    %v3853 = vadd.f32 0.0, %v3852
    %3854 = vmatprep.mubr.bf16.mxu0 %v2209
    %3855 = vmatmul.mubr.bf16.gmra.mxu0 %v2208
    %v3856 = vpop.f32.mrf.mxu0
    %v3857 = vadd.f32 0.0, %v3856
    %v3858 = vpop.f32.mrf.mxu0
    %v3859 = vadd.f32 0.0, %v3858
    %v3860 = vpop.f32.mrf.mxu0
    %v3861 = vadd.f32 0.0, %v3860
    %v3862 = vpop.f32.mrf.mxu0
    %v3863 = vadd.f32 0.0, %v3862
    %3864 = vdwg.mxu0
    %3865 = vmatprep.subr.bf16.mxu0 %v3425
    %3866 = vmatpush1.bf16.msra.mxu0 %v3424
    %3867 = vmatprep.subr.bf16.mxu0 %v3417
    %3868 = vmatpush1.bf16.msra.mxu0 %v3416
    %3869 = vmatprep.subr.bf16.mxu0 %v3409
    %3870 = vmatpush1.bf16.msra.mxu0 %v3408
    %3871 = vmatprep.subr.bf16.mxu0 %v3401
    %3872 = vmatpush1.bf16.msra.mxu0 %v3400
    %3873 = vmatprep.subr.bf16.mxu0 %v3393
    %3874 = vmatpush1.bf16.msra.mxu0 %v3392
    %3875 = vmatprep.subr.bf16.mxu0 %v3385
    %3876 = vmatpush1.bf16.msra.mxu0 %v3384
    %3877 = vmatprep.subr.bf16.mxu0 %v3377
    %3878 = vmatpush1.bf16.msra.mxu0 %v3376
    %3879 = vmatprep.subr.bf16.mxu0 %v3369
    %3880 = vmatpush1.bf16.msra.mxu0 %v3368
    %3881 = vmatprep.subr.bf16.mxu0 %v3489
    %3882 = vmatpush2.bf16.msra.mxu0 %v3488
    %3883 = vmatprep.subr.bf16.mxu0 %v3481
    %3884 = vmatpush2.bf16.msra.mxu0 %v3480
    %3885 = vmatprep.subr.bf16.mxu0 %v3473
    %3886 = vmatpush2.bf16.msra.mxu0 %v3472
    %3887 = vmatprep.subr.bf16.mxu0 %v3465
    %3888 = vmatpush2.bf16.msra.mxu0 %v3464
    %3889 = vmatprep.subr.bf16.mxu0 %v3457
    %3890 = vmatpush2.bf16.msra.mxu0 %v3456
    %3891 = vmatprep.subr.bf16.mxu0 %v3449
    %3892 = vmatpush2.bf16.msra.mxu0 %v3448
    %3893 = vmatprep.subr.bf16.mxu0 %v3441
    %3894 = vmatpush2.bf16.msra.mxu0 %v3440
    %3895 = vmatprep.subr.bf16.mxu0 %v3433
    %3896 = vmatpush2.bf16.msra.mxu0 %v3432
    %3897 = vmatprep.mubr.bf16.mxu0 %v2183
    %3898 = vmatmul.mubr.bf16.gmra.mxu0 %v2182
    %v3899 = vpop.f32.mrf.mxu0
    %v3900 = vadd.f32 %v3787, %v3899
    %v3901 = vpop.f32.mrf.mxu0
    %v3902 = vadd.f32 %v3789, %v3901
    %v3903 = vpop.f32.mrf.mxu0
    %v3904 = vadd.f32 %v3791, %v3903
    %v3905 = vpop.f32.mrf.mxu0
    %v3906 = vadd.f32 %v3793, %v3905
    %3907 = vmatprep.mubr.bf16.mxu0 %v2187
    %3908 = vmatmul.mubr.bf16.gmra.mxu0 %v2186
    %v3909 = vpop.f32.mrf.mxu0
    %v3910 = vadd.f32 %v3797, %v3909
    %v3911 = vpop.f32.mrf.mxu0
    %v3912 = vadd.f32 %v3799, %v3911
    %v3913 = vpop.f32.mrf.mxu0
    %v3914 = vadd.f32 %v3801, %v3913
    %v3915 = vpop.f32.mrf.mxu0
    %v3916 = vadd.f32 %v3803, %v3915
    %3917 = vmatprep.mubr.bf16.mxu0 %v2191
    %3918 = vmatmul.mubr.bf16.gmra.mxu0 %v2190
    %v3919 = vpop.f32.mrf.mxu0
    %v3920 = vadd.f32 %v3807, %v3919
    %v3921 = vpop.f32.mrf.mxu0
    %v3922 = vadd.f32 %v3809, %v3921
    %v3923 = vpop.f32.mrf.mxu0
    %v3924 = vadd.f32 %v3811, %v3923
    %v3925 = vpop.f32.mrf.mxu0
    %v3926 = vadd.f32 %v3813, %v3925
    %3927 = vmatprep.mubr.bf16.mxu0 %v2195
    %3928 = vmatmul.mubr.bf16.gmra.mxu0 %v2194
    %v3929 = vpop.f32.mrf.mxu0
    %v3930 = vadd.f32 %v3817, %v3929
    %v3931 = vpop.f32.mrf.mxu0
    %v3932 = vadd.f32 %v3819, %v3931
    %v3933 = vpop.f32.mrf.mxu0
    %v3934 = vadd.f32 %v3821, %v3933
    %v3935 = vpop.f32.mrf.mxu0
    %v3936 = vadd.f32 %v3823, %v3935
    %3937 = vmatprep.mubr.bf16.mxu0 %v2199
    %3938 = vmatmul.mubr.bf16.gmra.mxu0 %v2198
    %v3939 = vpop.f32.mrf.mxu0
    %v3940 = vadd.f32 %v3827, %v3939
    %v3941 = vpop.f32.mrf.mxu0
    %v3942 = vadd.f32 %v3829, %v3941
    %v3943 = vpop.f32.mrf.mxu0
    %v3944 = vadd.f32 %v3831, %v3943
    %v3945 = vpop.f32.mrf.mxu0
    %v3946 = vadd.f32 %v3833, %v3945
    %3947 = vmatprep.mubr.bf16.mxu0 %v2203
    %3948 = vmatmul.mubr.bf16.gmra.mxu0 %v2202
    %v3949 = vpop.f32.mrf.mxu0
    %v3950 = vadd.f32 %v3837, %v3949
    %v3951 = vpop.f32.mrf.mxu0
    %v3952 = vadd.f32 %v3839, %v3951
    %v3953 = vpop.f32.mrf.mxu0
    %v3954 = vadd.f32 %v3841, %v3953
    %v3955 = vpop.f32.mrf.mxu0
    %v3956 = vadd.f32 %v3843, %v3955
    %3957 = vmatprep.mubr.bf16.mxu0 %v2207
    %3958 = vmatmul.mubr.bf16.gmra.mxu0 %v2206
    %v3959 = vpop.f32.mrf.mxu0
    %v3960 = vadd.f32 %v3847, %v3959
    %v3961 = vpop.f32.mrf.mxu0
    %v3962 = vadd.f32 %v3849, %v3961
    %v3963 = vpop.f32.mrf.mxu0
    %v3964 = vadd.f32 %v3851, %v3963
    %v3965 = vpop.f32.mrf.mxu0
    %v3966 = vadd.f32 %v3853, %v3965
    %3967 = vmatprep.mubr.bf16.mxu0 %v2211
    %3968 = vmatmul.mubr.bf16.gmra.mxu0 %v2210
    %v3969 = vpop.f32.mrf.mxu0
    %v3970 = vadd.f32 %v3857, %v3969
    %v3971 = vpop.f32.mrf.mxu0
    %v3972 = vadd.f32 %v3859, %v3971
    %v3973 = vpop.f32.mrf.mxu0
    %v3974 = vadd.f32 %v3861, %v3973
    %v3975 = vpop.f32.mrf.mxu0
    %v3976 = vadd.f32 %v3863, %v3975
    %3977 = vdwg.mxu0
    %3978 = vmatprep.subr.bf16.mxu0 %v3299
    %3979 = vmatpush1.bf16.msra.mxu0 %v3298
    %3980 = vmatprep.subr.bf16.mxu0 %v3291
    %3981 = vmatpush1.bf16.msra.mxu0 %v3290
    %3982 = vmatprep.subr.bf16.mxu0 %v3283
    %3983 = vmatpush1.bf16.msra.mxu0 %v3282
    %3984 = vmatprep.subr.bf16.mxu0 %v3275
    %3985 = vmatpush1.bf16.msra.mxu0 %v3274
    %3986 = vmatprep.subr.bf16.mxu0 %v3267
    %3987 = vmatpush1.bf16.msra.mxu0 %v3266
    %3988 = vmatprep.subr.bf16.mxu0 %v3259
    %3989 = vmatpush1.bf16.msra.mxu0 %v3258
    %3990 = vmatprep.subr.bf16.mxu0 %v3251
    %3991 = vmatpush1.bf16.msra.mxu0 %v3250
    %3992 = vmatprep.subr.bf16.mxu0 %v3243
    %3993 = vmatpush1.bf16.msra.mxu0 %v3242
    %3994 = vmatprep.subr.bf16.mxu0 %v3363
    %3995 = vmatpush2.bf16.msra.mxu0 %v3362
    %3996 = vmatprep.subr.bf16.mxu0 %v3355
    %3997 = vmatpush2.bf16.msra.mxu0 %v3354
    %3998 = vmatprep.subr.bf16.mxu0 %v3347
    %3999 = vmatpush2.bf16.msra.mxu0 %v3346
    %4000 = vmatprep.subr.bf16.mxu0 %v3339
    %4001 = vmatpush2.bf16.msra.mxu0 %v3338
    %4002 = vmatprep.subr.bf16.mxu0 %v3331
    %4003 = vmatpush2.bf16.msra.mxu0 %v3330
    %4004 = vmatprep.subr.bf16.mxu0 %v3323
    %4005 = vmatpush2.bf16.msra.mxu0 %v3322
    %4006 = vmatprep.subr.bf16.mxu0 %v3315
    %4007 = vmatpush2.bf16.msra.mxu0 %v3314
    %4008 = vmatprep.subr.bf16.mxu0 %v3307
    %4009 = vmatpush2.bf16.msra.mxu0 %v3306
    %4010 = vmatprep.mubr.bf16.mxu0 %v2181
    %4011 = vmatmul.mubr.bf16.gmra.mxu0 %v2180
    %v4012 = vpop.f32.mrf.mxu0
    %v4013 = vadd.f32 0.0, %v4012
    %v4014 = vpop.f32.mrf.mxu0
    %v4015 = vadd.f32 0.0, %v4014
    %v4016 = vpop.f32.mrf.mxu0
    %v4017 = vadd.f32 0.0, %v4016
    %v4018 = vpop.f32.mrf.mxu0
    %v4019 = vadd.f32 0.0, %v4018
    %4020 = vmatprep.mubr.bf16.mxu0 %v2185
    %4021 = vmatmul.mubr.bf16.gmra.mxu0 %v2184
    %v4022 = vpop.f32.mrf.mxu0
    %v4023 = vadd.f32 0.0, %v4022
    %v4024 = vpop.f32.mrf.mxu0
    %v4025 = vadd.f32 0.0, %v4024
    %v4026 = vpop.f32.mrf.mxu0
    %v4027 = vadd.f32 0.0, %v4026
    %v4028 = vpop.f32.mrf.mxu0
    %v4029 = vadd.f32 0.0, %v4028
    %4030 = vmatprep.mubr.bf16.mxu0 %v2189
    %4031 = vmatmul.mubr.bf16.gmra.mxu0 %v2188
    %v4032 = vpop.f32.mrf.mxu0
    %v4033 = vadd.f32 0.0, %v4032
    %v4034 = vpop.f32.mrf.mxu0
    %v4035 = vadd.f32 0.0, %v4034
    %v4036 = vpop.f32.mrf.mxu0
    %v4037 = vadd.f32 0.0, %v4036
    %v4038 = vpop.f32.mrf.mxu0
    %v4039 = vadd.f32 0.0, %v4038
    %4040 = vmatprep.mubr.bf16.mxu0 %v2193
    %4041 = vmatmul.mubr.bf16.gmra.mxu0 %v2192
    %v4042 = vpop.f32.mrf.mxu0
    %v4043 = vadd.f32 0.0, %v4042
    %v4044 = vpop.f32.mrf.mxu0
    %v4045 = vadd.f32 0.0, %v4044
    %v4046 = vpop.f32.mrf.mxu0
    %v4047 = vadd.f32 0.0, %v4046
    %v4048 = vpop.f32.mrf.mxu0
    %v4049 = vadd.f32 0.0, %v4048
    %4050 = vmatprep.mubr.bf16.mxu0 %v2197
    %4051 = vmatmul.mubr.bf16.gmra.mxu0 %v2196
    %v4052 = vpop.f32.mrf.mxu0
    %v4053 = vadd.f32 0.0, %v4052
    %v4054 = vpop.f32.mrf.mxu0
    %v4055 = vadd.f32 0.0, %v4054
    %v4056 = vpop.f32.mrf.mxu0
    %v4057 = vadd.f32 0.0, %v4056
    %v4058 = vpop.f32.mrf.mxu0
    %v4059 = vadd.f32 0.0, %v4058
    %4060 = vmatprep.mubr.bf16.mxu0 %v2201
    %4061 = vmatmul.mubr.bf16.gmra.mxu0 %v2200
    %v4062 = vpop.f32.mrf.mxu0
    %v4063 = vadd.f32 0.0, %v4062
    %v4064 = vpop.f32.mrf.mxu0
    %v4065 = vadd.f32 0.0, %v4064
    %v4066 = vpop.f32.mrf.mxu0
    %v4067 = vadd.f32 0.0, %v4066
    %v4068 = vpop.f32.mrf.mxu0
    %v4069 = vadd.f32 0.0, %v4068
    %4070 = vmatprep.mubr.bf16.mxu0 %v2205
    %4071 = vmatmul.mubr.bf16.gmra.mxu0 %v2204
    %v4072 = vpop.f32.mrf.mxu0
    %v4073 = vadd.f32 0.0, %v4072
    %v4074 = vpop.f32.mrf.mxu0
    %v4075 = vadd.f32 0.0, %v4074
    %v4076 = vpop.f32.mrf.mxu0
    %v4077 = vadd.f32 0.0, %v4076
    %v4078 = vpop.f32.mrf.mxu0
    %v4079 = vadd.f32 0.0, %v4078
    %4080 = vmatprep.mubr.bf16.mxu0 %v2209
    %4081 = vmatmul.mubr.bf16.gmra.mxu0 %v2208
    %v4082 = vpop.f32.mrf.mxu0
    %v4083 = vadd.f32 0.0, %v4082
    %v4084 = vpop.f32.mrf.mxu0
    %v4085 = vadd.f32 0.0, %v4084
    %v4086 = vpop.f32.mrf.mxu0
    %v4087 = vadd.f32 0.0, %v4086
    %v4088 = vpop.f32.mrf.mxu0
    %v4089 = vadd.f32 0.0, %v4088
    %4090 = vdwg.mxu0
    %4091 = vmatprep.subr.bf16.mxu0 %v3427
    %4092 = vmatpush1.bf16.msra.mxu0 %v3426
    %4093 = vmatprep.subr.bf16.mxu0 %v3419
    %4094 = vmatpush1.bf16.msra.mxu0 %v3418
    %4095 = vmatprep.subr.bf16.mxu0 %v3411
    %4096 = vmatpush1.bf16.msra.mxu0 %v3410
    %4097 = vmatprep.subr.bf16.mxu0 %v3403
    %4098 = vmatpush1.bf16.msra.mxu0 %v3402
    %4099 = vmatprep.subr.bf16.mxu0 %v3395
    %4100 = vmatpush1.bf16.msra.mxu0 %v3394
    %4101 = vmatprep.subr.bf16.mxu0 %v3387
    %4102 = vmatpush1.bf16.msra.mxu0 %v3386
    %4103 = vmatprep.subr.bf16.mxu0 %v3379
    %4104 = vmatpush1.bf16.msra.mxu0 %v3378
    %4105 = vmatprep.subr.bf16.mxu0 %v3371
    %4106 = vmatpush1.bf16.msra.mxu0 %v3370
    %4107 = vmatprep.subr.bf16.mxu0 %v3491
    %4108 = vmatpush2.bf16.msra.mxu0 %v3490
    %4109 = vmatprep.subr.bf16.mxu0 %v3483
    %4110 = vmatpush2.bf16.msra.mxu0 %v3482
    %4111 = vmatprep.subr.bf16.mxu0 %v3475
    %4112 = vmatpush2.bf16.msra.mxu0 %v3474
    %4113 = vmatprep.subr.bf16.mxu0 %v3467
    %4114 = vmatpush2.bf16.msra.mxu0 %v3466
    %4115 = vmatprep.subr.bf16.mxu0 %v3459
    %4116 = vmatpush2.bf16.msra.mxu0 %v3458
    %4117 = vmatprep.subr.bf16.mxu0 %v3451
    %4118 = vmatpush2.bf16.msra.mxu0 %v3450
    %4119 = vmatprep.subr.bf16.mxu0 %v3443
    %4120 = vmatpush2.bf16.msra.mxu0 %v3442
    %4121 = vmatprep.subr.bf16.mxu0 %v3435
    %4122 = vmatpush2.bf16.msra.mxu0 %v3434
    %4123 = vmatprep.mubr.bf16.mxu0 %v2183
    %4124 = vmatmul.mubr.bf16.gmra.mxu0 %v2182
    %v4125 = vpop.f32.mrf.mxu0
    %v4126 = vadd.f32 %v4013, %v4125
    %v4127 = vpop.f32.mrf.mxu0
    %v4128 = vadd.f32 %v4015, %v4127
    %v4129 = vpop.f32.mrf.mxu0
    %v4130 = vadd.f32 %v4017, %v4129
    %v4131 = vpop.f32.mrf.mxu0
    %v4132 = vadd.f32 %v4019, %v4131
    %4133 = vmatprep.mubr.bf16.mxu0 %v2187
    %4134 = vmatmul.mubr.bf16.gmra.mxu0 %v2186
    %v4135 = vpop.f32.mrf.mxu0
    %v4136 = vadd.f32 %v4023, %v4135
    %v4137 = vpop.f32.mrf.mxu0
    %v4138 = vadd.f32 %v4025, %v4137
    %v4139 = vpop.f32.mrf.mxu0
    %v4140 = vadd.f32 %v4027, %v4139
    %v4141 = vpop.f32.mrf.mxu0
    %v4142 = vadd.f32 %v4029, %v4141
    %4143 = vmatprep.mubr.bf16.mxu0 %v2191
    %4144 = vmatmul.mubr.bf16.gmra.mxu0 %v2190
    %v4145 = vpop.f32.mrf.mxu0
    %v4146 = vadd.f32 %v4033, %v4145
    %v4147 = vpop.f32.mrf.mxu0
    %v4148 = vadd.f32 %v4035, %v4147
    %v4149 = vpop.f32.mrf.mxu0
    %v4150 = vadd.f32 %v4037, %v4149
    %v4151 = vpop.f32.mrf.mxu0
    %v4152 = vadd.f32 %v4039, %v4151
    %4153 = vmatprep.mubr.bf16.mxu0 %v2195
    %4154 = vmatmul.mubr.bf16.gmra.mxu0 %v2194
    %v4155 = vpop.f32.mrf.mxu0
    %v4156 = vadd.f32 %v4043, %v4155
    %v4157 = vpop.f32.mrf.mxu0
    %v4158 = vadd.f32 %v4045, %v4157
    %v4159 = vpop.f32.mrf.mxu0
    %v4160 = vadd.f32 %v4047, %v4159
    %v4161 = vpop.f32.mrf.mxu0
    %v4162 = vadd.f32 %v4049, %v4161
    %4163 = vmatprep.mubr.bf16.mxu0 %v2199
    %4164 = vmatmul.mubr.bf16.gmra.mxu0 %v2198
    %v4165 = vpop.f32.mrf.mxu0
    %v4166 = vadd.f32 %v4053, %v4165
    %v4167 = vpop.f32.mrf.mxu0
    %v4168 = vadd.f32 %v4055, %v4167
    %v4169 = vpop.f32.mrf.mxu0
    %v4170 = vadd.f32 %v4057, %v4169
    %v4171 = vpop.f32.mrf.mxu0
    %v4172 = vadd.f32 %v4059, %v4171
    %4173 = vmatprep.mubr.bf16.mxu0 %v2203
    %4174 = vmatmul.mubr.bf16.gmra.mxu0 %v2202
    %v4175 = vpop.f32.mrf.mxu0
    %v4176 = vadd.f32 %v4063, %v4175
    %v4177 = vpop.f32.mrf.mxu0
    %v4178 = vadd.f32 %v4065, %v4177
    %v4179 = vpop.f32.mrf.mxu0
    %v4180 = vadd.f32 %v4067, %v4179
    %v4181 = vpop.f32.mrf.mxu0
    %v4182 = vadd.f32 %v4069, %v4181
    %4183 = vmatprep.mubr.bf16.mxu0 %v2207
    %4184 = vmatmul.mubr.bf16.gmra.mxu0 %v2206
    %v4185 = vpop.f32.mrf.mxu0
    %v4186 = vadd.f32 %v4073, %v4185
    %v4187 = vpop.f32.mrf.mxu0
    %v4188 = vadd.f32 %v4075, %v4187
    %v4189 = vpop.f32.mrf.mxu0
    %v4190 = vadd.f32 %v4077, %v4189
    %v4191 = vpop.f32.mrf.mxu0
    %v4192 = vadd.f32 %v4079, %v4191
    %4193 = vmatprep.mubr.bf16.mxu0 %v2211
    %4194 = vmatmul.mubr.bf16.gmra.mxu0 %v2210
    %v4195 = vpop.f32.mrf.mxu0
    %v4196 = vadd.f32 %v4083, %v4195
    %v4197 = vpop.f32.mrf.mxu0
    %v4198 = vadd.f32 %v4085, %v4197
    %v4199 = vpop.f32.mrf.mxu0
    %v4200 = vadd.f32 %v4087, %v4199
    %v4201 = vpop.f32.mrf.mxu0
    %v4202 = vadd.f32 %v4089, %v4201
    %4203 = vdwg.mxu0
    %4204 = vmatprep.subr.bf16.mxu0 %v3301
    %4205 = vmatpush1.bf16.msra.mxu0 %v3300
    %4206 = vmatprep.subr.bf16.mxu0 %v3293
    %4207 = vmatpush1.bf16.msra.mxu0 %v3292
    %4208 = vmatprep.subr.bf16.mxu0 %v3285
    %4209 = vmatpush1.bf16.msra.mxu0 %v3284
    %4210 = vmatprep.subr.bf16.mxu0 %v3277
    %4211 = vmatpush1.bf16.msra.mxu0 %v3276
    %4212 = vmatprep.subr.bf16.mxu0 %v3269
    %4213 = vmatpush1.bf16.msra.mxu0 %v3268
    %4214 = vmatprep.subr.bf16.mxu0 %v3261
    %4215 = vmatpush1.bf16.msra.mxu0 %v3260
    %4216 = vmatprep.subr.bf16.mxu0 %v3253
    %4217 = vmatpush1.bf16.msra.mxu0 %v3252
    %4218 = vmatprep.subr.bf16.mxu0 %v3245
    %4219 = vmatpush1.bf16.msra.mxu0 %v3244
    %4220 = vmatprep.subr.bf16.mxu0 %v3365
    %4221 = vmatpush2.bf16.msra.mxu0 %v3364
    %4222 = vmatprep.subr.bf16.mxu0 %v3357
    %4223 = vmatpush2.bf16.msra.mxu0 %v3356
    %4224 = vmatprep.subr.bf16.mxu0 %v3349
    %4225 = vmatpush2.bf16.msra.mxu0 %v3348
    %4226 = vmatprep.subr.bf16.mxu0 %v3341
    %4227 = vmatpush2.bf16.msra.mxu0 %v3340
    %4228 = vmatprep.subr.bf16.mxu0 %v3333
    %4229 = vmatpush2.bf16.msra.mxu0 %v3332
    %4230 = vmatprep.subr.bf16.mxu0 %v3325
    %4231 = vmatpush2.bf16.msra.mxu0 %v3324
    %4232 = vmatprep.subr.bf16.mxu0 %v3317
    %4233 = vmatpush2.bf16.msra.mxu0 %v3316
    %4234 = vmatprep.subr.bf16.mxu0 %v3309
    %4235 = vmatpush2.bf16.msra.mxu0 %v3308
    %4236 = vmatprep.mubr.bf16.mxu0 %v2181
    %4237 = vmatmul.mubr.bf16.gmra.mxu0 %v2180
    %v4238 = vpop.f32.mrf.mxu0
    %v4239 = vadd.f32 0.0, %v4238
    %v4240 = vpop.f32.mrf.mxu0
    %v4241 = vadd.f32 0.0, %v4240
    %v4242 = vpop.f32.mrf.mxu0
    %v4243 = vadd.f32 0.0, %v4242
    %v4244 = vpop.f32.mrf.mxu0
    %v4245 = vadd.f32 0.0, %v4244
    %4246 = vmatprep.mubr.bf16.mxu0 %v2185
    %4247 = vmatmul.mubr.bf16.gmra.mxu0 %v2184
    %v4248 = vpop.f32.mrf.mxu0
    %v4249 = vadd.f32 0.0, %v4248
    %v4250 = vpop.f32.mrf.mxu0
    %v4251 = vadd.f32 0.0, %v4250
    %v4252 = vpop.f32.mrf.mxu0
    %v4253 = vadd.f32 0.0, %v4252
    %v4254 = vpop.f32.mrf.mxu0
    %v4255 = vadd.f32 0.0, %v4254
    %4256 = vmatprep.mubr.bf16.mxu0 %v2189
    %4257 = vmatmul.mubr.bf16.gmra.mxu0 %v2188
    %v4258 = vpop.f32.mrf.mxu0
    %v4259 = vadd.f32 0.0, %v4258
    %v4260 = vpop.f32.mrf.mxu0
    %v4261 = vadd.f32 0.0, %v4260
    %v4262 = vpop.f32.mrf.mxu0
    %v4263 = vadd.f32 0.0, %v4262
    %v4264 = vpop.f32.mrf.mxu0
    %v4265 = vadd.f32 0.0, %v4264
    %4266 = vmatprep.mubr.bf16.mxu0 %v2193
    %4267 = vmatmul.mubr.bf16.gmra.mxu0 %v2192
    %v4268 = vpop.f32.mrf.mxu0
    %v4269 = vadd.f32 0.0, %v4268
    %v4270 = vpop.f32.mrf.mxu0
    %v4271 = vadd.f32 0.0, %v4270
    %v4272 = vpop.f32.mrf.mxu0
    %v4273 = vadd.f32 0.0, %v4272
    %v4274 = vpop.f32.mrf.mxu0
    %v4275 = vadd.f32 0.0, %v4274
    %4276 = vmatprep.mubr.bf16.mxu0 %v2197
    %4277 = vmatmul.mubr.bf16.gmra.mxu0 %v2196
    %v4278 = vpop.f32.mrf.mxu0
    %v4279 = vadd.f32 0.0, %v4278
    %v4280 = vpop.f32.mrf.mxu0
    %v4281 = vadd.f32 0.0, %v4280
    %v4282 = vpop.f32.mrf.mxu0
    %v4283 = vadd.f32 0.0, %v4282
    %v4284 = vpop.f32.mrf.mxu0
    %v4285 = vadd.f32 0.0, %v4284
    %4286 = vmatprep.mubr.bf16.mxu0 %v2201
    %4287 = vmatmul.mubr.bf16.gmra.mxu0 %v2200
    %v4288 = vpop.f32.mrf.mxu0
    %v4289 = vadd.f32 0.0, %v4288
    %v4290 = vpop.f32.mrf.mxu0
    %v4291 = vadd.f32 0.0, %v4290
    %v4292 = vpop.f32.mrf.mxu0
    %v4293 = vadd.f32 0.0, %v4292
    %v4294 = vpop.f32.mrf.mxu0
    %v4295 = vadd.f32 0.0, %v4294
    %4296 = vmatprep.mubr.bf16.mxu0 %v2205
    %4297 = vmatmul.mubr.bf16.gmra.mxu0 %v2204
    %v4298 = vpop.f32.mrf.mxu0
    %v4299 = vadd.f32 0.0, %v4298
    %v4300 = vpop.f32.mrf.mxu0
    %v4301 = vadd.f32 0.0, %v4300
    %v4302 = vpop.f32.mrf.mxu0
    %v4303 = vadd.f32 0.0, %v4302
    %v4304 = vpop.f32.mrf.mxu0
    %v4305 = vadd.f32 0.0, %v4304
    %4306 = vmatprep.mubr.bf16.mxu0 %v2209
    %4307 = vmatmul.mubr.bf16.gmra.mxu0 %v2208
    %v4308 = vpop.f32.mrf.mxu0
    %v4309 = vadd.f32 0.0, %v4308
    %v4310 = vpop.f32.mrf.mxu0
    %v4311 = vadd.f32 0.0, %v4310
    %v4312 = vpop.f32.mrf.mxu0
    %v4313 = vadd.f32 0.0, %v4312
    %v4314 = vpop.f32.mrf.mxu0
    %v4315 = vadd.f32 0.0, %v4314
    %4316 = vdwg.mxu0
    %4317 = vmatprep.subr.bf16.mxu0 %v3429
    %4318 = vmatpush1.bf16.msra.mxu0 %v3428
    %4319 = vmatprep.subr.bf16.mxu0 %v3421
    %4320 = vmatpush1.bf16.msra.mxu0 %v3420
    %4321 = vmatprep.subr.bf16.mxu0 %v3413
    %4322 = vmatpush1.bf16.msra.mxu0 %v3412
    %4323 = vmatprep.subr.bf16.mxu0 %v3405
    %4324 = vmatpush1.bf16.msra.mxu0 %v3404
    %4325 = vmatprep.subr.bf16.mxu0 %v3397
    %4326 = vmatpush1.bf16.msra.mxu0 %v3396
    %4327 = vmatprep.subr.bf16.mxu0 %v3389
    %4328 = vmatpush1.bf16.msra.mxu0 %v3388
    %4329 = vmatprep.subr.bf16.mxu0 %v3381
    %4330 = vmatpush1.bf16.msra.mxu0 %v3380
    %4331 = vmatprep.subr.bf16.mxu0 %v3373
    %4332 = vmatpush1.bf16.msra.mxu0 %v3372
    %4333 = vmatprep.subr.bf16.mxu0 %v3493
    %4334 = vmatpush2.bf16.msra.mxu0 %v3492
    %4335 = vmatprep.subr.bf16.mxu0 %v3485
    %4336 = vmatpush2.bf16.msra.mxu0 %v3484
    %4337 = vmatprep.subr.bf16.mxu0 %v3477
    %4338 = vmatpush2.bf16.msra.mxu0 %v3476
    %4339 = vmatprep.subr.bf16.mxu0 %v3469
    %4340 = vmatpush2.bf16.msra.mxu0 %v3468
    %4341 = vmatprep.subr.bf16.mxu0 %v3461
    %4342 = vmatpush2.bf16.msra.mxu0 %v3460
    %4343 = vmatprep.subr.bf16.mxu0 %v3453
    %4344 = vmatpush2.bf16.msra.mxu0 %v3452
    %4345 = vmatprep.subr.bf16.mxu0 %v3445
    %4346 = vmatpush2.bf16.msra.mxu0 %v3444
    %4347 = vmatprep.subr.bf16.mxu0 %v3437
    %4348 = vmatpush2.bf16.msra.mxu0 %v3436
    %4349 = vmatprep.mubr.bf16.mxu0 %v2183
    %4350 = vmatmul.mubr.bf16.gmra.mxu0 %v2182
    %v4351 = vpop.f32.mrf.mxu0
    %v4352 = vadd.f32 %v4239, %v4351
    %v4353 = vpop.f32.mrf.mxu0
    %v4354 = vadd.f32 %v4241, %v4353
    %v4355 = vpop.f32.mrf.mxu0
    %v4356 = vadd.f32 %v4243, %v4355
    %v4357 = vpop.f32.mrf.mxu0
    %v4358 = vadd.f32 %v4245, %v4357
    %4359 = vmatprep.mubr.bf16.mxu0 %v2187
    %4360 = vmatmul.mubr.bf16.gmra.mxu0 %v2186
    %v4361 = vpop.f32.mrf.mxu0
    %v4362 = vadd.f32 %v4249, %v4361
    %v4363 = vpop.f32.mrf.mxu0
    %v4364 = vadd.f32 %v4251, %v4363
    %v4365 = vpop.f32.mrf.mxu0
    %v4366 = vadd.f32 %v4253, %v4365
    %v4367 = vpop.f32.mrf.mxu0
    %v4368 = vadd.f32 %v4255, %v4367
    %4369 = vmatprep.mubr.bf16.mxu0 %v2191
    %4370 = vmatmul.mubr.bf16.gmra.mxu0 %v2190
    %v4371 = vpop.f32.mrf.mxu0
    %v4372 = vadd.f32 %v4259, %v4371
    %v4373 = vpop.f32.mrf.mxu0
    %v4374 = vadd.f32 %v4261, %v4373
    %v4375 = vpop.f32.mrf.mxu0
    %v4376 = vadd.f32 %v4263, %v4375
    %v4377 = vpop.f32.mrf.mxu0
    %v4378 = vadd.f32 %v4265, %v4377
    %4379 = vmatprep.mubr.bf16.mxu0 %v2195
    %4380 = vmatmul.mubr.bf16.gmra.mxu0 %v2194
    %v4381 = vpop.f32.mrf.mxu0
    %v4382 = vadd.f32 %v4269, %v4381
    %v4383 = vpop.f32.mrf.mxu0
    %v4384 = vadd.f32 %v4271, %v4383
    %v4385 = vpop.f32.mrf.mxu0
    %v4386 = vadd.f32 %v4273, %v4385
    %v4387 = vpop.f32.mrf.mxu0
    %v4388 = vadd.f32 %v4275, %v4387
    %4389 = vmatprep.mubr.bf16.mxu0 %v2199
    %4390 = vmatmul.mubr.bf16.gmra.mxu0 %v2198
    %v4391 = vpop.f32.mrf.mxu0
    %v4392 = vadd.f32 %v4279, %v4391
    %v4393 = vpop.f32.mrf.mxu0
    %v4394 = vadd.f32 %v4281, %v4393
    %v4395 = vpop.f32.mrf.mxu0
    %v4396 = vadd.f32 %v4283, %v4395
    %v4397 = vpop.f32.mrf.mxu0
    %v4398 = vadd.f32 %v4285, %v4397
    %4399 = vmatprep.mubr.bf16.mxu0 %v2203
    %4400 = vmatmul.mubr.bf16.gmra.mxu0 %v2202
    %v4401 = vpop.f32.mrf.mxu0
    %v4402 = vadd.f32 %v4289, %v4401
    %v4403 = vpop.f32.mrf.mxu0
    %v4404 = vadd.f32 %v4291, %v4403
    %v4405 = vpop.f32.mrf.mxu0
    %v4406 = vadd.f32 %v4293, %v4405
    %v4407 = vpop.f32.mrf.mxu0
    %v4408 = vadd.f32 %v4295, %v4407
    %4409 = vmatprep.mubr.bf16.mxu0 %v2207
    %4410 = vmatmul.mubr.bf16.gmra.mxu0 %v2206
    %v4411 = vpop.f32.mrf.mxu0
    %v4412 = vadd.f32 %v4299, %v4411
    %v4413 = vpop.f32.mrf.mxu0
    %v4414 = vadd.f32 %v4301, %v4413
    %v4415 = vpop.f32.mrf.mxu0
    %v4416 = vadd.f32 %v4303, %v4415
    %v4417 = vpop.f32.mrf.mxu0
    %v4418 = vadd.f32 %v4305, %v4417
    %4419 = vmatprep.mubr.bf16.mxu0 %v2211
    %4420 = vmatmul.mubr.bf16.gmra.mxu0 %v2210
    %v4421 = vpop.f32.mrf.mxu0
    %v4422 = vadd.f32 %v4309, %v4421
    %v4423 = vpop.f32.mrf.mxu0
    %v4424 = vadd.f32 %v4311, %v4423
    %v4425 = vpop.f32.mrf.mxu0
    %v4426 = vadd.f32 %v4313, %v4425
    %v4427 = vpop.f32.mrf.mxu0
    %v4428 = vadd.f32 %v4315, %v4427
    %4429 = vdwg.mxu0
    %4430 = vmatprep.subr.bf16.mxu0 %v3303
    %4431 = vmatpush1.bf16.msra.mxu0 %v3302
    %4432 = vmatprep.subr.bf16.mxu0 %v3295
    %4433 = vmatpush1.bf16.msra.mxu0 %v3294
    %4434 = vmatprep.subr.bf16.mxu0 %v3287
    %4435 = vmatpush1.bf16.msra.mxu0 %v3286
    %4436 = vmatprep.subr.bf16.mxu0 %v3279
    %4437 = vmatpush1.bf16.msra.mxu0 %v3278
    %4438 = vmatprep.subr.bf16.mxu0 %v3271
    %4439 = vmatpush1.bf16.msra.mxu0 %v3270
    %4440 = vmatprep.subr.bf16.mxu0 %v3263
    %4441 = vmatpush1.bf16.msra.mxu0 %v3262
    %4442 = vmatprep.subr.bf16.mxu0 %v3255
    %4443 = vmatpush1.bf16.msra.mxu0 %v3254
    %4444 = vmatprep.subr.bf16.mxu0 %v3247
    %4445 = vmatpush1.bf16.msra.mxu0 %v3246
    %4446 = vmatprep.subr.bf16.mxu0 %v3367
    %4447 = vmatpush2.bf16.msra.mxu0 %v3366
    %4448 = vmatprep.subr.bf16.mxu0 %v3359
    %4449 = vmatpush2.bf16.msra.mxu0 %v3358
    %4450 = vmatprep.subr.bf16.mxu0 %v3351
    %4451 = vmatpush2.bf16.msra.mxu0 %v3350
    %4452 = vmatprep.subr.bf16.mxu0 %v3343
    %4453 = vmatpush2.bf16.msra.mxu0 %v3342
    %4454 = vmatprep.subr.bf16.mxu0 %v3335
    %4455 = vmatpush2.bf16.msra.mxu0 %v3334
    %4456 = vmatprep.subr.bf16.mxu0 %v3327
    %4457 = vmatpush2.bf16.msra.mxu0 %v3326
    %4458 = vmatprep.subr.bf16.mxu0 %v3319
    %4459 = vmatpush2.bf16.msra.mxu0 %v3318
    %4460 = vmatprep.subr.bf16.mxu0 %v3311
    %4461 = vmatpush2.bf16.msra.mxu0 %v3310
    %4462 = vmatprep.mubr.bf16.mxu0 %v2181
    %4463 = vmatmul.mubr.bf16.gmra.mxu0 %v2180
    %v4464 = vpop.f32.mrf.mxu0
    %v4465 = vadd.f32 0.0, %v4464
    %v4466 = vpop.f32.mrf.mxu0
    %v4467 = vadd.f32 0.0, %v4466
    %v4468 = vpop.f32.mrf.mxu0
    %v4469 = vadd.f32 0.0, %v4468
    %v4470 = vpop.f32.mrf.mxu0
    %v4471 = vadd.f32 0.0, %v4470
    %4472 = vmatprep.mubr.bf16.mxu0 %v2185
    %4473 = vmatmul.mubr.bf16.gmra.mxu0 %v2184
    %v4474 = vpop.f32.mrf.mxu0
    %v4475 = vadd.f32 0.0, %v4474
    %v4476 = vpop.f32.mrf.mxu0
    %v4477 = vadd.f32 0.0, %v4476
    %v4478 = vpop.f32.mrf.mxu0
    %v4479 = vadd.f32 0.0, %v4478
    %v4480 = vpop.f32.mrf.mxu0
    %v4481 = vadd.f32 0.0, %v4480
    %4482 = vmatprep.mubr.bf16.mxu0 %v2189
    %4483 = vmatmul.mubr.bf16.gmra.mxu0 %v2188
    %v4484 = vpop.f32.mrf.mxu0
    %v4485 = vadd.f32 0.0, %v4484
    %v4486 = vpop.f32.mrf.mxu0
    %v4487 = vadd.f32 0.0, %v4486
    %v4488 = vpop.f32.mrf.mxu0
    %v4489 = vadd.f32 0.0, %v4488
    %v4490 = vpop.f32.mrf.mxu0
    %v4491 = vadd.f32 0.0, %v4490
    %4492 = vmatprep.mubr.bf16.mxu0 %v2193
    %4493 = vmatmul.mubr.bf16.gmra.mxu0 %v2192
    %v4494 = vpop.f32.mrf.mxu0
    %v4495 = vadd.f32 0.0, %v4494
    %v4496 = vpop.f32.mrf.mxu0
    %v4497 = vadd.f32 0.0, %v4496
    %v4498 = vpop.f32.mrf.mxu0
    %v4499 = vadd.f32 0.0, %v4498
    %v4500 = vpop.f32.mrf.mxu0
    %v4501 = vadd.f32 0.0, %v4500
    %4502 = vmatprep.mubr.bf16.mxu0 %v2197
    %4503 = vmatmul.mubr.bf16.gmra.mxu0 %v2196
    %v4504 = vpop.f32.mrf.mxu0
    %v4505 = vadd.f32 0.0, %v4504
    %v4506 = vpop.f32.mrf.mxu0
    %v4507 = vadd.f32 0.0, %v4506
    %v4508 = vpop.f32.mrf.mxu0
    %v4509 = vadd.f32 0.0, %v4508
    %v4510 = vpop.f32.mrf.mxu0
    %v4511 = vadd.f32 0.0, %v4510
    %4512 = vmatprep.mubr.bf16.mxu0 %v2201
    %4513 = vmatmul.mubr.bf16.gmra.mxu0 %v2200
    %v4514 = vpop.f32.mrf.mxu0
    %v4515 = vadd.f32 0.0, %v4514
    %v4516 = vpop.f32.mrf.mxu0
    %v4517 = vadd.f32 0.0, %v4516
    %v4518 = vpop.f32.mrf.mxu0
    %v4519 = vadd.f32 0.0, %v4518
    %v4520 = vpop.f32.mrf.mxu0
    %v4521 = vadd.f32 0.0, %v4520
    %4522 = vmatprep.mubr.bf16.mxu0 %v2205
    %4523 = vmatmul.mubr.bf16.gmra.mxu0 %v2204
    %v4524 = vpop.f32.mrf.mxu0
    %v4525 = vadd.f32 0.0, %v4524
    %v4526 = vpop.f32.mrf.mxu0
    %v4527 = vadd.f32 0.0, %v4526
    %v4528 = vpop.f32.mrf.mxu0
    %v4529 = vadd.f32 0.0, %v4528
    %v4530 = vpop.f32.mrf.mxu0
    %v4531 = vadd.f32 0.0, %v4530
    %4532 = vmatprep.mubr.bf16.mxu0 %v2209
    %4533 = vmatmul.mubr.bf16.gmra.mxu0 %v2208
    %v4534 = vpop.f32.mrf.mxu0
    %v4535 = vadd.f32 0.0, %v4534
    %v4536 = vpop.f32.mrf.mxu0
    %v4537 = vadd.f32 0.0, %v4536
    %v4538 = vpop.f32.mrf.mxu0
    %v4539 = vadd.f32 0.0, %v4538
    %v4540 = vpop.f32.mrf.mxu0
    %v4541 = vadd.f32 0.0, %v4540
    %4542 = vdwg.mxu0
    %4543 = vmatprep.subr.bf16.mxu0 %v3431
    %4544 = vmatpush1.bf16.msra.mxu0 %v3430
    %4545 = vmatprep.subr.bf16.mxu0 %v3423
    %4546 = vmatpush1.bf16.msra.mxu0 %v3422
    %4547 = vmatprep.subr.bf16.mxu0 %v3415
    %4548 = vmatpush1.bf16.msra.mxu0 %v3414
    %4549 = vmatprep.subr.bf16.mxu0 %v3407
    %4550 = vmatpush1.bf16.msra.mxu0 %v3406
    %4551 = vmatprep.subr.bf16.mxu0 %v3399
    %4552 = vmatpush1.bf16.msra.mxu0 %v3398
    %4553 = vmatprep.subr.bf16.mxu0 %v3391
    %4554 = vmatpush1.bf16.msra.mxu0 %v3390
    %4555 = vmatprep.subr.bf16.mxu0 %v3383
    %4556 = vmatpush1.bf16.msra.mxu0 %v3382
    %4557 = vmatprep.subr.bf16.mxu0 %v3375
    %4558 = vmatpush1.bf16.msra.mxu0 %v3374
    %4559 = vmatprep.subr.bf16.mxu0 %v3495
    %4560 = vmatpush2.bf16.msra.mxu0 %v3494
    %4561 = vmatprep.subr.bf16.mxu0 %v3487
    %4562 = vmatpush2.bf16.msra.mxu0 %v3486
    %4563 = vmatprep.subr.bf16.mxu0 %v3479
    %4564 = vmatpush2.bf16.msra.mxu0 %v3478
    %4565 = vmatprep.subr.bf16.mxu0 %v3471
    %4566 = vmatpush2.bf16.msra.mxu0 %v3470
    %4567 = vmatprep.subr.bf16.mxu0 %v3463
    %4568 = vmatpush2.bf16.msra.mxu0 %v3462
    %4569 = vmatprep.subr.bf16.mxu0 %v3455
    %4570 = vmatpush2.bf16.msra.mxu0 %v3454
    %4571 = vmatprep.subr.bf16.mxu0 %v3447
    %4572 = vmatpush2.bf16.msra.mxu0 %v3446
    %4573 = vmatprep.subr.bf16.mxu0 %v3439
    %4574 = vmatpush2.bf16.msra.mxu0 %v3438
    %4575 = vmatprep.mubr.bf16.mxu0 %v2183
    %4576 = vmatmul.mubr.bf16.gmra.mxu0 %v2182
    %v4577 = vpop.f32.mrf.mxu0
    %v4578 = vadd.f32 %v4465, %v4577
    %v4579 = vpop.f32.mrf.mxu0
    %v4580 = vadd.f32 %v4467, %v4579
    %v4581 = vpop.f32.mrf.mxu0
    %v4582 = vadd.f32 %v4469, %v4581
    %v4583 = vpop.f32.mrf.mxu0
    %v4584 = vadd.f32 %v4471, %v4583
    %4585 = vmatprep.mubr.bf16.mxu0 %v2187
    %4586 = vmatmul.mubr.bf16.gmra.mxu0 %v2186
    %v4587 = vpop.f32.mrf.mxu0
    %v4588 = vadd.f32 %v4475, %v4587
    %v4589 = vpop.f32.mrf.mxu0
    %v4590 = vadd.f32 %v4477, %v4589
    %v4591 = vpop.f32.mrf.mxu0
    %v4592 = vadd.f32 %v4479, %v4591
    %v4593 = vpop.f32.mrf.mxu0
    %v4594 = vadd.f32 %v4481, %v4593
    %4595 = vmatprep.mubr.bf16.mxu0 %v2191
    %4596 = vmatmul.mubr.bf16.gmra.mxu0 %v2190
    %v4597 = vpop.f32.mrf.mxu0
    %v4598 = vadd.f32 %v4485, %v4597
    %v4599 = vpop.f32.mrf.mxu0
    %v4600 = vadd.f32 %v4487, %v4599
    %v4601 = vpop.f32.mrf.mxu0
    %v4602 = vadd.f32 %v4489, %v4601
    %v4603 = vpop.f32.mrf.mxu0
    %v4604 = vadd.f32 %v4491, %v4603
    %4605 = vmatprep.mubr.bf16.mxu0 %v2195
    %4606 = vmatmul.mubr.bf16.gmra.mxu0 %v2194
    %v4607 = vpop.f32.mrf.mxu0
    %v4608 = vadd.f32 %v4495, %v4607
    %v4609 = vpop.f32.mrf.mxu0
    %v4610 = vadd.f32 %v4497, %v4609
    %v4611 = vpop.f32.mrf.mxu0
    %v4612 = vadd.f32 %v4499, %v4611
    %v4613 = vpop.f32.mrf.mxu0
    %v4614 = vadd.f32 %v4501, %v4613
    %4615 = vmatprep.mubr.bf16.mxu0 %v2199
    %4616 = vmatmul.mubr.bf16.gmra.mxu0 %v2198
    %v4617 = vpop.f32.mrf.mxu0
    %v4618 = vadd.f32 %v4505, %v4617
    %v4619 = vpop.f32.mrf.mxu0
    %v4620 = vadd.f32 %v4507, %v4619
    %v4621 = vpop.f32.mrf.mxu0
    %v4622 = vadd.f32 %v4509, %v4621
    %v4623 = vpop.f32.mrf.mxu0
    %v4624 = vadd.f32 %v4511, %v4623
    %4625 = vmatprep.mubr.bf16.mxu0 %v2203
    %4626 = vmatmul.mubr.bf16.gmra.mxu0 %v2202
    %v4627 = vpop.f32.mrf.mxu0
    %v4628 = vadd.f32 %v4515, %v4627
    %v4629 = vpop.f32.mrf.mxu0
    %v4630 = vadd.f32 %v4517, %v4629
    %v4631 = vpop.f32.mrf.mxu0
    %v4632 = vadd.f32 %v4519, %v4631
    %v4633 = vpop.f32.mrf.mxu0
    %v4634 = vadd.f32 %v4521, %v4633
    %4635 = vmatprep.mubr.bf16.mxu0 %v2207
    %4636 = vmatmul.mubr.bf16.gmra.mxu0 %v2206
    %v4637 = vpop.f32.mrf.mxu0
    %v4638 = vadd.f32 %v4525, %v4637
    %v4639 = vpop.f32.mrf.mxu0
    %v4640 = vadd.f32 %v4527, %v4639
    %v4641 = vpop.f32.mrf.mxu0
    %v4642 = vadd.f32 %v4529, %v4641
    %v4643 = vpop.f32.mrf.mxu0
    %v4644 = vadd.f32 %v4531, %v4643
    %4645 = vmatprep.mubr.bf16.mxu0 %v2211
    %4646 = vmatmul.mubr.bf16.gmra.mxu0 %v2210
    %v4647 = vpop.f32.mrf.mxu0
    %v4648 = vadd.f32 %v4535, %v4647
    %v4649 = vpop.f32.mrf.mxu0
    %v4650 = vadd.f32 %v4537, %v4649
    %v4651 = vpop.f32.mrf.mxu0
    %v4652 = vadd.f32 %v4539, %v4651
    %v4653 = vpop.f32.mrf.mxu0
    %v4654 = vadd.f32 %v4541, %v4653
    %4655 = vdwg.mxu0
    %v4656 = vld [vmem:[%s3 + $0xd] sm:$0xff]
    %v4657 = vld [vmem:[%s3 + $0x15] sm:$0xff]
    %v4658 = vadd.f32 %v3900, %v3904
    %v4659 = vadd.f32 %v4658, %v3910
    %v4660 = vadd.f32 %v4659, %v3914
    %v4661 = vadd.f32 %v4660, %v3920
    %v4662 = vadd.f32 %v4661, %v3924
    %v4663 = vadd.f32 %v4662, %v3930
    %v4664 = vadd.f32 %v4663, %v3934
    %v4665 = vadd.f32 %v4664, %v3940
    %v4666 = vadd.f32 %v4665, %v3944
    %v4667 = vadd.f32 %v4666, %v3950
    %v4668 = vadd.f32 %v4667, %v3954
    %v4669 = vadd.f32 %v4668, %v3960
    %v4670 = vadd.f32 %v4669, %v3964
    %v4671 = vadd.f32 %v4670, %v3970
    %v4672 = vadd.f32 %v4671, %v3974
    %v4673 = vrot.slane %v4672, 4
    %v4674 = vadd.f32 %v4672, %v4673
    %v4675 = vrot.slane %v4674, 2
    %v4676 = vadd.f32 %v4674, %v4675
    %v4677 = vrot.slane %v4676, 1
    %v4678 = vadd.f32 %v4676, %v4677
    %v4679 = vadd.f32 %v3902, %v3906
    %v4680 = vadd.f32 %v4679, %v3912
    %v4681 = vadd.f32 %v4680, %v3916
    %v4682 = vadd.f32 %v4681, %v3922
    %v4683 = vadd.f32 %v4682, %v3926
    %v4684 = vadd.f32 %v4683, %v3932
    %v4685 = vadd.f32 %v4684, %v3936
    %v4686 = vadd.f32 %v4685, %v3942
    %v4687 = vadd.f32 %v4686, %v3946
    %v4688 = vadd.f32 %v4687, %v3952
    %v4689 = vadd.f32 %v4688, %v3956
    %v4690 = vadd.f32 %v4689, %v3962
    %v4691 = vadd.f32 %v4690, %v3966
    %v4692 = vadd.f32 %v4691, %v3972
    %v4693 = vadd.f32 %v4692, %v3976
    %v4694 = vrot.slane %v4693, 4
    %v4695 = vadd.f32 %v4693, %v4694
    %v4696 = vrot.slane %v4695, 2
    %v4697 = vadd.f32 %v4695, %v4696
    %v4698 = vrot.slane %v4697, 1
    %v4699 = vadd.f32 %v4697, %v4698
    %v4700 = vadd.f32 %v4126, %v4130
    %v4701 = vadd.f32 %v4700, %v4136
    %v4702 = vadd.f32 %v4701, %v4140
    %v4703 = vadd.f32 %v4702, %v4146
    %v4704 = vadd.f32 %v4703, %v4150
    %v4705 = vadd.f32 %v4704, %v4156
    %v4706 = vadd.f32 %v4705, %v4160
    %v4707 = vadd.f32 %v4706, %v4166
    %v4708 = vadd.f32 %v4707, %v4170
    %v4709 = vadd.f32 %v4708, %v4176
    %v4710 = vadd.f32 %v4709, %v4180
    %v4711 = vadd.f32 %v4710, %v4186
    %v4712 = vadd.f32 %v4711, %v4190
    %v4713 = vadd.f32 %v4712, %v4196
    %v4714 = vadd.f32 %v4713, %v4200
    %v4715 = vrot.slane %v4714, 4
    %v4716 = vadd.f32 %v4714, %v4715
    %v4717 = vrot.slane %v4716, 2
    %v4718 = vadd.f32 %v4716, %v4717
    %v4719 = vrot.slane %v4718, 1
    %v4720 = vadd.f32 %v4718, %v4719
    %v4721 = vadd.f32 %v4128, %v4132
    %v4722 = vadd.f32 %v4721, %v4138
    %v4723 = vadd.f32 %v4722, %v4142
    %v4724 = vadd.f32 %v4723, %v4148
    %v4725 = vadd.f32 %v4724, %v4152
    %v4726 = vadd.f32 %v4725, %v4158
    %v4727 = vadd.f32 %v4726, %v4162
    %v4728 = vadd.f32 %v4727, %v4168
    %v4729 = vadd.f32 %v4728, %v4172
    %v4730 = vadd.f32 %v4729, %v4178
    %v4731 = vadd.f32 %v4730, %v4182
    %v4732 = vadd.f32 %v4731, %v4188
    %v4733 = vadd.f32 %v4732, %v4192
    %v4734 = vadd.f32 %v4733, %v4198
    %v4735 = vadd.f32 %v4734, %v4202
    %v4736 = vrot.slane %v4735, 4
    %v4737 = vadd.f32 %v4735, %v4736
    %v4738 = vrot.slane %v4737, 2
    %v4739 = vadd.f32 %v4737, %v4738
    %v4740 = vrot.slane %v4739, 1
    %v4741 = vadd.f32 %v4739, %v4740
    %v4742 = vadd.f32 %v4352, %v4356
    %v4743 = vadd.f32 %v4742, %v4362
    %v4744 = vadd.f32 %v4743, %v4366
    %v4745 = vadd.f32 %v4744, %v4372
    %v4746 = vadd.f32 %v4745, %v4376
    %v4747 = vadd.f32 %v4746, %v4382
    %v4748 = vadd.f32 %v4747, %v4386
    %v4749 = vadd.f32 %v4748, %v4392
    %v4750 = vadd.f32 %v4749, %v4396
    %v4751 = vadd.f32 %v4750, %v4402
    %v4752 = vadd.f32 %v4751, %v4406
    %v4753 = vadd.f32 %v4752, %v4412
    %v4754 = vadd.f32 %v4753, %v4416
    %v4755 = vadd.f32 %v4754, %v4422
    %v4756 = vadd.f32 %v4755, %v4426
    %v4757 = vrot.slane %v4756, 4
    %v4758 = vadd.f32 %v4756, %v4757
    %v4759 = vrot.slane %v4758, 2
    %v4760 = vadd.f32 %v4758, %v4759
    %v4761 = vrot.slane %v4760, 1
    %v4762 = vadd.f32 %v4760, %v4761
    %v4763 = vadd.f32 %v4354, %v4358
    %v4764 = vadd.f32 %v4763, %v4364
    %v4765 = vadd.f32 %v4764, %v4368
    %v4766 = vadd.f32 %v4765, %v4374
    %v4767 = vadd.f32 %v4766, %v4378
    %v4768 = vadd.f32 %v4767, %v4384
    %v4769 = vadd.f32 %v4768, %v4388
    %v4770 = vadd.f32 %v4769, %v4394
    %v4771 = vadd.f32 %v4770, %v4398
    %v4772 = vadd.f32 %v4771, %v4404
    %v4773 = vadd.f32 %v4772, %v4408
    %v4774 = vadd.f32 %v4773, %v4414
    %v4775 = vadd.f32 %v4774, %v4418
    %v4776 = vadd.f32 %v4775, %v4424
    %v4777 = vadd.f32 %v4776, %v4428
    %v4778 = vrot.slane %v4777, 4
    %v4779 = vadd.f32 %v4777, %v4778
    %v4780 = vrot.slane %v4779, 2
    %v4781 = vadd.f32 %v4779, %v4780
    %v4782 = vrot.slane %v4781, 1
    %v4783 = vadd.f32 %v4781, %v4782
    %v4784 = vadd.f32 %v4578, %v4582
    %v4785 = vadd.f32 %v4784, %v4588
    %v4786 = vadd.f32 %v4785, %v4592
    %v4787 = vadd.f32 %v4786, %v4598
    %v4788 = vadd.f32 %v4787, %v4602
    %v4789 = vadd.f32 %v4788, %v4608
    %v4790 = vadd.f32 %v4789, %v4612
    %v4791 = vadd.f32 %v4790, %v4618
    %v4792 = vadd.f32 %v4791, %v4622
    %v4793 = vadd.f32 %v4792, %v4628
    %v4794 = vadd.f32 %v4793, %v4632
    %v4795 = vadd.f32 %v4794, %v4638
    %v4796 = vadd.f32 %v4795, %v4642
    %v4797 = vadd.f32 %v4796, %v4648
    %v4798 = vadd.f32 %v4797, %v4652
    %v4799 = vrot.slane %v4798, 4
    %v4800 = vadd.f32 %v4798, %v4799
    %v4801 = vrot.slane %v4800, 2
    %v4802 = vadd.f32 %v4800, %v4801
    %v4803 = vrot.slane %v4802, 1
    %v4804 = vadd.f32 %v4802, %v4803
    %v4805 = vadd.f32 %v4580, %v4584
    %v4806 = vadd.f32 %v4805, %v4590
    %v4807 = vadd.f32 %v4806, %v4594
    %v4808 = vadd.f32 %v4807, %v4600
    %v4809 = vadd.f32 %v4808, %v4604
    %v4810 = vadd.f32 %v4809, %v4610
    %v4811 = vadd.f32 %v4810, %v4614
    %v4812 = vadd.f32 %v4811, %v4620
    %v4813 = vadd.f32 %v4812, %v4624
    %v4814 = vadd.f32 %v4813, %v4630
    %v4815 = vadd.f32 %v4814, %v4634
    %v4816 = vadd.f32 %v4815, %v4640
    %v4817 = vadd.f32 %v4816, %v4644
    %v4818 = vadd.f32 %v4817, %v4650
    %v4819 = vadd.f32 %v4818, %v4654
    %v4820 = vrot.slane %v4819, 4
    %v4821 = vadd.f32 %v4819, %v4820
    %v4822 = vrot.slane %v4821, 2
    %v4823 = vadd.f32 %v4821, %v4822
    %v4824 = vrot.slane %v4823, 1
    %v4825 = vadd.f32 %v4823, %v4824
    %v4826 = vmul.f32 %v4678, 0.0078125
    %v4827 = vmul.f32 %v4699, 0.0078125
    %v4828 = vmul.f32 %v4720, 0.0078125
    %v4829 = vmul.f32 %v4741, 0.0078125
    %v4830 = vmul.f32 %v4762, 0.0078125
    %v4831 = vmul.f32 %v4783, 0.0078125
    %v4832 = vmul.f32 %v4804, 0.0078125
    %v4833 = vmul.f32 %v4825, 0.0078125
    %v4834 = vmul.f32 %v3900, %v3900
    %v4835 = vmul.f32 %v3902, %v3902
    %v4836 = vmul.f32 %v4126, %v4126
    %v4837 = vmul.f32 %v4128, %v4128
    %v4838 = vmul.f32 %v4352, %v4352
    %v4839 = vmul.f32 %v4354, %v4354
    %v4840 = vmul.f32 %v4578, %v4578
    %v4841 = vmul.f32 %v4580, %v4580
    %v4842 = vmul.f32 %v3904, %v3904
    %v4843 = vmul.f32 %v3906, %v3906
    %v4844 = vmul.f32 %v4130, %v4130
    %v4845 = vmul.f32 %v4132, %v4132
    %v4846 = vmul.f32 %v4356, %v4356
    %v4847 = vmul.f32 %v4358, %v4358
    %v4848 = vmul.f32 %v4582, %v4582
    %v4849 = vmul.f32 %v4584, %v4584
    %v4850 = vmul.f32 %v3910, %v3910
    %v4851 = vmul.f32 %v3912, %v3912
    %v4852 = vmul.f32 %v4136, %v4136
    %v4853 = vmul.f32 %v4138, %v4138
    %v4854 = vmul.f32 %v4362, %v4362
    %v4855 = vmul.f32 %v4364, %v4364
    %v4856 = vmul.f32 %v4588, %v4588
    %v4857 = vmul.f32 %v4590, %v4590
    %v4858 = vmul.f32 %v3914, %v3914
    %v4859 = vmul.f32 %v3916, %v3916
    %v4860 = vmul.f32 %v4140, %v4140
    %v4861 = vmul.f32 %v4142, %v4142
    %v4862 = vmul.f32 %v4366, %v4366
    %v4863 = vmul.f32 %v4368, %v4368
    %v4864 = vmul.f32 %v4592, %v4592
    %v4865 = vmul.f32 %v4594, %v4594
    %v4866 = vmul.f32 %v3920, %v3920
    %v4867 = vmul.f32 %v3922, %v3922
    %v4868 = vmul.f32 %v4146, %v4146
    %v4869 = vmul.f32 %v4148, %v4148
    %v4870 = vmul.f32 %v4372, %v4372
    %v4871 = vmul.f32 %v4374, %v4374
    %v4872 = vmul.f32 %v4598, %v4598
    %v4873 = vmul.f32 %v4600, %v4600
    %v4874 = vmul.f32 %v3924, %v3924
    %v4875 = vmul.f32 %v3926, %v3926
    %v4876 = vmul.f32 %v4150, %v4150
    %v4877 = vmul.f32 %v4152, %v4152
    %v4878 = vmul.f32 %v4376, %v4376
    %v4879 = vmul.f32 %v4378, %v4378
    %v4880 = vmul.f32 %v4602, %v4602
    %v4881 = vmul.f32 %v4604, %v4604
    %v4882 = vmul.f32 %v3930, %v3930
    %v4883 = vmul.f32 %v3932, %v3932
    %v4884 = vmul.f32 %v4156, %v4156
    %v4885 = vmul.f32 %v4158, %v4158
    %v4886 = vmul.f32 %v4382, %v4382
    %v4887 = vmul.f32 %v4384, %v4384
    %v4888 = vmul.f32 %v4608, %v4608
    %v4889 = vmul.f32 %v4610, %v4610
    %v4890 = vmul.f32 %v3934, %v3934
    %v4891 = vmul.f32 %v3936, %v3936
    %v4892 = vmul.f32 %v4160, %v4160
    %v4893 = vmul.f32 %v4162, %v4162
    %v4894 = vmul.f32 %v4386, %v4386
    %v4895 = vmul.f32 %v4388, %v4388
    %v4896 = vmul.f32 %v4612, %v4612
    %v4897 = vmul.f32 %v4614, %v4614
    %v4898 = vmul.f32 %v3940, %v3940
    %v4899 = vmul.f32 %v3942, %v3942
    %v4900 = vmul.f32 %v4166, %v4166
    %v4901 = vmul.f32 %v4168, %v4168
    %v4902 = vmul.f32 %v4392, %v4392
    %v4903 = vmul.f32 %v4394, %v4394
    %v4904 = vmul.f32 %v4618, %v4618
    %v4905 = vmul.f32 %v4620, %v4620
    %v4906 = vmul.f32 %v3944, %v3944
    %v4907 = vmul.f32 %v3946, %v3946
    %v4908 = vmul.f32 %v4170, %v4170
    %v4909 = vmul.f32 %v4172, %v4172
    %v4910 = vmul.f32 %v4396, %v4396
    %v4911 = vmul.f32 %v4398, %v4398
    %v4912 = vmul.f32 %v4622, %v4622
    %v4913 = vmul.f32 %v4624, %v4624
    %v4914 = vmul.f32 %v3950, %v3950
    %v4915 = vmul.f32 %v3952, %v3952
    %v4916 = vmul.f32 %v4176, %v4176
    %v4917 = vmul.f32 %v4178, %v4178
    %v4918 = vmul.f32 %v4402, %v4402
    %v4919 = vmul.f32 %v4404, %v4404
    %v4920 = vmul.f32 %v4628, %v4628
    %v4921 = vmul.f32 %v4630, %v4630
    %v4922 = vmul.f32 %v3954, %v3954
    %v4923 = vmul.f32 %v3956, %v3956
    %v4924 = vmul.f32 %v4180, %v4180
    %v4925 = vmul.f32 %v4182, %v4182
    %v4926 = vmul.f32 %v4406, %v4406
    %v4927 = vmul.f32 %v4408, %v4408
    %v4928 = vmul.f32 %v4632, %v4632
    %v4929 = vmul.f32 %v4634, %v4634
    %v4930 = vmul.f32 %v3960, %v3960
    %v4931 = vmul.f32 %v3962, %v3962
    %v4932 = vmul.f32 %v4186, %v4186
    %v4933 = vmul.f32 %v4188, %v4188
    %v4934 = vmul.f32 %v4412, %v4412
    %v4935 = vmul.f32 %v4414, %v4414
    %v4936 = vmul.f32 %v4638, %v4638
    %v4937 = vmul.f32 %v4640, %v4640
    %v4938 = vmul.f32 %v3964, %v3964
    %v4939 = vmul.f32 %v3966, %v3966
    %v4940 = vmul.f32 %v4190, %v4190
    %v4941 = vmul.f32 %v4192, %v4192
    %v4942 = vmul.f32 %v4416, %v4416
    %v4943 = vmul.f32 %v4418, %v4418
    %v4944 = vmul.f32 %v4642, %v4642
    %v4945 = vmul.f32 %v4644, %v4644
    %v4946 = vmul.f32 %v3970, %v3970
    %v4947 = vmul.f32 %v3972, %v3972
    %v4948 = vmul.f32 %v4196, %v4196
    %v4949 = vmul.f32 %v4198, %v4198
    %v4950 = vmul.f32 %v4422, %v4422
    %v4951 = vmul.f32 %v4424, %v4424
    %v4952 = vmul.f32 %v4648, %v4648
    %v4953 = vmul.f32 %v4650, %v4650
    %v4954 = vmul.f32 %v3974, %v3974
    %v4955 = vmul.f32 %v3976, %v3976
    %v4956 = vmul.f32 %v4200, %v4200
    %v4957 = vmul.f32 %v4202, %v4202
    %v4958 = vmul.f32 %v4426, %v4426
    %v4959 = vmul.f32 %v4428, %v4428
    %v4960 = vmul.f32 %v4652, %v4652
    %v4961 = vmul.f32 %v4654, %v4654
    %v4962 = vadd.f32 %v4834, %v4842
    %v4963 = vadd.f32 %v4962, %v4850
    %v4964 = vadd.f32 %v4963, %v4858
    %v4965 = vadd.f32 %v4964, %v4866
    %v4966 = vadd.f32 %v4965, %v4874
    %v4967 = vadd.f32 %v4966, %v4882
    %v4968 = vadd.f32 %v4967, %v4890
    %v4969 = vadd.f32 %v4968, %v4898
    %v4970 = vadd.f32 %v4969, %v4906
    %v4971 = vadd.f32 %v4970, %v4914
    %v4972 = vadd.f32 %v4971, %v4922
    %v4973 = vadd.f32 %v4972, %v4930
    %v4974 = vadd.f32 %v4973, %v4938
    %v4975 = vadd.f32 %v4974, %v4946
    %v4976 = vadd.f32 %v4975, %v4954
    %v4977 = vrot.slane %v4976, 4
    %v4978 = vadd.f32 %v4976, %v4977
    %v4979 = vrot.slane %v4978, 2
    %v4980 = vadd.f32 %v4978, %v4979
    %v4981 = vrot.slane %v4980, 1
    %v4982 = vadd.f32 %v4980, %v4981
    %v4983 = vadd.f32 %v4835, %v4843
    %v4984 = vadd.f32 %v4983, %v4851
    %v4985 = vadd.f32 %v4984, %v4859
    %v4986 = vadd.f32 %v4985, %v4867
    %v4987 = vadd.f32 %v4986, %v4875
    %v4988 = vadd.f32 %v4987, %v4883
    %v4989 = vadd.f32 %v4988, %v4891
    %v4990 = vadd.f32 %v4989, %v4899
    %v4991 = vadd.f32 %v4990, %v4907
    %v4992 = vadd.f32 %v4991, %v4915
    %v4993 = vadd.f32 %v4992, %v4923
    %v4994 = vadd.f32 %v4993, %v4931
    %v4995 = vadd.f32 %v4994, %v4939
    %v4996 = vadd.f32 %v4995, %v4947
    %v4997 = vadd.f32 %v4996, %v4955
    %v4998 = vrot.slane %v4997, 4
    %v4999 = vadd.f32 %v4997, %v4998
    %v5000 = vrot.slane %v4999, 2
    %v5001 = vadd.f32 %v4999, %v5000
    %v5002 = vrot.slane %v5001, 1
    %v5003 = vadd.f32 %v5001, %v5002
    %v5004 = vadd.f32 %v4836, %v4844
    %v5005 = vadd.f32 %v5004, %v4852
    %v5006 = vadd.f32 %v5005, %v4860
    %v5007 = vadd.f32 %v5006, %v4868
    %v5008 = vadd.f32 %v5007, %v4876
    %v5009 = vadd.f32 %v5008, %v4884
    %v5010 = vadd.f32 %v5009, %v4892
    %v5011 = vadd.f32 %v5010, %v4900
    %v5012 = vadd.f32 %v5011, %v4908
    %v5013 = vadd.f32 %v5012, %v4916
    %v5014 = vadd.f32 %v5013, %v4924
    %v5015 = vadd.f32 %v5014, %v4932
    %v5016 = vadd.f32 %v5015, %v4940
    %v5017 = vadd.f32 %v5016, %v4948
    %v5018 = vadd.f32 %v5017, %v4956
    %v5019 = vrot.slane %v5018, 4
    %v5020 = vadd.f32 %v5018, %v5019
    %v5021 = vrot.slane %v5020, 2
    %v5022 = vadd.f32 %v5020, %v5021
    %v5023 = vrot.slane %v5022, 1
    %v5024 = vadd.f32 %v5022, %v5023
    %v5025 = vadd.f32 %v4837, %v4845
    %v5026 = vadd.f32 %v5025, %v4853
    %v5027 = vadd.f32 %v5026, %v4861
    %v5028 = vadd.f32 %v5027, %v4869
    %v5029 = vadd.f32 %v5028, %v4877
    %v5030 = vadd.f32 %v5029, %v4885
    %v5031 = vadd.f32 %v5030, %v4893
    %v5032 = vadd.f32 %v5031, %v4901
    %v5033 = vadd.f32 %v5032, %v4909
    %v5034 = vadd.f32 %v5033, %v4917
    %v5035 = vadd.f32 %v5034, %v4925
    %v5036 = vadd.f32 %v5035, %v4933
    %v5037 = vadd.f32 %v5036, %v4941
    %v5038 = vadd.f32 %v5037, %v4949
    %v5039 = vadd.f32 %v5038, %v4957
    %v5040 = vrot.slane %v5039, 4
    %v5041 = vadd.f32 %v5039, %v5040
    %v5042 = vrot.slane %v5041, 2
    %v5043 = vadd.f32 %v5041, %v5042
    %v5044 = vrot.slane %v5043, 1
    %v5045 = vadd.f32 %v5043, %v5044
    %v5046 = vadd.f32 %v4838, %v4846
    %v5047 = vadd.f32 %v5046, %v4854
    %v5048 = vadd.f32 %v5047, %v4862
    %v5049 = vadd.f32 %v5048, %v4870
    %v5050 = vadd.f32 %v5049, %v4878
    %v5051 = vadd.f32 %v5050, %v4886
    %v5052 = vadd.f32 %v5051, %v4894
    %v5053 = vadd.f32 %v5052, %v4902
    %v5054 = vadd.f32 %v5053, %v4910
    %v5055 = vadd.f32 %v5054, %v4918
    %v5056 = vadd.f32 %v5055, %v4926
    %v5057 = vadd.f32 %v5056, %v4934
    %v5058 = vadd.f32 %v5057, %v4942
    %v5059 = vadd.f32 %v5058, %v4950
    %v5060 = vadd.f32 %v5059, %v4958
    %v5061 = vrot.slane %v5060, 4
    %v5062 = vadd.f32 %v5060, %v5061
    %v5063 = vrot.slane %v5062, 2
    %v5064 = vadd.f32 %v5062, %v5063
    %v5065 = vrot.slane %v5064, 1
    %v5066 = vadd.f32 %v5064, %v5065
    %v5067 = vadd.f32 %v4839, %v4847
    %v5068 = vadd.f32 %v5067, %v4855
    %v5069 = vadd.f32 %v5068, %v4863
    %v5070 = vadd.f32 %v5069, %v4871
    %v5071 = vadd.f32 %v5070, %v4879
    %v5072 = vadd.f32 %v5071, %v4887
    %v5073 = vadd.f32 %v5072, %v4895
    %v5074 = vadd.f32 %v5073, %v4903
    %v5075 = vadd.f32 %v5074, %v4911
    %v5076 = vadd.f32 %v5075, %v4919
    %v5077 = vadd.f32 %v5076, %v4927
    %v5078 = vadd.f32 %v5077, %v4935
    %v5079 = vadd.f32 %v5078, %v4943
    %v5080 = vadd.f32 %v5079, %v4951
    %v5081 = vadd.f32 %v5080, %v4959
    %v5082 = vrot.slane %v5081, 4
    %v5083 = vadd.f32 %v5081, %v5082
    %v5084 = vrot.slane %v5083, 2
    %v5085 = vadd.f32 %v5083, %v5084
    %v5086 = vrot.slane %v5085, 1
    %v5087 = vadd.f32 %v5085, %v5086
    %v5088 = vadd.f32 %v4840, %v4848
    %v5089 = vadd.f32 %v5088, %v4856
    %v5090 = vadd.f32 %v5089, %v4864
    %v5091 = vadd.f32 %v5090, %v4872
    %v5092 = vadd.f32 %v5091, %v4880
    %v5093 = vadd.f32 %v5092, %v4888
    %v5094 = vadd.f32 %v5093, %v4896
    %v5095 = vadd.f32 %v5094, %v4904
    %v5096 = vadd.f32 %v5095, %v4912
    %v5097 = vadd.f32 %v5096, %v4920
    %v5098 = vadd.f32 %v5097, %v4928
    %v5099 = vadd.f32 %v5098, %v4936
    %v5100 = vadd.f32 %v5099, %v4944
    %v5101 = vadd.f32 %v5100, %v4952
    %v5102 = vadd.f32 %v5101, %v4960
    %v5103 = vrot.slane %v5102, 4
    %v5104 = vadd.f32 %v5102, %v5103
    %v5105 = vrot.slane %v5104, 2
    %v5106 = vadd.f32 %v5104, %v5105
    %v5107 = vrot.slane %v5106, 1
    %v5108 = vadd.f32 %v5106, %v5107
    %v5109 = vadd.f32 %v4841, %v4849
    %v5110 = vadd.f32 %v5109, %v4857
    %v5111 = vadd.f32 %v5110, %v4865
    %v5112 = vadd.f32 %v5111, %v4873
    %v5113 = vadd.f32 %v5112, %v4881
    %v5114 = vadd.f32 %v5113, %v4889
    %v5115 = vadd.f32 %v5114, %v4897
    %v5116 = vadd.f32 %v5115, %v4905
    %v5117 = vadd.f32 %v5116, %v4913
    %v5118 = vadd.f32 %v5117, %v4921
    %v5119 = vadd.f32 %v5118, %v4929
    %v5120 = vadd.f32 %v5119, %v4937
    %v5121 = vadd.f32 %v5120, %v4945
    %v5122 = vadd.f32 %v5121, %v4953
    %v5123 = vadd.f32 %v5122, %v4961
    %v5124 = vrot.slane %v5123, 4
    %v5125 = vadd.f32 %v5123, %v5124
    %v5126 = vrot.slane %v5125, 2
    %v5127 = vadd.f32 %v5125, %v5126
    %v5128 = vrot.slane %v5127, 1
    %v5129 = vadd.f32 %v5127, %v5128
    %v5130 = vmul.f32 %v4982, 0.0078125
    %v5131 = vmul.f32 %v5003, 0.0078125
    %v5132 = vmul.f32 %v5024, 0.0078125
    %v5133 = vmul.f32 %v5045, 0.0078125
    %v5134 = vmul.f32 %v5066, 0.0078125
    %v5135 = vmul.f32 %v5087, 0.0078125
    %v5136 = vmul.f32 %v5108, 0.0078125
    %v5137 = vmul.f32 %v5129, 0.0078125
    %v5138 = vmul.f32 %v4826, %v4826
    %v5139 = vmul.f32 %v4827, %v4827
    %v5140 = vmul.f32 %v4828, %v4828
    %v5141 = vmul.f32 %v4829, %v4829
    %v5142 = vmul.f32 %v4830, %v4830
    %v5143 = vmul.f32 %v4831, %v4831
    %v5144 = vmul.f32 %v4832, %v4832
    %v5145 = vmul.f32 %v4833, %v4833
    %v5146 = vsub.f32 %v5130, %v5138
    %v5147 = vsub.f32 %v5131, %v5139
    %v5148 = vsub.f32 %v5132, %v5140
    %v5149 = vsub.f32 %v5133, %v5141
    %v5150 = vsub.f32 %v5134, %v5142
    %v5151 = vsub.f32 %v5135, %v5143
    %v5152 = vsub.f32 %v5136, %v5144
    %v5153 = vsub.f32 %v5137, %v5145
    %v5154 = vadd.f32 %v5146, 0.8
    %v5155 = vadd.f32 %v5147, 0.8
    %v5156 = vadd.f32 %v5148, 0.8
    %v5157 = vadd.f32 %v5149, 0.8
    %v5158 = vadd.f32 %v5150, 0.8
    %v5159 = vadd.f32 %v5151, 0.8
    %v5160 = vadd.f32 %v5152, 0.8
    %v5161 = vadd.f32 %v5153, 0.8
    %v5162 = vrsqrt.pop %v5154
    %v5163 = vrsqrt.pop %v5155
    %v5164 = vrsqrt.pop %v5156
    %v5165 = vrsqrt.pop %v5157
    %v5166 = vrsqrt.pop %v5158
    %v5167 = vrsqrt.pop %v5159
    %v5168 = vrsqrt.pop %v5160
    %v5169 = vrsqrt.pop %v5161
    %v5178 = vcombine.low %v5162, %v5163
    %v5179 = vcombine.low %v5164, %v5165
    %v5180 = vcombine.low %v5166, %v5167
    %v5181 = vcombine.low %v5168, %v5169
    %v5183 = vunpack.c.l.s4 1966171168
    %v5184 = vunpack.c.0.s8 %v5183
    %v5185 = vlaneseq
    %v5186 = vshrl.u32 %v5185, 7
    %v5187 = vsub.s32 %v5184, %v5186
    %v5188 = vrot.slane %v5178, %v5187
    %v5190 = vunpack.c.l.s4 1966171168
    %v5191 = vunpack.c.0.s8 %v5190
    %v5192 = vlaneseq
    %v5193 = vshrl.u32 %v5192, 7
    %v5194 = vsub.s32 %v5191, %v5193
    %v5195 = vrot.slane %v5179, %v5194
    %v5197 = vunpack.c.l.s4 1966171168
    %v5198 = vunpack.c.0.s8 %v5197
    %v5199 = vlaneseq
    %v5200 = vshrl.u32 %v5199, 7
    %v5201 = vsub.s32 %v5198, %v5200
    %v5202 = vrot.slane %v5180, %v5201
    %v5204 = vunpack.c.l.s4 1966171168
    %v5205 = vunpack.c.0.s8 %v5204
    %v5206 = vlaneseq
    %v5207 = vshrl.u32 %v5206, 7
    %v5208 = vsub.s32 %v5205, %v5207
    %v5209 = vrot.slane %v5181, %v5208
    %v5210 = vcombine.low %v5188, %v5195
    %v5211 = vcombine.low %v5202, %v5209
    %v5213 = vunpack.c.l.s4 1966171168
    %v5214 = vunpack.c.0.s8 %v5213
    %v5215 = vlaneseq
    %v5216 = vshrl.u32 %v5215, 7
    %v5217 = vsub.s32 %v5214, %v5216
    %v5218 = vrot.slane %v5210, %v5217
    %v5220 = vunpack.c.l.s4 1966171168
    %v5221 = vunpack.c.0.s8 %v5220
    %v5222 = vlaneseq
    %v5223 = vshrl.u32 %v5222, 7
    %v5224 = vsub.s32 %v5221, %v5223
    %v5225 = vrot.slane %v5211, %v5224
    %v5226 = vcombine.low %v5218, %v5225
    %v5228 = vmul.f32 %v4656, %v5226
    %v5230 = vlaneseq
    %v5231 = vshrl.u32 %v5230, 7
    %v5232 = vsub.s32 0, %v5231
    %v5233 = vrot.slane %v5228, %v5232
    %v5234 = vlaneseq
    %v5235 = vshrl.u32 %v5234, 7
    %v5236 = vsub.s32 1, %v5235
    %v5237 = vrot.slane %v5228, %v5236
    %v5238 = vlaneseq
    %v5239 = vshrl.u32 %v5238, 7
    %v5240 = vsub.s32 2, %v5239
    %v5241 = vrot.slane %v5228, %v5240
    %v5242 = vlaneseq
    %v5243 = vshrl.u32 %v5242, 7
    %v5244 = vsub.s32 3, %v5243
    %v5245 = vrot.slane %v5228, %v5244
    %v5246 = vlaneseq
    %v5247 = vshrl.u32 %v5246, 7
    %v5248 = vsub.s32 4, %v5247
    %v5249 = vrot.slane %v5228, %v5248
    %v5250 = vlaneseq
    %v5251 = vshrl.u32 %v5250, 7
    %v5252 = vsub.s32 5, %v5251
    %v5253 = vrot.slane %v5228, %v5252
    %v5254 = vlaneseq
    %v5255 = vshrl.u32 %v5254, 7
    %v5256 = vsub.s32 6, %v5255
    %v5257 = vrot.slane %v5228, %v5256
    %v5258 = vlaneseq
    %v5259 = vshrl.u32 %v5258, 7
    %v5260 = vsub.s32 7, %v5259
    %v5261 = vrot.slane %v5228, %v5260
    %v5270 = vmul.f32 %v4826, %v5233
    %v5271 = vmul.f32 %v4827, %v5237
    %v5272 = vmul.f32 %v4828, %v5241
    %v5273 = vmul.f32 %v4829, %v5245
    %v5274 = vmul.f32 %v4830, %v5249
    %v5275 = vmul.f32 %v4831, %v5253
    %v5276 = vmul.f32 %v4832, %v5257
    %v5277 = vmul.f32 %v4833, %v5261
    %v5286 = vcombine.low %v5270, %v5271
    %v5287 = vcombine.low %v5272, %v5273
    %v5288 = vcombine.low %v5274, %v5275
    %v5289 = vcombine.low %v5276, %v5277
    %v5291 = vunpack.c.l.s4 1966171168
    %v5292 = vunpack.c.0.s8 %v5291
    %v5293 = vlaneseq
    %v5294 = vshrl.u32 %v5293, 7
    %v5295 = vsub.s32 %v5292, %v5294
    %v5296 = vrot.slane %v5286, %v5295
    %v5298 = vunpack.c.l.s4 1966171168
    %v5299 = vunpack.c.0.s8 %v5298
    %v5300 = vlaneseq
    %v5301 = vshrl.u32 %v5300, 7
    %v5302 = vsub.s32 %v5299, %v5301
    %v5303 = vrot.slane %v5287, %v5302
    %v5305 = vunpack.c.l.s4 1966171168
    %v5306 = vunpack.c.0.s8 %v5305
    %v5307 = vlaneseq
    %v5308 = vshrl.u32 %v5307, 7
    %v5309 = vsub.s32 %v5306, %v5308
    %v5310 = vrot.slane %v5288, %v5309
    %v5312 = vunpack.c.l.s4 1966171168
    %v5313 = vunpack.c.0.s8 %v5312
    %v5314 = vlaneseq
    %v5315 = vshrl.u32 %v5314, 7
    %v5316 = vsub.s32 %v5313, %v5315
    %v5317 = vrot.slane %v5289, %v5316
    %v5318 = vcombine.low %v5296, %v5303
    %v5319 = vcombine.low %v5310, %v5317
    %v5321 = vunpack.c.l.s4 1966171168
    %v5322 = vunpack.c.0.s8 %v5321
    %v5323 = vlaneseq
    %v5324 = vshrl.u32 %v5323, 7
    %v5325 = vsub.s32 %v5322, %v5324
    %v5326 = vrot.slane %v5318, %v5325
    %v5328 = vunpack.c.l.s4 1966171168
    %v5329 = vunpack.c.0.s8 %v5328
    %v5330 = vlaneseq
    %v5331 = vshrl.u32 %v5330, 7
    %v5332 = vsub.s32 %v5329, %v5331
    %v5333 = vrot.slane %v5319, %v5332
    %v5334 = vcombine.low %v5326, %v5333
    %v5336 = vsub.f32 %v4657, %v5334
    %v5337 = vmul.f32 %v3900, %v5233
    %v5338 = vmul.f32 %v3902, %v5237
    %v5339 = vmul.f32 %v4126, %v5241
    %v5340 = vmul.f32 %v4128, %v5245
    %v5341 = vmul.f32 %v4352, %v5249
    %v5342 = vmul.f32 %v4354, %v5253
    %v5343 = vmul.f32 %v4578, %v5257
    %v5344 = vmul.f32 %v4580, %v5261
    %v5345 = vmul.f32 %v3904, %v5233
    %v5346 = vmul.f32 %v3906, %v5237
    %v5347 = vmul.f32 %v4130, %v5241
    %v5348 = vmul.f32 %v4132, %v5245
    %v5349 = vmul.f32 %v4356, %v5249
    %v5350 = vmul.f32 %v4358, %v5253
    %v5351 = vmul.f32 %v4582, %v5257
    %v5352 = vmul.f32 %v4584, %v5261
    %v5353 = vmul.f32 %v3910, %v5233
    %v5354 = vmul.f32 %v3912, %v5237
    %v5355 = vmul.f32 %v4136, %v5241
    %v5356 = vmul.f32 %v4138, %v5245
    %v5357 = vmul.f32 %v4362, %v5249
    %v5358 = vmul.f32 %v4364, %v5253
    %v5359 = vmul.f32 %v4588, %v5257
    %v5360 = vmul.f32 %v4590, %v5261
    %v5361 = vmul.f32 %v3914, %v5233
    %v5362 = vmul.f32 %v3916, %v5237
    %v5363 = vmul.f32 %v4140, %v5241
    %v5364 = vmul.f32 %v4142, %v5245
    %v5365 = vmul.f32 %v4366, %v5249
    %v5366 = vmul.f32 %v4368, %v5253
    %v5367 = vmul.f32 %v4592, %v5257
    %v5368 = vmul.f32 %v4594, %v5261
    %v5369 = vmul.f32 %v3920, %v5233
    %v5370 = vmul.f32 %v3922, %v5237
    %v5371 = vmul.f32 %v4146, %v5241
    %v5372 = vmul.f32 %v4148, %v5245
    %v5373 = vmul.f32 %v4372, %v5249
    %v5374 = vmul.f32 %v4374, %v5253
    %v5375 = vmul.f32 %v4598, %v5257
    %v5376 = vmul.f32 %v4600, %v5261
    %v5377 = vmul.f32 %v3924, %v5233
    %v5378 = vmul.f32 %v3926, %v5237
    %v5379 = vmul.f32 %v4150, %v5241
    %v5380 = vmul.f32 %v4152, %v5245
    %v5381 = vmul.f32 %v4376, %v5249
    %v5382 = vmul.f32 %v4378, %v5253
    %v5383 = vmul.f32 %v4602, %v5257
    %v5384 = vmul.f32 %v4604, %v5261
    %v5385 = vmul.f32 %v3930, %v5233
    %v5386 = vmul.f32 %v3932, %v5237
    %v5387 = vmul.f32 %v4156, %v5241
    %v5388 = vmul.f32 %v4158, %v5245
    %v5389 = vmul.f32 %v4382, %v5249
    %v5390 = vmul.f32 %v4384, %v5253
    %v5391 = vmul.f32 %v4608, %v5257
    %v5392 = vmul.f32 %v4610, %v5261
    %v5393 = vmul.f32 %v3934, %v5233
    %v5394 = vmul.f32 %v3936, %v5237
    %v5395 = vmul.f32 %v4160, %v5241
    %v5396 = vmul.f32 %v4162, %v5245
    %v5397 = vmul.f32 %v4386, %v5249
    %v5398 = vmul.f32 %v4388, %v5253
    %v5399 = vmul.f32 %v4612, %v5257
    %v5400 = vmul.f32 %v4614, %v5261
    %v5401 = vmul.f32 %v3940, %v5233
    %v5402 = vmul.f32 %v3942, %v5237
    %v5403 = vmul.f32 %v4166, %v5241
    %v5404 = vmul.f32 %v4168, %v5245
    %v5405 = vmul.f32 %v4392, %v5249
    %v5406 = vmul.f32 %v4394, %v5253
    %v5407 = vmul.f32 %v4618, %v5257
    %v5408 = vmul.f32 %v4620, %v5261
    %v5409 = vmul.f32 %v3944, %v5233
    %v5410 = vmul.f32 %v3946, %v5237
    %v5411 = vmul.f32 %v4170, %v5241
    %v5412 = vmul.f32 %v4172, %v5245
    %v5413 = vmul.f32 %v4396, %v5249
    %v5414 = vmul.f32 %v4398, %v5253
    %v5415 = vmul.f32 %v4622, %v5257
    %v5416 = vmul.f32 %v4624, %v5261
    %v5417 = vmul.f32 %v3950, %v5233
    %v5418 = vmul.f32 %v3952, %v5237
    %v5419 = vmul.f32 %v4176, %v5241
    %v5420 = vmul.f32 %v4178, %v5245
    %v5421 = vmul.f32 %v4402, %v5249
    %v5422 = vmul.f32 %v4404, %v5253
    %v5423 = vmul.f32 %v4628, %v5257
    %v5424 = vmul.f32 %v4630, %v5261
    %v5425 = vmul.f32 %v3954, %v5233
    %v5426 = vmul.f32 %v3956, %v5237
    %v5427 = vmul.f32 %v4180, %v5241
    %v5428 = vmul.f32 %v4182, %v5245
    %v5429 = vmul.f32 %v4406, %v5249
    %v5430 = vmul.f32 %v4408, %v5253
    %v5431 = vmul.f32 %v4632, %v5257
    %v5432 = vmul.f32 %v4634, %v5261
    %v5433 = vmul.f32 %v3960, %v5233
    %v5434 = vmul.f32 %v3962, %v5237
    %v5435 = vmul.f32 %v4186, %v5241
    %v5436 = vmul.f32 %v4188, %v5245
    %v5437 = vmul.f32 %v4412, %v5249
    %v5438 = vmul.f32 %v4414, %v5253
    %v5439 = vmul.f32 %v4638, %v5257
    %v5440 = vmul.f32 %v4640, %v5261
    %v5441 = vmul.f32 %v3964, %v5233
    %v5442 = vmul.f32 %v3966, %v5237
    %v5443 = vmul.f32 %v4190, %v5241
    %v5444 = vmul.f32 %v4192, %v5245
    %v5445 = vmul.f32 %v4416, %v5249
    %v5446 = vmul.f32 %v4418, %v5253
    %v5447 = vmul.f32 %v4642, %v5257
    %v5448 = vmul.f32 %v4644, %v5261
    %v5449 = vmul.f32 %v3970, %v5233
    %v5450 = vmul.f32 %v3972, %v5237
    %v5451 = vmul.f32 %v4196, %v5241
    %v5452 = vmul.f32 %v4198, %v5245
    %v5453 = vmul.f32 %v4422, %v5249
    %v5454 = vmul.f32 %v4424, %v5253
    %v5455 = vmul.f32 %v4648, %v5257
    %v5456 = vmul.f32 %v4650, %v5261
    %v5457 = vmul.f32 %v3974, %v5233
    %v5458 = vmul.f32 %v3976, %v5237
    %v5459 = vmul.f32 %v4200, %v5241
    %v5460 = vmul.f32 %v4202, %v5245
    %v5461 = vmul.f32 %v4426, %v5249
    %v5462 = vmul.f32 %v4428, %v5253
    %v5463 = vmul.f32 %v4652, %v5257
    %v5464 = vmul.f32 %v4654, %v5261
    %v5466 = vlaneseq
    %v5467 = vshrl.u32 %v5466, 7
    %v5468 = vsub.s32 0, %v5467
    %v5469 = vrot.slane %v5336, %v5468
    %v5470 = vlaneseq
    %v5471 = vshrl.u32 %v5470, 7
    %v5472 = vsub.s32 1, %v5471
    %v5473 = vrot.slane %v5336, %v5472
    %v5474 = vlaneseq
    %v5475 = vshrl.u32 %v5474, 7
    %v5476 = vsub.s32 2, %v5475
    %v5477 = vrot.slane %v5336, %v5476
    %v5478 = vlaneseq
    %v5479 = vshrl.u32 %v5478, 7
    %v5480 = vsub.s32 3, %v5479
    %v5481 = vrot.slane %v5336, %v5480
    %v5482 = vlaneseq
    %v5483 = vshrl.u32 %v5482, 7
    %v5484 = vsub.s32 4, %v5483
    %v5485 = vrot.slane %v5336, %v5484
    %v5486 = vlaneseq
    %v5487 = vshrl.u32 %v5486, 7
    %v5488 = vsub.s32 5, %v5487
    %v5489 = vrot.slane %v5336, %v5488
    %v5490 = vlaneseq
    %v5491 = vshrl.u32 %v5490, 7
    %v5492 = vsub.s32 6, %v5491
    %v5493 = vrot.slane %v5336, %v5492
    %v5494 = vlaneseq
    %v5495 = vshrl.u32 %v5494, 7
    %v5496 = vsub.s32 7, %v5495
    %v5497 = vrot.slane %v5336, %v5496
    %v5506 = vadd.f32 %v5337, %v5469
    %v5507 = vadd.f32 %v5338, %v5473
    %v5508 = vadd.f32 %v5339, %v5477
    %v5509 = vadd.f32 %v5340, %v5481
    %v5510 = vadd.f32 %v5341, %v5485
    %v5511 = vadd.f32 %v5342, %v5489
    %v5512 = vadd.f32 %v5343, %v5493
    %v5513 = vadd.f32 %v5344, %v5497
    %v5514 = vadd.f32 %v5345, %v5469
    %v5515 = vadd.f32 %v5346, %v5473
    %v5516 = vadd.f32 %v5347, %v5477
    %v5517 = vadd.f32 %v5348, %v5481
    %v5518 = vadd.f32 %v5349, %v5485
    %v5519 = vadd.f32 %v5350, %v5489
    %v5520 = vadd.f32 %v5351, %v5493
    %v5521 = vadd.f32 %v5352, %v5497
    %v5522 = vadd.f32 %v5353, %v5469
    %v5523 = vadd.f32 %v5354, %v5473
    %v5524 = vadd.f32 %v5355, %v5477
    %v5525 = vadd.f32 %v5356, %v5481
    %v5526 = vadd.f32 %v5357, %v5485
    %v5527 = vadd.f32 %v5358, %v5489
    %v5528 = vadd.f32 %v5359, %v5493
    %v5529 = vadd.f32 %v5360, %v5497
    %v5530 = vadd.f32 %v5361, %v5469
    %v5531 = vadd.f32 %v5362, %v5473
    %v5532 = vadd.f32 %v5363, %v5477
    %v5533 = vadd.f32 %v5364, %v5481
    %v5534 = vadd.f32 %v5365, %v5485
    %v5535 = vadd.f32 %v5366, %v5489
    %v5536 = vadd.f32 %v5367, %v5493
    %v5537 = vadd.f32 %v5368, %v5497
    %v5538 = vadd.f32 %v5369, %v5469
    %v5539 = vadd.f32 %v5370, %v5473
    %v5540 = vadd.f32 %v5371, %v5477
    %v5541 = vadd.f32 %v5372, %v5481
    %v5542 = vadd.f32 %v5373, %v5485
    %v5543 = vadd.f32 %v5374, %v5489
    %v5544 = vadd.f32 %v5375, %v5493
    %v5545 = vadd.f32 %v5376, %v5497
    %v5546 = vadd.f32 %v5377, %v5469
    %v5547 = vadd.f32 %v5378, %v5473
    %v5548 = vadd.f32 %v5379, %v5477
    %v5549 = vadd.f32 %v5380, %v5481
    %v5550 = vadd.f32 %v5381, %v5485
    %v5551 = vadd.f32 %v5382, %v5489
    %v5552 = vadd.f32 %v5383, %v5493
    %v5553 = vadd.f32 %v5384, %v5497
    %v5554 = vadd.f32 %v5385, %v5469
    %v5555 = vadd.f32 %v5386, %v5473
    %v5556 = vadd.f32 %v5387, %v5477
    %v5557 = vadd.f32 %v5388, %v5481
    %v5558 = vadd.f32 %v5389, %v5485
    %v5559 = vadd.f32 %v5390, %v5489
    %v5560 = vadd.f32 %v5391, %v5493
    %v5561 = vadd.f32 %v5392, %v5497
    %v5562 = vadd.f32 %v5393, %v5469
    %v5563 = vadd.f32 %v5394, %v5473
    %v5564 = vadd.f32 %v5395, %v5477
    %v5565 = vadd.f32 %v5396, %v5481
    %v5566 = vadd.f32 %v5397, %v5485
    %v5567 = vadd.f32 %v5398, %v5489
    %v5568 = vadd.f32 %v5399, %v5493
    %v5569 = vadd.f32 %v5400, %v5497
    %v5570 = vadd.f32 %v5401, %v5469
    %v5571 = vadd.f32 %v5402, %v5473
    %v5572 = vadd.f32 %v5403, %v5477
    %v5573 = vadd.f32 %v5404, %v5481
    %v5574 = vadd.f32 %v5405, %v5485
    %v5575 = vadd.f32 %v5406, %v5489
    %v5576 = vadd.f32 %v5407, %v5493
    %v5577 = vadd.f32 %v5408, %v5497
    %v5578 = vadd.f32 %v5409, %v5469
    %v5579 = vadd.f32 %v5410, %v5473
    %v5580 = vadd.f32 %v5411, %v5477
    %v5581 = vadd.f32 %v5412, %v5481
    %v5582 = vadd.f32 %v5413, %v5485
    %v5583 = vadd.f32 %v5414, %v5489
    %v5584 = vadd.f32 %v5415, %v5493
    %v5585 = vadd.f32 %v5416, %v5497
    %v5586 = vadd.f32 %v5417, %v5469
    %v5587 = vadd.f32 %v5418, %v5473
    %v5588 = vadd.f32 %v5419, %v5477
    %v5589 = vadd.f32 %v5420, %v5481
    %v5590 = vadd.f32 %v5421, %v5485
    %v5591 = vadd.f32 %v5422, %v5489
    %v5592 = vadd.f32 %v5423, %v5493
    %v5593 = vadd.f32 %v5424, %v5497
    %v5594 = vadd.f32 %v5425, %v5469
    %v5595 = vadd.f32 %v5426, %v5473
    %v5596 = vadd.f32 %v5427, %v5477
    %v5597 = vadd.f32 %v5428, %v5481
    %v5598 = vadd.f32 %v5429, %v5485
    %v5599 = vadd.f32 %v5430, %v5489
    %v5600 = vadd.f32 %v5431, %v5493
    %v5601 = vadd.f32 %v5432, %v5497
    %v5602 = vadd.f32 %v5433, %v5469
    %v5603 = vadd.f32 %v5434, %v5473
    %v5604 = vadd.f32 %v5435, %v5477
    %v5605 = vadd.f32 %v5436, %v5481
    %v5606 = vadd.f32 %v5437, %v5485
    %v5607 = vadd.f32 %v5438, %v5489
    %v5608 = vadd.f32 %v5439, %v5493
    %v5609 = vadd.f32 %v5440, %v5497
    %v5610 = vadd.f32 %v5441, %v5469
    %v5611 = vadd.f32 %v5442, %v5473
    %v5612 = vadd.f32 %v5443, %v5477
    %v5613 = vadd.f32 %v5444, %v5481
    %v5614 = vadd.f32 %v5445, %v5485
    %v5615 = vadd.f32 %v5446, %v5489
    %v5616 = vadd.f32 %v5447, %v5493
    %v5617 = vadd.f32 %v5448, %v5497
    %v5618 = vadd.f32 %v5449, %v5469
    %v5619 = vadd.f32 %v5450, %v5473
    %v5620 = vadd.f32 %v5451, %v5477
    %v5621 = vadd.f32 %v5452, %v5481
    %v5622 = vadd.f32 %v5453, %v5485
    %v5623 = vadd.f32 %v5454, %v5489
    %v5624 = vadd.f32 %v5455, %v5493
    %v5625 = vadd.f32 %v5456, %v5497
    %v5626 = vadd.f32 %v5457, %v5469
    %v5627 = vadd.f32 %v5458, %v5473
    %v5628 = vadd.f32 %v5459, %v5477
    %v5629 = vadd.f32 %v5460, %v5481
    %v5630 = vadd.f32 %v5461, %v5485
    %v5631 = vadd.f32 %v5462, %v5489
    %v5632 = vadd.f32 %v5463, %v5493
    %v5633 = vadd.f32 %v5464, %v5497
    %vm5634 = vcmp.gt.f32.partialorder %v5506, 0.0
    %vm5635 = vcmp.gt.f32.partialorder %v5507, 0.0
    %vm5636 = vcmp.gt.f32.partialorder %v5508, 0.0
    %vm5637 = vcmp.gt.f32.partialorder %v5509, 0.0
    %vm5638 = vcmp.gt.f32.partialorder %v5510, 0.0
    %vm5639 = vcmp.gt.f32.partialorder %v5511, 0.0
    %vm5640 = vcmp.gt.f32.partialorder %v5512, 0.0
    %vm5641 = vcmp.gt.f32.partialorder %v5513, 0.0
    %vm5642 = vcmp.gt.f32.partialorder %v5514, 0.0
    %vm5643 = vcmp.gt.f32.partialorder %v5515, 0.0
    %vm5644 = vcmp.gt.f32.partialorder %v5516, 0.0
    %vm5645 = vcmp.gt.f32.partialorder %v5517, 0.0
    %vm5646 = vcmp.gt.f32.partialorder %v5518, 0.0
    %vm5647 = vcmp.gt.f32.partialorder %v5519, 0.0
    %vm5648 = vcmp.gt.f32.partialorder %v5520, 0.0
    %vm5649 = vcmp.gt.f32.partialorder %v5521, 0.0
    %vm5650 = vcmp.gt.f32.partialorder %v5522, 0.0
    %vm5651 = vcmp.gt.f32.partialorder %v5523, 0.0
    %vm5652 = vcmp.gt.f32.partialorder %v5524, 0.0
    %vm5653 = vcmp.gt.f32.partialorder %v5525, 0.0
    %vm5654 = vcmp.gt.f32.partialorder %v5526, 0.0
    %vm5655 = vcmp.gt.f32.partialorder %v5527, 0.0
    %vm5656 = vcmp.gt.f32.partialorder %v5528, 0.0
    %vm5657 = vcmp.gt.f32.partialorder %v5529, 0.0
    %vm5658 = vcmp.gt.f32.partialorder %v5530, 0.0
    %vm5659 = vcmp.gt.f32.partialorder %v5531, 0.0
    %vm5660 = vcmp.gt.f32.partialorder %v5532, 0.0
    %vm5661 = vcmp.gt.f32.partialorder %v5533, 0.0
    %vm5662 = vcmp.gt.f32.partialorder %v5534, 0.0
    %vm5663 = vcmp.gt.f32.partialorder %v5535, 0.0
    %vm5664 = vcmp.gt.f32.partialorder %v5536, 0.0
    %vm5665 = vcmp.gt.f32.partialorder %v5537, 0.0
    %vm5666 = vcmp.gt.f32.partialorder %v5538, 0.0
    %vm5667 = vcmp.gt.f32.partialorder %v5539, 0.0
    %vm5668 = vcmp.gt.f32.partialorder %v5540, 0.0
    %vm5669 = vcmp.gt.f32.partialorder %v5541, 0.0
    %vm5670 = vcmp.gt.f32.partialorder %v5542, 0.0
    %vm5671 = vcmp.gt.f32.partialorder %v5543, 0.0
    %vm5672 = vcmp.gt.f32.partialorder %v5544, 0.0
    %vm5673 = vcmp.gt.f32.partialorder %v5545, 0.0
    %vm5674 = vcmp.gt.f32.partialorder %v5546, 0.0
    %vm5675 = vcmp.gt.f32.partialorder %v5547, 0.0
    %vm5676 = vcmp.gt.f32.partialorder %v5548, 0.0
    %vm5677 = vcmp.gt.f32.partialorder %v5549, 0.0
    %vm5678 = vcmp.gt.f32.partialorder %v5550, 0.0
    %vm5679 = vcmp.gt.f32.partialorder %v5551, 0.0
    %vm5680 = vcmp.gt.f32.partialorder %v5552, 0.0
    %vm5681 = vcmp.gt.f32.partialorder %v5553, 0.0
    %vm5682 = vcmp.gt.f32.partialorder %v5554, 0.0
    %vm5683 = vcmp.gt.f32.partialorder %v5555, 0.0
    %vm5684 = vcmp.gt.f32.partialorder %v5556, 0.0
    %vm5685 = vcmp.gt.f32.partialorder %v5557, 0.0
    %vm5686 = vcmp.gt.f32.partialorder %v5558, 0.0
    %vm5687 = vcmp.gt.f32.partialorder %v5559, 0.0
    %vm5688 = vcmp.gt.f32.partialorder %v5560, 0.0
    %vm5689 = vcmp.gt.f32.partialorder %v5561, 0.0
    %vm5690 = vcmp.gt.f32.partialorder %v5562, 0.0
    %vm5691 = vcmp.gt.f32.partialorder %v5563, 0.0
    %vm5692 = vcmp.gt.f32.partialorder %v5564, 0.0
    %vm5693 = vcmp.gt.f32.partialorder %v5565, 0.0
    %vm5694 = vcmp.gt.f32.partialorder %v5566, 0.0
    %vm5695 = vcmp.gt.f32.partialorder %v5567, 0.0
    %vm5696 = vcmp.gt.f32.partialorder %v5568, 0.0
    %vm5697 = vcmp.gt.f32.partialorder %v5569, 0.0
    %vm5698 = vcmp.gt.f32.partialorder %v5570, 0.0
    %vm5699 = vcmp.gt.f32.partialorder %v5571, 0.0
    %vm5700 = vcmp.gt.f32.partialorder %v5572, 0.0
    %vm5701 = vcmp.gt.f32.partialorder %v5573, 0.0
    %vm5702 = vcmp.gt.f32.partialorder %v5574, 0.0
    %vm5703 = vcmp.gt.f32.partialorder %v5575, 0.0
    %vm5704 = vcmp.gt.f32.partialorder %v5576, 0.0
    %vm5705 = vcmp.gt.f32.partialorder %v5577, 0.0
    %vm5706 = vcmp.gt.f32.partialorder %v5578, 0.0
    %vm5707 = vcmp.gt.f32.partialorder %v5579, 0.0
    %vm5708 = vcmp.gt.f32.partialorder %v5580, 0.0
    %vm5709 = vcmp.gt.f32.partialorder %v5581, 0.0
    %vm5710 = vcmp.gt.f32.partialorder %v5582, 0.0
    %vm5711 = vcmp.gt.f32.partialorder %v5583, 0.0
    %vm5712 = vcmp.gt.f32.partialorder %v5584, 0.0
    %vm5713 = vcmp.gt.f32.partialorder %v5585, 0.0
    %vm5714 = vcmp.gt.f32.partialorder %v5586, 0.0
    %vm5715 = vcmp.gt.f32.partialorder %v5587, 0.0
    %vm5716 = vcmp.gt.f32.partialorder %v5588, 0.0
    %vm5717 = vcmp.gt.f32.partialorder %v5589, 0.0
    %vm5718 = vcmp.gt.f32.partialorder %v5590, 0.0
    %vm5719 = vcmp.gt.f32.partialorder %v5591, 0.0
    %vm5720 = vcmp.gt.f32.partialorder %v5592, 0.0
    %vm5721 = vcmp.gt.f32.partialorder %v5593, 0.0
    %vm5722 = vcmp.gt.f32.partialorder %v5594, 0.0
    %vm5723 = vcmp.gt.f32.partialorder %v5595, 0.0
    %vm5724 = vcmp.gt.f32.partialorder %v5596, 0.0
    %vm5725 = vcmp.gt.f32.partialorder %v5597, 0.0
    %vm5726 = vcmp.gt.f32.partialorder %v5598, 0.0
    %vm5727 = vcmp.gt.f32.partialorder %v5599, 0.0
    %vm5728 = vcmp.gt.f32.partialorder %v5600, 0.0
    %vm5729 = vcmp.gt.f32.partialorder %v5601, 0.0
    %vm5730 = vcmp.gt.f32.partialorder %v5602, 0.0
    %vm5731 = vcmp.gt.f32.partialorder %v5603, 0.0
    %vm5732 = vcmp.gt.f32.partialorder %v5604, 0.0
    %vm5733 = vcmp.gt.f32.partialorder %v5605, 0.0
    %vm5734 = vcmp.gt.f32.partialorder %v5606, 0.0
    %vm5735 = vcmp.gt.f32.partialorder %v5607, 0.0
    %vm5736 = vcmp.gt.f32.partialorder %v5608, 0.0
    %vm5737 = vcmp.gt.f32.partialorder %v5609, 0.0
    %vm5738 = vcmp.gt.f32.partialorder %v5610, 0.0
    %vm5739 = vcmp.gt.f32.partialorder %v5611, 0.0
    %vm5740 = vcmp.gt.f32.partialorder %v5612, 0.0
    %vm5741 = vcmp.gt.f32.partialorder %v5613, 0.0
    %vm5742 = vcmp.gt.f32.partialorder %v5614, 0.0
    %vm5743 = vcmp.gt.f32.partialorder %v5615, 0.0
    %vm5744 = vcmp.gt.f32.partialorder %v5616, 0.0
    %vm5745 = vcmp.gt.f32.partialorder %v5617, 0.0
    %vm5746 = vcmp.gt.f32.partialorder %v5618, 0.0
    %vm5747 = vcmp.gt.f32.partialorder %v5619, 0.0
    %vm5748 = vcmp.gt.f32.partialorder %v5620, 0.0
    %vm5749 = vcmp.gt.f32.partialorder %v5621, 0.0
    %vm5750 = vcmp.gt.f32.partialorder %v5622, 0.0
    %vm5751 = vcmp.gt.f32.partialorder %v5623, 0.0
    %vm5752 = vcmp.gt.f32.partialorder %v5624, 0.0
    %vm5753 = vcmp.gt.f32.partialorder %v5625, 0.0
    %vm5754 = vcmp.gt.f32.partialorder %v5626, 0.0
    %vm5755 = vcmp.gt.f32.partialorder %v5627, 0.0
    %vm5756 = vcmp.gt.f32.partialorder %v5628, 0.0
    %vm5757 = vcmp.gt.f32.partialorder %v5629, 0.0
    %vm5758 = vcmp.gt.f32.partialorder %v5630, 0.0
    %vm5759 = vcmp.gt.f32.partialorder %v5631, 0.0
    %vm5760 = vcmp.gt.f32.partialorder %v5632, 0.0
    %vm5761 = vcmp.gt.f32.partialorder %v5633, 0.0
    %v5762 = vmul.f32 %v5506, 0.2
    %v5763 = vmul.f32 %v5507, 0.2
    %v5764 = vmul.f32 %v5508, 0.2
    %v5765 = vmul.f32 %v5509, 0.2
    %v5766 = vmul.f32 %v5510, 0.2
    %v5767 = vmul.f32 %v5511, 0.2
    %v5768 = vmul.f32 %v5512, 0.2
    %v5769 = vmul.f32 %v5513, 0.2
    %v5770 = vmul.f32 %v5514, 0.2
    %v5771 = vmul.f32 %v5515, 0.2
    %v5772 = vmul.f32 %v5516, 0.2
    %v5773 = vmul.f32 %v5517, 0.2
    %v5774 = vmul.f32 %v5518, 0.2
    %v5775 = vmul.f32 %v5519, 0.2
    %v5776 = vmul.f32 %v5520, 0.2
    %v5777 = vmul.f32 %v5521, 0.2
    %v5778 = vmul.f32 %v5522, 0.2
    %v5779 = vmul.f32 %v5523, 0.2
    %v5780 = vmul.f32 %v5524, 0.2
    %v5781 = vmul.f32 %v5525, 0.2
    %v5782 = vmul.f32 %v5526, 0.2
    %v5783 = vmul.f32 %v5527, 0.2
    %v5784 = vmul.f32 %v5528, 0.2
    %v5785 = vmul.f32 %v5529, 0.2
    %v5786 = vmul.f32 %v5530, 0.2
    %v5787 = vmul.f32 %v5531, 0.2
    %v5788 = vmul.f32 %v5532, 0.2
    %v5789 = vmul.f32 %v5533, 0.2
    %v5790 = vmul.f32 %v5534, 0.2
    %v5791 = vmul.f32 %v5535, 0.2
    %v5792 = vmul.f32 %v5536, 0.2
    %v5793 = vmul.f32 %v5537, 0.2
    %v5794 = vmul.f32 %v5538, 0.2
    %v5795 = vmul.f32 %v5539, 0.2
    %v5796 = vmul.f32 %v5540, 0.2
    %v5797 = vmul.f32 %v5541, 0.2
    %v5798 = vmul.f32 %v5542, 0.2
    %v5799 = vmul.f32 %v5543, 0.2
    %v5800 = vmul.f32 %v5544, 0.2
    %v5801 = vmul.f32 %v5545, 0.2
    %v5802 = vmul.f32 %v5546, 0.2
    %v5803 = vmul.f32 %v5547, 0.2
    %v5804 = vmul.f32 %v5548, 0.2
    %v5805 = vmul.f32 %v5549, 0.2
    %v5806 = vmul.f32 %v5550, 0.2
    %v5807 = vmul.f32 %v5551, 0.2
    %v5808 = vmul.f32 %v5552, 0.2
    %v5809 = vmul.f32 %v5553, 0.2
    %v5810 = vmul.f32 %v5554, 0.2
    %v5811 = vmul.f32 %v5555, 0.2
    %v5812 = vmul.f32 %v5556, 0.2
    %v5813 = vmul.f32 %v5557, 0.2
    %v5814 = vmul.f32 %v5558, 0.2
    %v5815 = vmul.f32 %v5559, 0.2
    %v5816 = vmul.f32 %v5560, 0.2
    %v5817 = vmul.f32 %v5561, 0.2
    %v5818 = vmul.f32 %v5562, 0.2
    %v5819 = vmul.f32 %v5563, 0.2
    %v5820 = vmul.f32 %v5564, 0.2
    %v5821 = vmul.f32 %v5565, 0.2
    %v5822 = vmul.f32 %v5566, 0.2
    %v5823 = vmul.f32 %v5567, 0.2
    %v5824 = vmul.f32 %v5568, 0.2
    %v5825 = vmul.f32 %v5569, 0.2
    %v5826 = vmul.f32 %v5570, 0.2
    %v5827 = vmul.f32 %v5571, 0.2
    %v5828 = vmul.f32 %v5572, 0.2
    %v5829 = vmul.f32 %v5573, 0.2
    %v5830 = vmul.f32 %v5574, 0.2
    %v5831 = vmul.f32 %v5575, 0.2
    %v5832 = vmul.f32 %v5576, 0.2
    %v5833 = vmul.f32 %v5577, 0.2
    %v5834 = vmul.f32 %v5578, 0.2
    %v5835 = vmul.f32 %v5579, 0.2
    %v5836 = vmul.f32 %v5580, 0.2
    %v5837 = vmul.f32 %v5581, 0.2
    %v5838 = vmul.f32 %v5582, 0.2
    %v5839 = vmul.f32 %v5583, 0.2
    %v5840 = vmul.f32 %v5584, 0.2
    %v5841 = vmul.f32 %v5585, 0.2
    %v5842 = vmul.f32 %v5586, 0.2
    %v5843 = vmul.f32 %v5587, 0.2
    %v5844 = vmul.f32 %v5588, 0.2
    %v5845 = vmul.f32 %v5589, 0.2
    %v5846 = vmul.f32 %v5590, 0.2
    %v5847 = vmul.f32 %v5591, 0.2
    %v5848 = vmul.f32 %v5592, 0.2
    %v5849 = vmul.f32 %v5593, 0.2
    %v5850 = vmul.f32 %v5594, 0.2
    %v5851 = vmul.f32 %v5595, 0.2
    %v5852 = vmul.f32 %v5596, 0.2
    %v5853 = vmul.f32 %v5597, 0.2
    %v5854 = vmul.f32 %v5598, 0.2
    %v5855 = vmul.f32 %v5599, 0.2
    %v5856 = vmul.f32 %v5600, 0.2
    %v5857 = vmul.f32 %v5601, 0.2
    %v5858 = vmul.f32 %v5602, 0.2
    %v5859 = vmul.f32 %v5603, 0.2
    %v5860 = vmul.f32 %v5604, 0.2
    %v5861 = vmul.f32 %v5605, 0.2
    %v5862 = vmul.f32 %v5606, 0.2
    %v5863 = vmul.f32 %v5607, 0.2
    %v5864 = vmul.f32 %v5608, 0.2
    %v5865 = vmul.f32 %v5609, 0.2
    %v5866 = vmul.f32 %v5610, 0.2
    %v5867 = vmul.f32 %v5611, 0.2
    %v5868 = vmul.f32 %v5612, 0.2
    %v5869 = vmul.f32 %v5613, 0.2
    %v5870 = vmul.f32 %v5614, 0.2
    %v5871 = vmul.f32 %v5615, 0.2
    %v5872 = vmul.f32 %v5616, 0.2
    %v5873 = vmul.f32 %v5617, 0.2
    %v5874 = vmul.f32 %v5618, 0.2
    %v5875 = vmul.f32 %v5619, 0.2
    %v5876 = vmul.f32 %v5620, 0.2
    %v5877 = vmul.f32 %v5621, 0.2
    %v5878 = vmul.f32 %v5622, 0.2
    %v5879 = vmul.f32 %v5623, 0.2
    %v5880 = vmul.f32 %v5624, 0.2
    %v5881 = vmul.f32 %v5625, 0.2
    %v5882 = vmul.f32 %v5626, 0.2
    %v5883 = vmul.f32 %v5627, 0.2
    %v5884 = vmul.f32 %v5628, 0.2
    %v5885 = vmul.f32 %v5629, 0.2
    %v5886 = vmul.f32 %v5630, 0.2
    %v5887 = vmul.f32 %v5631, 0.2
    %v5888 = vmul.f32 %v5632, 0.2
    %v5889 = vmul.f32 %v5633, 0.2
    %v5890 = vsel %vm5634, %v5506, %v5762
    %v5891 = vsel %vm5635, %v5507, %v5763
    %v5892 = vsel %vm5636, %v5508, %v5764
    %v5893 = vsel %vm5637, %v5509, %v5765
    %v5894 = vsel %vm5638, %v5510, %v5766
    %v5895 = vsel %vm5639, %v5511, %v5767
    %v5896 = vsel %vm5640, %v5512, %v5768
    %v5897 = vsel %vm5641, %v5513, %v5769
    %v5898 = vsel %vm5642, %v5514, %v5770
    %v5899 = vsel %vm5643, %v5515, %v5771
    %v5900 = vsel %vm5644, %v5516, %v5772
    %v5901 = vsel %vm5645, %v5517, %v5773
    %v5902 = vsel %vm5646, %v5518, %v5774
    %v5903 = vsel %vm5647, %v5519, %v5775
    %v5904 = vsel %vm5648, %v5520, %v5776
    %v5905 = vsel %vm5649, %v5521, %v5777
    %v5906 = vsel %vm5650, %v5522, %v5778
    %v5907 = vsel %vm5651, %v5523, %v5779
    %v5908 = vsel %vm5652, %v5524, %v5780
    %v5909 = vsel %vm5653, %v5525, %v5781
    %v5910 = vsel %vm5654, %v5526, %v5782
    %v5911 = vsel %vm5655, %v5527, %v5783
    %v5912 = vsel %vm5656, %v5528, %v5784
    %v5913 = vsel %vm5657, %v5529, %v5785
    %v5914 = vsel %vm5658, %v5530, %v5786
    %v5915 = vsel %vm5659, %v5531, %v5787
    %v5916 = vsel %vm5660, %v5532, %v5788
    %v5917 = vsel %vm5661, %v5533, %v5789
    %v5918 = vsel %vm5662, %v5534, %v5790
    %v5919 = vsel %vm5663, %v5535, %v5791
    %v5920 = vsel %vm5664, %v5536, %v5792
    %v5921 = vsel %vm5665, %v5537, %v5793
    %v5922 = vsel %vm5666, %v5538, %v5794
    %v5923 = vsel %vm5667, %v5539, %v5795
    %v5924 = vsel %vm5668, %v5540, %v5796
    %v5925 = vsel %vm5669, %v5541, %v5797
    %v5926 = vsel %vm5670, %v5542, %v5798
    %v5927 = vsel %vm5671, %v5543, %v5799
    %v5928 = vsel %vm5672, %v5544, %v5800
    %v5929 = vsel %vm5673, %v5545, %v5801
    %v5930 = vsel %vm5674, %v5546, %v5802
    %v5931 = vsel %vm5675, %v5547, %v5803
    %v5932 = vsel %vm5676, %v5548, %v5804
    %v5933 = vsel %vm5677, %v5549, %v5805
    %v5934 = vsel %vm5678, %v5550, %v5806
    %v5935 = vsel %vm5679, %v5551, %v5807
    %v5936 = vsel %vm5680, %v5552, %v5808
    %v5937 = vsel %vm5681, %v5553, %v5809
    %v5938 = vsel %vm5682, %v5554, %v5810
    %v5939 = vsel %vm5683, %v5555, %v5811
    %v5940 = vsel %vm5684, %v5556, %v5812
    %v5941 = vsel %vm5685, %v5557, %v5813
    %v5942 = vsel %vm5686, %v5558, %v5814
    %v5943 = vsel %vm5687, %v5559, %v5815
    %v5944 = vsel %vm5688, %v5560, %v5816
    %v5945 = vsel %vm5689, %v5561, %v5817
    %v5946 = vsel %vm5690, %v5562, %v5818
    %v5947 = vsel %vm5691, %v5563, %v5819
    %v5948 = vsel %vm5692, %v5564, %v5820
    %v5949 = vsel %vm5693, %v5565, %v5821
    %v5950 = vsel %vm5694, %v5566, %v5822
    %v5951 = vsel %vm5695, %v5567, %v5823
    %v5952 = vsel %vm5696, %v5568, %v5824
    %v5953 = vsel %vm5697, %v5569, %v5825
    %v5954 = vsel %vm5698, %v5570, %v5826
    %v5955 = vsel %vm5699, %v5571, %v5827
    %v5956 = vsel %vm5700, %v5572, %v5828
    %v5957 = vsel %vm5701, %v5573, %v5829
    %v5958 = vsel %vm5702, %v5574, %v5830
    %v5959 = vsel %vm5703, %v5575, %v5831
    %v5960 = vsel %vm5704, %v5576, %v5832
    %v5961 = vsel %vm5705, %v5577, %v5833
    %v5962 = vsel %vm5706, %v5578, %v5834
    %v5963 = vsel %vm5707, %v5579, %v5835
    %v5964 = vsel %vm5708, %v5580, %v5836
    %v5965 = vsel %vm5709, %v5581, %v5837
    %v5966 = vsel %vm5710, %v5582, %v5838
    %v5967 = vsel %vm5711, %v5583, %v5839
    %v5968 = vsel %vm5712, %v5584, %v5840
    %v5969 = vsel %vm5713, %v5585, %v5841
    %v5970 = vsel %vm5714, %v5586, %v5842
    %v5971 = vsel %vm5715, %v5587, %v5843
    %v5972 = vsel %vm5716, %v5588, %v5844
    %v5973 = vsel %vm5717, %v5589, %v5845
    %v5974 = vsel %vm5718, %v5590, %v5846
    %v5975 = vsel %vm5719, %v5591, %v5847
    %v5976 = vsel %vm5720, %v5592, %v5848
    %v5977 = vsel %vm5721, %v5593, %v5849
    %v5978 = vsel %vm5722, %v5594, %v5850
    %v5979 = vsel %vm5723, %v5595, %v5851
    %v5980 = vsel %vm5724, %v5596, %v5852
    %v5981 = vsel %vm5725, %v5597, %v5853
    %v5982 = vsel %vm5726, %v5598, %v5854
    %v5983 = vsel %vm5727, %v5599, %v5855
    %v5984 = vsel %vm5728, %v5600, %v5856
    %v5985 = vsel %vm5729, %v5601, %v5857
    %v5986 = vsel %vm5730, %v5602, %v5858
    %v5987 = vsel %vm5731, %v5603, %v5859
    %v5988 = vsel %vm5732, %v5604, %v5860
    %v5989 = vsel %vm5733, %v5605, %v5861
    %v5990 = vsel %vm5734, %v5606, %v5862
    %v5991 = vsel %vm5735, %v5607, %v5863
    %v5992 = vsel %vm5736, %v5608, %v5864
    %v5993 = vsel %vm5737, %v5609, %v5865
    %v5994 = vsel %vm5738, %v5610, %v5866
    %v5995 = vsel %vm5739, %v5611, %v5867
    %v5996 = vsel %vm5740, %v5612, %v5868
    %v5997 = vsel %vm5741, %v5613, %v5869
    %v5998 = vsel %vm5742, %v5614, %v5870
    %v5999 = vsel %vm5743, %v5615, %v5871
    %v6000 = vsel %vm5744, %v5616, %v5872
    %v6001 = vsel %vm5745, %v5617, %v5873
    %v6002 = vsel %vm5746, %v5618, %v5874
    %v6003 = vsel %vm5747, %v5619, %v5875
    %v6004 = vsel %vm5748, %v5620, %v5876
    %v6005 = vsel %vm5749, %v5621, %v5877
    %v6006 = vsel %vm5750, %v5622, %v5878
    %v6007 = vsel %vm5751, %v5623, %v5879
    %v6008 = vsel %vm5752, %v5624, %v5880
    %v6009 = vsel %vm5753, %v5625, %v5881
    %v6010 = vsel %vm5754, %v5626, %v5882
    %v6011 = vsel %vm5755, %v5627, %v5883
    %v6012 = vsel %vm5756, %v5628, %v5884
    %v6013 = vsel %vm5757, %v5629, %v5885
    %v6014 = vsel %vm5758, %v5630, %v5886
    %v6015 = vsel %vm5759, %v5631, %v5887
    %v6016 = vsel %vm5760, %v5632, %v5888
    %v6017 = vsel %vm5761, %v5633, %v5889
    %v6018 = vpack.c.bf16 %v5898, %v5890
    %v6019 = vpack.c.bf16 %v5899, %v5891
    %v6020 = vpack.c.bf16 %v5900, %v5892
    %v6021 = vpack.c.bf16 %v5901, %v5893
    %v6022 = vpack.c.bf16 %v5902, %v5894
    %v6023 = vpack.c.bf16 %v5903, %v5895
    %v6024 = vpack.c.bf16 %v5904, %v5896
    %v6025 = vpack.c.bf16 %v5905, %v5897
    %v6026 = vpack.c.bf16 %v5914, %v5906
    %v6027 = vpack.c.bf16 %v5915, %v5907
    %v6028 = vpack.c.bf16 %v5916, %v5908
    %v6029 = vpack.c.bf16 %v5917, %v5909
    %v6030 = vpack.c.bf16 %v5918, %v5910
    %v6031 = vpack.c.bf16 %v5919, %v5911
    %v6032 = vpack.c.bf16 %v5920, %v5912
    %v6033 = vpack.c.bf16 %v5921, %v5913
    %v6034 = vpack.c.bf16 %v5930, %v5922
    %v6035 = vpack.c.bf16 %v5931, %v5923
    %v6036 = vpack.c.bf16 %v5932, %v5924
    %v6037 = vpack.c.bf16 %v5933, %v5925
    %v6038 = vpack.c.bf16 %v5934, %v5926
    %v6039 = vpack.c.bf16 %v5935, %v5927
    %v6040 = vpack.c.bf16 %v5936, %v5928
    %v6041 = vpack.c.bf16 %v5937, %v5929
    %v6042 = vpack.c.bf16 %v5946, %v5938
    %v6043 = vpack.c.bf16 %v5947, %v5939
    %v6044 = vpack.c.bf16 %v5948, %v5940
    %v6045 = vpack.c.bf16 %v5949, %v5941
    %v6046 = vpack.c.bf16 %v5950, %v5942
    %v6047 = vpack.c.bf16 %v5951, %v5943
    %v6048 = vpack.c.bf16 %v5952, %v5944
    %v6049 = vpack.c.bf16 %v5953, %v5945
    %v6050 = vpack.c.bf16 %v5962, %v5954
    %v6051 = vpack.c.bf16 %v5963, %v5955
    %v6052 = vpack.c.bf16 %v5964, %v5956
    %v6053 = vpack.c.bf16 %v5965, %v5957
    %v6054 = vpack.c.bf16 %v5966, %v5958
    %v6055 = vpack.c.bf16 %v5967, %v5959
    %v6056 = vpack.c.bf16 %v5968, %v5960
    %v6057 = vpack.c.bf16 %v5969, %v5961
    %v6058 = vpack.c.bf16 %v5978, %v5970
    %v6059 = vpack.c.bf16 %v5979, %v5971
    %v6060 = vpack.c.bf16 %v5980, %v5972
    %v6061 = vpack.c.bf16 %v5981, %v5973
    %v6062 = vpack.c.bf16 %v5982, %v5974
    %v6063 = vpack.c.bf16 %v5983, %v5975
    %v6064 = vpack.c.bf16 %v5984, %v5976
    %v6065 = vpack.c.bf16 %v5985, %v5977
    %v6066 = vpack.c.bf16 %v5994, %v5986
    %v6067 = vpack.c.bf16 %v5995, %v5987
    %v6068 = vpack.c.bf16 %v5996, %v5988
    %v6069 = vpack.c.bf16 %v5997, %v5989
    %v6070 = vpack.c.bf16 %v5998, %v5990
    %v6071 = vpack.c.bf16 %v5999, %v5991
    %v6072 = vpack.c.bf16 %v6000, %v5992
    %v6073 = vpack.c.bf16 %v6001, %v5993
    %v6074 = vpack.c.bf16 %v6010, %v6002
    %v6075 = vpack.c.bf16 %v6011, %v6003
    %v6076 = vpack.c.bf16 %v6012, %v6004
    %v6077 = vpack.c.bf16 %v6013, %v6005
    %v6078 = vpack.c.bf16 %v6014, %v6006
    %v6079 = vpack.c.bf16 %v6015, %v6007
    %v6080 = vpack.c.bf16 %v6016, %v6008
    %v6081 = vpack.c.bf16 %v6017, %v6009
    %s6082 = smul.u32 4, 128
    %s6083 = smul.u32 %s6082, 2
    %s6084 = sshll.u32 %s6083, 4
    %6085 = dma.done %s870, %s6084
    %v6086 = vld [vmem:[#allocation4] sm:$0xff]
    %v6087 = vld [vmem:[#allocation4 + $0x8] sm:$0xff]
    %v6088 = vld [vmem:[#allocation4 + $0x10] sm:$0xff]
    %v6089 = vld [vmem:[#allocation4 + $0x18] sm:$0xff]
    %v6090 = vld [vmem:[#allocation4 + $0x20] sm:$0xff]
    %v6091 = vld [vmem:[#allocation4 + $0x28] sm:$0xff]
    %v6092 = vld [vmem:[#allocation4 + $0x30] sm:$0xff]
    %v6093 = vld [vmem:[#allocation4 + $0x38] sm:$0xff]
    %v6094 = vld [vmem:[#allocation4 + $0x40] sm:$0xff]
    %v6095 = vld [vmem:[#allocation4 + $0x48] sm:$0xff]
    %v6096 = vld [vmem:[#allocation4 + $0x50] sm:$0xff]
    %v6097 = vld [vmem:[#allocation4 + $0x58] sm:$0xff]
    %v6098 = vld [vmem:[#allocation4 + $0x60] sm:$0xff]
    %v6099 = vld [vmem:[#allocation4 + $0x68] sm:$0xff]
    %v6100 = vld [vmem:[#allocation4 + $0x70] sm:$0xff]
    %v6101 = vld [vmem:[#allocation4 + $0x78] sm:$0xff]
    %v6102 = vld [vmem:[#allocation4 + $0x80] sm:$0xff]
    %v6103 = vld [vmem:[#allocation4 + $0x88] sm:$0xff]
    %v6104 = vld [vmem:[#allocation4 + $0x90] sm:$0xff]
    %v6105 = vld [vmem:[#allocation4 + $0x98] sm:$0xff]
    %v6106 = vld [vmem:[#allocation4 + $0xa0] sm:$0xff]
    %v6107 = vld [vmem:[#allocation4 + $0xa8] sm:$0xff]
    %v6108 = vld [vmem:[#allocation4 + $0xb0] sm:$0xff]
    %v6109 = vld [vmem:[#allocation4 + $0xb8] sm:$0xff]
    %v6110 = vld [vmem:[#allocation4 + $0xc0] sm:$0xff]
    %v6111 = vld [vmem:[#allocation4 + $0xc8] sm:$0xff]
    %v6112 = vld [vmem:[#allocation4 + $0xd0] sm:$0xff]
    %v6113 = vld [vmem:[#allocation4 + $0xd8] sm:$0xff]
    %v6114 = vld [vmem:[#allocation4 + $0xe0] sm:$0xff]
    %v6115 = vld [vmem:[#allocation4 + $0xe8] sm:$0xff]
    %v6116 = vld [vmem:[#allocation4 + $0xf0] sm:$0xff]
    %v6117 = vld [vmem:[#allocation4 + $0xf8] sm:$0xff]
    %v6118 = vld [vmem:[#allocation4 + $0x100] sm:$0xff]
    %v6119 = vld [vmem:[#allocation4 + $0x108] sm:$0xff]
    %v6120 = vld [vmem:[#allocation4 + $0x110] sm:$0xff]
    %v6121 = vld [vmem:[#allocation4 + $0x118] sm:$0xff]
    %v6122 = vld [vmem:[#allocation4 + $0x120] sm:$0xff]
    %v6123 = vld [vmem:[#allocation4 + $0x128] sm:$0xff]
    %v6124 = vld [vmem:[#allocation4 + $0x130] sm:$0xff]
    %v6125 = vld [vmem:[#allocation4 + $0x138] sm:$0xff]
    %v6126 = vld [vmem:[#allocation4 + $0x140] sm:$0xff]
    %v6127 = vld [vmem:[#allocation4 + $0x148] sm:$0xff]
    %v6128 = vld [vmem:[#allocation4 + $0x150] sm:$0xff]
    %v6129 = vld [vmem:[#allocation4 + $0x158] sm:$0xff]
    %v6130 = vld [vmem:[#allocation4 + $0x160] sm:$0xff]
    %v6131 = vld [vmem:[#allocation4 + $0x168] sm:$0xff]
    %v6132 = vld [vmem:[#allocation4 + $0x170] sm:$0xff]
    %v6133 = vld [vmem:[#allocation4 + $0x178] sm:$0xff]
    %v6134 = vld [vmem:[#allocation4 + $0x180] sm:$0xff]
    %v6135 = vld [vmem:[#allocation4 + $0x188] sm:$0xff]
    %v6136 = vld [vmem:[#allocation4 + $0x190] sm:$0xff]
    %v6137 = vld [vmem:[#allocation4 + $0x198] sm:$0xff]
    %v6138 = vld [vmem:[#allocation4 + $0x1a0] sm:$0xff]
    %v6139 = vld [vmem:[#allocation4 + $0x1a8] sm:$0xff]
    %v6140 = vld [vmem:[#allocation4 + $0x1b0] sm:$0xff]
    %v6141 = vld [vmem:[#allocation4 + $0x1b8] sm:$0xff]
    %v6142 = vld [vmem:[#allocation4 + $0x1c0] sm:$0xff]
    %v6143 = vld [vmem:[#allocation4 + $0x1c8] sm:$0xff]
    %v6144 = vld [vmem:[#allocation4 + $0x1d0] sm:$0xff]
    %v6145 = vld [vmem:[#allocation4 + $0x1d8] sm:$0xff]
    %v6146 = vld [vmem:[#allocation4 + $0x1e0] sm:$0xff]
    %v6147 = vld [vmem:[#allocation4 + $0x1e8] sm:$0xff]
    %v6148 = vld [vmem:[#allocation4 + $0x1f0] sm:$0xff]
    %v6149 = vld [vmem:[#allocation4 + $0x1f8] sm:$0xff]
    %v6150 = vld [vmem:[#allocation4 + $0x200] sm:$0xff]
    %v6151 = vld [vmem:[#allocation4 + $0x208] sm:$0xff]
    %v6152 = vld [vmem:[#allocation4 + $0x210] sm:$0xff]
    %v6153 = vld [vmem:[#allocation4 + $0x218] sm:$0xff]
    %v6154 = vld [vmem:[#allocation4 + $0x220] sm:$0xff]
    %v6155 = vld [vmem:[#allocation4 + $0x228] sm:$0xff]
    %v6156 = vld [vmem:[#allocation4 + $0x230] sm:$0xff]
    %v6157 = vld [vmem:[#allocation4 + $0x238] sm:$0xff]
    %v6158 = vld [vmem:[#allocation4 + $0x240] sm:$0xff]
    %v6159 = vld [vmem:[#allocation4 + $0x248] sm:$0xff]
    %v6160 = vld [vmem:[#allocation4 + $0x250] sm:$0xff]
    %v6161 = vld [vmem:[#allocation4 + $0x258] sm:$0xff]
    %v6162 = vld [vmem:[#allocation4 + $0x260] sm:$0xff]
    %v6163 = vld [vmem:[#allocation4 + $0x268] sm:$0xff]
    %v6164 = vld [vmem:[#allocation4 + $0x270] sm:$0xff]
    %v6165 = vld [vmem:[#allocation4 + $0x278] sm:$0xff]
    %v6166 = vld [vmem:[#allocation4 + $0x280] sm:$0xff]
    %v6167 = vld [vmem:[#allocation4 + $0x288] sm:$0xff]
    %v6168 = vld [vmem:[#allocation4 + $0x290] sm:$0xff]
    %v6169 = vld [vmem:[#allocation4 + $0x298] sm:$0xff]
    %v6170 = vld [vmem:[#allocation4 + $0x2a0] sm:$0xff]
    %v6171 = vld [vmem:[#allocation4 + $0x2a8] sm:$0xff]
    %v6172 = vld [vmem:[#allocation4 + $0x2b0] sm:$0xff]
    %v6173 = vld [vmem:[#allocation4 + $0x2b8] sm:$0xff]
    %v6174 = vld [vmem:[#allocation4 + $0x2c0] sm:$0xff]
    %v6175 = vld [vmem:[#allocation4 + $0x2c8] sm:$0xff]
    %v6176 = vld [vmem:[#allocation4 + $0x2d0] sm:$0xff]
    %v6177 = vld [vmem:[#allocation4 + $0x2d8] sm:$0xff]
    %v6178 = vld [vmem:[#allocation4 + $0x2e0] sm:$0xff]
    %v6179 = vld [vmem:[#allocation4 + $0x2e8] sm:$0xff]
    %v6180 = vld [vmem:[#allocation4 + $0x2f0] sm:$0xff]
    %v6181 = vld [vmem:[#allocation4 + $0x2f8] sm:$0xff]
    %v6182 = vld [vmem:[#allocation4 + $0x300] sm:$0xff]
    %v6183 = vld [vmem:[#allocation4 + $0x308] sm:$0xff]
    %v6184 = vld [vmem:[#allocation4 + $0x310] sm:$0xff]
    %v6185 = vld [vmem:[#allocation4 + $0x318] sm:$0xff]
    %v6186 = vld [vmem:[#allocation4 + $0x320] sm:$0xff]
    %v6187 = vld [vmem:[#allocation4 + $0x328] sm:$0xff]
    %v6188 = vld [vmem:[#allocation4 + $0x330] sm:$0xff]
    %v6189 = vld [vmem:[#allocation4 + $0x338] sm:$0xff]
    %v6190 = vld [vmem:[#allocation4 + $0x340] sm:$0xff]
    %v6191 = vld [vmem:[#allocation4 + $0x348] sm:$0xff]
    %v6192 = vld [vmem:[#allocation4 + $0x350] sm:$0xff]
    %v6193 = vld [vmem:[#allocation4 + $0x358] sm:$0xff]
    %v6194 = vld [vmem:[#allocation4 + $0x360] sm:$0xff]
    %v6195 = vld [vmem:[#allocation4 + $0x368] sm:$0xff]
    %v6196 = vld [vmem:[#allocation4 + $0x370] sm:$0xff]
    %v6197 = vld [vmem:[#allocation4 + $0x378] sm:$0xff]
    %v6198 = vld [vmem:[#allocation4 + $0x380] sm:$0xff]
    %v6199 = vld [vmem:[#allocation4 + $0x388] sm:$0xff]
    %v6200 = vld [vmem:[#allocation4 + $0x390] sm:$0xff]
    %v6201 = vld [vmem:[#allocation4 + $0x398] sm:$0xff]
    %v6202 = vld [vmem:[#allocation4 + $0x3a0] sm:$0xff]
    %v6203 = vld [vmem:[#allocation4 + $0x3a8] sm:$0xff]
    %v6204 = vld [vmem:[#allocation4 + $0x3b0] sm:$0xff]
    %v6205 = vld [vmem:[#allocation4 + $0x3b8] sm:$0xff]
    %v6206 = vld [vmem:[#allocation4 + $0x3c0] sm:$0xff]
    %v6207 = vld [vmem:[#allocation4 + $0x3c8] sm:$0xff]
    %v6208 = vld [vmem:[#allocation4 + $0x3d0] sm:$0xff]
    %v6209 = vld [vmem:[#allocation4 + $0x3d8] sm:$0xff]
    %v6210 = vld [vmem:[#allocation4 + $0x3e0] sm:$0xff]
    %v6211 = vld [vmem:[#allocation4 + $0x3e8] sm:$0xff]
    %v6212 = vld [vmem:[#allocation4 + $0x3f0] sm:$0xff]
    %v6213 = vld [vmem:[#allocation4 + $0x3f8] sm:$0xff]
    %v6214 = vld [vmem:[%s3 + $0x1d] sm:$0x3]
    %v6216 = vlaneseq
    %v6217 = vshrl.u32 %v6216, 7
    %v6218 = vsub.s32 0, %v6217
    %v6219 = vrot.slane %v6214, %v6218
    %v6220 = vlaneseq
    %v6221 = vshrl.u32 %v6220, 7
    %v6222 = vsub.s32 1, %v6221
    %v6223 = vrot.slane %v6214, %v6222
    %v6354 = vunpack.c.l.b16 %v6086
    %v6355 = vunpack.c.h.b16 %v6086
    %v6356 = vunpack.c.l.b16 %v6087
    %v6357 = vunpack.c.h.b16 %v6087
    %v6358 = vunpack.c.l.b16 %v6088
    %v6359 = vunpack.c.h.b16 %v6088
    %v6360 = vunpack.c.l.b16 %v6089
    %v6361 = vunpack.c.h.b16 %v6089
    %v6362 = vunpack.c.l.b16 %v6090
    %v6363 = vunpack.c.h.b16 %v6090
    %v6364 = vunpack.c.l.b16 %v6091
    %v6365 = vunpack.c.h.b16 %v6091
    %v6366 = vunpack.c.l.b16 %v6092
    %v6367 = vunpack.c.h.b16 %v6092
    %v6368 = vunpack.c.l.b16 %v6093
    %v6369 = vunpack.c.h.b16 %v6093
    %v6370 = vunpack.c.l.b16 %v6094
    %v6371 = vunpack.c.h.b16 %v6094
    %v6372 = vunpack.c.l.b16 %v6095
    %v6373 = vunpack.c.h.b16 %v6095
    %v6374 = vunpack.c.l.b16 %v6096
    %v6375 = vunpack.c.h.b16 %v6096
    %v6376 = vunpack.c.l.b16 %v6097
    %v6377 = vunpack.c.h.b16 %v6097
    %v6378 = vunpack.c.l.b16 %v6098
    %v6379 = vunpack.c.h.b16 %v6098
    %v6380 = vunpack.c.l.b16 %v6099
    %v6381 = vunpack.c.h.b16 %v6099
    %v6382 = vunpack.c.l.b16 %v6100
    %v6383 = vunpack.c.h.b16 %v6100
    %v6384 = vunpack.c.l.b16 %v6101
    %v6385 = vunpack.c.h.b16 %v6101
    %v6386 = vunpack.c.l.b16 %v6102
    %v6387 = vunpack.c.h.b16 %v6102
    %v6388 = vunpack.c.l.b16 %v6103
    %v6389 = vunpack.c.h.b16 %v6103
    %v6390 = vunpack.c.l.b16 %v6104
    %v6391 = vunpack.c.h.b16 %v6104
    %v6392 = vunpack.c.l.b16 %v6105
    %v6393 = vunpack.c.h.b16 %v6105
    %v6394 = vunpack.c.l.b16 %v6106
    %v6395 = vunpack.c.h.b16 %v6106
    %v6396 = vunpack.c.l.b16 %v6107
    %v6397 = vunpack.c.h.b16 %v6107
    %v6398 = vunpack.c.l.b16 %v6108
    %v6399 = vunpack.c.h.b16 %v6108
    %v6400 = vunpack.c.l.b16 %v6109
    %v6401 = vunpack.c.h.b16 %v6109
    %v6402 = vunpack.c.l.b16 %v6110
    %v6403 = vunpack.c.h.b16 %v6110
    %v6404 = vunpack.c.l.b16 %v6111
    %v6405 = vunpack.c.h.b16 %v6111
    %v6406 = vunpack.c.l.b16 %v6112
    %v6407 = vunpack.c.h.b16 %v6112
    %v6408 = vunpack.c.l.b16 %v6113
    %v6409 = vunpack.c.h.b16 %v6113
    %v6410 = vunpack.c.l.b16 %v6114
    %v6411 = vunpack.c.h.b16 %v6114
    %v6412 = vunpack.c.l.b16 %v6115
    %v6413 = vunpack.c.h.b16 %v6115
    %v6414 = vunpack.c.l.b16 %v6116
    %v6415 = vunpack.c.h.b16 %v6116
    %v6416 = vunpack.c.l.b16 %v6117
    %v6417 = vunpack.c.h.b16 %v6117
    %v6418 = vunpack.c.l.b16 %v6118
    %v6419 = vunpack.c.h.b16 %v6118
    %v6420 = vunpack.c.l.b16 %v6119
    %v6421 = vunpack.c.h.b16 %v6119
    %v6422 = vunpack.c.l.b16 %v6120
    %v6423 = vunpack.c.h.b16 %v6120
    %v6424 = vunpack.c.l.b16 %v6121
    %v6425 = vunpack.c.h.b16 %v6121
    %v6426 = vunpack.c.l.b16 %v6122
    %v6427 = vunpack.c.h.b16 %v6122
    %v6428 = vunpack.c.l.b16 %v6123
    %v6429 = vunpack.c.h.b16 %v6123
    %v6430 = vunpack.c.l.b16 %v6124
    %v6431 = vunpack.c.h.b16 %v6124
    %v6432 = vunpack.c.l.b16 %v6125
    %v6433 = vunpack.c.h.b16 %v6125
    %v6434 = vunpack.c.l.b16 %v6126
    %v6435 = vunpack.c.h.b16 %v6126
    %v6436 = vunpack.c.l.b16 %v6127
    %v6437 = vunpack.c.h.b16 %v6127
    %v6438 = vunpack.c.l.b16 %v6128
    %v6439 = vunpack.c.h.b16 %v6128
    %v6440 = vunpack.c.l.b16 %v6129
    %v6441 = vunpack.c.h.b16 %v6129
    %v6442 = vunpack.c.l.b16 %v6130
    %v6443 = vunpack.c.h.b16 %v6130
    %v6444 = vunpack.c.l.b16 %v6131
    %v6445 = vunpack.c.h.b16 %v6131
    %v6446 = vunpack.c.l.b16 %v6132
    %v6447 = vunpack.c.h.b16 %v6132
    %v6448 = vunpack.c.l.b16 %v6133
    %v6449 = vunpack.c.h.b16 %v6133
    %v6450 = vunpack.c.l.b16 %v6134
    %v6451 = vunpack.c.h.b16 %v6134
    %v6452 = vunpack.c.l.b16 %v6135
    %v6453 = vunpack.c.h.b16 %v6135
    %v6454 = vunpack.c.l.b16 %v6136
    %v6455 = vunpack.c.h.b16 %v6136
    %v6456 = vunpack.c.l.b16 %v6137
    %v6457 = vunpack.c.h.b16 %v6137
    %v6458 = vunpack.c.l.b16 %v6138
    %v6459 = vunpack.c.h.b16 %v6138
    %v6460 = vunpack.c.l.b16 %v6139
    %v6461 = vunpack.c.h.b16 %v6139
    %v6462 = vunpack.c.l.b16 %v6140
    %v6463 = vunpack.c.h.b16 %v6140
    %v6464 = vunpack.c.l.b16 %v6141
    %v6465 = vunpack.c.h.b16 %v6141
    %v6466 = vunpack.c.l.b16 %v6142
    %v6467 = vunpack.c.h.b16 %v6142
    %v6468 = vunpack.c.l.b16 %v6143
    %v6469 = vunpack.c.h.b16 %v6143
    %v6470 = vunpack.c.l.b16 %v6144
    %v6471 = vunpack.c.h.b16 %v6144
    %v6472 = vunpack.c.l.b16 %v6145
    %v6473 = vunpack.c.h.b16 %v6145
    %v6474 = vunpack.c.l.b16 %v6146
    %v6475 = vunpack.c.h.b16 %v6146
    %v6476 = vunpack.c.l.b16 %v6147
    %v6477 = vunpack.c.h.b16 %v6147
    %v6478 = vunpack.c.l.b16 %v6148
    %v6479 = vunpack.c.h.b16 %v6148
    %v6480 = vunpack.c.l.b16 %v6149
    %v6481 = vunpack.c.h.b16 %v6149
    %v6482 = vunpack.c.l.b16 %v6150
    %v6483 = vunpack.c.h.b16 %v6150
    %v6484 = vunpack.c.l.b16 %v6151
    %v6485 = vunpack.c.h.b16 %v6151
    %v6486 = vunpack.c.l.b16 %v6152
    %v6487 = vunpack.c.h.b16 %v6152
    %v6488 = vunpack.c.l.b16 %v6153
    %v6489 = vunpack.c.h.b16 %v6153
    %v6490 = vunpack.c.l.b16 %v6154
    %v6491 = vunpack.c.h.b16 %v6154
    %v6492 = vunpack.c.l.b16 %v6155
    %v6493 = vunpack.c.h.b16 %v6155
    %v6494 = vunpack.c.l.b16 %v6156
    %v6495 = vunpack.c.h.b16 %v6156
    %v6496 = vunpack.c.l.b16 %v6157
    %v6497 = vunpack.c.h.b16 %v6157
    %v6498 = vunpack.c.l.b16 %v6158
    %v6499 = vunpack.c.h.b16 %v6158
    %v6500 = vunpack.c.l.b16 %v6159
    %v6501 = vunpack.c.h.b16 %v6159
    %v6502 = vunpack.c.l.b16 %v6160
    %v6503 = vunpack.c.h.b16 %v6160
    %v6504 = vunpack.c.l.b16 %v6161
    %v6505 = vunpack.c.h.b16 %v6161
    %v6506 = vunpack.c.l.b16 %v6162
    %v6507 = vunpack.c.h.b16 %v6162
    %v6508 = vunpack.c.l.b16 %v6163
    %v6509 = vunpack.c.h.b16 %v6163
    %v6510 = vunpack.c.l.b16 %v6164
    %v6511 = vunpack.c.h.b16 %v6164
    %v6512 = vunpack.c.l.b16 %v6165
    %v6513 = vunpack.c.h.b16 %v6165
    %v6514 = vunpack.c.l.b16 %v6166
    %v6515 = vunpack.c.h.b16 %v6166
    %v6516 = vunpack.c.l.b16 %v6167
    %v6517 = vunpack.c.h.b16 %v6167
    %v6518 = vunpack.c.l.b16 %v6168
    %v6519 = vunpack.c.h.b16 %v6168
    %v6520 = vunpack.c.l.b16 %v6169
    %v6521 = vunpack.c.h.b16 %v6169
    %v6522 = vunpack.c.l.b16 %v6170
    %v6523 = vunpack.c.h.b16 %v6170
    %v6524 = vunpack.c.l.b16 %v6171
    %v6525 = vunpack.c.h.b16 %v6171
    %v6526 = vunpack.c.l.b16 %v6172
    %v6527 = vunpack.c.h.b16 %v6172
    %v6528 = vunpack.c.l.b16 %v6173
    %v6529 = vunpack.c.h.b16 %v6173
    %v6530 = vunpack.c.l.b16 %v6174
    %v6531 = vunpack.c.h.b16 %v6174
    %v6532 = vunpack.c.l.b16 %v6175
    %v6533 = vunpack.c.h.b16 %v6175
    %v6534 = vunpack.c.l.b16 %v6176
    %v6535 = vunpack.c.h.b16 %v6176
    %v6536 = vunpack.c.l.b16 %v6177
    %v6537 = vunpack.c.h.b16 %v6177
    %v6538 = vunpack.c.l.b16 %v6178
    %v6539 = vunpack.c.h.b16 %v6178
    %v6540 = vunpack.c.l.b16 %v6179
    %v6541 = vunpack.c.h.b16 %v6179
    %v6542 = vunpack.c.l.b16 %v6180
    %v6543 = vunpack.c.h.b16 %v6180
    %v6544 = vunpack.c.l.b16 %v6181
    %v6545 = vunpack.c.h.b16 %v6181
    %v6546 = vunpack.c.l.b16 %v6182
    %v6547 = vunpack.c.h.b16 %v6182
    %v6548 = vunpack.c.l.b16 %v6183
    %v6549 = vunpack.c.h.b16 %v6183
    %v6550 = vunpack.c.l.b16 %v6184
    %v6551 = vunpack.c.h.b16 %v6184
    %v6552 = vunpack.c.l.b16 %v6185
    %v6553 = vunpack.c.h.b16 %v6185
    %v6554 = vunpack.c.l.b16 %v6186
    %v6555 = vunpack.c.h.b16 %v6186
    %v6556 = vunpack.c.l.b16 %v6187
    %v6557 = vunpack.c.h.b16 %v6187
    %v6558 = vunpack.c.l.b16 %v6188
    %v6559 = vunpack.c.h.b16 %v6188
    %v6560 = vunpack.c.l.b16 %v6189
    %v6561 = vunpack.c.h.b16 %v6189
    %v6562 = vunpack.c.l.b16 %v6190
    %v6563 = vunpack.c.h.b16 %v6190
    %v6564 = vunpack.c.l.b16 %v6191
    %v6565 = vunpack.c.h.b16 %v6191
    %v6566 = vunpack.c.l.b16 %v6192
    %v6567 = vunpack.c.h.b16 %v6192
    %v6568 = vunpack.c.l.b16 %v6193
    %v6569 = vunpack.c.h.b16 %v6193
    %v6570 = vunpack.c.l.b16 %v6194
    %v6571 = vunpack.c.h.b16 %v6194
    %v6572 = vunpack.c.l.b16 %v6195
    %v6573 = vunpack.c.h.b16 %v6195
    %v6574 = vunpack.c.l.b16 %v6196
    %v6575 = vunpack.c.h.b16 %v6196
    %v6576 = vunpack.c.l.b16 %v6197
    %v6577 = vunpack.c.h.b16 %v6197
    %v6578 = vunpack.c.l.b16 %v6198
    %v6579 = vunpack.c.h.b16 %v6198
    %v6580 = vunpack.c.l.b16 %v6199
    %v6581 = vunpack.c.h.b16 %v6199
    %v6582 = vunpack.c.l.b16 %v6200
    %v6583 = vunpack.c.h.b16 %v6200
    %v6584 = vunpack.c.l.b16 %v6201
    %v6585 = vunpack.c.h.b16 %v6201
    %v6586 = vunpack.c.l.b16 %v6202
    %v6587 = vunpack.c.h.b16 %v6202
    %v6588 = vunpack.c.l.b16 %v6203
    %v6589 = vunpack.c.h.b16 %v6203
    %v6590 = vunpack.c.l.b16 %v6204
    %v6591 = vunpack.c.h.b16 %v6204
    %v6592 = vunpack.c.l.b16 %v6205
    %v6593 = vunpack.c.h.b16 %v6205
    %v6594 = vunpack.c.l.b16 %v6206
    %v6595 = vunpack.c.h.b16 %v6206
    %v6596 = vunpack.c.l.b16 %v6207
    %v6597 = vunpack.c.h.b16 %v6207
    %v6598 = vunpack.c.l.b16 %v6208
    %v6599 = vunpack.c.h.b16 %v6208
    %v6600 = vunpack.c.l.b16 %v6209
    %v6601 = vunpack.c.h.b16 %v6209
    %v6602 = vunpack.c.l.b16 %v6210
    %v6603 = vunpack.c.h.b16 %v6210
    %v6604 = vunpack.c.l.b16 %v6211
    %v6605 = vunpack.c.h.b16 %v6211
    %v6606 = vunpack.c.l.b16 %v6212
    %v6607 = vunpack.c.h.b16 %v6212
    %v6608 = vunpack.c.l.b16 %v6213
    %v6609 = vunpack.c.h.b16 %v6213
    %v6610 = vpack.c.b16 %v6356, %v6354
    %v6611 = vpack.c.b16 %v6357, %v6355
    %v6612 = vpack.c.b16 %v6360, %v6358
    %v6613 = vpack.c.b16 %v6361, %v6359
    %v6614 = vpack.c.b16 %v6364, %v6362
    %v6615 = vpack.c.b16 %v6365, %v6363
    %v6616 = vpack.c.b16 %v6368, %v6366
    %v6617 = vpack.c.b16 %v6369, %v6367
    %v6618 = vpack.c.b16 %v6372, %v6370
    %v6619 = vpack.c.b16 %v6373, %v6371
    %v6620 = vpack.c.b16 %v6376, %v6374
    %v6621 = vpack.c.b16 %v6377, %v6375
    %v6622 = vpack.c.b16 %v6380, %v6378
    %v6623 = vpack.c.b16 %v6381, %v6379
    %v6624 = vpack.c.b16 %v6384, %v6382
    %v6625 = vpack.c.b16 %v6385, %v6383
    %v6626 = vpack.c.b16 %v6388, %v6386
    %v6627 = vpack.c.b16 %v6389, %v6387
    %v6628 = vpack.c.b16 %v6392, %v6390
    %v6629 = vpack.c.b16 %v6393, %v6391
    %v6630 = vpack.c.b16 %v6396, %v6394
    %v6631 = vpack.c.b16 %v6397, %v6395
    %v6632 = vpack.c.b16 %v6400, %v6398
    %v6633 = vpack.c.b16 %v6401, %v6399
    %v6634 = vpack.c.b16 %v6404, %v6402
    %v6635 = vpack.c.b16 %v6405, %v6403
    %v6636 = vpack.c.b16 %v6408, %v6406
    %v6637 = vpack.c.b16 %v6409, %v6407
    %v6638 = vpack.c.b16 %v6412, %v6410
    %v6639 = vpack.c.b16 %v6413, %v6411
    %v6640 = vpack.c.b16 %v6416, %v6414
    %v6641 = vpack.c.b16 %v6417, %v6415
    %v6642 = vpack.c.b16 %v6420, %v6418
    %v6643 = vpack.c.b16 %v6421, %v6419
    %v6644 = vpack.c.b16 %v6424, %v6422
    %v6645 = vpack.c.b16 %v6425, %v6423
    %v6646 = vpack.c.b16 %v6428, %v6426
    %v6647 = vpack.c.b16 %v6429, %v6427
    %v6648 = vpack.c.b16 %v6432, %v6430
    %v6649 = vpack.c.b16 %v6433, %v6431
    %v6650 = vpack.c.b16 %v6436, %v6434
    %v6651 = vpack.c.b16 %v6437, %v6435
    %v6652 = vpack.c.b16 %v6440, %v6438
    %v6653 = vpack.c.b16 %v6441, %v6439
    %v6654 = vpack.c.b16 %v6444, %v6442
    %v6655 = vpack.c.b16 %v6445, %v6443
    %v6656 = vpack.c.b16 %v6448, %v6446
    %v6657 = vpack.c.b16 %v6449, %v6447
    %v6658 = vpack.c.b16 %v6452, %v6450
    %v6659 = vpack.c.b16 %v6453, %v6451
    %v6660 = vpack.c.b16 %v6456, %v6454
    %v6661 = vpack.c.b16 %v6457, %v6455
    %v6662 = vpack.c.b16 %v6460, %v6458
    %v6663 = vpack.c.b16 %v6461, %v6459
    %v6664 = vpack.c.b16 %v6464, %v6462
    %v6665 = vpack.c.b16 %v6465, %v6463
    %v6666 = vpack.c.b16 %v6468, %v6466
    %v6667 = vpack.c.b16 %v6469, %v6467
    %v6668 = vpack.c.b16 %v6472, %v6470
    %v6669 = vpack.c.b16 %v6473, %v6471
    %v6670 = vpack.c.b16 %v6476, %v6474
    %v6671 = vpack.c.b16 %v6477, %v6475
    %v6672 = vpack.c.b16 %v6480, %v6478
    %v6673 = vpack.c.b16 %v6481, %v6479
    %v6674 = vpack.c.b16 %v6484, %v6482
    %v6675 = vpack.c.b16 %v6485, %v6483
    %v6676 = vpack.c.b16 %v6488, %v6486
    %v6677 = vpack.c.b16 %v6489, %v6487
    %v6678 = vpack.c.b16 %v6492, %v6490
    %v6679 = vpack.c.b16 %v6493, %v6491
    %v6680 = vpack.c.b16 %v6496, %v6494
    %v6681 = vpack.c.b16 %v6497, %v6495
    %v6682 = vpack.c.b16 %v6500, %v6498
    %v6683 = vpack.c.b16 %v6501, %v6499
    %v6684 = vpack.c.b16 %v6504, %v6502
    %v6685 = vpack.c.b16 %v6505, %v6503
    %v6686 = vpack.c.b16 %v6508, %v6506
    %v6687 = vpack.c.b16 %v6509, %v6507
    %v6688 = vpack.c.b16 %v6512, %v6510
    %v6689 = vpack.c.b16 %v6513, %v6511
    %v6690 = vpack.c.b16 %v6516, %v6514
    %v6691 = vpack.c.b16 %v6517, %v6515
    %v6692 = vpack.c.b16 %v6520, %v6518
    %v6693 = vpack.c.b16 %v6521, %v6519
    %v6694 = vpack.c.b16 %v6524, %v6522
    %v6695 = vpack.c.b16 %v6525, %v6523
    %v6696 = vpack.c.b16 %v6528, %v6526
    %v6697 = vpack.c.b16 %v6529, %v6527
    %v6698 = vpack.c.b16 %v6532, %v6530
    %v6699 = vpack.c.b16 %v6533, %v6531
    %v6700 = vpack.c.b16 %v6536, %v6534
    %v6701 = vpack.c.b16 %v6537, %v6535
    %v6702 = vpack.c.b16 %v6540, %v6538
    %v6703 = vpack.c.b16 %v6541, %v6539
    %v6704 = vpack.c.b16 %v6544, %v6542
    %v6705 = vpack.c.b16 %v6545, %v6543
    %v6706 = vpack.c.b16 %v6548, %v6546
    %v6707 = vpack.c.b16 %v6549, %v6547
    %v6708 = vpack.c.b16 %v6552, %v6550
    %v6709 = vpack.c.b16 %v6553, %v6551
    %v6710 = vpack.c.b16 %v6556, %v6554
    %v6711 = vpack.c.b16 %v6557, %v6555
    %v6712 = vpack.c.b16 %v6560, %v6558
    %v6713 = vpack.c.b16 %v6561, %v6559
    %v6714 = vpack.c.b16 %v6564, %v6562
    %v6715 = vpack.c.b16 %v6565, %v6563
    %v6716 = vpack.c.b16 %v6568, %v6566
    %v6717 = vpack.c.b16 %v6569, %v6567
    %v6718 = vpack.c.b16 %v6572, %v6570
    %v6719 = vpack.c.b16 %v6573, %v6571
    %v6720 = vpack.c.b16 %v6576, %v6574
    %v6721 = vpack.c.b16 %v6577, %v6575
    %v6722 = vpack.c.b16 %v6580, %v6578
    %v6723 = vpack.c.b16 %v6581, %v6579
    %v6724 = vpack.c.b16 %v6584, %v6582
    %v6725 = vpack.c.b16 %v6585, %v6583
    %v6726 = vpack.c.b16 %v6588, %v6586
    %v6727 = vpack.c.b16 %v6589, %v6587
    %v6728 = vpack.c.b16 %v6592, %v6590
    %v6729 = vpack.c.b16 %v6593, %v6591
    %v6730 = vpack.c.b16 %v6596, %v6594
    %v6731 = vpack.c.b16 %v6597, %v6595
    %v6732 = vpack.c.b16 %v6600, %v6598
    %v6733 = vpack.c.b16 %v6601, %v6599
    %v6734 = vpack.c.b16 %v6604, %v6602
    %v6735 = vpack.c.b16 %v6605, %v6603
    %v6736 = vpack.c.b16 %v6608, %v6606
    %v6737 = vpack.c.b16 %v6609, %v6607
    %6866 = vmatprep.subr.bf16.mxu0 %v6625
    %6867 = vmatpush1.bf16.msra.mxu0 %v6624
    %6868 = vmatprep.subr.bf16.mxu0 %v6623
    %6869 = vmatpush1.bf16.msra.mxu0 %v6622
    %6870 = vmatprep.subr.bf16.mxu0 %v6621
    %6871 = vmatpush1.bf16.msra.mxu0 %v6620
    %6872 = vmatprep.subr.bf16.mxu0 %v6619
    %6873 = vmatpush1.bf16.msra.mxu0 %v6618
    %6874 = vmatprep.subr.bf16.mxu0 %v6617
    %6875 = vmatpush1.bf16.msra.mxu0 %v6616
    %6876 = vmatprep.subr.bf16.mxu0 %v6615
    %6877 = vmatpush1.bf16.msra.mxu0 %v6614
    %6878 = vmatprep.subr.bf16.mxu0 %v6613
    %6879 = vmatpush1.bf16.msra.mxu0 %v6612
    %6880 = vmatprep.subr.bf16.mxu0 %v6611
    %6881 = vmatpush1.bf16.msra.mxu0 %v6610
    %6882 = vmatprep.subr.bf16.mxu0 %v6641
    %6883 = vmatpush2.bf16.msra.mxu0 %v6640
    %6884 = vmatprep.subr.bf16.mxu0 %v6639
    %6885 = vmatpush2.bf16.msra.mxu0 %v6638
    %6886 = vmatprep.subr.bf16.mxu0 %v6637
    %6887 = vmatpush2.bf16.msra.mxu0 %v6636
    %6888 = vmatprep.subr.bf16.mxu0 %v6635
    %6889 = vmatpush2.bf16.msra.mxu0 %v6634
    %6890 = vmatprep.subr.bf16.mxu0 %v6633
    %6891 = vmatpush2.bf16.msra.mxu0 %v6632
    %6892 = vmatprep.subr.bf16.mxu0 %v6631
    %6893 = vmatpush2.bf16.msra.mxu0 %v6630
    %6894 = vmatprep.subr.bf16.mxu0 %v6629
    %6895 = vmatpush2.bf16.msra.mxu0 %v6628
    %6896 = vmatprep.subr.bf16.mxu0 %v6627
    %6897 = vmatpush2.bf16.msra.mxu0 %v6626
    %6898 = vmatprep.mubr.bf16.mxu0 %v6019
    %6899 = vmatmul.mubr.bf16.gmra.mxu0 %v6018
    %v6900 = vpop.f32.mrf.mxu0
    %v6901 = vadd.f32 %v6219, %v6900
    %v6902 = vpop.f32.mrf.mxu0
    %v6903 = vadd.f32 %v6223, %v6902
    %v6904 = vpop.f32.mrf.mxu0
    %v6905 = vadd.f32 %v6219, %v6904
    %v6906 = vpop.f32.mrf.mxu0
    %v6907 = vadd.f32 %v6223, %v6906
    %6908 = vmatprep.mubr.bf16.mxu0 %v6027
    %6909 = vmatmul.mubr.bf16.gmra.mxu0 %v6026
    %v6910 = vpop.f32.mrf.mxu0
    %v6911 = vadd.f32 %v6219, %v6910
    %v6912 = vpop.f32.mrf.mxu0
    %v6913 = vadd.f32 %v6223, %v6912
    %v6914 = vpop.f32.mrf.mxu0
    %v6915 = vadd.f32 %v6219, %v6914
    %v6916 = vpop.f32.mrf.mxu0
    %v6917 = vadd.f32 %v6223, %v6916
    %6918 = vmatprep.mubr.bf16.mxu0 %v6035
    %6919 = vmatmul.mubr.bf16.gmra.mxu0 %v6034
    %v6920 = vpop.f32.mrf.mxu0
    %v6921 = vadd.f32 %v6219, %v6920
    %v6922 = vpop.f32.mrf.mxu0
    %v6923 = vadd.f32 %v6223, %v6922
    %v6924 = vpop.f32.mrf.mxu0
    %v6925 = vadd.f32 %v6219, %v6924
    %v6926 = vpop.f32.mrf.mxu0
    %v6927 = vadd.f32 %v6223, %v6926
    %6928 = vmatprep.mubr.bf16.mxu0 %v6043
    %6929 = vmatmul.mubr.bf16.gmra.mxu0 %v6042
    %v6930 = vpop.f32.mrf.mxu0
    %v6931 = vadd.f32 %v6219, %v6930
    %v6932 = vpop.f32.mrf.mxu0
    %v6933 = vadd.f32 %v6223, %v6932
    %v6934 = vpop.f32.mrf.mxu0
    %v6935 = vadd.f32 %v6219, %v6934
    %v6936 = vpop.f32.mrf.mxu0
    %v6937 = vadd.f32 %v6223, %v6936
    %6938 = vmatprep.mubr.bf16.mxu0 %v6051
    %6939 = vmatmul.mubr.bf16.gmra.mxu0 %v6050
    %v6940 = vpop.f32.mrf.mxu0
    %v6941 = vadd.f32 %v6219, %v6940
    %v6942 = vpop.f32.mrf.mxu0
    %v6943 = vadd.f32 %v6223, %v6942
    %v6944 = vpop.f32.mrf.mxu0
    %v6945 = vadd.f32 %v6219, %v6944
    %v6946 = vpop.f32.mrf.mxu0
    %v6947 = vadd.f32 %v6223, %v6946
    %6948 = vmatprep.mubr.bf16.mxu0 %v6059
    %6949 = vmatmul.mubr.bf16.gmra.mxu0 %v6058
    %v6950 = vpop.f32.mrf.mxu0
    %v6951 = vadd.f32 %v6219, %v6950
    %v6952 = vpop.f32.mrf.mxu0
    %v6953 = vadd.f32 %v6223, %v6952
    %v6954 = vpop.f32.mrf.mxu0
    %v6955 = vadd.f32 %v6219, %v6954
    %v6956 = vpop.f32.mrf.mxu0
    %v6957 = vadd.f32 %v6223, %v6956
    %6958 = vmatprep.mubr.bf16.mxu0 %v6067
    %6959 = vmatmul.mubr.bf16.gmra.mxu0 %v6066
    %v6960 = vpop.f32.mrf.mxu0
    %v6961 = vadd.f32 %v6219, %v6960
    %v6962 = vpop.f32.mrf.mxu0
    %v6963 = vadd.f32 %v6223, %v6962
    %v6964 = vpop.f32.mrf.mxu0
    %v6965 = vadd.f32 %v6219, %v6964
    %v6966 = vpop.f32.mrf.mxu0
    %v6967 = vadd.f32 %v6223, %v6966
    %6968 = vmatprep.mubr.bf16.mxu0 %v6075
    %6969 = vmatmul.mubr.bf16.gmra.mxu0 %v6074
    %v6970 = vpop.f32.mrf.mxu0
    %v6971 = vadd.f32 %v6219, %v6970
    %v6972 = vpop.f32.mrf.mxu0
    %v6973 = vadd.f32 %v6223, %v6972
    %v6974 = vpop.f32.mrf.mxu0
    %v6975 = vadd.f32 %v6219, %v6974
    %v6976 = vpop.f32.mrf.mxu0
    %v6977 = vadd.f32 %v6223, %v6976
    %6978 = vdwg.mxu0
    %6979 = vmatprep.subr.bf16.mxu0 %v6657
    %6980 = vmatpush1.bf16.msra.mxu0 %v6656
    %6981 = vmatprep.subr.bf16.mxu0 %v6655
    %6982 = vmatpush1.bf16.msra.mxu0 %v6654
    %6983 = vmatprep.subr.bf16.mxu0 %v6653
    %6984 = vmatpush1.bf16.msra.mxu0 %v6652
    %6985 = vmatprep.subr.bf16.mxu0 %v6651
    %6986 = vmatpush1.bf16.msra.mxu0 %v6650
    %6987 = vmatprep.subr.bf16.mxu0 %v6649
    %6988 = vmatpush1.bf16.msra.mxu0 %v6648
    %6989 = vmatprep.subr.bf16.mxu0 %v6647
    %6990 = vmatpush1.bf16.msra.mxu0 %v6646
    %6991 = vmatprep.subr.bf16.mxu0 %v6645
    %6992 = vmatpush1.bf16.msra.mxu0 %v6644
    %6993 = vmatprep.subr.bf16.mxu0 %v6643
    %6994 = vmatpush1.bf16.msra.mxu0 %v6642
    %6995 = vmatprep.subr.bf16.mxu0 %v6673
    %6996 = vmatpush2.bf16.msra.mxu0 %v6672
    %6997 = vmatprep.subr.bf16.mxu0 %v6671
    %6998 = vmatpush2.bf16.msra.mxu0 %v6670
    %6999 = vmatprep.subr.bf16.mxu0 %v6669
    %7000 = vmatpush2.bf16.msra.mxu0 %v6668
    %7001 = vmatprep.subr.bf16.mxu0 %v6667
    %7002 = vmatpush2.bf16.msra.mxu0 %v6666
    %7003 = vmatprep.subr.bf16.mxu0 %v6665
    %7004 = vmatpush2.bf16.msra.mxu0 %v6664
    %7005 = vmatprep.subr.bf16.mxu0 %v6663
    %7006 = vmatpush2.bf16.msra.mxu0 %v6662
    %7007 = vmatprep.subr.bf16.mxu0 %v6661
    %7008 = vmatpush2.bf16.msra.mxu0 %v6660
    %7009 = vmatprep.subr.bf16.mxu0 %v6659
    %7010 = vmatpush2.bf16.msra.mxu0 %v6658
    %7011 = vmatprep.mubr.bf16.mxu0 %v6021
    %7012 = vmatmul.mubr.bf16.gmra.mxu0 %v6020
    %v7013 = vpop.f32.mrf.mxu0
    %v7014 = vadd.f32 %v6901, %v7013
    %v7015 = vpop.f32.mrf.mxu0
    %v7016 = vadd.f32 %v6903, %v7015
    %v7017 = vpop.f32.mrf.mxu0
    %v7018 = vadd.f32 %v6905, %v7017
    %v7019 = vpop.f32.mrf.mxu0
    %v7020 = vadd.f32 %v6907, %v7019
    %7021 = vmatprep.mubr.bf16.mxu0 %v6029
    %7022 = vmatmul.mubr.bf16.gmra.mxu0 %v6028
    %v7023 = vpop.f32.mrf.mxu0
    %v7024 = vadd.f32 %v6911, %v7023
    %v7025 = vpop.f32.mrf.mxu0
    %v7026 = vadd.f32 %v6913, %v7025
    %v7027 = vpop.f32.mrf.mxu0
    %v7028 = vadd.f32 %v6915, %v7027
    %v7029 = vpop.f32.mrf.mxu0
    %v7030 = vadd.f32 %v6917, %v7029
    %7031 = vmatprep.mubr.bf16.mxu0 %v6037
    %7032 = vmatmul.mubr.bf16.gmra.mxu0 %v6036
    %v7033 = vpop.f32.mrf.mxu0
    %v7034 = vadd.f32 %v6921, %v7033
    %v7035 = vpop.f32.mrf.mxu0
    %v7036 = vadd.f32 %v6923, %v7035
    %v7037 = vpop.f32.mrf.mxu0
    %v7038 = vadd.f32 %v6925, %v7037
    %v7039 = vpop.f32.mrf.mxu0
    %v7040 = vadd.f32 %v6927, %v7039
    %7041 = vmatprep.mubr.bf16.mxu0 %v6045
    %7042 = vmatmul.mubr.bf16.gmra.mxu0 %v6044
    %v7043 = vpop.f32.mrf.mxu0
    %v7044 = vadd.f32 %v6931, %v7043
    %v7045 = vpop.f32.mrf.mxu0
    %v7046 = vadd.f32 %v6933, %v7045
    %v7047 = vpop.f32.mrf.mxu0
    %v7048 = vadd.f32 %v6935, %v7047
    %v7049 = vpop.f32.mrf.mxu0
    %v7050 = vadd.f32 %v6937, %v7049
    %7051 = vmatprep.mubr.bf16.mxu0 %v6053
    %7052 = vmatmul.mubr.bf16.gmra.mxu0 %v6052
    %v7053 = vpop.f32.mrf.mxu0
    %v7054 = vadd.f32 %v6941, %v7053
    %v7055 = vpop.f32.mrf.mxu0
    %v7056 = vadd.f32 %v6943, %v7055
    %v7057 = vpop.f32.mrf.mxu0
    %v7058 = vadd.f32 %v6945, %v7057
    %v7059 = vpop.f32.mrf.mxu0
    %v7060 = vadd.f32 %v6947, %v7059
    %7061 = vmatprep.mubr.bf16.mxu0 %v6061
    %7062 = vmatmul.mubr.bf16.gmra.mxu0 %v6060
    %v7063 = vpop.f32.mrf.mxu0
    %v7064 = vadd.f32 %v6951, %v7063
    %v7065 = vpop.f32.mrf.mxu0
    %v7066 = vadd.f32 %v6953, %v7065
    %v7067 = vpop.f32.mrf.mxu0
    %v7068 = vadd.f32 %v6955, %v7067
    %v7069 = vpop.f32.mrf.mxu0
    %v7070 = vadd.f32 %v6957, %v7069
    %7071 = vmatprep.mubr.bf16.mxu0 %v6069
    %7072 = vmatmul.mubr.bf16.gmra.mxu0 %v6068
    %v7073 = vpop.f32.mrf.mxu0
    %v7074 = vadd.f32 %v6961, %v7073
    %v7075 = vpop.f32.mrf.mxu0
    %v7076 = vadd.f32 %v6963, %v7075
    %v7077 = vpop.f32.mrf.mxu0
    %v7078 = vadd.f32 %v6965, %v7077
    %v7079 = vpop.f32.mrf.mxu0
    %v7080 = vadd.f32 %v6967, %v7079
    %7081 = vmatprep.mubr.bf16.mxu0 %v6077
    %7082 = vmatmul.mubr.bf16.gmra.mxu0 %v6076
    %v7083 = vpop.f32.mrf.mxu0
    %v7084 = vadd.f32 %v6971, %v7083
    %v7085 = vpop.f32.mrf.mxu0
    %v7086 = vadd.f32 %v6973, %v7085
    %v7087 = vpop.f32.mrf.mxu0
    %v7088 = vadd.f32 %v6975, %v7087
    %v7089 = vpop.f32.mrf.mxu0
    %v7090 = vadd.f32 %v6977, %v7089
    %7091 = vdwg.mxu0
    %7092 = vmatprep.subr.bf16.mxu0 %v6689
    %7093 = vmatpush1.bf16.msra.mxu0 %v6688
    %7094 = vmatprep.subr.bf16.mxu0 %v6687
    %7095 = vmatpush1.bf16.msra.mxu0 %v6686
    %7096 = vmatprep.subr.bf16.mxu0 %v6685
    %7097 = vmatpush1.bf16.msra.mxu0 %v6684
    %7098 = vmatprep.subr.bf16.mxu0 %v6683
    %7099 = vmatpush1.bf16.msra.mxu0 %v6682
    %7100 = vmatprep.subr.bf16.mxu0 %v6681
    %7101 = vmatpush1.bf16.msra.mxu0 %v6680
    %7102 = vmatprep.subr.bf16.mxu0 %v6679
    %7103 = vmatpush1.bf16.msra.mxu0 %v6678
    %7104 = vmatprep.subr.bf16.mxu0 %v6677
    %7105 = vmatpush1.bf16.msra.mxu0 %v6676
    %7106 = vmatprep.subr.bf16.mxu0 %v6675
    %7107 = vmatpush1.bf16.msra.mxu0 %v6674
    %7108 = vmatprep.subr.bf16.mxu0 %v6705
    %7109 = vmatpush2.bf16.msra.mxu0 %v6704
    %7110 = vmatprep.subr.bf16.mxu0 %v6703
    %7111 = vmatpush2.bf16.msra.mxu0 %v6702
    %7112 = vmatprep.subr.bf16.mxu0 %v6701
    %7113 = vmatpush2.bf16.msra.mxu0 %v6700
    %7114 = vmatprep.subr.bf16.mxu0 %v6699
    %7115 = vmatpush2.bf16.msra.mxu0 %v6698
    %7116 = vmatprep.subr.bf16.mxu0 %v6697
    %7117 = vmatpush2.bf16.msra.mxu0 %v6696
    %7118 = vmatprep.subr.bf16.mxu0 %v6695
    %7119 = vmatpush2.bf16.msra.mxu0 %v6694
    %7120 = vmatprep.subr.bf16.mxu0 %v6693
    %7121 = vmatpush2.bf16.msra.mxu0 %v6692
    %7122 = vmatprep.subr.bf16.mxu0 %v6691
    %7123 = vmatpush2.bf16.msra.mxu0 %v6690
    %7124 = vmatprep.mubr.bf16.mxu0 %v6023
    %7125 = vmatmul.mubr.bf16.gmra.mxu0 %v6022
    %v7126 = vpop.f32.mrf.mxu0
    %v7127 = vadd.f32 %v7014, %v7126
    %v7128 = vpop.f32.mrf.mxu0
    %v7129 = vadd.f32 %v7016, %v7128
    %v7130 = vpop.f32.mrf.mxu0
    %v7131 = vadd.f32 %v7018, %v7130
    %v7132 = vpop.f32.mrf.mxu0
    %v7133 = vadd.f32 %v7020, %v7132
    %7134 = vmatprep.mubr.bf16.mxu0 %v6031
    %7135 = vmatmul.mubr.bf16.gmra.mxu0 %v6030
    %v7136 = vpop.f32.mrf.mxu0
    %v7137 = vadd.f32 %v7024, %v7136
    %v7138 = vpop.f32.mrf.mxu0
    %v7139 = vadd.f32 %v7026, %v7138
    %v7140 = vpop.f32.mrf.mxu0
    %v7141 = vadd.f32 %v7028, %v7140
    %v7142 = vpop.f32.mrf.mxu0
    %v7143 = vadd.f32 %v7030, %v7142
    %7144 = vmatprep.mubr.bf16.mxu0 %v6039
    %7145 = vmatmul.mubr.bf16.gmra.mxu0 %v6038
    %v7146 = vpop.f32.mrf.mxu0
    %v7147 = vadd.f32 %v7034, %v7146
    %v7148 = vpop.f32.mrf.mxu0
    %v7149 = vadd.f32 %v7036, %v7148
    %v7150 = vpop.f32.mrf.mxu0
    %v7151 = vadd.f32 %v7038, %v7150
    %v7152 = vpop.f32.mrf.mxu0
    %v7153 = vadd.f32 %v7040, %v7152
    %7154 = vmatprep.mubr.bf16.mxu0 %v6047
    %7155 = vmatmul.mubr.bf16.gmra.mxu0 %v6046
    %v7156 = vpop.f32.mrf.mxu0
    %v7157 = vadd.f32 %v7044, %v7156
    %v7158 = vpop.f32.mrf.mxu0
    %v7159 = vadd.f32 %v7046, %v7158
    %v7160 = vpop.f32.mrf.mxu0
    %v7161 = vadd.f32 %v7048, %v7160
    %v7162 = vpop.f32.mrf.mxu0
    %v7163 = vadd.f32 %v7050, %v7162
    %7164 = vmatprep.mubr.bf16.mxu0 %v6055
    %7165 = vmatmul.mubr.bf16.gmra.mxu0 %v6054
    %v7166 = vpop.f32.mrf.mxu0
    %v7167 = vadd.f32 %v7054, %v7166
    %v7168 = vpop.f32.mrf.mxu0
    %v7169 = vadd.f32 %v7056, %v7168
    %v7170 = vpop.f32.mrf.mxu0
    %v7171 = vadd.f32 %v7058, %v7170
    %v7172 = vpop.f32.mrf.mxu0
    %v7173 = vadd.f32 %v7060, %v7172
    %7174 = vmatprep.mubr.bf16.mxu0 %v6063
    %7175 = vmatmul.mubr.bf16.gmra.mxu0 %v6062
    %v7176 = vpop.f32.mrf.mxu0
    %v7177 = vadd.f32 %v7064, %v7176
    %v7178 = vpop.f32.mrf.mxu0
    %v7179 = vadd.f32 %v7066, %v7178
    %v7180 = vpop.f32.mrf.mxu0
    %v7181 = vadd.f32 %v7068, %v7180
    %v7182 = vpop.f32.mrf.mxu0
    %v7183 = vadd.f32 %v7070, %v7182
    %7184 = vmatprep.mubr.bf16.mxu0 %v6071
    %7185 = vmatmul.mubr.bf16.gmra.mxu0 %v6070
    %v7186 = vpop.f32.mrf.mxu0
    %v7187 = vadd.f32 %v7074, %v7186
    %v7188 = vpop.f32.mrf.mxu0
    %v7189 = vadd.f32 %v7076, %v7188
    %v7190 = vpop.f32.mrf.mxu0
    %v7191 = vadd.f32 %v7078, %v7190
    %v7192 = vpop.f32.mrf.mxu0
    %v7193 = vadd.f32 %v7080, %v7192
    %7194 = vmatprep.mubr.bf16.mxu0 %v6079
    %7195 = vmatmul.mubr.bf16.gmra.mxu0 %v6078
    %v7196 = vpop.f32.mrf.mxu0
    %v7197 = vadd.f32 %v7084, %v7196
    %v7198 = vpop.f32.mrf.mxu0
    %v7199 = vadd.f32 %v7086, %v7198
    %v7200 = vpop.f32.mrf.mxu0
    %v7201 = vadd.f32 %v7088, %v7200
    %v7202 = vpop.f32.mrf.mxu0
    %v7203 = vadd.f32 %v7090, %v7202
    %7204 = vdwg.mxu0
    %7205 = vmatprep.subr.bf16.mxu0 %v6721
    %7206 = vmatpush1.bf16.msra.mxu0 %v6720
    %7207 = vmatprep.subr.bf16.mxu0 %v6719
    %7208 = vmatpush1.bf16.msra.mxu0 %v6718
    %7209 = vmatprep.subr.bf16.mxu0 %v6717
    %7210 = vmatpush1.bf16.msra.mxu0 %v6716
    %7211 = vmatprep.subr.bf16.mxu0 %v6715
    %7212 = vmatpush1.bf16.msra.mxu0 %v6714
    %7213 = vmatprep.subr.bf16.mxu0 %v6713
    %7214 = vmatpush1.bf16.msra.mxu0 %v6712
    %7215 = vmatprep.subr.bf16.mxu0 %v6711
    %7216 = vmatpush1.bf16.msra.mxu0 %v6710
    %7217 = vmatprep.subr.bf16.mxu0 %v6709
    %7218 = vmatpush1.bf16.msra.mxu0 %v6708
    %7219 = vmatprep.subr.bf16.mxu0 %v6707
    %7220 = vmatpush1.bf16.msra.mxu0 %v6706
    %7221 = vmatprep.subr.bf16.mxu0 %v6737
    %7222 = vmatpush2.bf16.msra.mxu0 %v6736
    %7223 = vmatprep.subr.bf16.mxu0 %v6735
    %7224 = vmatpush2.bf16.msra.mxu0 %v6734
    %7225 = vmatprep.subr.bf16.mxu0 %v6733
    %7226 = vmatpush2.bf16.msra.mxu0 %v6732
    %7227 = vmatprep.subr.bf16.mxu0 %v6731
    %7228 = vmatpush2.bf16.msra.mxu0 %v6730
    %7229 = vmatprep.subr.bf16.mxu0 %v6729
    %7230 = vmatpush2.bf16.msra.mxu0 %v6728
    %7231 = vmatprep.subr.bf16.mxu0 %v6727
    %7232 = vmatpush2.bf16.msra.mxu0 %v6726
    %7233 = vmatprep.subr.bf16.mxu0 %v6725
    %7234 = vmatpush2.bf16.msra.mxu0 %v6724
    %7235 = vmatprep.subr.bf16.mxu0 %v6723
    %7236 = vmatpush2.bf16.msra.mxu0 %v6722
    %7237 = vmatprep.mubr.bf16.mxu0 %v6025
    %7238 = vmatmul.mubr.bf16.gmra.mxu0 %v6024
    %v7239 = vpop.f32.mrf.mxu0
    %v7240 = vadd.f32 %v7127, %v7239
    %v7241 = vpop.f32.mrf.mxu0
    %v7242 = vadd.f32 %v7129, %v7241
    %v7243 = vpop.f32.mrf.mxu0
    %v7244 = vadd.f32 %v7131, %v7243
    %v7245 = vpop.f32.mrf.mxu0
    %v7246 = vadd.f32 %v7133, %v7245
    %7247 = vmatprep.mubr.bf16.mxu0 %v6033
    %7248 = vmatmul.mubr.bf16.gmra.mxu0 %v6032
    %v7249 = vpop.f32.mrf.mxu0
    %v7250 = vadd.f32 %v7137, %v7249
    %v7251 = vpop.f32.mrf.mxu0
    %v7252 = vadd.f32 %v7139, %v7251
    %v7253 = vpop.f32.mrf.mxu0
    %v7254 = vadd.f32 %v7141, %v7253
    %v7255 = vpop.f32.mrf.mxu0
    %v7256 = vadd.f32 %v7143, %v7255
    %7257 = vmatprep.mubr.bf16.mxu0 %v6041
    %7258 = vmatmul.mubr.bf16.gmra.mxu0 %v6040
    %v7259 = vpop.f32.mrf.mxu0
    %v7260 = vadd.f32 %v7147, %v7259
    %v7261 = vpop.f32.mrf.mxu0
    %v7262 = vadd.f32 %v7149, %v7261
    %v7263 = vpop.f32.mrf.mxu0
    %v7264 = vadd.f32 %v7151, %v7263
    %v7265 = vpop.f32.mrf.mxu0
    %v7266 = vadd.f32 %v7153, %v7265
    %7267 = vmatprep.mubr.bf16.mxu0 %v6049
    %7268 = vmatmul.mubr.bf16.gmra.mxu0 %v6048
    %v7269 = vpop.f32.mrf.mxu0
    %v7270 = vadd.f32 %v7157, %v7269
    %v7271 = vpop.f32.mrf.mxu0
    %v7272 = vadd.f32 %v7159, %v7271
    %v7273 = vpop.f32.mrf.mxu0
    %v7274 = vadd.f32 %v7161, %v7273
    %v7275 = vpop.f32.mrf.mxu0
    %v7276 = vadd.f32 %v7163, %v7275
    %7277 = vmatprep.mubr.bf16.mxu0 %v6057
    %7278 = vmatmul.mubr.bf16.gmra.mxu0 %v6056
    %v7279 = vpop.f32.mrf.mxu0
    %v7280 = vadd.f32 %v7167, %v7279
    %v7281 = vpop.f32.mrf.mxu0
    %v7282 = vadd.f32 %v7169, %v7281
    %v7283 = vpop.f32.mrf.mxu0
    %v7284 = vadd.f32 %v7171, %v7283
    %v7285 = vpop.f32.mrf.mxu0
    %v7286 = vadd.f32 %v7173, %v7285
    %7287 = vmatprep.mubr.bf16.mxu0 %v6065
    %7288 = vmatmul.mubr.bf16.gmra.mxu0 %v6064
    %v7289 = vpop.f32.mrf.mxu0
    %v7290 = vadd.f32 %v7177, %v7289
    %v7291 = vpop.f32.mrf.mxu0
    %v7292 = vadd.f32 %v7179, %v7291
    %v7293 = vpop.f32.mrf.mxu0
    %v7294 = vadd.f32 %v7181, %v7293
    %v7295 = vpop.f32.mrf.mxu0
    %v7296 = vadd.f32 %v7183, %v7295
    %7297 = vmatprep.mubr.bf16.mxu0 %v6073
    %7298 = vmatmul.mubr.bf16.gmra.mxu0 %v6072
    %v7299 = vpop.f32.mrf.mxu0
    %v7300 = vadd.f32 %v7187, %v7299
    %v7301 = vpop.f32.mrf.mxu0
    %v7302 = vadd.f32 %v7189, %v7301
    %v7303 = vpop.f32.mrf.mxu0
    %v7304 = vadd.f32 %v7191, %v7303
    %v7305 = vpop.f32.mrf.mxu0
    %v7306 = vadd.f32 %v7193, %v7305
    %7307 = vmatprep.mubr.bf16.mxu0 %v6081
    %7308 = vmatmul.mubr.bf16.gmra.mxu0 %v6080
    %v7309 = vpop.f32.mrf.mxu0
    %v7310 = vadd.f32 %v7197, %v7309
    %v7311 = vpop.f32.mrf.mxu0
    %v7312 = vadd.f32 %v7199, %v7311
    %v7313 = vpop.f32.mrf.mxu0
    %v7314 = vadd.f32 %v7201, %v7313
    %v7315 = vpop.f32.mrf.mxu0
    %v7316 = vadd.f32 %v7203, %v7315
    %7317 = vdwg.mxu0
    %v7318 = vtanh.pop %v7240
    %v7319 = vtanh.pop %v7242
    %v7320 = vtanh.pop %v7244
    %v7321 = vtanh.pop %v7246
    %v7322 = vtanh.pop %v7250
    %v7323 = vtanh.pop %v7252
    %v7324 = vtanh.pop %v7254
    %v7325 = vtanh.pop %v7256
    %v7326 = vtanh.pop %v7260
    %v7327 = vtanh.pop %v7262
    %v7328 = vtanh.pop %v7264
    %v7329 = vtanh.pop %v7266
    %v7330 = vtanh.pop %v7270
    %v7331 = vtanh.pop %v7272
    %v7332 = vtanh.pop %v7274
    %v7333 = vtanh.pop %v7276
    %v7334 = vtanh.pop %v7280
    %v7335 = vtanh.pop %v7282
    %v7336 = vtanh.pop %v7284
    %v7337 = vtanh.pop %v7286
    %v7338 = vtanh.pop %v7290
    %v7339 = vtanh.pop %v7292
    %v7340 = vtanh.pop %v7294
    %v7341 = vtanh.pop %v7296
    %v7342 = vtanh.pop %v7300
    %v7343 = vtanh.pop %v7302
    %v7344 = vtanh.pop %v7304
    %v7345 = vtanh.pop %v7306
    %v7346 = vtanh.pop %v7310
    %v7347 = vtanh.pop %v7312
    %v7348 = vtanh.pop %v7314
    %v7349 = vtanh.pop %v7316
    %7350 = vst [vmem:[#allocation6] sm:$0xff] %v7318
    %7351 = vst [vmem:[#allocation6 + $0x8] sm:$0xff] %v7319
    %7352 = vst [vmem:[#allocation6 + $0x10] sm:$0xff] %v7320
    %7353 = vst [vmem:[#allocation6 + $0x18] sm:$0xff] %v7321
    %7354 = vst [vmem:[#allocation6 + $0x20] sm:$0xff] %v7322
    %7355 = vst [vmem:[#allocation6 + $0x28] sm:$0xff] %v7323
    %7356 = vst [vmem:[#allocation6 + $0x30] sm:$0xff] %v7324
    %7357 = vst [vmem:[#allocation6 + $0x38] sm:$0xff] %v7325
    %7358 = vst [vmem:[#allocation6 + $0x40] sm:$0xff] %v7326
    %7359 = vst [vmem:[#allocation6 + $0x48] sm:$0xff] %v7327
    %7360 = vst [vmem:[#allocation6 + $0x50] sm:$0xff] %v7328
    %7361 = vst [vmem:[#allocation6 + $0x58] sm:$0xff] %v7329
    %7362 = vst [vmem:[#allocation6 + $0x60] sm:$0xff] %v7330
    %7363 = vst [vmem:[#allocation6 + $0x68] sm:$0xff] %v7331
    %7364 = vst [vmem:[#allocation6 + $0x70] sm:$0xff] %v7332
    %7365 = vst [vmem:[#allocation6 + $0x78] sm:$0xff] %v7333
    %7366 = vst [vmem:[#allocation6 + $0x80] sm:$0xff] %v7334
    %7367 = vst [vmem:[#allocation6 + $0x88] sm:$0xff] %v7335
    %7368 = vst [vmem:[#allocation6 + $0x90] sm:$0xff] %v7336
    %7369 = vst [vmem:[#allocation6 + $0x98] sm:$0xff] %v7337
    %7370 = vst [vmem:[#allocation6 + $0xa0] sm:$0xff] %v7338
    %7371 = vst [vmem:[#allocation6 + $0xa8] sm:$0xff] %v7339
    %7372 = vst [vmem:[#allocation6 + $0xb0] sm:$0xff] %v7340
    %7373 = vst [vmem:[#allocation6 + $0xb8] sm:$0xff] %v7341
    %7374 = vst [vmem:[#allocation6 + $0xc0] sm:$0xff] %v7342
    %7375 = vst [vmem:[#allocation6 + $0xc8] sm:$0xff] %v7343
    %7376 = vst [vmem:[#allocation6 + $0xd0] sm:$0xff] %v7344
    %7377 = vst [vmem:[#allocation6 + $0xd8] sm:$0xff] %v7345
    %7378 = vst [vmem:[#allocation6 + $0xe0] sm:$0xff] %v7346
    %7379 = vst [vmem:[#allocation6 + $0xe8] sm:$0xff] %v7347
    %7380 = vst [vmem:[#allocation6 + $0xf0] sm:$0xff] %v7348
    %7381 = vst [vmem:[#allocation6 + $0xf8] sm:$0xff] %v7349
    // Predicated region
    $region30: #{generator_forward.1} parent=1 // pred_check
      _
    $region31: #{generator_forward.1} parent=1 // pred_check_branch
      %7383 = sbr.rel (0) target = $region33
    $region32: #{generator_forward.1} parent=1 // pred_region
      %s7385 = ssub.s32 4096, 4096
      %7386 = vsyncadd [#allocation7], %s7385
      %s7387 = sshll.u32 [#allocation6], 4
      %s7388 = int_to_ptr.vmem [resolvable:$true] %s7387
      %7393 = dma.vmem_to_hbm [thread:$0]  %s7388, 4096, %s7, [#allocation7], 256, 256, 16
    $region33: #{generator_forward.1} parent=1 // pred_fallthru
      _
    // Predicated region
    $region34: #{generator_forward.1} parent=1 // pred_check
      _
    $region35: #{generator_forward.1} parent=1 // pred_check_branch
      %7395 = sbr.rel (0) target = $region37
    $region36: #{generator_forward.1} parent=1 // pred_region
      %7396 = dma.done [#allocation7], 4096
    $region37: #{generator_forward.1} parent=1 // pred_fallthru
      _
    %7397 = vsyncpa [#allocation7], 1
  %7398 = vsyncmov [#allocation5]
  %s7399 = vpop.sfrf %7398
  %p7400 = scmp.eq.s32.totalorder %s7399, 0
  %p7401 = pneg %p7400
  %7403 = shalt.err (%p7401)
  %s7404 = scalar_lea.sflag [#allocation5], 1
  %7405 = vsyncmov %s7404
  %s7406 = vpop.sfrf %7405
  %p7407 = scmp.eq.s32.totalorder %s7406, 0
  %p7408 = pneg %p7407
  %7410 = shalt.err (%p7408)
  %s7411 = scalar_lea.sflag [#allocation5], 2
  %7412 = vsyncmov %s7411
  %s7413 = vpop.sfrf %7412
  %p7414 = scmp.eq.s32.totalorder %s7413, 0
  %p7415 = pneg %p7414
  %7417 = shalt.err (%p7415)

</llo_original>
